<compile_context>
chip_gen: v7x
topology: tpu7x:2x2x1
jax: 0.10.0
libtpu: 0.0.40
codegen_flags: <defaults>
</compile_context>

<pallas_src>
import functools
import math

import jax
import jax.numpy as jnp
from jax import lax
from jax.experimental import pallas as pl
from jax.experimental.pallas import tpu as pltpu


# --------------------------- weight preprocessing ---------------------------

def _conv_toeplitz(w_hwio, n_pos):
    """Block-Toeplitz matrices for valid (stride-1, no-pad) conv-as-matmul.

    Input element (p, ci) lives at lane p*Cin + ci of a (rows, n_pos*Cin)
    activation slab.  Returns T of shape (KH, n_pos*Cin, Wo*Cout) with
      T[i, (wo+j)*Cin + ci, wo*Cout + co] = w[i, j, ci, co]
    so that  out[ho, wo*Cout+co] = sum_i (x[ho+i, :] @ T[i])[wo*Cout+co].
    """
    KH, KW, Cin, Cout = w_hwio.shape
    Wo = n_pos - KW + 1
    mats = []
    for i in range(KH):
        parts = []
        for j in range(KW):
            shift_eye = jnp.eye(n_pos, Wo, k=-j, dtype=jnp.float32)  # [p, wo]=1 iff p==wo+j
            parts.append(jnp.einsum("pw,cd->pcwd", shift_eye,
                                    w_hwio[i, j].astype(jnp.float32)))
        mats.append(sum(parts).reshape(n_pos * Cin, Wo * Cout))
    return jnp.stack(mats)


def _split_pool_cols(t, cout):
    """Split Toeplitz output columns into even/odd conv positions (W-pool halves)."""
    kh, rows, wc = t.shape
    w = wc // cout
    wp = w // 2
    t4 = t.reshape(kh, rows, w, cout)
    te = t4[:, :, 0:2 * wp:2, :].reshape(kh, rows, wp * cout)
    to = t4[:, :, 1:2 * wp:2, :].reshape(kh, rows, wp * cout)
    return te, to


def prepare_actor_params(params, nb_states):
    """One-time repack of Actor parameters into the fused-kernel layout."""
    C, H, W = nb_states
    kh1, kw1 = params["conv1_w"].shape[0], params["conv1_w"].shape[1]
    kh2, kw2 = params["conv2_w"].shape[0], params["conv2_w"].shape[1]
    kh3, kw3 = params["conv3_w"].shape[0], params["conv3_w"].shape[1]
    cout = params["conv1_w"].shape[-1]                      # 32 for all convs

    H1, W1 = H - kh1 + 1, W - kw1 + 1
    H1p, W1p = H1 // 2, W1 // 2
    H2, W2 = H1p - kh2 + 1, W1p - kw2 + 1
    H2p, W2p = H2 // 2, W2 // 2
    H3, W3 = H2p - kh3 + 1, W2p - kw3 + 1
    assert min(H3, W3) >= 1, "input spatial size too small for the CNN stack"

    t1e, t1o = _split_pool_cols(_conv_toeplitz(params["conv1_w"], W), cout)
    t2e, t2o = _split_pool_cols(_conv_toeplitz(params["conv2_w"], W1p), cout)
    t3 = _conv_toeplitz(params["conv3_w"], W2p)

    b1r = jnp.tile(params["conv1_b"], W1p).reshape(1, W1p * cout).astype(jnp.float32)
    b2r = jnp.tile(params["conv2_b"], W2p).reshape(1, W2p * cout).astype(jnp.float32)
    b3r = jnp.tile(params["conv3_b"], W3).reshape(1, W3 * cout).astype(jnp.float32)

    # fc1: reorder PyTorch's CHW flatten order (c*H3*W3 + h*W3 + w) into the
    # kernel's (h, w*Cout + c) activation layout -> weight (H3, W3*Cout, 512).
    fc1_w = params["fc1_w"]
    assert fc1_w.shape[0] == cout * H3 * W3
    idx = (jnp.arange(cout)[None, None, :] * (H3 * W3)
           + jnp.arange(H3)[:, None, None] * W3
           + jnp.arange(W3)[None, :, None]).reshape(H3, W3 * cout)
    wfc1 = fc1_w[idx]
    bfc1 = params["fc1_b"].reshape(1, -1).astype(jnp.float32)

    # fc2: zero-pad the output dim to a lane-dense multiple of 128.
    nb_actions = params["fc2_w"].shape[1]
    n_pad = max(128, ((nb_actions + 127) // 128) * 128)
    wfc2 = jnp.pad(params["fc2_w"], ((0, 0), (0, n_pad - nb_actions)))
    bfc2 = jnp.pad(params["fc2_b"], (0, n_pad - nb_actions)).reshape(1, n_pad)
    bfc2 = bfc2.astype(jnp.float32)

    bf16 = jnp.bfloat16
    return {
        "t1e": t1e.astype(bf16), "t1o": t1o.astype(bf16), "b1r": b1r,
        "t2e": t2e.astype(bf16), "t2o": t2o.astype(bf16), "b2r": b2r,
        "t3": t3.astype(bf16), "b3r": b3r,
        "wfc1": wfc1.astype(bf16), "bfc1": bfc1,
        "wfc2": wfc2.astype(bf16), "bfc2": bfc2,
    }


# ------------------------------ fused kernel --------------------------------

def _actor_fused_kernel(x_ref, t1e_ref, t1o_ref, b1_ref,
                        t2e_ref, t2o_ref, b2_ref,
                        t3_ref, b3_ref,
                        wfc1_ref, bfc1_ref, wfc2_ref, bfc2_ref,
                        o_ref):
    f32 = jnp.float32
    bf16 = jnp.bfloat16

    # Static shape bookkeeping (Python ints at trace time).
    H = x_ref.shape[1]
    kh1 = t1e_ref.shape[0]
    h1 = H - kh1 + 1
    h1p = h1 // 2
    kh2 = t2e_ref.shape[0]
    h2 = h1p - kh2 + 1
    h2p = h2 // 2
    kh3 = t3_ref.shape[0]
    h3 = h2p - kh3 + 1
    assert h3 == wfc1_ref.shape[0]

    def conv_colpool(act_f32, te_ref, to_ref, h_out):
        # Valid conv as a sum of row-shifted matmuls against block-Toeplitz
        # weights; even/odd output-column split realises the W half of the
        # 2x2 max-pool.  bf16 operands, f32 accumulation.
        acc_e = None
        acc_o = None
        for i in range(te_ref.shape[0]):
            xi = act_f32[i:i + h_out, :].astype(bf16)
            pe = jnp.dot(xi, te_ref[i], preferred_element_type=f32)
            po = jnp.dot(xi, to_ref[i], preferred_element_type=f32)
            acc_e = pe if acc_e is None else acc_e + pe
            acc_o = po if acc_o is None else acc_o + po
        return jnp.maximum(acc_e, acc_o)

    def row_pool(col_f32, h_out, h_in):
        # H half of the 2x2 max-pool via exact 0/1 row-selection matmuls
        # (keeps everything on the MXU; no strided loads needed).
        r = lax.broadcasted_iota(jnp.int32, (h_out, h_in), 0)
        c = lax.broadcasted_iota(jnp.int32, (h_out, h_in), 1)
        sel_e = (c == 2 * r).astype(f32)
        sel_o = (c == 2 * r + 1).astype(f32)
        return jnp.maximum(
            jnp.dot(sel_e, col_f32, preferred_element_type=f32),
            jnp.dot(sel_o, col_f32, preferred_element_type=f32))

    x = x_ref[0]                                              # (H, W*Cin) f32

    # conv1 + ReLU + 2x2 max-pool (pool/bias/ReLU reordered -- exact).
    col1 = conv_colpool(x, t1e_ref, t1o_ref, h1)              # (H1, W1p*32)
    p1 = jnp.maximum(row_pool(col1, h1p, h1) + b1_ref[...], 0.0)

    # conv2 + ReLU + 2x2 max-pool.
    col2 = conv_colpool(p1, t2e_ref, t2o_ref, h2)             # (H2, W2p*32)
    p2 = jnp.maximum(row_pool(col2, h2p, h2) + b2_ref[...], 0.0)

    # conv3 + ReLU (no pooling).
    acc3 = None
    for i in range(kh3):
        xi = p2[i:i + h3, :].astype(bf16)
        part = jnp.dot(xi, t3_ref[i], preferred_element_type=f32)
        acc3 = part if acc3 is None else acc3 + part
    feat = jnp.maximum(acc3 + b3_ref[...], 0.0)               # (H3, W3*32)

    # fc1 + ReLU: contract both (row, lane) axes of `feat` against the
    # layout-reordered fc1 weight (one small matmul per conv3 output row).
    z1 = None
    for h in range(h3):
        part = jnp.dot(feat[h:h + 1, :].astype(bf16), wfc1_ref[h],
                       preferred_element_type=f32)
        z1 = part if z1 is None else z1 + part
    z1 = jnp.maximum(z1 + bfc1_ref[...], 0.0)                 # (1, 512)

    # fc2 + tanh on a zero-padded, lane-dense (1, 128) output block.
    z2 = jnp.dot(z1.astype(bf16), wfc2_ref[...], preferred_element_type=f32)
    o_ref[0] = jnp.tanh(z2 + bfc2_ref[...]).astype(o_ref.dtype)


# ------------------------------ public forward ------------------------------

def actor_forward(prep, x_nchw, *, nb_actions):
    """Actor.forward.  x_nchw: (B, C, H, W) float32 (PyTorch layout)."""
    B, C, H, W = x_nchw.shape
    # NCHW -> (B, H, W*C): one boundary transpose, then a free reshape.
    x2d = jnp.transpose(x_nchw, (0, 2, 3, 1)).reshape(B, H, W * C)
    x2d = x2d.astype(jnp.float32)

    n_pad = prep["wfc2"].shape[1]

    def full_spec(arr):
        nd = arr.ndim
        return pl.BlockSpec(arr.shape, lambda b, _nd=nd: (0,) * _nd)

    operands = (x2d, prep["t1e"], prep["t1o"], prep["b1r"],
                prep["t2e"], prep["t2o"], prep["b2r"],
                prep["t3"], prep["b3r"],
                prep["wfc1"], prep["bfc1"], prep["wfc2"], prep["bfc2"])

    in_specs = [pl.BlockSpec((1, H, W * C), lambda b: (b, 0, 0))]
    in_specs += [full_spec(a) for a in operands[1:]]

    out = pl.pallas_call(
        _actor_fused_kernel,
        out_shape=jax.ShapeDtypeStruct((B, 1, n_pad), jnp.float32),
        grid=(B,),
        in_specs=in_specs,
        out_specs=pl.BlockSpec((1, 1, n_pad), lambda b: (b, 0, 0)),
        compiler_params=pltpu.CompilerParams(
            dimension_semantics=("parallel",),
            vmem_limit_bytes=32 * 1024 * 1024,
        ),
    )(*operands)

    return out.reshape(B, n_pad)[:, :nb_actions]


# --------------------------- parameters (synthetic) --------------------------

def _uniform(key, shape, scale):
    return jax.random.uniform(key, shape, jnp.float32, -scale, scale)


def init_actor_params(key, nb_states, nb_actions, init_w=3e-5):
    """Synthetic init mirroring fanin_init / uniform(-init_w, init_w)."""
    C, H, W = nb_states
    ks = jax.random.split(key, 10)
    conv1_w = _uniform(ks[0], (5, 5, C, 32), 1.0 / math.sqrt(32.0))
    conv1_b = _uniform(ks[1], (32,), 1.0 / math.sqrt(C * 25.0))
    conv2_w = _uniform(ks[2], (5, 5, 32, 32), 1.0 / math.sqrt(32.0))
    conv2_b = _uniform(ks[3], (32,), 1.0 / math.sqrt(32 * 25.0))
    conv3_w = _uniform(ks[4], (4, 4, 32, 32), 1.0 / math.sqrt(32.0))
    conv3_b = _uniform(ks[5], (32,), 1.0 / math.sqrt(32 * 16.0))
    h = (((H - 4) // 2) - 4) // 2 - 3
    w = (((W - 4) // 2) - 4) // 2 - 3
    cnn_out_dims = 32 * h * w
    fc1_w = _uniform(ks[6], (cnn_out_dims, 512), 1.0 / math.sqrt(512.0))
    fc1_b = _uniform(ks[7], (512,), 1.0 / math.sqrt(float(cnn_out_dims)))
    fc2_w = _uniform(ks[8], (512, nb_actions), init_w)
    fc2_b = _uniform(ks[9], (nb_actions,), init_w)
    return {
        "conv1_w": conv1_w, "conv1_b": conv1_b,
        "conv2_w": conv2_w, "conv2_b": conv2_b,
        "conv3_w": conv3_w, "conv3_b": conv3_b,
        "fc1_w": fc1_w, "fc1_b": fc1_b,
        "fc2_w": fc2_w, "fc2_b": fc2_b,
    }


# ----------------------------------- main ------------------------------------

if __name__ == "__main__":
    nb_states = (4, 32, 32)    # (C, H, W) -> cnn_out_dims = 32 * 2 * 2 = 128
    nb_actions = 6
    batch = 2

    key = jax.random.PRNGKey(0)
    pkey, xkey = jax.random.split(key)
    params = init_actor_params(pkey, nb_states, nb_actions, init_w=3e-5)
    prep = prepare_actor_params(params, nb_states)

    x = jax.random.uniform(xkey, (batch,) + nb_states, jnp.float32)  # NCHW

    fwd = jax.jit(functools.partial(actor_forward, nb_actions=nb_actions))
    out = jax.block_until_ready(fwd(prep, x))

    assert out.shape == (batch, nb_actions), out.shape
    assert bool(jnp.all(jnp.isfinite(out)))
    assert bool(jnp.all(jnp.abs(out) <= 1.0))   # tanh range
    print("KERNEL_OK")
</pallas_src>

<mosaic_0001>
module attributes {stable_mosaic.version = 11 : i64} {
  func.func @_actor_fused_kernel(%arg0: i32, %arg1: memref<1x32x128xf32, #tpu.memory_space<vmem>>, %arg2: memref<5x128x448xbf16, #tpu.memory_space<vmem>>, %arg3: memref<5x128x448xbf16, #tpu.memory_space<vmem>>, %arg4: memref<1x448xf32, #tpu.memory_space<vmem>>, %arg5: memref<5x448x160xbf16, #tpu.memory_space<vmem>>, %arg6: memref<5x448x160xbf16, #tpu.memory_space<vmem>>, %arg7: memref<1x160xf32, #tpu.memory_space<vmem>>, %arg8: memref<4x160x64xbf16, #tpu.memory_space<vmem>>, %arg9: memref<1x64xf32, #tpu.memory_space<vmem>>, %arg10: memref<2x64x512xbf16, #tpu.memory_space<vmem>>, %arg11: memref<1x512xf32, #tpu.memory_space<vmem>>, %arg12: memref<512x128xbf16, #tpu.memory_space<vmem>>, %arg13: memref<1x128xf32, #tpu.memory_space<vmem>>, %arg14: memref<1x1x128xf32, #tpu.memory_space<vmem>>) attributes {dimension_semantics = [#tpu.dimension_semantics<parallel>], iteration_bounds = array<i64: 2>, scalar_prefetch = 0 : i64, scratch_operands = 0 : i64, tpu.core_type = #tpu.core_type<tc>, window_params = [{transform_indices = @transform_0, window_bounds = array<i64: 1, 32, 128>}, {pipeline_mode = #tpu.pipeline_mode<synchronous>, transform_indices = @transform_1, window_bounds = array<i64: 5, 128, 448>}, {pipeline_mode = #tpu.pipeline_mode<synchronous>, transform_indices = @transform_2, window_bounds = array<i64: 5, 128, 448>}, {pipeline_mode = #tpu.pipeline_mode<synchronous>, transform_indices = @transform_3, window_bounds = array<i64: 1, 448>}, {pipeline_mode = #tpu.pipeline_mode<synchronous>, transform_indices = @transform_4, window_bounds = array<i64: 5, 448, 160>}, {pipeline_mode = #tpu.pipeline_mode<synchronous>, transform_indices = @transform_5, window_bounds = array<i64: 5, 448, 160>}, {pipeline_mode = #tpu.pipeline_mode<synchronous>, transform_indices = @transform_6, window_bounds = array<i64: 1, 160>}, {pipeline_mode = #tpu.pipeline_mode<synchronous>, transform_indices = @transform_7, window_bounds = array<i64: 4, 160, 64>}, {pipeline_mode = #tpu.pipeline_mode<synchronous>, transform_indices = @transform_8, window_bounds = array<i64: 1, 64>}, {pipeline_mode = #tpu.pipeline_mode<synchronous>, transform_indices = @transform_9, window_bounds = array<i64: 2, 64, 512>}, {pipeline_mode = #tpu.pipeline_mode<synchronous>, transform_indices = @transform_10, window_bounds = array<i64: 1, 512>}, {pipeline_mode = #tpu.pipeline_mode<synchronous>, transform_indices = @transform_11, window_bounds = array<i64: 512, 128>}, {pipeline_mode = #tpu.pipeline_mode<synchronous>, transform_indices = @transform_12, window_bounds = array<i64: 1, 128>}, {transform_indices = @transform_13, window_bounds = array<i64: 1, 1, 128>}]} {
    %c0 = arith.constant 0 : index
    %c0_0 = arith.constant 0 : index
    %c0_1 = arith.constant 0 : index
    %0 = vector.load %arg1[%c0, %c0_0, %c0_1] : memref<1x32x128xf32, #tpu.memory_space<vmem>>, vector<1x32x128xf32>
    %1 = vector.shape_cast %0 : vector<1x32x128xf32> to vector<32x128xf32>
    %2 = vector.extract_strided_slice %1 {offsets = [0, 0], sizes = [28, 128], strides = [1, 1]} : vector<32x128xf32> to vector<28x128xf32>
    %3 = arith.truncf %2 : vector<28x128xf32> to vector<28x128xbf16>
    %c0_2 = arith.constant 0 : index
    %c0_3 = arith.constant 0 : index
    %c0_4 = arith.constant 0 : index
    %4 = vector.load %arg2[%c0_2, %c0_3, %c0_4] : memref<5x128x448xbf16, #tpu.memory_space<vmem>>, vector<1x128x448xbf16>
    %5 = vector.shape_cast %4 : vector<1x128x448xbf16> to vector<128x448xbf16>
    %cst = arith.constant dense<0.000000e+00> : vector<28x448xf32>
    %6 = tpu.matmul %3, %5, %cst {dimension_numbers = #tpu.dot_dimension_numbers<[1], [0], [0], [1], [0, 0, 1, 1], [], []>} : vector<28x128xbf16>, vector<128x448xbf16>, vector<28x448xf32> -> vector<28x448xf32>
    %c0_5 = arith.constant 0 : index
    %c0_6 = arith.constant 0 : index
    %c0_7 = arith.constant 0 : index
    %7 = vector.load %arg3[%c0_5, %c0_6, %c0_7] : memref<5x128x448xbf16, #tpu.memory_space<vmem>>, vector<1x128x448xbf16>
    %8 = vector.shape_cast %7 : vector<1x128x448xbf16> to vector<128x448xbf16>
    %cst_8 = arith.constant dense<0.000000e+00> : vector<28x448xf32>
    %9 = tpu.matmul %3, %8, %cst_8 {dimension_numbers = #tpu.dot_dimension_numbers<[1], [0], [0], [1], [0, 0, 1, 1], [], []>} : vector<28x128xbf16>, vector<128x448xbf16>, vector<28x448xf32> -> vector<28x448xf32>
    %10 = vector.extract_strided_slice %1 {offsets = [1, 0], sizes = [28, 128], strides = [1, 1]} : vector<32x128xf32> to vector<28x128xf32>
    %11 = arith.truncf %10 : vector<28x128xf32> to vector<28x128xbf16>
    %c1 = arith.constant 1 : index
    %c0_9 = arith.constant 0 : index
    %c0_10 = arith.constant 0 : index
    %12 = vector.load %arg2[%c1, %c0_9, %c0_10] : memref<5x128x448xbf16, #tpu.memory_space<vmem>>, vector<1x128x448xbf16>
    %13 = vector.shape_cast %12 : vector<1x128x448xbf16> to vector<128x448xbf16>
    %cst_11 = arith.constant dense<0.000000e+00> : vector<28x448xf32>
    %14 = tpu.matmul %11, %13, %cst_11 {dimension_numbers = #tpu.dot_dimension_numbers<[1], [0], [0], [1], [0, 0, 1, 1], [], []>} : vector<28x128xbf16>, vector<128x448xbf16>, vector<28x448xf32> -> vector<28x448xf32>
    %c1_12 = arith.constant 1 : index
    %c0_13 = arith.constant 0 : index
    %c0_14 = arith.constant 0 : index
    %15 = vector.load %arg3[%c1_12, %c0_13, %c0_14] : memref<5x128x448xbf16, #tpu.memory_space<vmem>>, vector<1x128x448xbf16>
    %16 = vector.shape_cast %15 : vector<1x128x448xbf16> to vector<128x448xbf16>
    %cst_15 = arith.constant dense<0.000000e+00> : vector<28x448xf32>
    %17 = tpu.matmul %11, %16, %cst_15 {dimension_numbers = #tpu.dot_dimension_numbers<[1], [0], [0], [1], [0, 0, 1, 1], [], []>} : vector<28x128xbf16>, vector<128x448xbf16>, vector<28x448xf32> -> vector<28x448xf32>
    %18 = arith.addf %6, %14 : vector<28x448xf32>
    %19 = arith.addf %9, %17 : vector<28x448xf32>
    %20 = vector.extract_strided_slice %1 {offsets = [2, 0], sizes = [28, 128], strides = [1, 1]} : vector<32x128xf32> to vector<28x128xf32>
    %21 = arith.truncf %20 : vector<28x128xf32> to vector<28x128xbf16>
    %c2 = arith.constant 2 : index
    %c0_16 = arith.constant 0 : index
    %c0_17 = arith.constant 0 : index
    %22 = vector.load %arg2[%c2, %c0_16, %c0_17] : memref<5x128x448xbf16, #tpu.memory_space<vmem>>, vector<1x128x448xbf16>
    %23 = vector.shape_cast %22 : vector<1x128x448xbf16> to vector<128x448xbf16>
    %cst_18 = arith.constant dense<0.000000e+00> : vector<28x448xf32>
    %24 = tpu.matmul %21, %23, %cst_18 {dimension_numbers = #tpu.dot_dimension_numbers<[1], [0], [0], [1], [0, 0, 1, 1], [], []>} : vector<28x128xbf16>, vector<128x448xbf16>, vector<28x448xf32> -> vector<28x448xf32>
    %c2_19 = arith.constant 2 : index
    %c0_20 = arith.constant 0 : index
    %c0_21 = arith.constant 0 : index
    %25 = vector.load %arg3[%c2_19, %c0_20, %c0_21] : memref<5x128x448xbf16, #tpu.memory_space<vmem>>, vector<1x128x448xbf16>
    %26 = vector.shape_cast %25 : vector<1x128x448xbf16> to vector<128x448xbf16>
    %cst_22 = arith.constant dense<0.000000e+00> : vector<28x448xf32>
    %27 = tpu.matmul %21, %26, %cst_22 {dimension_numbers = #tpu.dot_dimension_numbers<[1], [0], [0], [1], [0, 0, 1, 1], [], []>} : vector<28x128xbf16>, vector<128x448xbf16>, vector<28x448xf32> -> vector<28x448xf32>
    %28 = arith.addf %18, %24 : vector<28x448xf32>
    %29 = arith.addf %19, %27 : vector<28x448xf32>
    %30 = vector.extract_strided_slice %1 {offsets = [3, 0], sizes = [28, 128], strides = [1, 1]} : vector<32x128xf32> to vector<28x128xf32>
    %31 = arith.truncf %30 : vector<28x128xf32> to vector<28x128xbf16>
    %c3 = arith.constant 3 : index
    %c0_23 = arith.constant 0 : index
    %c0_24 = arith.constant 0 : index
    %32 = vector.load %arg2[%c3, %c0_23, %c0_24] : memref<5x128x448xbf16, #tpu.memory_space<vmem>>, vector<1x128x448xbf16>
    %33 = vector.shape_cast %32 : vector<1x128x448xbf16> to vector<128x448xbf16>
    %cst_25 = arith.constant dense<0.000000e+00> : vector<28x448xf32>
    %34 = tpu.matmul %31, %33, %cst_25 {dimension_numbers = #tpu.dot_dimension_numbers<[1], [0], [0], [1], [0, 0, 1, 1], [], []>} : vector<28x128xbf16>, vector<128x448xbf16>, vector<28x448xf32> -> vector<28x448xf32>
    %c3_26 = arith.constant 3 : index
    %c0_27 = arith.constant 0 : index
    %c0_28 = arith.constant 0 : index
    %35 = vector.load %arg3[%c3_26, %c0_27, %c0_28] : memref<5x128x448xbf16, #tpu.memory_space<vmem>>, vector<1x128x448xbf16>
    %36 = vector.shape_cast %35 : vector<1x128x448xbf16> to vector<128x448xbf16>
    %cst_29 = arith.constant dense<0.000000e+00> : vector<28x448xf32>
    %37 = tpu.matmul %31, %36, %cst_29 {dimension_numbers = #tpu.dot_dimension_numbers<[1], [0], [0], [1], [0, 0, 1, 1], [], []>} : vector<28x128xbf16>, vector<128x448xbf16>, vector<28x448xf32> -> vector<28x448xf32>
    %38 = arith.addf %28, %34 : vector<28x448xf32>
    %39 = arith.addf %29, %37 : vector<28x448xf32>
    %40 = vector.extract_strided_slice %1 {offsets = [4, 0], sizes = [28, 128], strides = [1, 1]} : vector<32x128xf32> to vector<28x128xf32>
    %41 = arith.truncf %40 : vector<28x128xf32> to vector<28x128xbf16>
    %c4 = arith.constant 4 : index
    %c0_30 = arith.constant 0 : index
    %c0_31 = arith.constant 0 : index
    %42 = vector.load %arg2[%c4, %c0_30, %c0_31] : memref<5x128x448xbf16, #tpu.memory_space<vmem>>, vector<1x128x448xbf16>
    %43 = vector.shape_cast %42 : vector<1x128x448xbf16> to vector<128x448xbf16>
    %cst_32 = arith.constant dense<0.000000e+00> : vector<28x448xf32>
    %44 = tpu.matmul %41, %43, %cst_32 {dimension_numbers = #tpu.dot_dimension_numbers<[1], [0], [0], [1], [0, 0, 1, 1], [], []>} : vector<28x128xbf16>, vector<128x448xbf16>, vector<28x448xf32> -> vector<28x448xf32>
    %c4_33 = arith.constant 4 : index
    %c0_34 = arith.constant 0 : index
    %c0_35 = arith.constant 0 : index
    %45 = vector.load %arg3[%c4_33, %c0_34, %c0_35] : memref<5x128x448xbf16, #tpu.memory_space<vmem>>, vector<1x128x448xbf16>
    %46 = vector.shape_cast %45 : vector<1x128x448xbf16> to vector<128x448xbf16>
    %cst_36 = arith.constant dense<0.000000e+00> : vector<28x448xf32>
    %47 = tpu.matmul %41, %46, %cst_36 {dimension_numbers = #tpu.dot_dimension_numbers<[1], [0], [0], [1], [0, 0, 1, 1], [], []>} : vector<28x128xbf16>, vector<128x448xbf16>, vector<28x448xf32> -> vector<28x448xf32>
    %48 = arith.addf %38, %44 : vector<28x448xf32>
    %49 = arith.addf %39, %47 : vector<28x448xf32>
    %50 = arith.maximumf %48, %49 : vector<28x448xf32>
    %51 = tpu.iota {dimensions = array<i32: 0>} : vector<14x28xi32>
    %52 = tpu.iota {dimensions = array<i32: 1>} : vector<14x28xi32>
    %c2_i32 = arith.constant 2 : i32
    %53 = vector.broadcast %c2_i32 : i32 to vector<14x28xi32>
    %54 = arith.muli %53, %51 : vector<14x28xi32>
    %55 = arith.cmpi eq, %52, %54 : vector<14x28xi32>
    %56 = arith.extui %55 : vector<14x28xi1> to vector<14x28xi32>
    %57 = arith.sitofp %56 : vector<14x28xi32> to vector<14x28xf32>
    %c2_i32_37 = arith.constant 2 : i32
    %58 = vector.broadcast %c2_i32_37 : i32 to vector<14x28xi32>
    %59 = arith.muli %58, %51 : vector<14x28xi32>
    %c1_i32 = arith.constant 1 : i32
    %60 = vector.broadcast %c1_i32 : i32 to vector<14x28xi32>
    %61 = arith.addi %59, %60 : vector<14x28xi32>
    %62 = arith.cmpi eq, %52, %61 : vector<14x28xi32>
    %63 = arith.extui %62 : vector<14x28xi1> to vector<14x28xi32>
    %64 = arith.sitofp %63 : vector<14x28xi32> to vector<14x28xf32>
    %cst_38 = arith.constant dense<0.000000e+00> : vector<14x448xf32>
    %65 = tpu.matmul %57, %50, %cst_38 {dimension_numbers = #tpu.dot_dimension_numbers<[1], [0], [0], [1], [0, 0, 1, 1], [], []>} : vector<14x28xf32>, vector<28x448xf32>, vector<14x448xf32> -> vector<14x448xf32>
    %cst_39 = arith.constant dense<0.000000e+00> : vector<14x448xf32>
    %66 = tpu.matmul %64, %50, %cst_39 {dimension_numbers = #tpu.dot_dimension_numbers<[1], [0], [0], [1], [0, 0, 1, 1], [], []>} : vector<14x28xf32>, vector<28x448xf32>, vector<14x448xf32> -> vector<14x448xf32>
    %67 = arith.maximumf %65, %66 : vector<14x448xf32>
    %c0_40 = arith.constant 0 : index
    %c0_41 = arith.constant 0 : index
    %68 = vector.load %arg4[%c0_40, %c0_41] : memref<1x448xf32, #tpu.memory_space<vmem>>, vector<1x448xf32>
    %69 = vector.broadcast %68 : vector<1x448xf32> to vector<14x448xf32>
    %70 = arith.addf %67, %69 : vector<14x448xf32>
    %cst_42 = arith.constant 0.000000e+00 : f32
    %71 = vector.broadcast %cst_42 : f32 to vector<14x448xf32>
    %72 = arith.maximumf %70, %71 : vector<14x448xf32>
    %73 = vector.extract_strided_slice %72 {offsets = [0, 0], sizes = [10, 448], strides = [1, 1]} : vector<14x448xf32> to vector<10x448xf32>
    %74 = arith.truncf %73 : vector<10x448xf32> to vector<10x448xbf16>
    %c0_43 = arith.constant 0 : index
    %c0_44 = arith.constant 0 : index
    %c0_45 = arith.constant 0 : index
    %75 = vector.load %arg5[%c0_43, %c0_44, %c0_45] : memref<5x448x160xbf16, #tpu.memory_space<vmem>>, vector<1x448x160xbf16>
    %76 = vector.shape_cast %75 : vector<1x448x160xbf16> to vector<448x160xbf16>
    %cst_46 = arith.constant dense<0.000000e+00> : vector<10x160xf32>
    %77 = tpu.matmul %74, %76, %cst_46 {dimension_numbers = #tpu.dot_dimension_numbers<[1], [0], [0], [1], [0, 0, 1, 1], [], []>} : vector<10x448xbf16>, vector<448x160xbf16>, vector<10x160xf32> -> vector<10x160xf32>
    %c0_47 = arith.constant 0 : index
    %c0_48 = arith.constant 0 : index
    %c0_49 = arith.constant 0 : index
    %78 = vector.load %arg6[%c0_47, %c0_48, %c0_49] : memref<5x448x160xbf16, #tpu.memory_space<vmem>>, vector<1x448x160xbf16>
    %79 = vector.shape_cast %78 : vector<1x448x160xbf16> to vector<448x160xbf16>
    %cst_50 = arith.constant dense<0.000000e+00> : vector<10x160xf32>
    %80 = tpu.matmul %74, %79, %cst_50 {dimension_numbers = #tpu.dot_dimension_numbers<[1], [0], [0], [1], [0, 0, 1, 1], [], []>} : vector<10x448xbf16>, vector<448x160xbf16>, vector<10x160xf32> -> vector<10x160xf32>
    %81 = vector.extract_strided_slice %72 {offsets = [1, 0], sizes = [10, 448], strides = [1, 1]} : vector<14x448xf32> to vector<10x448xf32>
    %82 = arith.truncf %81 : vector<10x448xf32> to vector<10x448xbf16>
    %c1_51 = arith.constant 1 : index
    %c0_52 = arith.constant 0 : index
    %c0_53 = arith.constant 0 : index
    %83 = vector.load %arg5[%c1_51, %c0_52, %c0_53] : memref<5x448x160xbf16, #tpu.memory_space<vmem>>, vector<1x448x160xbf16>
    %84 = vector.shape_cast %83 : vector<1x448x160xbf16> to vector<448x160xbf16>
    %cst_54 = arith.constant dense<0.000000e+00> : vector<10x160xf32>
    %85 = tpu.matmul %82, %84, %cst_54 {dimension_numbers = #tpu.dot_dimension_numbers<[1], [0], [0], [1], [0, 0, 1, 1], [], []>} : vector<10x448xbf16>, vector<448x160xbf16>, vector<10x160xf32> -> vector<10x160xf32>
    %c1_55 = arith.constant 1 : index
    %c0_56 = arith.constant 0 : index
    %c0_57 = arith.constant 0 : index
    %86 = vector.load %arg6[%c1_55, %c0_56, %c0_57] : memref<5x448x160xbf16, #tpu.memory_space<vmem>>, vector<1x448x160xbf16>
    %87 = vector.shape_cast %86 : vector<1x448x160xbf16> to vector<448x160xbf16>
    %cst_58 = arith.constant dense<0.000000e+00> : vector<10x160xf32>
    %88 = tpu.matmul %82, %87, %cst_58 {dimension_numbers = #tpu.dot_dimension_numbers<[1], [0], [0], [1], [0, 0, 1, 1], [], []>} : vector<10x448xbf16>, vector<448x160xbf16>, vector<10x160xf32> -> vector<10x160xf32>
    %89 = arith.addf %77, %85 : vector<10x160xf32>
    %90 = arith.addf %80, %88 : vector<10x160xf32>
    %91 = vector.extract_strided_slice %72 {offsets = [2, 0], sizes = [10, 448], strides = [1, 1]} : vector<14x448xf32> to vector<10x448xf32>
    %92 = arith.truncf %91 : vector<10x448xf32> to vector<10x448xbf16>
    %c2_59 = arith.constant 2 : index
    %c0_60 = arith.constant 0 : index
    %c0_61 = arith.constant 0 : index
    %93 = vector.load %arg5[%c2_59, %c0_60, %c0_61] : memref<5x448x160xbf16, #tpu.memory_space<vmem>>, vector<1x448x160xbf16>
    %94 = vector.shape_cast %93 : vector<1x448x160xbf16> to vector<448x160xbf16>
    %cst_62 = arith.constant dense<0.000000e+00> : vector<10x160xf32>
    %95 = tpu.matmul %92, %94, %cst_62 {dimension_numbers = #tpu.dot_dimension_numbers<[1], [0], [0], [1], [0, 0, 1, 1], [], []>} : vector<10x448xbf16>, vector<448x160xbf16>, vector<10x160xf32> -> vector<10x160xf32>
    %c2_63 = arith.constant 2 : index
    %c0_64 = arith.constant 0 : index
    %c0_65 = arith.constant 0 : index
    %96 = vector.load %arg6[%c2_63, %c0_64, %c0_65] : memref<5x448x160xbf16, #tpu.memory_space<vmem>>, vector<1x448x160xbf16>
    %97 = vector.shape_cast %96 : vector<1x448x160xbf16> to vector<448x160xbf16>
    %cst_66 = arith.constant dense<0.000000e+00> : vector<10x160xf32>
    %98 = tpu.matmul %92, %97, %cst_66 {dimension_numbers = #tpu.dot_dimension_numbers<[1], [0], [0], [1], [0, 0, 1, 1], [], []>} : vector<10x448xbf16>, vector<448x160xbf16>, vector<10x160xf32> -> vector<10x160xf32>
    %99 = arith.addf %89, %95 : vector<10x160xf32>
    %100 = arith.addf %90, %98 : vector<10x160xf32>
    %101 = vector.extract_strided_slice %72 {offsets = [3, 0], sizes = [10, 448], strides = [1, 1]} : vector<14x448xf32> to vector<10x448xf32>
    %102 = arith.truncf %101 : vector<10x448xf32> to vector<10x448xbf16>
    %c3_67 = arith.constant 3 : index
    %c0_68 = arith.constant 0 : index
    %c0_69 = arith.constant 0 : index
    %103 = vector.load %arg5[%c3_67, %c0_68, %c0_69] : memref<5x448x160xbf16, #tpu.memory_space<vmem>>, vector<1x448x160xbf16>
    %104 = vector.shape_cast %103 : vector<1x448x160xbf16> to vector<448x160xbf16>
    %cst_70 = arith.constant dense<0.000000e+00> : vector<10x160xf32>
    %105 = tpu.matmul %102, %104, %cst_70 {dimension_numbers = #tpu.dot_dimension_numbers<[1], [0], [0], [1], [0, 0, 1, 1], [], []>} : vector<10x448xbf16>, vector<448x160xbf16>, vector<10x160xf32> -> vector<10x160xf32>
    %c3_71 = arith.constant 3 : index
    %c0_72 = arith.constant 0 : index
    %c0_73 = arith.constant 0 : index
    %106 = vector.load %arg6[%c3_71, %c0_72, %c0_73] : memref<5x448x160xbf16, #tpu.memory_space<vmem>>, vector<1x448x160xbf16>
    %107 = vector.shape_cast %106 : vector<1x448x160xbf16> to vector<448x160xbf16>
    %cst_74 = arith.constant dense<0.000000e+00> : vector<10x160xf32>
    %108 = tpu.matmul %102, %107, %cst_74 {dimension_numbers = #tpu.dot_dimension_numbers<[1], [0], [0], [1], [0, 0, 1, 1], [], []>} : vector<10x448xbf16>, vector<448x160xbf16>, vector<10x160xf32> -> vector<10x160xf32>
    %109 = arith.addf %99, %105 : vector<10x160xf32>
    %110 = arith.addf %100, %108 : vector<10x160xf32>
    %111 = vector.extract_strided_slice %72 {offsets = [4, 0], sizes = [10, 448], strides = [1, 1]} : vector<14x448xf32> to vector<10x448xf32>
    %112 = arith.truncf %111 : vector<10x448xf32> to vector<10x448xbf16>
    %c4_75 = arith.constant 4 : index
    %c0_76 = arith.constant 0 : index
    %c0_77 = arith.constant 0 : index
    %113 = vector.load %arg5[%c4_75, %c0_76, %c0_77] : memref<5x448x160xbf16, #tpu.memory_space<vmem>>, vector<1x448x160xbf16>
    %114 = vector.shape_cast %113 : vector<1x448x160xbf16> to vector<448x160xbf16>
    %cst_78 = arith.constant dense<0.000000e+00> : vector<10x160xf32>
    %115 = tpu.matmul %112, %114, %cst_78 {dimension_numbers = #tpu.dot_dimension_numbers<[1], [0], [0], [1], [0, 0, 1, 1], [], []>} : vector<10x448xbf16>, vector<448x160xbf16>, vector<10x160xf32> -> vector<10x160xf32>
    %c4_79 = arith.constant 4 : index
    %c0_80 = arith.constant 0 : index
    %c0_81 = arith.constant 0 : index
    %116 = vector.load %arg6[%c4_79, %c0_80, %c0_81] : memref<5x448x160xbf16, #tpu.memory_space<vmem>>, vector<1x448x160xbf16>
    %117 = vector.shape_cast %116 : vector<1x448x160xbf16> to vector<448x160xbf16>
    %cst_82 = arith.constant dense<0.000000e+00> : vector<10x160xf32>
    %118 = tpu.matmul %112, %117, %cst_82 {dimension_numbers = #tpu.dot_dimension_numbers<[1], [0], [0], [1], [0, 0, 1, 1], [], []>} : vector<10x448xbf16>, vector<448x160xbf16>, vector<10x160xf32> -> vector<10x160xf32>
    %119 = arith.addf %109, %115 : vector<10x160xf32>
    %120 = arith.addf %110, %118 : vector<10x160xf32>
    %121 = arith.maximumf %119, %120 : vector<10x160xf32>
    %122 = tpu.iota {dimensions = array<i32: 0>} : vector<5x10xi32>
    %123 = tpu.iota {dimensions = array<i32: 1>} : vector<5x10xi32>
    %c2_i32_83 = arith.constant 2 : i32
    %124 = vector.broadcast %c2_i32_83 : i32 to vector<5x10xi32>
    %125 = arith.muli %124, %122 : vector<5x10xi32>
    %126 = arith.cmpi eq, %123, %125 : vector<5x10xi32>
    %127 = arith.extui %126 : vector<5x10xi1> to vector<5x10xi32>
    %128 = arith.sitofp %127 : vector<5x10xi32> to vector<5x10xf32>
    %c2_i32_84 = arith.constant 2 : i32
    %129 = vector.broadcast %c2_i32_84 : i32 to vector<5x10xi32>
    %130 = arith.muli %129, %122 : vector<5x10xi32>
    %c1_i32_85 = arith.constant 1 : i32
    %131 = vector.broadcast %c1_i32_85 : i32 to vector<5x10xi32>
    %132 = arith.addi %130, %131 : vector<5x10xi32>
    %133 = arith.cmpi eq, %123, %132 : vector<5x10xi32>
    %134 = arith.extui %133 : vector<5x10xi1> to vector<5x10xi32>
    %135 = arith.sitofp %134 : vector<5x10xi32> to vector<5x10xf32>
    %cst_86 = arith.constant dense<0.000000e+00> : vector<5x160xf32>
    %136 = tpu.matmul %128, %121, %cst_86 {dimension_numbers = #tpu.dot_dimension_numbers<[1], [0], [0], [1], [0, 0, 1, 1], [], []>} : vector<5x10xf32>, vector<10x160xf32>, vector<5x160xf32> -> vector<5x160xf32>
    %cst_87 = arith.constant dense<0.000000e+00> : vector<5x160xf32>
    %137 = tpu.matmul %135, %121, %cst_87 {dimension_numbers = #tpu.dot_dimension_numbers<[1], [0], [0], [1], [0, 0, 1, 1], [], []>} : vector<5x10xf32>, vector<10x160xf32>, vector<5x160xf32> -> vector<5x160xf32>
    %138 = arith.maximumf %136, %137 : vector<5x160xf32>
    %c0_88 = arith.constant 0 : index
    %c0_89 = arith.constant 0 : index
    %139 = vector.load %arg7[%c0_88, %c0_89] : memref<1x160xf32, #tpu.memory_space<vmem>>, vector<1x160xf32>
    %140 = vector.broadcast %139 : vector<1x160xf32> to vector<5x160xf32>
    %141 = arith.addf %138, %140 : vector<5x160xf32>
    %cst_90 = arith.constant 0.000000e+00 : f32
    %142 = vector.broadcast %cst_90 : f32 to vector<5x160xf32>
    %143 = arith.maximumf %141, %142 : vector<5x160xf32>
    %144 = vector.extract_strided_slice %143 {offsets = [0, 0], sizes = [2, 160], strides = [1, 1]} : vector<5x160xf32> to vector<2x160xf32>
    %145 = arith.truncf %144 : vector<2x160xf32> to vector<2x160xbf16>
    %c0_91 = arith.constant 0 : index
    %c0_92 = arith.constant 0 : index
    %c0_93 = arith.constant 0 : index
    %146 = vector.load %arg8[%c0_91, %c0_92, %c0_93] : memref<4x160x64xbf16, #tpu.memory_space<vmem>>, vector<1x160x64xbf16>
    %147 = vector.shape_cast %146 : vector<1x160x64xbf16> to vector<160x64xbf16>
    %cst_94 = arith.constant dense<0.000000e+00> : vector<2x64xf32>
    %148 = tpu.matmul %145, %147, %cst_94 {dimension_numbers = #tpu.dot_dimension_numbers<[1], [0], [0], [1], [0, 0, 1, 1], [], []>} : vector<2x160xbf16>, vector<160x64xbf16>, vector<2x64xf32> -> vector<2x64xf32>
    %149 = vector.extract_strided_slice %143 {offsets = [1, 0], sizes = [2, 160], strides = [1, 1]} : vector<5x160xf32> to vector<2x160xf32>
    %150 = arith.truncf %149 : vector<2x160xf32> to vector<2x160xbf16>
    %c1_95 = arith.constant 1 : index
    %c0_96 = arith.constant 0 : index
    %c0_97 = arith.constant 0 : index
    %151 = vector.load %arg8[%c1_95, %c0_96, %c0_97] : memref<4x160x64xbf16, #tpu.memory_space<vmem>>, vector<1x160x64xbf16>
    %152 = vector.shape_cast %151 : vector<1x160x64xbf16> to vector<160x64xbf16>
    %cst_98 = arith.constant dense<0.000000e+00> : vector<2x64xf32>
    %153 = tpu.matmul %150, %152, %cst_98 {dimension_numbers = #tpu.dot_dimension_numbers<[1], [0], [0], [1], [0, 0, 1, 1], [], []>} : vector<2x160xbf16>, vector<160x64xbf16>, vector<2x64xf32> -> vector<2x64xf32>
    %154 = arith.addf %148, %153 : vector<2x64xf32>
    %155 = vector.extract_strided_slice %143 {offsets = [2, 0], sizes = [2, 160], strides = [1, 1]} : vector<5x160xf32> to vector<2x160xf32>
    %156 = arith.truncf %155 : vector<2x160xf32> to vector<2x160xbf16>
    %c2_99 = arith.constant 2 : index
    %c0_100 = arith.constant 0 : index
    %c0_101 = arith.constant 0 : index
    %157 = vector.load %arg8[%c2_99, %c0_100, %c0_101] : memref<4x160x64xbf16, #tpu.memory_space<vmem>>, vector<1x160x64xbf16>
    %158 = vector.shape_cast %157 : vector<1x160x64xbf16> to vector<160x64xbf16>
    %cst_102 = arith.constant dense<0.000000e+00> : vector<2x64xf32>
    %159 = tpu.matmul %156, %158, %cst_102 {dimension_numbers = #tpu.dot_dimension_numbers<[1], [0], [0], [1], [0, 0, 1, 1], [], []>} : vector<2x160xbf16>, vector<160x64xbf16>, vector<2x64xf32> -> vector<2x64xf32>
    %160 = arith.addf %154, %159 : vector<2x64xf32>
    %161 = vector.extract_strided_slice %143 {offsets = [3, 0], sizes = [2, 160], strides = [1, 1]} : vector<5x160xf32> to vector<2x160xf32>
    %162 = arith.truncf %161 : vector<2x160xf32> to vector<2x160xbf16>
    %c3_103 = arith.constant 3 : index
    %c0_104 = arith.constant 0 : index
    %c0_105 = arith.constant 0 : index
    %163 = vector.load %arg8[%c3_103, %c0_104, %c0_105] : memref<4x160x64xbf16, #tpu.memory_space<vmem>>, vector<1x160x64xbf16>
    %164 = vector.shape_cast %163 : vector<1x160x64xbf16> to vector<160x64xbf16>
    %cst_106 = arith.constant dense<0.000000e+00> : vector<2x64xf32>
    %165 = tpu.matmul %162, %164, %cst_106 {dimension_numbers = #tpu.dot_dimension_numbers<[1], [0], [0], [1], [0, 0, 1, 1], [], []>} : vector<2x160xbf16>, vector<160x64xbf16>, vector<2x64xf32> -> vector<2x64xf32>
    %166 = arith.addf %160, %165 : vector<2x64xf32>
    %c0_107 = arith.constant 0 : index
    %c0_108 = arith.constant 0 : index
    %167 = vector.load %arg9[%c0_107, %c0_108] : memref<1x64xf32, #tpu.memory_space<vmem>>, vector<1x64xf32>
    %168 = vector.broadcast %167 : vector<1x64xf32> to vector<2x64xf32>
    %169 = arith.addf %166, %168 : vector<2x64xf32>
    %cst_109 = arith.constant 0.000000e+00 : f32
    %170 = vector.broadcast %cst_109 : f32 to vector<2x64xf32>
    %171 = arith.maximumf %169, %170 : vector<2x64xf32>
    %172 = vector.extract_strided_slice %171 {offsets = [0, 0], sizes = [1, 64], strides = [1, 1]} : vector<2x64xf32> to vector<1x64xf32>
    %173 = arith.truncf %172 : vector<1x64xf32> to vector<1x64xbf16>
    %c0_110 = arith.constant 0 : index
    %c0_111 = arith.constant 0 : index
    %c0_112 = arith.constant 0 : index
    %174 = vector.load %arg10[%c0_110, %c0_111, %c0_112] : memref<2x64x512xbf16, #tpu.memory_space<vmem>>, vector<1x64x512xbf16>
    %175 = vector.shape_cast %174 : vector<1x64x512xbf16> to vector<64x512xbf16>
    %cst_113 = arith.constant dense<0.000000e+00> : vector<1x512xf32>
    %176 = tpu.matmul %173, %175, %cst_113 {dimension_numbers = #tpu.dot_dimension_numbers<[1], [0], [0], [1], [0, 0, 1, 1], [], []>} : vector<1x64xbf16>, vector<64x512xbf16>, vector<1x512xf32> -> vector<1x512xf32>
    %177 = vector.extract_strided_slice %171 {offsets = [1, 0], sizes = [1, 64], strides = [1, 1]} : vector<2x64xf32> to vector<1x64xf32>
    %178 = arith.truncf %177 : vector<1x64xf32> to vector<1x64xbf16>
    %c1_114 = arith.constant 1 : index
    %c0_115 = arith.constant 0 : index
    %c0_116 = arith.constant 0 : index
    %179 = vector.load %arg10[%c1_114, %c0_115, %c0_116] : memref<2x64x512xbf16, #tpu.memory_space<vmem>>, vector<1x64x512xbf16>
    %180 = vector.shape_cast %179 : vector<1x64x512xbf16> to vector<64x512xbf16>
    %cst_117 = arith.constant dense<0.000000e+00> : vector<1x512xf32>
    %181 = tpu.matmul %178, %180, %cst_117 {dimension_numbers = #tpu.dot_dimension_numbers<[1], [0], [0], [1], [0, 0, 1, 1], [], []>} : vector<1x64xbf16>, vector<64x512xbf16>, vector<1x512xf32> -> vector<1x512xf32>
    %182 = arith.addf %176, %181 : vector<1x512xf32>
    %c0_118 = arith.constant 0 : index
    %c0_119 = arith.constant 0 : index
    %183 = vector.load %arg11[%c0_118, %c0_119] : memref<1x512xf32, #tpu.memory_space<vmem>>, vector<1x512xf32>
    %184 = arith.addf %182, %183 : vector<1x512xf32>
    %cst_120 = arith.constant 0.000000e+00 : f32
    %185 = vector.broadcast %cst_120 : f32 to vector<1x512xf32>
    %186 = arith.maximumf %184, %185 : vector<1x512xf32>
    %187 = arith.truncf %186 : vector<1x512xf32> to vector<1x512xbf16>
    %c0_121 = arith.constant 0 : index
    %c0_122 = arith.constant 0 : index
    %188 = vector.load %arg12[%c0_121, %c0_122] : memref<512x128xbf16, #tpu.memory_space<vmem>>, vector<512x128xbf16>
    %cst_123 = arith.constant dense<0.000000e+00> : vector<1x128xf32>
    %189 = tpu.matmul %187, %188, %cst_123 {dimension_numbers = #tpu.dot_dimension_numbers<[1], [0], [0], [1], [0, 0, 1, 1], [], []>} : vector<1x512xbf16>, vector<512x128xbf16>, vector<1x128xf32> -> vector<1x128xf32>
    %c0_124 = arith.constant 0 : index
    %c0_125 = arith.constant 0 : index
    %190 = vector.load %arg13[%c0_124, %c0_125] : memref<1x128xf32, #tpu.memory_space<vmem>>, vector<1x128xf32>
    %191 = arith.addf %189, %190 : vector<1x128xf32>
    %192 = math.tanh %191 : vector<1x128xf32>
    %c0_126 = arith.constant 0 : index
    %c0_127 = arith.constant 0 : index
    %c0_128 = arith.constant 0 : index
    %193 = vector.load %arg14[%c0_126, %c0_127, %c0_128] : memref<1x1x128xf32, #tpu.memory_space<vmem>>, vector<1x1x128xf32>
    %194 = vector.shape_cast %193 : vector<1x1x128xf32> to vector<1x128xf32>
    %195 = vector.shape_cast %192 : vector<1x128xf32> to vector<1x1x128xf32>
    tpu.vector_store %arg14[%c0_126, %c0_127, %c0_128], %195 {strides = array<i32>} : memref<1x1x128xf32, #tpu.memory_space<vmem>>, vector<1x1x128xf32>,
    return
  }
  func.func @transform_0(%arg0: i32) -> (i32, i32, i32) {
    %c0_i32 = arith.constant 0 : i32
    %c0_i32_0 = arith.constant 0 : i32
    %c0_i32_1 = arith.constant 0 : i32
    return %arg0, %c0_i32, %c0_i32_0 : i32, i32, i32
  }
  func.func @transform_1(%arg0: i32) -> (i32, i32, i32) {
    %c0_i32 = arith.constant 0 : i32
    %c0_i32_0 = arith.constant 0 : i32
    %c0_i32_1 = arith.constant 0 : i32
    %c0_i32_2 = arith.constant 0 : i32
    return %c0_i32, %c0_i32_0, %c0_i32_1 : i32, i32, i32
  }
  func.func @transform_2(%arg0: i32) -> (i32, i32, i32) {
    %c0_i32 = arith.constant 0 : i32
    %c0_i32_0 = arith.constant 0 : i32
    %c0_i32_1 = arith.constant 0 : i32
    %c0_i32_2 = arith.constant 0 : i32
    return %c0_i32, %c0_i32_0, %c0_i32_1 : i32, i32, i32
  }
  func.func @transform_3(%arg0: i32) -> (i32, i32) {
    %c0_i32 = arith.constant 0 : i32
    %c0_i32_0 = arith.constant 0 : i32
    %c0_i32_1 = arith.constant 0 : i32
    return %c0_i32, %c0_i32_0 : i32, i32
  }
  func.func @transform_4(%arg0: i32) -> (i32, i32, i32) {
    %c0_i32 = arith.constant 0 : i32
    %c0_i32_0 = arith.constant 0 : i32
    %c0_i32_1 = arith.constant 0 : i32
    %c0_i32_2 = arith.constant 0 : i32
    return %c0_i32, %c0_i32_0, %c0_i32_1 : i32, i32, i32
  }
  func.func @transform_5(%arg0: i32) -> (i32, i32, i32) {
    %c0_i32 = arith.constant 0 : i32
    %c0_i32_0 = arith.constant 0 : i32
    %c0_i32_1 = arith.constant 0 : i32
    %c0_i32_2 = arith.constant 0 : i32
    return %c0_i32, %c0_i32_0, %c0_i32_1 : i32, i32, i32
  }
  func.func @transform_6(%arg0: i32) -> (i32, i32) {
    %c0_i32 = arith.constant 0 : i32
    %c0_i32_0 = arith.constant 0 : i32
    %c0_i32_1 = arith.constant 0 : i32
    return %c0_i32, %c0_i32_0 : i32, i32
  }
  func.func @transform_7(%arg0: i32) -> (i32, i32, i32) {
    %c0_i32 = arith.constant 0 : i32
    %c0_i32_0 = arith.constant 0 : i32
    %c0_i32_1 = arith.constant 0 : i32
    %c0_i32_2 = arith.constant 0 : i32
    return %c0_i32, %c0_i32_0, %c0_i32_1 : i32, i32, i32
  }
  func.func @transform_8(%arg0: i32) -> (i32, i32) {
    %c0_i32 = arith.constant 0 : i32
    %c0_i32_0 = arith.constant 0 : i32
    %c0_i32_1 = arith.constant 0 : i32
    return %c0_i32, %c0_i32_0 : i32, i32
  }
  func.func @transform_9(%arg0: i32) -> (i32, i32, i32) {
    %c0_i32 = arith.constant 0 : i32
    %c0_i32_0 = arith.constant 0 : i32
    %c0_i32_1 = arith.constant 0 : i32
    %c0_i32_2 = arith.constant 0 : i32
    return %c0_i32, %c0_i32_0, %c0_i32_1 : i32, i32, i32
  }
  func.func @transform_10(%arg0: i32) -> (i32, i32) {
    %c0_i32 = arith.constant 0 : i32
    %c0_i32_0 = arith.constant 0 : i32
    %c0_i32_1 = arith.constant 0 : i32
    return %c0_i32, %c0_i32_0 : i32, i32
  }
  func.func @transform_11(%arg0: i32) -> (i32, i32) {
    %c0_i32 = arith.constant 0 : i32
    %c0_i32_0 = arith.constant 0 : i32
    %c0_i32_1 = arith.constant 0 : i32
    return %c0_i32, %c0_i32_0 : i32, i32
  }
  func.func @transform_12(%arg0: i32) -> (i32, i32) {
    %c0_i32 = arith.constant 0 : i32
    %c0_i32_0 = arith.constant 0 : i32
    %c0_i32_1 = arith.constant 0 : i32
    return %c0_i32, %c0_i32_0 : i32, i32
  }
  func.func @transform_13(%arg0: i32) -> (i32, i32, i32) {
    %c0_i32 = arith.constant 0 : i32
    %c0_i32_0 = arith.constant 0 : i32
    %c0_i32_1 = arith.constant 0 : i32
    return %arg0, %c0_i32, %c0_i32_0 : i32, i32, i32
  }
}

</mosaic_0001>

<llo_original>
// kernel: actor_forward.1
$region0: #{actor_forward.1}
  #allocation0 [shape = 'u32[]', space=smem, size = 0x4, offset = 0x4, fixed_abs, tag = 'smem constant byte address 0x4 - core index']
  #allocation1 [shape = 'u32[144,128]{1,0:T(1,128)}', space=vmem, size = 0x12000, scoped, tag = 'internal scratch']
  %s0 = inlined_call_operand.vmem [shape: f32[2,32,128], index: 0, kind: input, shape index: {}]
  %s1 = inlined_call_operand.vmem [shape: bf16[5,128,448], index: 1, kind: input, shape index: {}]
  %s2 = inlined_call_operand.vmem [shape: bf16[5,128,448], index: 2, kind: input, shape index: {}]
  %s3 = inlined_call_operand.vmem [shape: f32[1,448], index: 3, kind: input, shape index: {}]
  %s4 = inlined_call_operand.vmem [shape: bf16[5,448,160], index: 4, kind: input, shape index: {}]
  %s5 = inlined_call_operand.vmem [shape: bf16[5,448,160], index: 5, kind: input, shape index: {}]
  %s6 = inlined_call_operand.vmem [shape: f32[1,160], index: 6, kind: input, shape index: {}]
  %s7 = inlined_call_operand.vmem [shape: bf16[4,160,64], index: 7, kind: input, shape index: {}]
  %s8 = inlined_call_operand.vmem [shape: f32[1,64], index: 8, kind: input, shape index: {}]
  %s9 = inlined_call_operand.vmem [shape: bf16[2,64,512], index: 9, kind: input, shape index: {}]
  %s10 = inlined_call_operand.vmem [shape: f32[1,512], index: 10, kind: input, shape index: {}]
  %s11 = inlined_call_operand.vmem [shape: bf16[512,128], index: 11, kind: input, shape index: {}]
  %s12 = inlined_call_operand.vmem [shape: f32[1,128], index: 12, kind: input, shape index: {}]
  %s13 = inlined_call_operand.hbm [shape: f32[2,1,128], index: 13, kind: output, shape index: {}]
  %s14 = sld [smem:[#allocation0]]
  $region85: #{actor_forward.1} parent=0
    _
  %s16 = ssub.s32 1, %s14
  %s17 = scalar_select 0, %s16, %s14
  $region1: #{actor_forward.1} parent=0
    #allocation2 [shape = 'u8[1024]{0}', space=vmem, size = 0x400, scoped, tag = 'output window, operand 0']
    #allocation3 [shape = 's32[2]{0}', space=sflag, size = 0x8, scoped, tag = 'scoped memory for actor_forward.1']
    %18 = vsyncpa [#allocation3], 0
    %s19 = scalar_lea.sflag [#allocation3], 1
    %20 = vsyncpa %s19, 0
    loop: start=0, step=1, limit=4
    $region2: #{actor_forward.1} parent=1 // loop_pre_header
      _
    $region3: #{actor_forward.1} parent=1 // loop_header
      %s22 = sphi 0, %s26
      %p23 = scmp.ge.s32.totalorder %s22, 4
      %s32 = sphi 0, %s34
      %s35 = sphi 0, %s32
      %s36 = sphi 0, %s35
      %s52 = sphi 0, %s36
      %s56 = sphi 0, %s56
      %s58 = sphi 0, %s56
      %s59 = sphi 0, %s58
      %s73 = sphi 0, %s59
      %s77 = sphi 0, %s77
      %s79 = sphi 0, %s77
      %s80 = sphi 0, %s79
      %s94 = sphi 0, %s80
      %s98 = sphi 0, %s98
      %s100 = sphi 0, %s98
      %s101 = sphi 0, %s100
      %s115 = sphi 0, %s101
      %s119 = sphi 0, %s119
      %s121 = sphi 0, %s119
      %s122 = sphi 0, %s121
      %s136 = sphi 0, %s122
      %s140 = sphi 0, %s140
      %s142 = sphi 0, %s140
      %s143 = sphi 0, %s142
      %s157 = sphi 0, %s143
      %s161 = sphi 0, %s161
      %s163 = sphi 0, %s161
      %s164 = sphi 0, %s163
      %s178 = sphi 0, %s164
      %s182 = sphi 0, %s182
      %s184 = sphi 0, %s182
      %s185 = sphi 0, %s184
      %s199 = sphi 0, %s185
      %s203 = sphi 0, %s203
      %s205 = sphi 0, %s203
      %s206 = sphi 0, %s205
      %s220 = sphi 0, %s206
      %s224 = sphi 0, %s224
      %s226 = sphi 0, %s224
      %s227 = sphi 0, %s226
      %s241 = sphi 0, %s227
      %s245 = sphi 0, %s245
      %s247 = sphi 0, %s245
      %s248 = sphi 0, %s247
      %s262 = sphi 0, %s248
      %s266 = sphi 0, %s266
      %s268 = sphi 0, %s266
      %s269 = sphi 0, %s268
      %s283 = sphi 0, %s269
      %s287 = sphi 0, %s287
      %s289 = sphi 0, %s287
      %s290 = sphi 0, %s289
      %s304 = sphi 0, %s290
      %s310 = sphi 0, %s312
      %s313 = sphi 0, %s310
      %s314 = sphi 0, %s313
      %s330 = sphi 0, %s314
    $region4: #{actor_forward.1} parent=1 // loop_header_branch
      %25 = sbr.rel (%p23) target = $region8
    $region5: #{actor_forward.1} parent=1 // loop_body
      %s27 = ssub.s32 %s22, 1
      %s28 = ssub.s32 %s22, 2
      %s29 = sadd.s32 %s22, 1
      %s30 = ssub.s32 %s22, %s29
      %p31 = scmp.eq.s32.totalorder %s30, 0
      %s33 = sadd.s32 %s32, 1
      %s34 = scalar_select %p31, %s32, %s33
      %p37 = pneg %p31
      %p38 = scmp.eq.s32.totalorder %s22, 1
      %p39 = por %p37, %p38
      %p40 = scmp.ne.s32.totalorder %s32, %s35
      %p41 = scmp.eq.s32.totalorder %s22, 0
      %p42 = por %p40, %p41
      %p43 = scmp.ne.s32.totalorder %s32, %s35
      %p44 = scmp.eq.s32.totalorder %s27, 1
      %p45 = por %p43, %p44
      %p46 = scmp.ne.s32.totalorder %s35, %s36
      %p47 = scmp.eq.s32.totalorder %s27, 0
      %p48 = por %p46, %p47
      %p49 = scmp.ne.s32.totalorder %s35, %s36
      %p50 = scmp.eq.s32.totalorder %s28, 1
      %p51 = por %p49, %p50
      %p53 = scmp.ne.s32.totalorder %s36, %s52
      %p54 = scmp.eq.s32.totalorder %s28, 0
      %p55 = por %p53, %p54
      %s57 = sadd.s32 %s56, 1
      %p60 = scmp.eq.s32.totalorder %s22, 1
      %p61 = scmp.ne.s32.totalorder %s56, %s58
      %p62 = scmp.eq.s32.totalorder %s22, 0
      %p63 = por %p61, %p62
      %p64 = scmp.ne.s32.totalorder %s56, %s58
      %p65 = scmp.eq.s32.totalorder %s27, 1
      %p66 = por %p64, %p65
      %p67 = scmp.ne.s32.totalorder %s58, %s59
      %p68 = scmp.eq.s32.totalorder %s27, 0
      %p69 = por %p67, %p68
      %p70 = scmp.ne.s32.totalorder %s58, %s59
      %p71 = scmp.eq.s32.totalorder %s28, 1
      %p72 = por %p70, %p71
      %p74 = scmp.ne.s32.totalorder %s59, %s73
      %p75 = scmp.eq.s32.totalorder %s28, 0
      %p76 = por %p74, %p75
      %s78 = sadd.s32 %s77, 1
      %p81 = scmp.eq.s32.totalorder %s22, 1
      %p82 = scmp.ne.s32.totalorder %s77, %s79
      %p83 = scmp.eq.s32.totalorder %s22, 0
      %p84 = por %p82, %p83
      %p85 = scmp.ne.s32.totalorder %s77, %s79
      %p86 = scmp.eq.s32.totalorder %s27, 1
      %p87 = por %p85, %p86
      %p88 = scmp.ne.s32.totalorder %s79, %s80
      %p89 = scmp.eq.s32.totalorder %s27, 0
      %p90 = por %p88, %p89
      %p91 = scmp.ne.s32.totalorder %s79, %s80
      %p92 = scmp.eq.s32.totalorder %s28, 1
      %p93 = por %p91, %p92
      %p95 = scmp.ne.s32.totalorder %s80, %s94
      %p96 = scmp.eq.s32.totalorder %s28, 0
      %p97 = por %p95, %p96
      %s99 = sadd.s32 %s98, 1
      %p102 = scmp.eq.s32.totalorder %s22, 1
      %p103 = scmp.ne.s32.totalorder %s98, %s100
      %p104 = scmp.eq.s32.totalorder %s22, 0
      %p105 = por %p103, %p104
      %p106 = scmp.ne.s32.totalorder %s98, %s100
      %p107 = scmp.eq.s32.totalorder %s27, 1
      %p108 = por %p106, %p107
      %p109 = scmp.ne.s32.totalorder %s100, %s101
      %p110 = scmp.eq.s32.totalorder %s27, 0
      %p111 = por %p109, %p110
      %p112 = scmp.ne.s32.totalorder %s100, %s101
      %p113 = scmp.eq.s32.totalorder %s28, 1
      %p114 = por %p112, %p113
      %p116 = scmp.ne.s32.totalorder %s101, %s115
      %p117 = scmp.eq.s32.totalorder %s28, 0
      %p118 = por %p116, %p117
      %s120 = sadd.s32 %s119, 1
      %p123 = scmp.eq.s32.totalorder %s22, 1
      %p124 = scmp.ne.s32.totalorder %s119, %s121
      %p125 = scmp.eq.s32.totalorder %s22, 0
      %p126 = por %p124, %p125
      %p127 = scmp.ne.s32.totalorder %s119, %s121
      %p128 = scmp.eq.s32.totalorder %s27, 1
      %p129 = por %p127, %p128
      %p130 = scmp.ne.s32.totalorder %s121, %s122
      %p131 = scmp.eq.s32.totalorder %s27, 0
      %p132 = por %p130, %p131
      %p133 = scmp.ne.s32.totalorder %s121, %s122
      %p134 = scmp.eq.s32.totalorder %s28, 1
      %p135 = por %p133, %p134
      %p137 = scmp.ne.s32.totalorder %s122, %s136
      %p138 = scmp.eq.s32.totalorder %s28, 0
      %p139 = por %p137, %p138
      %s141 = sadd.s32 %s140, 1
      %p144 = scmp.eq.s32.totalorder %s22, 1
      %p145 = scmp.ne.s32.totalorder %s140, %s142
      %p146 = scmp.eq.s32.totalorder %s22, 0
      %p147 = por %p145, %p146
      %p148 = scmp.ne.s32.totalorder %s140, %s142
      %p149 = scmp.eq.s32.totalorder %s27, 1
      %p150 = por %p148, %p149
      %p151 = scmp.ne.s32.totalorder %s142, %s143
      %p152 = scmp.eq.s32.totalorder %s27, 0
      %p153 = por %p151, %p152
      %p154 = scmp.ne.s32.totalorder %s142, %s143
      %p155 = scmp.eq.s32.totalorder %s28, 1
      %p156 = por %p154, %p155
      %p158 = scmp.ne.s32.totalorder %s143, %s157
      %p159 = scmp.eq.s32.totalorder %s28, 0
      %p160 = por %p158, %p159
      %s162 = sadd.s32 %s161, 1
      %p165 = scmp.eq.s32.totalorder %s22, 1
      %p166 = scmp.ne.s32.totalorder %s161, %s163
      %p167 = scmp.eq.s32.totalorder %s22, 0
      %p168 = por %p166, %p167
      %p169 = scmp.ne.s32.totalorder %s161, %s163
      %p170 = scmp.eq.s32.totalorder %s27, 1
      %p171 = por %p169, %p170
      %p172 = scmp.ne.s32.totalorder %s163, %s164
      %p173 = scmp.eq.s32.totalorder %s27, 0
      %p174 = por %p172, %p173
      %p175 = scmp.ne.s32.totalorder %s163, %s164
      %p176 = scmp.eq.s32.totalorder %s28, 1
      %p177 = por %p175, %p176
      %p179 = scmp.ne.s32.totalorder %s164, %s178
      %p180 = scmp.eq.s32.totalorder %s28, 0
      %p181 = por %p179, %p180
      %s183 = sadd.s32 %s182, 1
      %p186 = scmp.eq.s32.totalorder %s22, 1
      %p187 = scmp.ne.s32.totalorder %s182, %s184
      %p188 = scmp.eq.s32.totalorder %s22, 0
      %p189 = por %p187, %p188
      %p190 = scmp.ne.s32.totalorder %s182, %s184
      %p191 = scmp.eq.s32.totalorder %s27, 1
      %p192 = por %p190, %p191
      %p193 = scmp.ne.s32.totalorder %s184, %s185
      %p194 = scmp.eq.s32.totalorder %s27, 0
      %p195 = por %p193, %p194
      %p196 = scmp.ne.s32.totalorder %s184, %s185
      %p197 = scmp.eq.s32.totalorder %s28, 1
      %p198 = por %p196, %p197
      %p200 = scmp.ne.s32.totalorder %s185, %s199
      %p201 = scmp.eq.s32.totalorder %s28, 0
      %p202 = por %p200, %p201
      %s204 = sadd.s32 %s203, 1
      %p207 = scmp.eq.s32.totalorder %s22, 1
      %p208 = scmp.ne.s32.totalorder %s203, %s205
      %p209 = scmp.eq.s32.totalorder %s22, 0
      %p210 = por %p208, %p209
      %p211 = scmp.ne.s32.totalorder %s203, %s205
      %p212 = scmp.eq.s32.totalorder %s27, 1
      %p213 = por %p211, %p212
      %p214 = scmp.ne.s32.totalorder %s205, %s206
      %p215 = scmp.eq.s32.totalorder %s27, 0
      %p216 = por %p214, %p215
      %p217 = scmp.ne.s32.totalorder %s205, %s206
      %p218 = scmp.eq.s32.totalorder %s28, 1
      %p219 = por %p217, %p218
      %p221 = scmp.ne.s32.totalorder %s206, %s220
      %p222 = scmp.eq.s32.totalorder %s28, 0
      %p223 = por %p221, %p222
      %s225 = sadd.s32 %s224, 1
      %p228 = scmp.eq.s32.totalorder %s22, 1
      %p229 = scmp.ne.s32.totalorder %s224, %s226
      %p230 = scmp.eq.s32.totalorder %s22, 0
      %p231 = por %p229, %p230
      %p232 = scmp.ne.s32.totalorder %s224, %s226
      %p233 = scmp.eq.s32.totalorder %s27, 1
      %p234 = por %p232, %p233
      %p235 = scmp.ne.s32.totalorder %s226, %s227
      %p236 = scmp.eq.s32.totalorder %s27, 0
      %p237 = por %p235, %p236
      %p238 = scmp.ne.s32.totalorder %s226, %s227
      %p239 = scmp.eq.s32.totalorder %s28, 1
      %p240 = por %p238, %p239
      %p242 = scmp.ne.s32.totalorder %s227, %s241
      %p243 = scmp.eq.s32.totalorder %s28, 0
      %p244 = por %p242, %p243
      %s246 = sadd.s32 %s245, 1
      %p249 = scmp.eq.s32.totalorder %s22, 1
      %p250 = scmp.ne.s32.totalorder %s245, %s247
      %p251 = scmp.eq.s32.totalorder %s22, 0
      %p252 = por %p250, %p251
      %p253 = scmp.ne.s32.totalorder %s245, %s247
      %p254 = scmp.eq.s32.totalorder %s27, 1
      %p255 = por %p253, %p254
      %p256 = scmp.ne.s32.totalorder %s247, %s248
      %p257 = scmp.eq.s32.totalorder %s27, 0
      %p258 = por %p256, %p257
      %p259 = scmp.ne.s32.totalorder %s247, %s248
      %p260 = scmp.eq.s32.totalorder %s28, 1
      %p261 = por %p259, %p260
      %p263 = scmp.ne.s32.totalorder %s248, %s262
      %p264 = scmp.eq.s32.totalorder %s28, 0
      %p265 = por %p263, %p264
      %s267 = sadd.s32 %s266, 1
      %p270 = scmp.eq.s32.totalorder %s22, 1
      %p271 = scmp.ne.s32.totalorder %s266, %s268
      %p272 = scmp.eq.s32.totalorder %s22, 0
      %p273 = por %p271, %p272
      %p274 = scmp.ne.s32.totalorder %s266, %s268
      %p275 = scmp.eq.s32.totalorder %s27, 1
      %p276 = por %p274, %p275
      %p277 = scmp.ne.s32.totalorder %s268, %s269
      %p278 = scmp.eq.s32.totalorder %s27, 0
      %p279 = por %p277, %p278
      %p280 = scmp.ne.s32.totalorder %s268, %s269
      %p281 = scmp.eq.s32.totalorder %s28, 1
      %p282 = por %p280, %p281
      %p284 = scmp.ne.s32.totalorder %s269, %s283
      %p285 = scmp.eq.s32.totalorder %s28, 0
      %p286 = por %p284, %p285
      %s288 = sadd.s32 %s287, 1
      %p291 = scmp.eq.s32.totalorder %s22, 1
      %p292 = scmp.ne.s32.totalorder %s287, %s289
      %p293 = scmp.eq.s32.totalorder %s22, 0
      %p294 = por %p292, %p293
      %p295 = scmp.ne.s32.totalorder %s287, %s289
      %p296 = scmp.eq.s32.totalorder %s27, 1
      %p297 = por %p295, %p296
      %p298 = scmp.ne.s32.totalorder %s289, %s290
      %p299 = scmp.eq.s32.totalorder %s27, 0
      %p300 = por %p298, %p299
      %p301 = scmp.ne.s32.totalorder %s289, %s290
      %p302 = scmp.eq.s32.totalorder %s28, 1
      %p303 = por %p301, %p302
      %p305 = scmp.ne.s32.totalorder %s290, %s304
      %p306 = scmp.eq.s32.totalorder %s28, 0
      %p307 = por %p305, %p306
      %s308 = ssub.s32 %s22, %s29
      %p309 = scmp.eq.s32.totalorder %s308, 0
      %s311 = sadd.s32 %s310, 1
      %s312 = scalar_select %p309, %s310, %s311
      %p315 = pneg %p309
      %p316 = scmp.eq.s32.totalorder %s22, 1
      %p317 = por %p315, %p316
      %p318 = scmp.ne.s32.totalorder %s310, %s313
      %p319 = scmp.eq.s32.totalorder %s22, 0
      %p320 = por %p318, %p319
      %p321 = scmp.ne.s32.totalorder %s310, %s313
      %p322 = scmp.eq.s32.totalorder %s27, 1
      %p323 = por %p321, %p322
      %p324 = scmp.ne.s32.totalorder %s313, %s314
      %p325 = scmp.eq.s32.totalorder %s27, 0
      %p326 = por %p324, %p325
      %p327 = scmp.ne.s32.totalorder %s313, %s314
      %p328 = scmp.eq.s32.totalorder %s28, 1
      %p329 = por %p327, %p328
      %p331 = scmp.ne.s32.totalorder %s314, %s330
      %p332 = scmp.eq.s32.totalorder %s28, 0
      %p333 = por %p331, %p332
      %p334 = scmp.le.s32.totalorder 1, %s22
      %p335 = scmp.lt.s32.totalorder %s22, 3
      %p336 = pnand %p334, %p335
      %p337 = pneg %p336
      // Predicated region
      $region9: #{actor_forward.1} parent=5 // pred_check
        _
      $region10: #{actor_forward.1} parent=5 // pred_check_branch
        %339 = sbr.rel (%p336) target = $region12
      $region11: #{actor_forward.1} parent=5 // pred_region
        %s340 = ssub.s32 %s22, 1
        // Predicated region
        $region13: #{actor_forward.1} parent=11 // pred_check
          %p341 = pneg %p69
        $region14: #{actor_forward.1} parent=11 // pred_check_branch
          %343 = sbr.rel (%p341) target = $region16
        $region15: #{actor_forward.1} parent=11 // pred_region
          _
        $region16: #{actor_forward.1} parent=11 // pred_fallthru
          _
        // Predicated region
        $region17: #{actor_forward.1} parent=11 // pred_check
          %p344 = pneg %p90
        $region18: #{actor_forward.1} parent=11 // pred_check_branch
          %346 = sbr.rel (%p344) target = $region20
        $region19: #{actor_forward.1} parent=11 // pred_region
          _
        $region20: #{actor_forward.1} parent=11 // pred_fallthru
          _
        // Predicated region
        $region21: #{actor_forward.1} parent=11 // pred_check
          %p347 = pneg %p111
        $region22: #{actor_forward.1} parent=11 // pred_check_branch
          %349 = sbr.rel (%p347) target = $region24
        $region23: #{actor_forward.1} parent=11 // pred_region
          _
        $region24: #{actor_forward.1} parent=11 // pred_fallthru
          _
        // Predicated region
        $region25: #{actor_forward.1} parent=11 // pred_check
          %p350 = pneg %p132
        $region26: #{actor_forward.1} parent=11 // pred_check_branch
          %352 = sbr.rel (%p350) target = $region28
        $region27: #{actor_forward.1} parent=11 // pred_region
          _
        $region28: #{actor_forward.1} parent=11 // pred_fallthru
          _
        // Predicated region
        $region29: #{actor_forward.1} parent=11 // pred_check
          %p353 = pneg %p153
        $region30: #{actor_forward.1} parent=11 // pred_check_branch
          %355 = sbr.rel (%p353) target = $region32
        $region31: #{actor_forward.1} parent=11 // pred_region
          _
        $region32: #{actor_forward.1} parent=11 // pred_fallthru
          _
        // Predicated region
        $region33: #{actor_forward.1} parent=11 // pred_check
          %p356 = pneg %p174
        $region34: #{actor_forward.1} parent=11 // pred_check_branch
          %358 = sbr.rel (%p356) target = $region36
        $region35: #{actor_forward.1} parent=11 // pred_region
          _
        $region36: #{actor_forward.1} parent=11 // pred_fallthru
          _
        // Predicated region
        $region37: #{actor_forward.1} parent=11 // pred_check
          %p359 = pneg %p195
        $region38: #{actor_forward.1} parent=11 // pred_check_branch
          %361 = sbr.rel (%p359) target = $region40
        $region39: #{actor_forward.1} parent=11 // pred_region
          _
        $region40: #{actor_forward.1} parent=11 // pred_fallthru
          _
        // Predicated region
        $region41: #{actor_forward.1} parent=11 // pred_check
          %p362 = pneg %p216
        $region42: #{actor_forward.1} parent=11 // pred_check_branch
          %364 = sbr.rel (%p362) target = $region44
        $region43: #{actor_forward.1} parent=11 // pred_region
          _
        $region44: #{actor_forward.1} parent=11 // pred_fallthru
          _
        // Predicated region
        $region45: #{actor_forward.1} parent=11 // pred_check
          %p365 = pneg %p237
        $region46: #{actor_forward.1} parent=11 // pred_check_branch
          %367 = sbr.rel (%p365) target = $region48
        $region47: #{actor_forward.1} parent=11 // pred_region
          _
        $region48: #{actor_forward.1} parent=11 // pred_fallthru
          _
        // Predicated region
        $region49: #{actor_forward.1} parent=11 // pred_check
          %p368 = pneg %p258
        $region50: #{actor_forward.1} parent=11 // pred_check_branch
          %370 = sbr.rel (%p368) target = $region52
        $region51: #{actor_forward.1} parent=11 // pred_region
          _
        $region52: #{actor_forward.1} parent=11 // pred_fallthru
          _
        // Predicated region
        $region53: #{actor_forward.1} parent=11 // pred_check
          %p371 = pneg %p279
        $region54: #{actor_forward.1} parent=11 // pred_check_branch
          %373 = sbr.rel (%p371) target = $region56
        $region55: #{actor_forward.1} parent=11 // pred_region
          _
        $region56: #{actor_forward.1} parent=11 // pred_fallthru
          _
        // Predicated region
        $region57: #{actor_forward.1} parent=11 // pred_check
          %p374 = pneg %p300
        $region58: #{actor_forward.1} parent=11 // pred_check_branch
          %376 = sbr.rel (%p374) target = $region60
        $region59: #{actor_forward.1} parent=11 // pred_region
          _
        $region60: #{actor_forward.1} parent=11 // pred_fallthru
          _
      $region12: #{actor_forward.1} parent=5 // pred_fallthru
        _
      %p377 = scmp.lt.s32.totalorder %s22, 2
      // Predicated region
      $region61: #{actor_forward.1} parent=5 // pred_check
        %p378 = pneg %p377
      $region62: #{actor_forward.1} parent=5 // pred_check_branch
        %380 = sbr.rel (%p378) target = $region64
      $region63: #{actor_forward.1} parent=5 // pred_region
        // Predicated region
        $region65: #{actor_forward.1} parent=63 // pred_check
          %p381 = pneg %p42
        $region66: #{actor_forward.1} parent=63 // pred_check_branch
          %383 = sbr.rel (%p381) target = $region68
        $region67: #{actor_forward.1} parent=63 // pred_region
          %p384 = scmp.lt.s32.totalorder %s22, 1
          %s385 = scalar_select %p384, %s22, 1
          %s386 = smul.addr %s385, 4
          %s387 = smul.addr %s386, 8
          %s388 = scalar_lea.vmem %s0, %s387
        $region68: #{actor_forward.1} parent=63 // pred_fallthru
          _
      $region64: #{actor_forward.1} parent=5 // pred_fallthru
        _
      %p389 = scmp.le.s32.totalorder 1, %s22
      %p390 = scmp.lt.s32.totalorder %s22, 3
      %p391 = pnand %p389, %p390
      %p392 = pneg %p391
      // Predicated region
      $region69: #{actor_forward.1} parent=5 // pred_check
        _
      $region70: #{actor_forward.1} parent=5 // pred_check_branch
        %394 = sbr.rel (%p391) target = $region72
      $region71: #{actor_forward.1} parent=5 // pred_region
        %s395 = ssub.s32 %s22, 1
        %p396 = scmp.lt.s32.totalorder %s27, 1
        %s397 = scalar_select %p396, %s27, 1
        %s398 = smul.addr %s397, 4
        %s399 = smul.addr %s398, 8
        %s400 = scalar_lea.vmem %s0, %s399
        %p401 = pneg %p48
        %p402 = pneg %p45
        %p403 = pneg %p69
        %p404 = pneg %p66
        %p405 = pneg %p90
        %p406 = pneg %p87
        %p407 = pneg %p111
        %p408 = pneg %p108
        %p409 = pneg %p132
        %p410 = pneg %p129
        %p411 = pneg %p153
        %p412 = pneg %p150
        %p413 = pneg %p174
        %p414 = pneg %p171
        %p415 = pneg %p195
        %p416 = pneg %p192
        %p417 = pneg %p216
        %p418 = pneg %p213
        %p419 = pneg %p237
        %p420 = pneg %p234
        %p421 = pneg %p258
        %p422 = pneg %p255
        %p423 = pneg %p279
        %p424 = pneg %p276
        %p425 = pneg %p300
        %p426 = pneg %p297
        %p427 = pneg %p326
        %p428 = pneg %p323
        %s429 = sand.u32 %s313, 1
        %s430 = scalar_lea.sflag [#allocation3], %s429
        %s431 = sand.u32 %s313, 1
        %s432 = scalar_lea.vmem [#allocation2], %s431
        %p433 = scmp.lt.s32.totalorder %s27, 1
        %s434 = scalar_select %p433, %s27, 1
        %s435 = smul.addr %s434, 4
        %s436 = smul.addr %s435, 8
        %s437 = scalar_lea.vmem %s0, %s436
        %v439 = vld [vmem:[%s437] sm:$0xff]
        %v440 = vld [vmem:[%s437 + $0x8] sm:$0xff]
        %v441 = vld [vmem:[%s437 + $0x10] sm:$0xff]
        %v442 = vld [vmem:[%s437 + $0x18] sm:$0xff]
        %v443 = vpack.c.bf16 %v440, %v439
        %v444 = vpack.c.bf16 %v442, %v441
        %v445 = vld [vmem:[%s1] sm:$0xff]
        %v446 = vld [vmem:[%s1 + $0x8] sm:$0xff]
        %v447 = vld [vmem:[%s1 + $0x10] sm:$0xff]
        %v448 = vld [vmem:[%s1 + $0x18] sm:$0xff]
        %v449 = vld [vmem:[%s1 + $0x20] sm:$0xff]
        %v450 = vld [vmem:[%s1 + $0x28] sm:$0xff]
        %v451 = vld [vmem:[%s1 + $0x30] sm:$0xff]
        %v452 = vld [vmem:[%s1 + $0x38] sm:$0xff]
        %v453 = vld [vmem:[%s1 + $0x40] sm:$0xff]
        %v454 = vld [vmem:[%s1 + $0x48] sm:$0xff]
        %v455 = vld [vmem:[%s1 + $0x50] sm:$0xff]
        %v456 = vld [vmem:[%s1 + $0x58] sm:$0xff]
        %v457 = vld [vmem:[%s1 + $0x60] sm:$0xff]
        %v458 = vld [vmem:[%s1 + $0x68] sm:$0xff]
        %v459 = vld [vmem:[%s1 + $0x70] sm:$0xff]
        %v460 = vld [vmem:[%s1 + $0x78] sm:$0xff]
        %v461 = vld [vmem:[%s1 + $0x80] sm:$0xff]
        %v462 = vld [vmem:[%s1 + $0x88] sm:$0xff]
        %v463 = vld [vmem:[%s1 + $0x90] sm:$0xff]
        %v464 = vld [vmem:[%s1 + $0x98] sm:$0xff]
        %v465 = vld [vmem:[%s1 + $0xa0] sm:$0xff]
        %v466 = vld [vmem:[%s1 + $0xa8] sm:$0xff]
        %v467 = vld [vmem:[%s1 + $0xb0] sm:$0xff]
        %v468 = vld [vmem:[%s1 + $0xb8] sm:$0xff]
        %v469 = vld [vmem:[%s1 + $0xc0] sm:$0xff]
        %v470 = vld [vmem:[%s1 + $0xc8] sm:$0xff]
        %v471 = vld [vmem:[%s1 + $0xd0] sm:$0xff]
        %v472 = vld [vmem:[%s1 + $0xd8] sm:$0xff]
        %v473 = vld [vmem:[%s1 + $0xe0] sm:$0xff]
        %v474 = vld [vmem:[%s1 + $0xe8] sm:$0xff]
        %v475 = vld [vmem:[%s1 + $0xf0] sm:$0xff]
        %v476 = vld [vmem:[%s1 + $0xf8] sm:$0xff]
        %v477 = vld [vmem:[%s2] sm:$0xff]
        %v478 = vld [vmem:[%s2 + $0x8] sm:$0xff]
        %v479 = vld [vmem:[%s2 + $0x10] sm:$0xff]
        %v480 = vld [vmem:[%s2 + $0x18] sm:$0xff]
        %v481 = vld [vmem:[%s2 + $0x20] sm:$0xff]
        %v482 = vld [vmem:[%s2 + $0x28] sm:$0xff]
        %v483 = vld [vmem:[%s2 + $0x30] sm:$0xff]
        %v484 = vld [vmem:[%s2 + $0x38] sm:$0xff]
        %v485 = vld [vmem:[%s2 + $0x40] sm:$0xff]
        %v486 = vld [vmem:[%s2 + $0x48] sm:$0xff]
        %v487 = vld [vmem:[%s2 + $0x50] sm:$0xff]
        %v488 = vld [vmem:[%s2 + $0x58] sm:$0xff]
        %v489 = vld [vmem:[%s2 + $0x60] sm:$0xff]
        %v490 = vld [vmem:[%s2 + $0x68] sm:$0xff]
        %v491 = vld [vmem:[%s2 + $0x70] sm:$0xff]
        %v492 = vld [vmem:[%s2 + $0x78] sm:$0xff]
        %v493 = vld [vmem:[%s2 + $0x80] sm:$0xff]
        %v494 = vld [vmem:[%s2 + $0x88] sm:$0xff]
        %v495 = vld [vmem:[%s2 + $0x90] sm:$0xff]
        %v496 = vld [vmem:[%s2 + $0x98] sm:$0xff]
        %v497 = vld [vmem:[%s2 + $0xa0] sm:$0xff]
        %v498 = vld [vmem:[%s2 + $0xa8] sm:$0xff]
        %v499 = vld [vmem:[%s2 + $0xb0] sm:$0xff]
        %v500 = vld [vmem:[%s2 + $0xb8] sm:$0xff]
        %v501 = vld [vmem:[%s2 + $0xc0] sm:$0xff]
        %v502 = vld [vmem:[%s2 + $0xc8] sm:$0xff]
        %v503 = vld [vmem:[%s2 + $0xd0] sm:$0xff]
        %v504 = vld [vmem:[%s2 + $0xd8] sm:$0xff]
        %v505 = vld [vmem:[%s2 + $0xe0] sm:$0xff]
        %v506 = vld [vmem:[%s2 + $0xe8] sm:$0xff]
        %v507 = vld [vmem:[%s2 + $0xf0] sm:$0xff]
        %v508 = vld [vmem:[%s2 + $0xf8] sm:$0xff]
        %s509 = scalar_lea.vmem %s1, 256
        %v510 = vld [vmem:[%s509] sm:$0xff]
        %v511 = vld [vmem:[%s509 + $0x8] sm:$0xff]
        %v512 = vld [vmem:[%s509 + $0x10] sm:$0xff]
        %v513 = vld [vmem:[%s509 + $0x18] sm:$0xff]
        %v514 = vld [vmem:[%s509 + $0x20] sm:$0xff]
        %v515 = vld [vmem:[%s509 + $0x28] sm:$0xff]
        %v516 = vld [vmem:[%s509 + $0x30] sm:$0xff]
        %v517 = vld [vmem:[%s509 + $0x38] sm:$0xff]
        %v518 = vld [vmem:[%s509 + $0x40] sm:$0xff]
        %v519 = vld [vmem:[%s509 + $0x48] sm:$0xff]
        %v520 = vld [vmem:[%s509 + $0x50] sm:$0xff]
        %v521 = vld [vmem:[%s509 + $0x58] sm:$0xff]
        %v522 = vld [vmem:[%s509 + $0x60] sm:$0xff]
        %v523 = vld [vmem:[%s509 + $0x68] sm:$0xff]
        %v524 = vld [vmem:[%s509 + $0x70] sm:$0xff]
        %v525 = vld [vmem:[%s509 + $0x78] sm:$0xff]
        %v526 = vld [vmem:[%s509 + $0x80] sm:$0xff]
        %v527 = vld [vmem:[%s509 + $0x88] sm:$0xff]
        %v528 = vld [vmem:[%s509 + $0x90] sm:$0xff]
        %v529 = vld [vmem:[%s509 + $0x98] sm:$0xff]
        %v530 = vld [vmem:[%s509 + $0xa0] sm:$0xff]
        %v531 = vld [vmem:[%s509 + $0xa8] sm:$0xff]
        %v532 = vld [vmem:[%s509 + $0xb0] sm:$0xff]
        %v533 = vld [vmem:[%s509 + $0xb8] sm:$0xff]
        %v534 = vld [vmem:[%s509 + $0xc0] sm:$0xff]
        %v535 = vld [vmem:[%s509 + $0xc8] sm:$0xff]
        %v536 = vld [vmem:[%s509 + $0xd0] sm:$0xff]
        %v537 = vld [vmem:[%s509 + $0xd8] sm:$0xff]
        %v538 = vld [vmem:[%s509 + $0xe0] sm:$0xff]
        %v539 = vld [vmem:[%s509 + $0xe8] sm:$0xff]
        %v540 = vld [vmem:[%s509 + $0xf0] sm:$0xff]
        %v541 = vld [vmem:[%s509 + $0xf8] sm:$0xff]
        %vm542 = vsmask.f32 7424
        %v544 = vshrl.u32 %v443, 16
        %v546 = vshll.u32 %v443, 16
        %v548 = vrot.slane %v546, 1
        %v549 = vor.u32 %v544, %v548
        %v551 = vshll.u32 %v444, 16
        %v553 = vrot.slane %v551, 1
        %v554 = vsel %vm542, %v549, %v553
        %v555 = vshrl.u32 %v444, 16
        %v557 = vor.u32 %v555, %v553
        %v592 = vunpack.c.l.b16 %v510
        %v593 = vunpack.c.h.b16 %v510
        %v594 = vunpack.c.l.b16 %v511
        %v595 = vunpack.c.h.b16 %v511
        %v596 = vunpack.c.l.b16 %v512
        %v597 = vunpack.c.h.b16 %v512
        %v598 = vunpack.c.l.b16 %v513
        %v599 = vunpack.c.h.b16 %v513
        %v600 = vunpack.c.l.b16 %v514
        %v601 = vunpack.c.h.b16 %v514
        %v602 = vunpack.c.l.b16 %v515
        %v603 = vunpack.c.h.b16 %v515
        %v604 = vunpack.c.l.b16 %v516
        %v605 = vunpack.c.h.b16 %v516
        %v606 = vunpack.c.l.b16 %v517
        %v607 = vunpack.c.h.b16 %v517
        %v608 = vunpack.c.l.b16 %v518
        %v609 = vunpack.c.h.b16 %v518
        %v610 = vunpack.c.l.b16 %v519
        %v611 = vunpack.c.h.b16 %v519
        %v612 = vunpack.c.l.b16 %v520
        %v613 = vunpack.c.h.b16 %v520
        %v614 = vunpack.c.l.b16 %v521
        %v615 = vunpack.c.h.b16 %v521
        %v616 = vunpack.c.l.b16 %v522
        %v617 = vunpack.c.h.b16 %v522
        %v618 = vunpack.c.l.b16 %v523
        %v619 = vunpack.c.h.b16 %v523
        %v620 = vunpack.c.l.b16 %v524
        %v621 = vunpack.c.h.b16 %v524
        %v622 = vunpack.c.l.b16 %v525
        %v623 = vunpack.c.h.b16 %v525
        %v624 = vunpack.c.l.b16 %v526
        %v625 = vunpack.c.h.b16 %v526
        %v626 = vunpack.c.l.b16 %v527
        %v627 = vunpack.c.h.b16 %v527
        %v628 = vunpack.c.l.b16 %v528
        %v629 = vunpack.c.h.b16 %v528
        %v630 = vunpack.c.l.b16 %v529
        %v631 = vunpack.c.h.b16 %v529
        %v632 = vunpack.c.l.b16 %v530
        %v633 = vunpack.c.h.b16 %v530
        %v634 = vunpack.c.l.b16 %v531
        %v635 = vunpack.c.h.b16 %v531
        %v636 = vunpack.c.l.b16 %v532
        %v637 = vunpack.c.h.b16 %v532
        %v638 = vunpack.c.l.b16 %v533
        %v639 = vunpack.c.h.b16 %v533
        %v640 = vunpack.c.l.b16 %v534
        %v641 = vunpack.c.h.b16 %v534
        %v642 = vunpack.c.l.b16 %v535
        %v643 = vunpack.c.h.b16 %v535
        %v644 = vunpack.c.l.b16 %v536
        %v645 = vunpack.c.h.b16 %v536
        %v646 = vunpack.c.l.b16 %v537
        %v647 = vunpack.c.h.b16 %v537
        %v648 = vunpack.c.l.b16 %v538
        %v649 = vunpack.c.h.b16 %v538
        %v650 = vunpack.c.l.b16 %v539
        %v651 = vunpack.c.h.b16 %v539
        %v652 = vunpack.c.l.b16 %v540
        %v653 = vunpack.c.h.b16 %v540
        %v654 = vunpack.c.l.b16 %v541
        %v655 = vunpack.c.h.b16 %v541
        %v656 = vpack.c.b16 %v596, %v592
        %v657 = vpack.c.b16 %v597, %v593
        %v658 = vpack.c.b16 %v598, %v594
        %v659 = vpack.c.b16 %v599, %v595
        %v660 = vpack.c.b16 %v604, %v600
        %v661 = vpack.c.b16 %v605, %v601
        %v662 = vpack.c.b16 %v606, %v602
        %v663 = vpack.c.b16 %v607, %v603
        %v664 = vpack.c.b16 %v612, %v608
        %v665 = vpack.c.b16 %v613, %v609
        %v666 = vpack.c.b16 %v614, %v610
        %v667 = vpack.c.b16 %v615, %v611
        %v668 = vpack.c.b16 %v620, %v616
        %v669 = vpack.c.b16 %v621, %v617
        %v670 = vpack.c.b16 %v622, %v618
        %v671 = vpack.c.b16 %v623, %v619
        %v672 = vpack.c.b16 %v628, %v624
        %v673 = vpack.c.b16 %v629, %v625
        %v674 = vpack.c.b16 %v630, %v626
        %v675 = vpack.c.b16 %v631, %v627
        %v676 = vpack.c.b16 %v636, %v632
        %v677 = vpack.c.b16 %v637, %v633
        %v678 = vpack.c.b16 %v638, %v634
        %v679 = vpack.c.b16 %v639, %v635
        %v680 = vpack.c.b16 %v644, %v640
        %v681 = vpack.c.b16 %v645, %v641
        %v682 = vpack.c.b16 %v646, %v642
        %v683 = vpack.c.b16 %v647, %v643
        %v684 = vpack.c.b16 %v652, %v648
        %v685 = vpack.c.b16 %v653, %v649
        %v686 = vpack.c.b16 %v654, %v650
        %v687 = vpack.c.b16 %v655, %v651
        %720 = vmatprep.subr.bf16.mxu0 %v657
        %721 = vmatpush1.bf16.msra.mxu0 %v656
        %722 = vmatprep.subr.bf16.mxu0 %v661
        %723 = vmatpush1.bf16.msra.mxu0 %v660
        %724 = vmatprep.subr.bf16.mxu0 %v665
        %725 = vmatpush1.bf16.msra.mxu0 %v664
        %726 = vmatprep.subr.bf16.mxu0 %v669
        %727 = vmatpush1.bf16.msra.mxu0 %v668
        %728 = vmatprep.subr.bf16.mxu0 %v673
        %729 = vmatpush1.bf16.msra.mxu0 %v672
        %730 = vmatprep.subr.bf16.mxu0 %v677
        %731 = vmatpush1.bf16.msra.mxu0 %v676
        %732 = vmatprep.subr.bf16.mxu0 %v681
        %733 = vmatpush1.bf16.msra.mxu0 %v680
        %734 = vmatprep.subr.bf16.mxu0 %v685
        %735 = vmatpush1.bf16.msra.mxu0 %v684
        %736 = vmatprep.subr.bf16.mxu0 0
        %737 = vmatpush1.bf16.msra.mxu0 0
        %738 = vmatprep.subr.bf16.mxu0 0
        %739 = vmatpush1.bf16.msra.mxu0 0
        %740 = vmatprep.subr.bf16.mxu0 0
        %741 = vmatpush1.bf16.msra.mxu0 0
        %742 = vmatprep.subr.bf16.mxu0 0
        %743 = vmatpush1.bf16.msra.mxu0 0
        %744 = vmatprep.subr.bf16.mxu0 0
        %745 = vmatpush1.bf16.msra.mxu0 0
        %746 = vmatprep.subr.bf16.mxu0 0
        %747 = vmatpush1.bf16.msra.mxu0 0
        %748 = vmatprep.subr.bf16.mxu0 0
        %749 = vmatpush1.bf16.msra.mxu0 0
        %750 = vmatprep.subr.bf16.mxu0 0
        %751 = vmatpush1.bf16.msra.mxu0 0
        %752 = vmatprep.mubr.bf16.mxu0 0
        %753 = vmatmul.mubr.bf16.gmra.mrb[0].mxu0 %v554
        %v754 = vpop.f32.mrb[0].mxu0
        %v755 = vadd.f32 0.0, %v754
        %v756 = vpop.f32.mrb[0].mxu0
        %v757 = vadd.f32 0.0, %v756
        %v758 = vpop.f32.mrb[0].mxu0
        %v759 = vadd.f32 0.0, %v758
        %v760 = vpop.f32.mrb[0].mxu0
        %v761 = vadd.f32 0.0, %v760
        %762 = vmatprep.mubr.bf16.mxu0 0
        %763 = vmatmul.mubr.bf16.gmra.mrb[0].mxu0 %v557
        %v764 = vpop.f32.mrb[0].mxu0
        %v765 = vadd.f32 0.0, %v764
        %v766 = vpop.f32.mrb[0].mxu0
        %v767 = vadd.f32 0.0, %v766
        %v768 = vpop.f32.mrb[0].mxu0
        %v769 = vadd.f32 0.0, %v768
        %v770 = vpop.f32.mrb[0].mxu0
        %v771 = vadd.f32 0.0, %v770
        %772 = vdwg.mxu0
        %773 = vmatprep.subr.bf16.mxu0 %v659
        %774 = vmatpush1.bf16.msra.mxu0 %v658
        %775 = vmatprep.subr.bf16.mxu0 %v663
        %776 = vmatpush1.bf16.msra.mxu0 %v662
        %777 = vmatprep.subr.bf16.mxu0 %v667
        %778 = vmatpush1.bf16.msra.mxu0 %v666
        %779 = vmatprep.subr.bf16.mxu0 %v671
        %780 = vmatpush1.bf16.msra.mxu0 %v670
        %781 = vmatprep.subr.bf16.mxu0 %v675
        %782 = vmatpush1.bf16.msra.mxu0 %v674
        %783 = vmatprep.subr.bf16.mxu0 %v679
        %784 = vmatpush1.bf16.msra.mxu0 %v678
        %785 = vmatprep.subr.bf16.mxu0 %v683
        %786 = vmatpush1.bf16.msra.mxu0 %v682
        %787 = vmatprep.subr.bf16.mxu0 %v687
        %788 = vmatpush1.bf16.msra.mxu0 %v686
        %789 = vmatprep.subr.bf16.mxu0 0
        %790 = vmatpush1.bf16.msra.mxu0 0
        %791 = vmatprep.subr.bf16.mxu0 0
        %792 = vmatpush1.bf16.msra.mxu0 0
        %793 = vmatprep.subr.bf16.mxu0 0
        %794 = vmatpush1.bf16.msra.mxu0 0
        %795 = vmatprep.subr.bf16.mxu0 0
        %796 = vmatpush1.bf16.msra.mxu0 0
        %797 = vmatprep.subr.bf16.mxu0 0
        %798 = vmatpush1.bf16.msra.mxu0 0
        %799 = vmatprep.subr.bf16.mxu0 0
        %800 = vmatpush1.bf16.msra.mxu0 0
        %801 = vmatprep.subr.bf16.mxu0 0
        %802 = vmatpush1.bf16.msra.mxu0 0
        %803 = vmatprep.subr.bf16.mxu0 0
        %804 = vmatpush1.bf16.msra.mxu0 0
        %805 = vmatprep.mubr.bf16.mxu0 0
        %806 = vmatmul.mubr.bf16.gmra.mrb[0].mxu0 %v554
        %v807 = vpop.f32.mrb[0].mxu0
        %v808 = vadd.f32 0.0, %v807
        %v809 = vpop.f32.mrb[0].mxu0
        %v810 = vadd.f32 0.0, %v809
        %v811 = vpop.f32.mrb[0].mxu0
        %v812 = vadd.f32 0.0, %v811
        %v813 = vpop.f32.mrb[0].mxu0
        %v814 = vadd.f32 0.0, %v813
        %815 = vmatprep.mubr.bf16.mxu0 0
        %816 = vmatmul.mubr.bf16.gmra.mrb[0].mxu0 %v557
        %v817 = vpop.f32.mrb[0].mxu0
        %v818 = vadd.f32 0.0, %v817
        %v819 = vpop.f32.mrb[0].mxu0
        %v820 = vadd.f32 0.0, %v819
        %v821 = vpop.f32.mrb[0].mxu0
        %v822 = vadd.f32 0.0, %v821
        %v823 = vpop.f32.mrb[0].mxu0
        %v824 = vadd.f32 0.0, %v823
        %825 = vdwg.mxu0
        %s826 = scalar_lea.vmem %s2, 256
        %v827 = vld [vmem:[%s826] sm:$0xff]
        %v828 = vld [vmem:[%s826 + $0x8] sm:$0xff]
        %v829 = vld [vmem:[%s826 + $0x10] sm:$0xff]
        %v830 = vld [vmem:[%s826 + $0x18] sm:$0xff]
        %v831 = vld [vmem:[%s826 + $0x20] sm:$0xff]
        %v832 = vld [vmem:[%s826 + $0x28] sm:$0xff]
        %v833 = vld [vmem:[%s826 + $0x30] sm:$0xff]
        %v834 = vld [vmem:[%s826 + $0x38] sm:$0xff]
        %v835 = vld [vmem:[%s826 + $0x40] sm:$0xff]
        %v836 = vld [vmem:[%s826 + $0x48] sm:$0xff]
        %v837 = vld [vmem:[%s826 + $0x50] sm:$0xff]
        %v838 = vld [vmem:[%s826 + $0x58] sm:$0xff]
        %v839 = vld [vmem:[%s826 + $0x60] sm:$0xff]
        %v840 = vld [vmem:[%s826 + $0x68] sm:$0xff]
        %v841 = vld [vmem:[%s826 + $0x70] sm:$0xff]
        %v842 = vld [vmem:[%s826 + $0x78] sm:$0xff]
        %v843 = vld [vmem:[%s826 + $0x80] sm:$0xff]
        %v844 = vld [vmem:[%s826 + $0x88] sm:$0xff]
        %v845 = vld [vmem:[%s826 + $0x90] sm:$0xff]
        %v846 = vld [vmem:[%s826 + $0x98] sm:$0xff]
        %v847 = vld [vmem:[%s826 + $0xa0] sm:$0xff]
        %v848 = vld [vmem:[%s826 + $0xa8] sm:$0xff]
        %v849 = vld [vmem:[%s826 + $0xb0] sm:$0xff]
        %v850 = vld [vmem:[%s826 + $0xb8] sm:$0xff]
        %v851 = vld [vmem:[%s826 + $0xc0] sm:$0xff]
        %v852 = vld [vmem:[%s826 + $0xc8] sm:$0xff]
        %v853 = vld [vmem:[%s826 + $0xd0] sm:$0xff]
        %v854 = vld [vmem:[%s826 + $0xd8] sm:$0xff]
        %v855 = vld [vmem:[%s826 + $0xe0] sm:$0xff]
        %v856 = vld [vmem:[%s826 + $0xe8] sm:$0xff]
        %v857 = vld [vmem:[%s826 + $0xf0] sm:$0xff]
        %v858 = vld [vmem:[%s826 + $0xf8] sm:$0xff]
        %v891 = vunpack.c.l.b16 %v827
        %v892 = vunpack.c.h.b16 %v827
        %v893 = vunpack.c.l.b16 %v828
        %v894 = vunpack.c.h.b16 %v828
        %v895 = vunpack.c.l.b16 %v829
        %v896 = vunpack.c.h.b16 %v829
        %v897 = vunpack.c.l.b16 %v830
        %v898 = vunpack.c.h.b16 %v830
        %v899 = vunpack.c.l.b16 %v831
        %v900 = vunpack.c.h.b16 %v831
        %v901 = vunpack.c.l.b16 %v832
        %v902 = vunpack.c.h.b16 %v832
        %v903 = vunpack.c.l.b16 %v833
        %v904 = vunpack.c.h.b16 %v833
        %v905 = vunpack.c.l.b16 %v834
        %v906 = vunpack.c.h.b16 %v834
        %v907 = vunpack.c.l.b16 %v835
        %v908 = vunpack.c.h.b16 %v835
        %v909 = vunpack.c.l.b16 %v836
        %v910 = vunpack.c.h.b16 %v836
        %v911 = vunpack.c.l.b16 %v837
        %v912 = vunpack.c.h.b16 %v837
        %v913 = vunpack.c.l.b16 %v838
        %v914 = vunpack.c.h.b16 %v838
        %v915 = vunpack.c.l.b16 %v839
        %v916 = vunpack.c.h.b16 %v839
        %v917 = vunpack.c.l.b16 %v840
        %v918 = vunpack.c.h.b16 %v840
        %v919 = vunpack.c.l.b16 %v841
        %v920 = vunpack.c.h.b16 %v841
        %v921 = vunpack.c.l.b16 %v842
        %v922 = vunpack.c.h.b16 %v842
        %v923 = vunpack.c.l.b16 %v843
        %v924 = vunpack.c.h.b16 %v843
        %v925 = vunpack.c.l.b16 %v844
        %v926 = vunpack.c.h.b16 %v844
        %v927 = vunpack.c.l.b16 %v845
        %v928 = vunpack.c.h.b16 %v845
        %v929 = vunpack.c.l.b16 %v846
        %v930 = vunpack.c.h.b16 %v846
        %v931 = vunpack.c.l.b16 %v847
        %v932 = vunpack.c.h.b16 %v847
        %v933 = vunpack.c.l.b16 %v848
        %v934 = vunpack.c.h.b16 %v848
        %v935 = vunpack.c.l.b16 %v849
        %v936 = vunpack.c.h.b16 %v849
        %v937 = vunpack.c.l.b16 %v850
        %v938 = vunpack.c.h.b16 %v850
        %v939 = vunpack.c.l.b16 %v851
        %v940 = vunpack.c.h.b16 %v851
        %v941 = vunpack.c.l.b16 %v852
        %v942 = vunpack.c.h.b16 %v852
        %v943 = vunpack.c.l.b16 %v853
        %v944 = vunpack.c.h.b16 %v853
        %v945 = vunpack.c.l.b16 %v854
        %v946 = vunpack.c.h.b16 %v854
        %v947 = vunpack.c.l.b16 %v855
        %v948 = vunpack.c.h.b16 %v855
        %v949 = vunpack.c.l.b16 %v856
        %v950 = vunpack.c.h.b16 %v856
        %v951 = vunpack.c.l.b16 %v857
        %v952 = vunpack.c.h.b16 %v857
        %v953 = vunpack.c.l.b16 %v858
        %v954 = vunpack.c.h.b16 %v858
        %v955 = vpack.c.b16 %v895, %v891
        %v956 = vpack.c.b16 %v896, %v892
        %v957 = vpack.c.b16 %v897, %v893
        %v958 = vpack.c.b16 %v898, %v894
        %v959 = vpack.c.b16 %v903, %v899
        %v960 = vpack.c.b16 %v904, %v900
        %v961 = vpack.c.b16 %v905, %v901
        %v962 = vpack.c.b16 %v906, %v902
        %v963 = vpack.c.b16 %v911, %v907
        %v964 = vpack.c.b16 %v912, %v908
        %v965 = vpack.c.b16 %v913, %v909
        %v966 = vpack.c.b16 %v914, %v910
        %v967 = vpack.c.b16 %v919, %v915
        %v968 = vpack.c.b16 %v920, %v916
        %v969 = vpack.c.b16 %v921, %v917
        %v970 = vpack.c.b16 %v922, %v918
        %v971 = vpack.c.b16 %v927, %v923
        %v972 = vpack.c.b16 %v928, %v924
        %v973 = vpack.c.b16 %v929, %v925
        %v974 = vpack.c.b16 %v930, %v926
        %v975 = vpack.c.b16 %v935, %v931
        %v976 = vpack.c.b16 %v936, %v932
        %v977 = vpack.c.b16 %v937, %v933
        %v978 = vpack.c.b16 %v938, %v934
        %v979 = vpack.c.b16 %v943, %v939
        %v980 = vpack.c.b16 %v944, %v940
        %v981 = vpack.c.b16 %v945, %v941
        %v982 = vpack.c.b16 %v946, %v942
        %v983 = vpack.c.b16 %v951, %v947
        %v984 = vpack.c.b16 %v952, %v948
        %v985 = vpack.c.b16 %v953, %v949
        %v986 = vpack.c.b16 %v954, %v950
        %1019 = vmatprep.subr.bf16.mxu0 %v956
        %1020 = vmatpush1.bf16.msra.mxu0 %v955
        %1021 = vmatprep.subr.bf16.mxu0 %v960
        %1022 = vmatpush1.bf16.msra.mxu0 %v959
        %1023 = vmatprep.subr.bf16.mxu0 %v964
        %1024 = vmatpush1.bf16.msra.mxu0 %v963
        %1025 = vmatprep.subr.bf16.mxu0 %v968
        %1026 = vmatpush1.bf16.msra.mxu0 %v967
        %1027 = vmatprep.subr.bf16.mxu0 %v972
        %1028 = vmatpush1.bf16.msra.mxu0 %v971
        %1029 = vmatprep.subr.bf16.mxu0 %v976
        %1030 = vmatpush1.bf16.msra.mxu0 %v975
        %1031 = vmatprep.subr.bf16.mxu0 %v980
        %1032 = vmatpush1.bf16.msra.mxu0 %v979
        %1033 = vmatprep.subr.bf16.mxu0 %v984
        %1034 = vmatpush1.bf16.msra.mxu0 %v983
        %1035 = vmatprep.subr.bf16.mxu0 0
        %1036 = vmatpush1.bf16.msra.mxu0 0
        %1037 = vmatprep.subr.bf16.mxu0 0
        %1038 = vmatpush1.bf16.msra.mxu0 0
        %1039 = vmatprep.subr.bf16.mxu0 0
        %1040 = vmatpush1.bf16.msra.mxu0 0
        %1041 = vmatprep.subr.bf16.mxu0 0
        %1042 = vmatpush1.bf16.msra.mxu0 0
        %1043 = vmatprep.subr.bf16.mxu0 0
        %1044 = vmatpush1.bf16.msra.mxu0 0
        %1045 = vmatprep.subr.bf16.mxu0 0
        %1046 = vmatpush1.bf16.msra.mxu0 0
        %1047 = vmatprep.subr.bf16.mxu0 0
        %1048 = vmatpush1.bf16.msra.mxu0 0
        %1049 = vmatprep.subr.bf16.mxu0 0
        %1050 = vmatpush1.bf16.msra.mxu0 0
        %1051 = vmatprep.mubr.bf16.mxu0 0
        %1052 = vmatmul.mubr.bf16.gmra.mrb[0].mxu0 %v554
        %v1053 = vpop.f32.mrb[0].mxu0
        %v1054 = vadd.f32 0.0, %v1053
        %v1055 = vpop.f32.mrb[0].mxu0
        %v1056 = vadd.f32 0.0, %v1055
        %v1057 = vpop.f32.mrb[0].mxu0
        %v1058 = vadd.f32 0.0, %v1057
        %v1059 = vpop.f32.mrb[0].mxu0
        %v1060 = vadd.f32 0.0, %v1059
        %1061 = vmatprep.mubr.bf16.mxu0 0
        %1062 = vmatmul.mubr.bf16.gmra.mrb[0].mxu0 %v557
        %v1063 = vpop.f32.mrb[0].mxu0
        %v1064 = vadd.f32 0.0, %v1063
        %v1065 = vpop.f32.mrb[0].mxu0
        %v1066 = vadd.f32 0.0, %v1065
        %v1067 = vpop.f32.mrb[0].mxu0
        %v1068 = vadd.f32 0.0, %v1067
        %v1069 = vpop.f32.mrb[0].mxu0
        %v1070 = vadd.f32 0.0, %v1069
        %1071 = vdwg.mxu0
        %1072 = vmatprep.subr.bf16.mxu0 %v958
        %1073 = vmatpush1.bf16.msra.mxu0 %v957
        %1074 = vmatprep.subr.bf16.mxu0 %v962
        %1075 = vmatpush1.bf16.msra.mxu0 %v961
        %1076 = vmatprep.subr.bf16.mxu0 %v966
        %1077 = vmatpush1.bf16.msra.mxu0 %v965
        %1078 = vmatprep.subr.bf16.mxu0 %v970
        %1079 = vmatpush1.bf16.msra.mxu0 %v969
        %1080 = vmatprep.subr.bf16.mxu0 %v974
        %1081 = vmatpush1.bf16.msra.mxu0 %v973
        %1082 = vmatprep.subr.bf16.mxu0 %v978
        %1083 = vmatpush1.bf16.msra.mxu0 %v977
        %1084 = vmatprep.subr.bf16.mxu0 %v982
        %1085 = vmatpush1.bf16.msra.mxu0 %v981
        %1086 = vmatprep.subr.bf16.mxu0 %v986
        %1087 = vmatpush1.bf16.msra.mxu0 %v985
        %1088 = vmatprep.subr.bf16.mxu0 0
        %1089 = vmatpush1.bf16.msra.mxu0 0
        %1090 = vmatprep.subr.bf16.mxu0 0
        %1091 = vmatpush1.bf16.msra.mxu0 0
        %1092 = vmatprep.subr.bf16.mxu0 0
        %1093 = vmatpush1.bf16.msra.mxu0 0
        %1094 = vmatprep.subr.bf16.mxu0 0
        %1095 = vmatpush1.bf16.msra.mxu0 0
        %1096 = vmatprep.subr.bf16.mxu0 0
        %1097 = vmatpush1.bf16.msra.mxu0 0
        %1098 = vmatprep.subr.bf16.mxu0 0
        %1099 = vmatpush1.bf16.msra.mxu0 0
        %1100 = vmatprep.subr.bf16.mxu0 0
        %1101 = vmatpush1.bf16.msra.mxu0 0
        %1102 = vmatprep.subr.bf16.mxu0 0
        %1103 = vmatpush1.bf16.msra.mxu0 0
        %1104 = vmatprep.mubr.bf16.mxu0 0
        %1105 = vmatmul.mubr.bf16.gmra.mrb[0].mxu0 %v554
        %v1106 = vpop.f32.mrb[0].mxu0
        %v1107 = vadd.f32 0.0, %v1106
        %v1108 = vpop.f32.mrb[0].mxu0
        %v1109 = vadd.f32 0.0, %v1108
        %v1110 = vpop.f32.mrb[0].mxu0
        %v1111 = vadd.f32 0.0, %v1110
        %v1112 = vpop.f32.mrb[0].mxu0
        %v1113 = vadd.f32 0.0, %v1112
        %1114 = vmatprep.mubr.bf16.mxu0 0
        %1115 = vmatmul.mubr.bf16.gmra.mrb[0].mxu0 %v557
        %v1116 = vpop.f32.mrb[0].mxu0
        %v1117 = vadd.f32 0.0, %v1116
        %v1118 = vpop.f32.mrb[0].mxu0
        %v1119 = vadd.f32 0.0, %v1118
        %v1120 = vpop.f32.mrb[0].mxu0
        %v1121 = vadd.f32 0.0, %v1120
        %v1122 = vpop.f32.mrb[0].mxu0
        %v1123 = vadd.f32 0.0, %v1122
        %1124 = vdwg.mxu0
        %v1157 = vunpack.c.l.b16 %v445
        %v1158 = vunpack.c.h.b16 %v445
        %v1159 = vunpack.c.l.b16 %v446
        %v1160 = vunpack.c.h.b16 %v446
        %v1161 = vunpack.c.l.b16 %v447
        %v1162 = vunpack.c.h.b16 %v447
        %v1163 = vunpack.c.l.b16 %v448
        %v1164 = vunpack.c.h.b16 %v448
        %v1165 = vunpack.c.l.b16 %v449
        %v1166 = vunpack.c.h.b16 %v449
        %v1167 = vunpack.c.l.b16 %v450
        %v1168 = vunpack.c.h.b16 %v450
        %v1169 = vunpack.c.l.b16 %v451
        %v1170 = vunpack.c.h.b16 %v451
        %v1171 = vunpack.c.l.b16 %v452
        %v1172 = vunpack.c.h.b16 %v452
        %v1173 = vunpack.c.l.b16 %v453
        %v1174 = vunpack.c.h.b16 %v453
        %v1175 = vunpack.c.l.b16 %v454
        %v1176 = vunpack.c.h.b16 %v454
        %v1177 = vunpack.c.l.b16 %v455
        %v1178 = vunpack.c.h.b16 %v455
        %v1179 = vunpack.c.l.b16 %v456
        %v1180 = vunpack.c.h.b16 %v456
        %v1181 = vunpack.c.l.b16 %v457
        %v1182 = vunpack.c.h.b16 %v457
        %v1183 = vunpack.c.l.b16 %v458
        %v1184 = vunpack.c.h.b16 %v458
        %v1185 = vunpack.c.l.b16 %v459
        %v1186 = vunpack.c.h.b16 %v459
        %v1187 = vunpack.c.l.b16 %v460
        %v1188 = vunpack.c.h.b16 %v460
        %v1189 = vunpack.c.l.b16 %v461
        %v1190 = vunpack.c.h.b16 %v461
        %v1191 = vunpack.c.l.b16 %v462
        %v1192 = vunpack.c.h.b16 %v462
        %v1193 = vunpack.c.l.b16 %v463
        %v1194 = vunpack.c.h.b16 %v463
        %v1195 = vunpack.c.l.b16 %v464
        %v1196 = vunpack.c.h.b16 %v464
        %v1197 = vunpack.c.l.b16 %v465
        %v1198 = vunpack.c.h.b16 %v465
        %v1199 = vunpack.c.l.b16 %v466
        %v1200 = vunpack.c.h.b16 %v466
        %v1201 = vunpack.c.l.b16 %v467
        %v1202 = vunpack.c.h.b16 %v467
        %v1203 = vunpack.c.l.b16 %v468
        %v1204 = vunpack.c.h.b16 %v468
        %v1205 = vunpack.c.l.b16 %v469
        %v1206 = vunpack.c.h.b16 %v469
        %v1207 = vunpack.c.l.b16 %v470
        %v1208 = vunpack.c.h.b16 %v470
        %v1209 = vunpack.c.l.b16 %v471
        %v1210 = vunpack.c.h.b16 %v471
        %v1211 = vunpack.c.l.b16 %v472
        %v1212 = vunpack.c.h.b16 %v472
        %v1213 = vunpack.c.l.b16 %v473
        %v1214 = vunpack.c.h.b16 %v473
        %v1215 = vunpack.c.l.b16 %v474
        %v1216 = vunpack.c.h.b16 %v474
        %v1217 = vunpack.c.l.b16 %v475
        %v1218 = vunpack.c.h.b16 %v475
        %v1219 = vunpack.c.l.b16 %v476
        %v1220 = vunpack.c.h.b16 %v476
        %v1221 = vpack.c.b16 %v1161, %v1157
        %v1222 = vpack.c.b16 %v1162, %v1158
        %v1223 = vpack.c.b16 %v1163, %v1159
        %v1224 = vpack.c.b16 %v1164, %v1160
        %v1225 = vpack.c.b16 %v1169, %v1165
        %v1226 = vpack.c.b16 %v1170, %v1166
        %v1227 = vpack.c.b16 %v1171, %v1167
        %v1228 = vpack.c.b16 %v1172, %v1168
        %v1229 = vpack.c.b16 %v1177, %v1173
        %v1230 = vpack.c.b16 %v1178, %v1174
        %v1231 = vpack.c.b16 %v1179, %v1175
        %v1232 = vpack.c.b16 %v1180, %v1176
        %v1233 = vpack.c.b16 %v1185, %v1181
        %v1234 = vpack.c.b16 %v1186, %v1182
        %v1235 = vpack.c.b16 %v1187, %v1183
        %v1236 = vpack.c.b16 %v1188, %v1184
        %v1237 = vpack.c.b16 %v1193, %v1189
        %v1238 = vpack.c.b16 %v1194, %v1190
        %v1239 = vpack.c.b16 %v1195, %v1191
        %v1240 = vpack.c.b16 %v1196, %v1192
        %v1241 = vpack.c.b16 %v1201, %v1197
        %v1242 = vpack.c.b16 %v1202, %v1198
        %v1243 = vpack.c.b16 %v1203, %v1199
        %v1244 = vpack.c.b16 %v1204, %v1200
        %v1245 = vpack.c.b16 %v1209, %v1205
        %v1246 = vpack.c.b16 %v1210, %v1206
        %v1247 = vpack.c.b16 %v1211, %v1207
        %v1248 = vpack.c.b16 %v1212, %v1208
        %v1249 = vpack.c.b16 %v1217, %v1213
        %v1250 = vpack.c.b16 %v1218, %v1214
        %v1251 = vpack.c.b16 %v1219, %v1215
        %v1252 = vpack.c.b16 %v1220, %v1216
        %1285 = vmatprep.subr.bf16.mxu0 %v1222
        %1286 = vmatpush1.bf16.msra.mxu0 %v1221
        %1287 = vmatprep.subr.bf16.mxu0 %v1226
        %1288 = vmatpush1.bf16.msra.mxu0 %v1225
        %1289 = vmatprep.subr.bf16.mxu0 %v1230
        %1290 = vmatpush1.bf16.msra.mxu0 %v1229
        %1291 = vmatprep.subr.bf16.mxu0 %v1234
        %1292 = vmatpush1.bf16.msra.mxu0 %v1233
        %1293 = vmatprep.subr.bf16.mxu0 %v1238
        %1294 = vmatpush1.bf16.msra.mxu0 %v1237
        %1295 = vmatprep.subr.bf16.mxu0 %v1242
        %1296 = vmatpush1.bf16.msra.mxu0 %v1241
        %1297 = vmatprep.subr.bf16.mxu0 %v1246
        %1298 = vmatpush1.bf16.msra.mxu0 %v1245
        %1299 = vmatprep.subr.bf16.mxu0 %v1250
        %1300 = vmatpush1.bf16.msra.mxu0 %v1249
        %1301 = vmatprep.subr.bf16.mxu0 0
        %1302 = vmatpush1.bf16.msra.mxu0 0
        %1303 = vmatprep.subr.bf16.mxu0 0
        %1304 = vmatpush1.bf16.msra.mxu0 0
        %1305 = vmatprep.subr.bf16.mxu0 0
        %1306 = vmatpush1.bf16.msra.mxu0 0
        %1307 = vmatprep.subr.bf16.mxu0 0
        %1308 = vmatpush1.bf16.msra.mxu0 0
        %1309 = vmatprep.subr.bf16.mxu0 0
        %1310 = vmatpush1.bf16.msra.mxu0 0
        %1311 = vmatprep.subr.bf16.mxu0 0
        %1312 = vmatpush1.bf16.msra.mxu0 0
        %1313 = vmatprep.subr.bf16.mxu0 0
        %1314 = vmatpush1.bf16.msra.mxu0 0
        %1315 = vmatprep.subr.bf16.mxu0 0
        %1316 = vmatpush1.bf16.msra.mxu0 0
        %1317 = vmatprep.mubr.bf16.mxu0 0
        %1318 = vmatmul.mubr.bf16.gmra.mrb[0].mxu0 %v443
        %v1319 = vpop.f32.mrb[0].mxu0
        %v1320 = vadd.f32 %v755, %v1319
        %v1321 = vpop.f32.mrb[0].mxu0
        %v1322 = vadd.f32 %v757, %v1321
        %v1323 = vpop.f32.mrb[0].mxu0
        %v1324 = vadd.f32 %v759, %v1323
        %v1325 = vpop.f32.mrb[0].mxu0
        %v1326 = vadd.f32 %v761, %v1325
        %1327 = vmatprep.mubr.bf16.mxu0 0
        %1328 = vmatmul.mubr.bf16.gmra.mrb[0].mxu0 %v444
        %v1329 = vpop.f32.mrb[0].mxu0
        %v1330 = vadd.f32 %v765, %v1329
        %v1331 = vpop.f32.mrb[0].mxu0
        %v1332 = vadd.f32 %v767, %v1331
        %v1333 = vpop.f32.mrb[0].mxu0
        %v1334 = vadd.f32 %v769, %v1333
        %v1335 = vpop.f32.mrb[0].mxu0
        %v1336 = vadd.f32 %v771, %v1335
        %1337 = vdwg.mxu0
        %1338 = vmatprep.subr.bf16.mxu0 %v1224
        %1339 = vmatpush1.bf16.msra.mxu0 %v1223
        %1340 = vmatprep.subr.bf16.mxu0 %v1228
        %1341 = vmatpush1.bf16.msra.mxu0 %v1227
        %1342 = vmatprep.subr.bf16.mxu0 %v1232
        %1343 = vmatpush1.bf16.msra.mxu0 %v1231
        %1344 = vmatprep.subr.bf16.mxu0 %v1236
        %1345 = vmatpush1.bf16.msra.mxu0 %v1235
        %1346 = vmatprep.subr.bf16.mxu0 %v1240
        %1347 = vmatpush1.bf16.msra.mxu0 %v1239
        %1348 = vmatprep.subr.bf16.mxu0 %v1244
        %1349 = vmatpush1.bf16.msra.mxu0 %v1243
        %1350 = vmatprep.subr.bf16.mxu0 %v1248
        %1351 = vmatpush1.bf16.msra.mxu0 %v1247
        %1352 = vmatprep.subr.bf16.mxu0 %v1252
        %1353 = vmatpush1.bf16.msra.mxu0 %v1251
        %1354 = vmatprep.subr.bf16.mxu0 0
        %1355 = vmatpush1.bf16.msra.mxu0 0
        %1356 = vmatprep.subr.bf16.mxu0 0
        %1357 = vmatpush1.bf16.msra.mxu0 0
        %1358 = vmatprep.subr.bf16.mxu0 0
        %1359 = vmatpush1.bf16.msra.mxu0 0
        %1360 = vmatprep.subr.bf16.mxu0 0
        %1361 = vmatpush1.bf16.msra.mxu0 0
        %1362 = vmatprep.subr.bf16.mxu0 0
        %1363 = vmatpush1.bf16.msra.mxu0 0
        %1364 = vmatprep.subr.bf16.mxu0 0
        %1365 = vmatpush1.bf16.msra.mxu0 0
        %1366 = vmatprep.subr.bf16.mxu0 0
        %1367 = vmatpush1.bf16.msra.mxu0 0
        %1368 = vmatprep.subr.bf16.mxu0 0
        %1369 = vmatpush1.bf16.msra.mxu0 0
        %1370 = vmatprep.mubr.bf16.mxu0 0
        %1371 = vmatmul.mubr.bf16.gmra.mrb[0].mxu0 %v443
        %v1372 = vpop.f32.mrb[0].mxu0
        %v1373 = vadd.f32 %v808, %v1372
        %v1374 = vpop.f32.mrb[0].mxu0
        %v1375 = vadd.f32 %v810, %v1374
        %v1376 = vpop.f32.mrb[0].mxu0
        %v1377 = vadd.f32 %v812, %v1376
        %v1378 = vpop.f32.mrb[0].mxu0
        %v1379 = vadd.f32 %v814, %v1378
        %1380 = vmatprep.mubr.bf16.mxu0 0
        %1381 = vmatmul.mubr.bf16.gmra.mrb[0].mxu0 %v444
        %v1382 = vpop.f32.mrb[0].mxu0
        %v1383 = vadd.f32 %v818, %v1382
        %v1384 = vpop.f32.mrb[0].mxu0
        %v1385 = vadd.f32 %v820, %v1384
        %v1386 = vpop.f32.mrb[0].mxu0
        %v1387 = vadd.f32 %v822, %v1386
        %v1388 = vpop.f32.mrb[0].mxu0
        %v1389 = vadd.f32 %v824, %v1388
        %1390 = vdwg.mxu0
        %v1423 = vunpack.c.l.b16 %v477
        %v1424 = vunpack.c.h.b16 %v477
        %v1425 = vunpack.c.l.b16 %v478
        %v1426 = vunpack.c.h.b16 %v478
        %v1427 = vunpack.c.l.b16 %v479
        %v1428 = vunpack.c.h.b16 %v479
        %v1429 = vunpack.c.l.b16 %v480
        %v1430 = vunpack.c.h.b16 %v480
        %v1431 = vunpack.c.l.b16 %v481
        %v1432 = vunpack.c.h.b16 %v481
        %v1433 = vunpack.c.l.b16 %v482
        %v1434 = vunpack.c.h.b16 %v482
        %v1435 = vunpack.c.l.b16 %v483
        %v1436 = vunpack.c.h.b16 %v483
        %v1437 = vunpack.c.l.b16 %v484
        %v1438 = vunpack.c.h.b16 %v484
        %v1439 = vunpack.c.l.b16 %v485
        %v1440 = vunpack.c.h.b16 %v485
        %v1441 = vunpack.c.l.b16 %v486
        %v1442 = vunpack.c.h.b16 %v486
        %v1443 = vunpack.c.l.b16 %v487
        %v1444 = vunpack.c.h.b16 %v487
        %v1445 = vunpack.c.l.b16 %v488
        %v1446 = vunpack.c.h.b16 %v488
        %v1447 = vunpack.c.l.b16 %v489
        %v1448 = vunpack.c.h.b16 %v489
        %v1449 = vunpack.c.l.b16 %v490
        %v1450 = vunpack.c.h.b16 %v490
        %v1451 = vunpack.c.l.b16 %v491
        %v1452 = vunpack.c.h.b16 %v491
        %v1453 = vunpack.c.l.b16 %v492
        %v1454 = vunpack.c.h.b16 %v492
        %v1455 = vunpack.c.l.b16 %v493
        %v1456 = vunpack.c.h.b16 %v493
        %v1457 = vunpack.c.l.b16 %v494
        %v1458 = vunpack.c.h.b16 %v494
        %v1459 = vunpack.c.l.b16 %v495
        %v1460 = vunpack.c.h.b16 %v495
        %v1461 = vunpack.c.l.b16 %v496
        %v1462 = vunpack.c.h.b16 %v496
        %v1463 = vunpack.c.l.b16 %v497
        %v1464 = vunpack.c.h.b16 %v497
        %v1465 = vunpack.c.l.b16 %v498
        %v1466 = vunpack.c.h.b16 %v498
        %v1467 = vunpack.c.l.b16 %v499
        %v1468 = vunpack.c.h.b16 %v499
        %v1469 = vunpack.c.l.b16 %v500
        %v1470 = vunpack.c.h.b16 %v500
        %v1471 = vunpack.c.l.b16 %v501
        %v1472 = vunpack.c.h.b16 %v501
        %v1473 = vunpack.c.l.b16 %v502
        %v1474 = vunpack.c.h.b16 %v502
        %v1475 = vunpack.c.l.b16 %v503
        %v1476 = vunpack.c.h.b16 %v503
        %v1477 = vunpack.c.l.b16 %v504
        %v1478 = vunpack.c.h.b16 %v504
        %v1479 = vunpack.c.l.b16 %v505
        %v1480 = vunpack.c.h.b16 %v505
        %v1481 = vunpack.c.l.b16 %v506
        %v1482 = vunpack.c.h.b16 %v506
        %v1483 = vunpack.c.l.b16 %v507
        %v1484 = vunpack.c.h.b16 %v507
        %v1485 = vunpack.c.l.b16 %v508
        %v1486 = vunpack.c.h.b16 %v508
        %v1487 = vpack.c.b16 %v1427, %v1423
        %v1488 = vpack.c.b16 %v1428, %v1424
        %v1489 = vpack.c.b16 %v1429, %v1425
        %v1490 = vpack.c.b16 %v1430, %v1426
        %v1491 = vpack.c.b16 %v1435, %v1431
        %v1492 = vpack.c.b16 %v1436, %v1432
        %v1493 = vpack.c.b16 %v1437, %v1433
        %v1494 = vpack.c.b16 %v1438, %v1434
        %v1495 = vpack.c.b16 %v1443, %v1439
        %v1496 = vpack.c.b16 %v1444, %v1440
        %v1497 = vpack.c.b16 %v1445, %v1441
        %v1498 = vpack.c.b16 %v1446, %v1442
        %v1499 = vpack.c.b16 %v1451, %v1447
        %v1500 = vpack.c.b16 %v1452, %v1448
        %v1501 = vpack.c.b16 %v1453, %v1449
        %v1502 = vpack.c.b16 %v1454, %v1450
        %v1503 = vpack.c.b16 %v1459, %v1455
        %v1504 = vpack.c.b16 %v1460, %v1456
        %v1505 = vpack.c.b16 %v1461, %v1457
        %v1506 = vpack.c.b16 %v1462, %v1458
        %v1507 = vpack.c.b16 %v1467, %v1463
        %v1508 = vpack.c.b16 %v1468, %v1464
        %v1509 = vpack.c.b16 %v1469, %v1465
        %v1510 = vpack.c.b16 %v1470, %v1466
        %v1511 = vpack.c.b16 %v1475, %v1471
        %v1512 = vpack.c.b16 %v1476, %v1472
        %v1513 = vpack.c.b16 %v1477, %v1473
        %v1514 = vpack.c.b16 %v1478, %v1474
        %v1515 = vpack.c.b16 %v1483, %v1479
        %v1516 = vpack.c.b16 %v1484, %v1480
        %v1517 = vpack.c.b16 %v1485, %v1481
        %v1518 = vpack.c.b16 %v1486, %v1482
        %1551 = vmatprep.subr.bf16.mxu0 %v1488
        %1552 = vmatpush1.bf16.msra.mxu0 %v1487
        %1553 = vmatprep.subr.bf16.mxu0 %v1492
        %1554 = vmatpush1.bf16.msra.mxu0 %v1491
        %1555 = vmatprep.subr.bf16.mxu0 %v1496
        %1556 = vmatpush1.bf16.msra.mxu0 %v1495
        %1557 = vmatprep.subr.bf16.mxu0 %v1500
        %1558 = vmatpush1.bf16.msra.mxu0 %v1499
        %1559 = vmatprep.subr.bf16.mxu0 %v1504
        %1560 = vmatpush1.bf16.msra.mxu0 %v1503
        %1561 = vmatprep.subr.bf16.mxu0 %v1508
        %1562 = vmatpush1.bf16.msra.mxu0 %v1507
        %1563 = vmatprep.subr.bf16.mxu0 %v1512
        %1564 = vmatpush1.bf16.msra.mxu0 %v1511
        %1565 = vmatprep.subr.bf16.mxu0 %v1516
        %1566 = vmatpush1.bf16.msra.mxu0 %v1515
        %1567 = vmatprep.subr.bf16.mxu0 0
        %1568 = vmatpush1.bf16.msra.mxu0 0
        %1569 = vmatprep.subr.bf16.mxu0 0
        %1570 = vmatpush1.bf16.msra.mxu0 0
        %1571 = vmatprep.subr.bf16.mxu0 0
        %1572 = vmatpush1.bf16.msra.mxu0 0
        %1573 = vmatprep.subr.bf16.mxu0 0
        %1574 = vmatpush1.bf16.msra.mxu0 0
        %1575 = vmatprep.subr.bf16.mxu0 0
        %1576 = vmatpush1.bf16.msra.mxu0 0
        %1577 = vmatprep.subr.bf16.mxu0 0
        %1578 = vmatpush1.bf16.msra.mxu0 0
        %1579 = vmatprep.subr.bf16.mxu0 0
        %1580 = vmatpush1.bf16.msra.mxu0 0
        %1581 = vmatprep.subr.bf16.mxu0 0
        %1582 = vmatpush1.bf16.msra.mxu0 0
        %1583 = vmatprep.mubr.bf16.mxu0 0
        %1584 = vmatmul.mubr.bf16.gmra.mrb[0].mxu0 %v443
        %v1585 = vpop.f32.mrb[0].mxu0
        %v1586 = vadd.f32 %v1054, %v1585
        %v1587 = vpop.f32.mrb[0].mxu0
        %v1588 = vadd.f32 %v1056, %v1587
        %v1589 = vpop.f32.mrb[0].mxu0
        %v1590 = vadd.f32 %v1058, %v1589
        %v1591 = vpop.f32.mrb[0].mxu0
        %v1592 = vadd.f32 %v1060, %v1591
        %1593 = vmatprep.mubr.bf16.mxu0 0
        %1594 = vmatmul.mubr.bf16.gmra.mrb[0].mxu0 %v444
        %v1595 = vpop.f32.mrb[0].mxu0
        %v1596 = vadd.f32 %v1064, %v1595
        %v1597 = vpop.f32.mrb[0].mxu0
        %v1598 = vadd.f32 %v1066, %v1597
        %v1599 = vpop.f32.mrb[0].mxu0
        %v1600 = vadd.f32 %v1068, %v1599
        %v1601 = vpop.f32.mrb[0].mxu0
        %v1602 = vadd.f32 %v1070, %v1601
        %1603 = vdwg.mxu0
        %1604 = vmatprep.subr.bf16.mxu0 %v1490
        %1605 = vmatpush1.bf16.msra.mxu0 %v1489
        %1606 = vmatprep.subr.bf16.mxu0 %v1494
        %1607 = vmatpush1.bf16.msra.mxu0 %v1493
        %1608 = vmatprep.subr.bf16.mxu0 %v1498
        %1609 = vmatpush1.bf16.msra.mxu0 %v1497
        %1610 = vmatprep.subr.bf16.mxu0 %v1502
        %1611 = vmatpush1.bf16.msra.mxu0 %v1501
        %1612 = vmatprep.subr.bf16.mxu0 %v1506
        %1613 = vmatpush1.bf16.msra.mxu0 %v1505
        %1614 = vmatprep.subr.bf16.mxu0 %v1510
        %1615 = vmatpush1.bf16.msra.mxu0 %v1509
        %1616 = vmatprep.subr.bf16.mxu0 %v1514
        %1617 = vmatpush1.bf16.msra.mxu0 %v1513
        %1618 = vmatprep.subr.bf16.mxu0 %v1518
        %1619 = vmatpush1.bf16.msra.mxu0 %v1517
        %1620 = vmatprep.subr.bf16.mxu0 0
        %1621 = vmatpush1.bf16.msra.mxu0 0
        %1622 = vmatprep.subr.bf16.mxu0 0
        %1623 = vmatpush1.bf16.msra.mxu0 0
        %1624 = vmatprep.subr.bf16.mxu0 0
        %1625 = vmatpush1.bf16.msra.mxu0 0
        %1626 = vmatprep.subr.bf16.mxu0 0
        %1627 = vmatpush1.bf16.msra.mxu0 0
        %1628 = vmatprep.subr.bf16.mxu0 0
        %1629 = vmatpush1.bf16.msra.mxu0 0
        %1630 = vmatprep.subr.bf16.mxu0 0
        %1631 = vmatpush1.bf16.msra.mxu0 0
        %1632 = vmatprep.subr.bf16.mxu0 0
        %1633 = vmatpush1.bf16.msra.mxu0 0
        %1634 = vmatprep.subr.bf16.mxu0 0
        %1635 = vmatpush1.bf16.msra.mxu0 0
        %1636 = vmatprep.mubr.bf16.mxu0 0
        %1637 = vmatmul.mubr.bf16.gmra.mrb[0].mxu0 %v443
        %v1638 = vpop.f32.mrb[0].mxu0
        %v1639 = vadd.f32 %v1107, %v1638
        %v1640 = vpop.f32.mrb[0].mxu0
        %v1641 = vadd.f32 %v1109, %v1640
        %v1642 = vpop.f32.mrb[0].mxu0
        %v1643 = vadd.f32 %v1111, %v1642
        %v1644 = vpop.f32.mrb[0].mxu0
        %v1645 = vadd.f32 %v1113, %v1644
        %1646 = vmatprep.mubr.bf16.mxu0 0
        %1647 = vmatmul.mubr.bf16.gmra.mrb[0].mxu0 %v444
        %v1648 = vpop.f32.mrb[0].mxu0
        %v1649 = vadd.f32 %v1117, %v1648
        %v1650 = vpop.f32.mrb[0].mxu0
        %v1651 = vadd.f32 %v1119, %v1650
        %v1652 = vpop.f32.mrb[0].mxu0
        %v1653 = vadd.f32 %v1121, %v1652
        %v1654 = vpop.f32.mrb[0].mxu0
        %v1655 = vadd.f32 %v1123, %v1654
        %1656 = vdwg.mxu0
        %s1657 = scalar_lea.vmem %s1, 512
        %v1658 = vld [vmem:[%s1657] sm:$0xff]
        %v1659 = vld [vmem:[%s1657 + $0x8] sm:$0xff]
        %v1660 = vld [vmem:[%s1657 + $0x10] sm:$0xff]
        %v1661 = vld [vmem:[%s1657 + $0x18] sm:$0xff]
        %v1662 = vld [vmem:[%s1657 + $0x20] sm:$0xff]
        %v1663 = vld [vmem:[%s1657 + $0x28] sm:$0xff]
        %v1664 = vld [vmem:[%s1657 + $0x30] sm:$0xff]
        %v1665 = vld [vmem:[%s1657 + $0x38] sm:$0xff]
        %v1666 = vld [vmem:[%s1657 + $0x40] sm:$0xff]
        %v1667 = vld [vmem:[%s1657 + $0x48] sm:$0xff]
        %v1668 = vld [vmem:[%s1657 + $0x50] sm:$0xff]
        %v1669 = vld [vmem:[%s1657 + $0x58] sm:$0xff]
        %v1670 = vld [vmem:[%s1657 + $0x60] sm:$0xff]
        %v1671 = vld [vmem:[%s1657 + $0x68] sm:$0xff]
        %v1672 = vld [vmem:[%s1657 + $0x70] sm:$0xff]
        %v1673 = vld [vmem:[%s1657 + $0x78] sm:$0xff]
        %v1674 = vld [vmem:[%s1657 + $0x80] sm:$0xff]
        %v1675 = vld [vmem:[%s1657 + $0x88] sm:$0xff]
        %v1676 = vld [vmem:[%s1657 + $0x90] sm:$0xff]
        %v1677 = vld [vmem:[%s1657 + $0x98] sm:$0xff]
        %v1678 = vld [vmem:[%s1657 + $0xa0] sm:$0xff]
        %v1679 = vld [vmem:[%s1657 + $0xa8] sm:$0xff]
        %v1680 = vld [vmem:[%s1657 + $0xb0] sm:$0xff]
        %v1681 = vld [vmem:[%s1657 + $0xb8] sm:$0xff]
        %v1682 = vld [vmem:[%s1657 + $0xc0] sm:$0xff]
        %v1683 = vld [vmem:[%s1657 + $0xc8] sm:$0xff]
        %v1684 = vld [vmem:[%s1657 + $0xd0] sm:$0xff]
        %v1685 = vld [vmem:[%s1657 + $0xd8] sm:$0xff]
        %v1686 = vld [vmem:[%s1657 + $0xe0] sm:$0xff]
        %v1687 = vld [vmem:[%s1657 + $0xe8] sm:$0xff]
        %v1688 = vld [vmem:[%s1657 + $0xf0] sm:$0xff]
        %v1689 = vld [vmem:[%s1657 + $0xf8] sm:$0xff]
        %vm1692 = vcmask 1046528
        %v1693 = vrot.slane %v443, 1
        %v1694 = vrot.slane %v444, 1
        %v1695 = vsel %vm1692, %v1693, %v1694
        %v1730 = vunpack.c.l.b16 %v1658
        %v1731 = vunpack.c.h.b16 %v1658
        %v1732 = vunpack.c.l.b16 %v1659
        %v1733 = vunpack.c.h.b16 %v1659
        %v1734 = vunpack.c.l.b16 %v1660
        %v1735 = vunpack.c.h.b16 %v1660
        %v1736 = vunpack.c.l.b16 %v1661
        %v1737 = vunpack.c.h.b16 %v1661
        %v1738 = vunpack.c.l.b16 %v1662
        %v1739 = vunpack.c.h.b16 %v1662
        %v1740 = vunpack.c.l.b16 %v1663
        %v1741 = vunpack.c.h.b16 %v1663
        %v1742 = vunpack.c.l.b16 %v1664
        %v1743 = vunpack.c.h.b16 %v1664
        %v1744 = vunpack.c.l.b16 %v1665
        %v1745 = vunpack.c.h.b16 %v1665
        %v1746 = vunpack.c.l.b16 %v1666
        %v1747 = vunpack.c.h.b16 %v1666
        %v1748 = vunpack.c.l.b16 %v1667
        %v1749 = vunpack.c.h.b16 %v1667
        %v1750 = vunpack.c.l.b16 %v1668
        %v1751 = vunpack.c.h.b16 %v1668
        %v1752 = vunpack.c.l.b16 %v1669
        %v1753 = vunpack.c.h.b16 %v1669
        %v1754 = vunpack.c.l.b16 %v1670
        %v1755 = vunpack.c.h.b16 %v1670
        %v1756 = vunpack.c.l.b16 %v1671
        %v1757 = vunpack.c.h.b16 %v1671
        %v1758 = vunpack.c.l.b16 %v1672
        %v1759 = vunpack.c.h.b16 %v1672
        %v1760 = vunpack.c.l.b16 %v1673
        %v1761 = vunpack.c.h.b16 %v1673
        %v1762 = vunpack.c.l.b16 %v1674
        %v1763 = vunpack.c.h.b16 %v1674
        %v1764 = vunpack.c.l.b16 %v1675
        %v1765 = vunpack.c.h.b16 %v1675
        %v1766 = vunpack.c.l.b16 %v1676
        %v1767 = vunpack.c.h.b16 %v1676
        %v1768 = vunpack.c.l.b16 %v1677
        %v1769 = vunpack.c.h.b16 %v1677
        %v1770 = vunpack.c.l.b16 %v1678
        %v1771 = vunpack.c.h.b16 %v1678
        %v1772 = vunpack.c.l.b16 %v1679
        %v1773 = vunpack.c.h.b16 %v1679
        %v1774 = vunpack.c.l.b16 %v1680
        %v1775 = vunpack.c.h.b16 %v1680
        %v1776 = vunpack.c.l.b16 %v1681
        %v1777 = vunpack.c.h.b16 %v1681
        %v1778 = vunpack.c.l.b16 %v1682
        %v1779 = vunpack.c.h.b16 %v1682
        %v1780 = vunpack.c.l.b16 %v1683
        %v1781 = vunpack.c.h.b16 %v1683
        %v1782 = vunpack.c.l.b16 %v1684
        %v1783 = vunpack.c.h.b16 %v1684
        %v1784 = vunpack.c.l.b16 %v1685
        %v1785 = vunpack.c.h.b16 %v1685
        %v1786 = vunpack.c.l.b16 %v1686
        %v1787 = vunpack.c.h.b16 %v1686
        %v1788 = vunpack.c.l.b16 %v1687
        %v1789 = vunpack.c.h.b16 %v1687
        %v1790 = vunpack.c.l.b16 %v1688
        %v1791 = vunpack.c.h.b16 %v1688
        %v1792 = vunpack.c.l.b16 %v1689
        %v1793 = vunpack.c.h.b16 %v1689
        %v1794 = vpack.c.b16 %v1734, %v1730
        %v1795 = vpack.c.b16 %v1735, %v1731
        %v1796 = vpack.c.b16 %v1736, %v1732
        %v1797 = vpack.c.b16 %v1737, %v1733
        %v1798 = vpack.c.b16 %v1742, %v1738
        %v1799 = vpack.c.b16 %v1743, %v1739
        %v1800 = vpack.c.b16 %v1744, %v1740
        %v1801 = vpack.c.b16 %v1745, %v1741
        %v1802 = vpack.c.b16 %v1750, %v1746
        %v1803 = vpack.c.b16 %v1751, %v1747
        %v1804 = vpack.c.b16 %v1752, %v1748
        %v1805 = vpack.c.b16 %v1753, %v1749
        %v1806 = vpack.c.b16 %v1758, %v1754
        %v1807 = vpack.c.b16 %v1759, %v1755
        %v1808 = vpack.c.b16 %v1760, %v1756
        %v1809 = vpack.c.b16 %v1761, %v1757
        %v1810 = vpack.c.b16 %v1766, %v1762
        %v1811 = vpack.c.b16 %v1767, %v1763
        %v1812 = vpack.c.b16 %v1768, %v1764
        %v1813 = vpack.c.b16 %v1769, %v1765
        %v1814 = vpack.c.b16 %v1774, %v1770
        %v1815 = vpack.c.b16 %v1775, %v1771
        %v1816 = vpack.c.b16 %v1776, %v1772
        %v1817 = vpack.c.b16 %v1777, %v1773
        %v1818 = vpack.c.b16 %v1782, %v1778
        %v1819 = vpack.c.b16 %v1783, %v1779
        %v1820 = vpack.c.b16 %v1784, %v1780
        %v1821 = vpack.c.b16 %v1785, %v1781
        %v1822 = vpack.c.b16 %v1790, %v1786
        %v1823 = vpack.c.b16 %v1791, %v1787
        %v1824 = vpack.c.b16 %v1792, %v1788
        %v1825 = vpack.c.b16 %v1793, %v1789
        %1858 = vmatprep.subr.bf16.mxu0 %v1795
        %1859 = vmatpush1.bf16.msra.mxu0 %v1794
        %1860 = vmatprep.subr.bf16.mxu0 %v1799
        %1861 = vmatpush1.bf16.msra.mxu0 %v1798
        %1862 = vmatprep.subr.bf16.mxu0 %v1803
        %1863 = vmatpush1.bf16.msra.mxu0 %v1802
        %1864 = vmatprep.subr.bf16.mxu0 %v1807
        %1865 = vmatpush1.bf16.msra.mxu0 %v1806
        %1866 = vmatprep.subr.bf16.mxu0 %v1811
        %1867 = vmatpush1.bf16.msra.mxu0 %v1810
        %1868 = vmatprep.subr.bf16.mxu0 %v1815
        %1869 = vmatpush1.bf16.msra.mxu0 %v1814
        %1870 = vmatprep.subr.bf16.mxu0 %v1819
        %1871 = vmatpush1.bf16.msra.mxu0 %v1818
        %1872 = vmatprep.subr.bf16.mxu0 %v1823
        %1873 = vmatpush1.bf16.msra.mxu0 %v1822
        %1874 = vmatprep.subr.bf16.mxu0 0
        %1875 = vmatpush1.bf16.msra.mxu0 0
        %1876 = vmatprep.subr.bf16.mxu0 0
        %1877 = vmatpush1.bf16.msra.mxu0 0
        %1878 = vmatprep.subr.bf16.mxu0 0
        %1879 = vmatpush1.bf16.msra.mxu0 0
        %1880 = vmatprep.subr.bf16.mxu0 0
        %1881 = vmatpush1.bf16.msra.mxu0 0
        %1882 = vmatprep.subr.bf16.mxu0 0
        %1883 = vmatpush1.bf16.msra.mxu0 0
        %1884 = vmatprep.subr.bf16.mxu0 0
        %1885 = vmatpush1.bf16.msra.mxu0 0
        %1886 = vmatprep.subr.bf16.mxu0 0
        %1887 = vmatpush1.bf16.msra.mxu0 0
        %1888 = vmatprep.subr.bf16.mxu0 0
        %1889 = vmatpush1.bf16.msra.mxu0 0
        %1890 = vmatprep.mubr.bf16.mxu0 0
        %1891 = vmatmul.mubr.bf16.gmra.mrb[0].mxu0 %v1695
        %v1892 = vpop.f32.mrb[0].mxu0
        %v1893 = vadd.f32 0.0, %v1892
        %v1894 = vpop.f32.mrb[0].mxu0
        %v1895 = vadd.f32 0.0, %v1894
        %v1896 = vpop.f32.mrb[0].mxu0
        %v1897 = vadd.f32 0.0, %v1896
        %v1898 = vpop.f32.mrb[0].mxu0
        %v1899 = vadd.f32 0.0, %v1898
        %1900 = vmatprep.mubr.bf16.mxu0 0
        %1901 = vmatmul.mubr.bf16.gmra.mrb[0].mxu0 %v1694
        %v1902 = vpop.f32.mrb[0].mxu0
        %v1903 = vadd.f32 0.0, %v1902
        %v1904 = vpop.f32.mrb[0].mxu0
        %v1905 = vadd.f32 0.0, %v1904
        %v1906 = vpop.f32.mrb[0].mxu0
        %v1907 = vadd.f32 0.0, %v1906
        %v1908 = vpop.f32.mrb[0].mxu0
        %v1909 = vadd.f32 0.0, %v1908
        %1910 = vdwg.mxu0
        %1911 = vmatprep.subr.bf16.mxu0 %v1797
        %1912 = vmatpush1.bf16.msra.mxu0 %v1796
        %1913 = vmatprep.subr.bf16.mxu0 %v1801
        %1914 = vmatpush1.bf16.msra.mxu0 %v1800
        %1915 = vmatprep.subr.bf16.mxu0 %v1805
        %1916 = vmatpush1.bf16.msra.mxu0 %v1804
        %1917 = vmatprep.subr.bf16.mxu0 %v1809
        %1918 = vmatpush1.bf16.msra.mxu0 %v1808
        %1919 = vmatprep.subr.bf16.mxu0 %v1813
        %1920 = vmatpush1.bf16.msra.mxu0 %v1812
        %1921 = vmatprep.subr.bf16.mxu0 %v1817
        %1922 = vmatpush1.bf16.msra.mxu0 %v1816
        %1923 = vmatprep.subr.bf16.mxu0 %v1821
        %1924 = vmatpush1.bf16.msra.mxu0 %v1820
        %1925 = vmatprep.subr.bf16.mxu0 %v1825
        %1926 = vmatpush1.bf16.msra.mxu0 %v1824
        %1927 = vmatprep.subr.bf16.mxu0 0
        %1928 = vmatpush1.bf16.msra.mxu0 0
        %1929 = vmatprep.subr.bf16.mxu0 0
        %1930 = vmatpush1.bf16.msra.mxu0 0
        %1931 = vmatprep.subr.bf16.mxu0 0
        %1932 = vmatpush1.bf16.msra.mxu0 0
        %1933 = vmatprep.subr.bf16.mxu0 0
        %1934 = vmatpush1.bf16.msra.mxu0 0
        %1935 = vmatprep.subr.bf16.mxu0 0
        %1936 = vmatpush1.bf16.msra.mxu0 0
        %1937 = vmatprep.subr.bf16.mxu0 0
        %1938 = vmatpush1.bf16.msra.mxu0 0
        %1939 = vmatprep.subr.bf16.mxu0 0
        %1940 = vmatpush1.bf16.msra.mxu0 0
        %1941 = vmatprep.subr.bf16.mxu0 0
        %1942 = vmatpush1.bf16.msra.mxu0 0
        %1943 = vmatprep.mubr.bf16.mxu0 0
        %1944 = vmatmul.mubr.bf16.gmra.mrb[0].mxu0 %v1695
        %v1945 = vpop.f32.mrb[0].mxu0
        %v1946 = vadd.f32 0.0, %v1945
        %v1947 = vpop.f32.mrb[0].mxu0
        %v1948 = vadd.f32 0.0, %v1947
        %v1949 = vpop.f32.mrb[0].mxu0
        %v1950 = vadd.f32 0.0, %v1949
        %v1951 = vpop.f32.mrb[0].mxu0
        %v1952 = vadd.f32 0.0, %v1951
        %1953 = vmatprep.mubr.bf16.mxu0 0
        %1954 = vmatmul.mubr.bf16.gmra.mrb[0].mxu0 %v1694
        %v1955 = vpop.f32.mrb[0].mxu0
        %v1956 = vadd.f32 0.0, %v1955
        %v1957 = vpop.f32.mrb[0].mxu0
        %v1958 = vadd.f32 0.0, %v1957
        %v1959 = vpop.f32.mrb[0].mxu0
        %v1960 = vadd.f32 0.0, %v1959
        %v1961 = vpop.f32.mrb[0].mxu0
        %v1962 = vadd.f32 0.0, %v1961
        %1963 = vdwg.mxu0
        %s1964 = scalar_lea.vmem %s2, 512
        %v1965 = vld [vmem:[%s1964] sm:$0xff]
        %v1966 = vld [vmem:[%s1964 + $0x8] sm:$0xff]
        %v1967 = vld [vmem:[%s1964 + $0x10] sm:$0xff]
        %v1968 = vld [vmem:[%s1964 + $0x18] sm:$0xff]
        %v1969 = vld [vmem:[%s1964 + $0x20] sm:$0xff]
        %v1970 = vld [vmem:[%s1964 + $0x28] sm:$0xff]
        %v1971 = vld [vmem:[%s1964 + $0x30] sm:$0xff]
        %v1972 = vld [vmem:[%s1964 + $0x38] sm:$0xff]
        %v1973 = vld [vmem:[%s1964 + $0x40] sm:$0xff]
        %v1974 = vld [vmem:[%s1964 + $0x48] sm:$0xff]
        %v1975 = vld [vmem:[%s1964 + $0x50] sm:$0xff]
        %v1976 = vld [vmem:[%s1964 + $0x58] sm:$0xff]
        %v1977 = vld [vmem:[%s1964 + $0x60] sm:$0xff]
        %v1978 = vld [vmem:[%s1964 + $0x68] sm:$0xff]
        %v1979 = vld [vmem:[%s1964 + $0x70] sm:$0xff]
        %v1980 = vld [vmem:[%s1964 + $0x78] sm:$0xff]
        %v1981 = vld [vmem:[%s1964 + $0x80] sm:$0xff]
        %v1982 = vld [vmem:[%s1964 + $0x88] sm:$0xff]
        %v1983 = vld [vmem:[%s1964 + $0x90] sm:$0xff]
        %v1984 = vld [vmem:[%s1964 + $0x98] sm:$0xff]
        %v1985 = vld [vmem:[%s1964 + $0xa0] sm:$0xff]
        %v1986 = vld [vmem:[%s1964 + $0xa8] sm:$0xff]
        %v1987 = vld [vmem:[%s1964 + $0xb0] sm:$0xff]
        %v1988 = vld [vmem:[%s1964 + $0xb8] sm:$0xff]
        %v1989 = vld [vmem:[%s1964 + $0xc0] sm:$0xff]
        %v1990 = vld [vmem:[%s1964 + $0xc8] sm:$0xff]
        %v1991 = vld [vmem:[%s1964 + $0xd0] sm:$0xff]
        %v1992 = vld [vmem:[%s1964 + $0xd8] sm:$0xff]
        %v1993 = vld [vmem:[%s1964 + $0xe0] sm:$0xff]
        %v1994 = vld [vmem:[%s1964 + $0xe8] sm:$0xff]
        %v1995 = vld [vmem:[%s1964 + $0xf0] sm:$0xff]
        %v1996 = vld [vmem:[%s1964 + $0xf8] sm:$0xff]
        %v2029 = vunpack.c.l.b16 %v1965
        %v2030 = vunpack.c.h.b16 %v1965
        %v2031 = vunpack.c.l.b16 %v1966
        %v2032 = vunpack.c.h.b16 %v1966
        %v2033 = vunpack.c.l.b16 %v1967
        %v2034 = vunpack.c.h.b16 %v1967
        %v2035 = vunpack.c.l.b16 %v1968
        %v2036 = vunpack.c.h.b16 %v1968
        %v2037 = vunpack.c.l.b16 %v1969
        %v2038 = vunpack.c.h.b16 %v1969
        %v2039 = vunpack.c.l.b16 %v1970
        %v2040 = vunpack.c.h.b16 %v1970
        %v2041 = vunpack.c.l.b16 %v1971
        %v2042 = vunpack.c.h.b16 %v1971
        %v2043 = vunpack.c.l.b16 %v1972
        %v2044 = vunpack.c.h.b16 %v1972
        %v2045 = vunpack.c.l.b16 %v1973
        %v2046 = vunpack.c.h.b16 %v1973
        %v2047 = vunpack.c.l.b16 %v1974
        %v2048 = vunpack.c.h.b16 %v1974
        %v2049 = vunpack.c.l.b16 %v1975
        %v2050 = vunpack.c.h.b16 %v1975
        %v2051 = vunpack.c.l.b16 %v1976
        %v2052 = vunpack.c.h.b16 %v1976
        %v2053 = vunpack.c.l.b16 %v1977
        %v2054 = vunpack.c.h.b16 %v1977
        %v2055 = vunpack.c.l.b16 %v1978
        %v2056 = vunpack.c.h.b16 %v1978
        %v2057 = vunpack.c.l.b16 %v1979
        %v2058 = vunpack.c.h.b16 %v1979
        %v2059 = vunpack.c.l.b16 %v1980
        %v2060 = vunpack.c.h.b16 %v1980
        %v2061 = vunpack.c.l.b16 %v1981
        %v2062 = vunpack.c.h.b16 %v1981
        %v2063 = vunpack.c.l.b16 %v1982
        %v2064 = vunpack.c.h.b16 %v1982
        %v2065 = vunpack.c.l.b16 %v1983
        %v2066 = vunpack.c.h.b16 %v1983
        %v2067 = vunpack.c.l.b16 %v1984
        %v2068 = vunpack.c.h.b16 %v1984
        %v2069 = vunpack.c.l.b16 %v1985
        %v2070 = vunpack.c.h.b16 %v1985
        %v2071 = vunpack.c.l.b16 %v1986
        %v2072 = vunpack.c.h.b16 %v1986
        %v2073 = vunpack.c.l.b16 %v1987
        %v2074 = vunpack.c.h.b16 %v1987
        %v2075 = vunpack.c.l.b16 %v1988
        %v2076 = vunpack.c.h.b16 %v1988
        %v2077 = vunpack.c.l.b16 %v1989
        %v2078 = vunpack.c.h.b16 %v1989
        %v2079 = vunpack.c.l.b16 %v1990
        %v2080 = vunpack.c.h.b16 %v1990
        %v2081 = vunpack.c.l.b16 %v1991
        %v2082 = vunpack.c.h.b16 %v1991
        %v2083 = vunpack.c.l.b16 %v1992
        %v2084 = vunpack.c.h.b16 %v1992
        %v2085 = vunpack.c.l.b16 %v1993
        %v2086 = vunpack.c.h.b16 %v1993
        %v2087 = vunpack.c.l.b16 %v1994
        %v2088 = vunpack.c.h.b16 %v1994
        %v2089 = vunpack.c.l.b16 %v1995
        %v2090 = vunpack.c.h.b16 %v1995
        %v2091 = vunpack.c.l.b16 %v1996
        %v2092 = vunpack.c.h.b16 %v1996
        %v2093 = vpack.c.b16 %v2033, %v2029
        %v2094 = vpack.c.b16 %v2034, %v2030
        %v2095 = vpack.c.b16 %v2035, %v2031
        %v2096 = vpack.c.b16 %v2036, %v2032
        %v2097 = vpack.c.b16 %v2041, %v2037
        %v2098 = vpack.c.b16 %v2042, %v2038
        %v2099 = vpack.c.b16 %v2043, %v2039
        %v2100 = vpack.c.b16 %v2044, %v2040
        %v2101 = vpack.c.b16 %v2049, %v2045
        %v2102 = vpack.c.b16 %v2050, %v2046
        %v2103 = vpack.c.b16 %v2051, %v2047
        %v2104 = vpack.c.b16 %v2052, %v2048
        %v2105 = vpack.c.b16 %v2057, %v2053
        %v2106 = vpack.c.b16 %v2058, %v2054
        %v2107 = vpack.c.b16 %v2059, %v2055
        %v2108 = vpack.c.b16 %v2060, %v2056
        %v2109 = vpack.c.b16 %v2065, %v2061
        %v2110 = vpack.c.b16 %v2066, %v2062
        %v2111 = vpack.c.b16 %v2067, %v2063
        %v2112 = vpack.c.b16 %v2068, %v2064
        %v2113 = vpack.c.b16 %v2073, %v2069
        %v2114 = vpack.c.b16 %v2074, %v2070
        %v2115 = vpack.c.b16 %v2075, %v2071
        %v2116 = vpack.c.b16 %v2076, %v2072
        %v2117 = vpack.c.b16 %v2081, %v2077
        %v2118 = vpack.c.b16 %v2082, %v2078
        %v2119 = vpack.c.b16 %v2083, %v2079
        %v2120 = vpack.c.b16 %v2084, %v2080
        %v2121 = vpack.c.b16 %v2089, %v2085
        %v2122 = vpack.c.b16 %v2090, %v2086
        %v2123 = vpack.c.b16 %v2091, %v2087
        %v2124 = vpack.c.b16 %v2092, %v2088
        %2157 = vmatprep.subr.bf16.mxu0 %v2094
        %2158 = vmatpush1.bf16.msra.mxu0 %v2093
        %2159 = vmatprep.subr.bf16.mxu0 %v2098
        %2160 = vmatpush1.bf16.msra.mxu0 %v2097
        %2161 = vmatprep.subr.bf16.mxu0 %v2102
        %2162 = vmatpush1.bf16.msra.mxu0 %v2101
        %2163 = vmatprep.subr.bf16.mxu0 %v2106
        %2164 = vmatpush1.bf16.msra.mxu0 %v2105
        %2165 = vmatprep.subr.bf16.mxu0 %v2110
        %2166 = vmatpush1.bf16.msra.mxu0 %v2109
        %2167 = vmatprep.subr.bf16.mxu0 %v2114
        %2168 = vmatpush1.bf16.msra.mxu0 %v2113
        %2169 = vmatprep.subr.bf16.mxu0 %v2118
        %2170 = vmatpush1.bf16.msra.mxu0 %v2117
        %2171 = vmatprep.subr.bf16.mxu0 %v2122
        %2172 = vmatpush1.bf16.msra.mxu0 %v2121
        %2173 = vmatprep.subr.bf16.mxu0 0
        %2174 = vmatpush1.bf16.msra.mxu0 0
        %2175 = vmatprep.subr.bf16.mxu0 0
        %2176 = vmatpush1.bf16.msra.mxu0 0
        %2177 = vmatprep.subr.bf16.mxu0 0
        %2178 = vmatpush1.bf16.msra.mxu0 0
        %2179 = vmatprep.subr.bf16.mxu0 0
        %2180 = vmatpush1.bf16.msra.mxu0 0
        %2181 = vmatprep.subr.bf16.mxu0 0
        %2182 = vmatpush1.bf16.msra.mxu0 0
        %2183 = vmatprep.subr.bf16.mxu0 0
        %2184 = vmatpush1.bf16.msra.mxu0 0
        %2185 = vmatprep.subr.bf16.mxu0 0
        %2186 = vmatpush1.bf16.msra.mxu0 0
        %2187 = vmatprep.subr.bf16.mxu0 0
        %2188 = vmatpush1.bf16.msra.mxu0 0
        %2189 = vmatprep.mubr.bf16.mxu0 0
        %2190 = vmatmul.mubr.bf16.gmra.mrb[0].mxu0 %v1695
        %v2191 = vpop.f32.mrb[0].mxu0
        %v2192 = vadd.f32 0.0, %v2191
        %v2193 = vpop.f32.mrb[0].mxu0
        %v2194 = vadd.f32 0.0, %v2193
        %v2195 = vpop.f32.mrb[0].mxu0
        %v2196 = vadd.f32 0.0, %v2195
        %v2197 = vpop.f32.mrb[0].mxu0
        %v2198 = vadd.f32 0.0, %v2197
        %2199 = vmatprep.mubr.bf16.mxu0 0
        %2200 = vmatmul.mubr.bf16.gmra.mrb[0].mxu0 %v1694
        %v2201 = vpop.f32.mrb[0].mxu0
        %v2202 = vadd.f32 0.0, %v2201
        %v2203 = vpop.f32.mrb[0].mxu0
        %v2204 = vadd.f32 0.0, %v2203
        %v2205 = vpop.f32.mrb[0].mxu0
        %v2206 = vadd.f32 0.0, %v2205
        %v2207 = vpop.f32.mrb[0].mxu0
        %v2208 = vadd.f32 0.0, %v2207
        %2209 = vdwg.mxu0
        %2210 = vmatprep.subr.bf16.mxu0 %v2096
        %2211 = vmatpush1.bf16.msra.mxu0 %v2095
        %2212 = vmatprep.subr.bf16.mxu0 %v2100
        %2213 = vmatpush1.bf16.msra.mxu0 %v2099
        %2214 = vmatprep.subr.bf16.mxu0 %v2104
        %2215 = vmatpush1.bf16.msra.mxu0 %v2103
        %2216 = vmatprep.subr.bf16.mxu0 %v2108
        %2217 = vmatpush1.bf16.msra.mxu0 %v2107
        %2218 = vmatprep.subr.bf16.mxu0 %v2112
        %2219 = vmatpush1.bf16.msra.mxu0 %v2111
        %2220 = vmatprep.subr.bf16.mxu0 %v2116
        %2221 = vmatpush1.bf16.msra.mxu0 %v2115
        %2222 = vmatprep.subr.bf16.mxu0 %v2120
        %2223 = vmatpush1.bf16.msra.mxu0 %v2119
        %2224 = vmatprep.subr.bf16.mxu0 %v2124
        %2225 = vmatpush1.bf16.msra.mxu0 %v2123
        %2226 = vmatprep.subr.bf16.mxu0 0
        %2227 = vmatpush1.bf16.msra.mxu0 0
        %2228 = vmatprep.subr.bf16.mxu0 0
        %2229 = vmatpush1.bf16.msra.mxu0 0
        %2230 = vmatprep.subr.bf16.mxu0 0
        %2231 = vmatpush1.bf16.msra.mxu0 0
        %2232 = vmatprep.subr.bf16.mxu0 0
        %2233 = vmatpush1.bf16.msra.mxu0 0
        %2234 = vmatprep.subr.bf16.mxu0 0
        %2235 = vmatpush1.bf16.msra.mxu0 0
        %2236 = vmatprep.subr.bf16.mxu0 0
        %2237 = vmatpush1.bf16.msra.mxu0 0
        %2238 = vmatprep.subr.bf16.mxu0 0
        %2239 = vmatpush1.bf16.msra.mxu0 0
        %2240 = vmatprep.subr.bf16.mxu0 0
        %2241 = vmatpush1.bf16.msra.mxu0 0
        %2242 = vmatprep.mubr.bf16.mxu0 0
        %2243 = vmatmul.mubr.bf16.gmra.mrb[0].mxu0 %v1695
        %v2244 = vpop.f32.mrb[0].mxu0
        %v2245 = vadd.f32 0.0, %v2244
        %v2246 = vpop.f32.mrb[0].mxu0
        %v2247 = vadd.f32 0.0, %v2246
        %v2248 = vpop.f32.mrb[0].mxu0
        %v2249 = vadd.f32 0.0, %v2248
        %v2250 = vpop.f32.mrb[0].mxu0
        %v2251 = vadd.f32 0.0, %v2250
        %2252 = vmatprep.mubr.bf16.mxu0 0
        %2253 = vmatmul.mubr.bf16.gmra.mrb[0].mxu0 %v1694
        %v2254 = vpop.f32.mrb[0].mxu0
        %v2255 = vadd.f32 0.0, %v2254
        %v2256 = vpop.f32.mrb[0].mxu0
        %v2257 = vadd.f32 0.0, %v2256
        %v2258 = vpop.f32.mrb[0].mxu0
        %v2259 = vadd.f32 0.0, %v2258
        %v2260 = vpop.f32.mrb[0].mxu0
        %v2261 = vadd.f32 0.0, %v2260
        %2262 = vdwg.mxu0
        %v2263 = vadd.f32 %v1320, %v1893
        %v2264 = vadd.f32 %v1322, %v1895
        %v2265 = vadd.f32 %v1373, %v1946
        %v2266 = vadd.f32 %v1375, %v1948
        %v2267 = vadd.f32 %v1324, %v1897
        %v2268 = vadd.f32 %v1326, %v1899
        %v2269 = vadd.f32 %v1377, %v1950
        %v2270 = vadd.f32 %v1379, %v1952
        %v2271 = vadd.f32 %v1330, %v1903
        %v2272 = vadd.f32 %v1332, %v1905
        %v2273 = vadd.f32 %v1383, %v1956
        %v2274 = vadd.f32 %v1385, %v1958
        %v2275 = vadd.f32 %v1334, %v1907
        %v2276 = vadd.f32 %v1336, %v1909
        %v2277 = vadd.f32 %v1387, %v1960
        %v2278 = vadd.f32 %v1389, %v1962
        %v2279 = vadd.f32 %v1586, %v2192
        %v2280 = vadd.f32 %v1588, %v2194
        %v2281 = vadd.f32 %v1639, %v2245
        %v2282 = vadd.f32 %v1641, %v2247
        %v2283 = vadd.f32 %v1590, %v2196
        %v2284 = vadd.f32 %v1592, %v2198
        %v2285 = vadd.f32 %v1643, %v2249
        %v2286 = vadd.f32 %v1645, %v2251
        %v2287 = vadd.f32 %v1596, %v2202
        %v2288 = vadd.f32 %v1598, %v2204
        %v2289 = vadd.f32 %v1649, %v2255
        %v2290 = vadd.f32 %v1651, %v2257
        %v2291 = vadd.f32 %v1600, %v2206
        %v2292 = vadd.f32 %v1602, %v2208
        %v2293 = vadd.f32 %v1653, %v2259
        %v2294 = vadd.f32 %v1655, %v2261
        %s2295 = scalar_lea.vmem %s1, 768
        %v2296 = vld [vmem:[%s2295] sm:$0xff]
        %v2297 = vld [vmem:[%s2295 + $0x8] sm:$0xff]
        %v2298 = vld [vmem:[%s2295 + $0x10] sm:$0xff]
        %v2299 = vld [vmem:[%s2295 + $0x18] sm:$0xff]
        %v2300 = vld [vmem:[%s2295 + $0x20] sm:$0xff]
        %v2301 = vld [vmem:[%s2295 + $0x28] sm:$0xff]
        %v2302 = vld [vmem:[%s2295 + $0x30] sm:$0xff]
        %v2303 = vld [vmem:[%s2295 + $0x38] sm:$0xff]
        %v2304 = vld [vmem:[%s2295 + $0x40] sm:$0xff]
        %v2305 = vld [vmem:[%s2295 + $0x48] sm:$0xff]
        %v2306 = vld [vmem:[%s2295 + $0x50] sm:$0xff]
        %v2307 = vld [vmem:[%s2295 + $0x58] sm:$0xff]
        %v2308 = vld [vmem:[%s2295 + $0x60] sm:$0xff]
        %v2309 = vld [vmem:[%s2295 + $0x68] sm:$0xff]
        %v2310 = vld [vmem:[%s2295 + $0x70] sm:$0xff]
        %v2311 = vld [vmem:[%s2295 + $0x78] sm:$0xff]
        %v2312 = vld [vmem:[%s2295 + $0x80] sm:$0xff]
        %v2313 = vld [vmem:[%s2295 + $0x88] sm:$0xff]
        %v2314 = vld [vmem:[%s2295 + $0x90] sm:$0xff]
        %v2315 = vld [vmem:[%s2295 + $0x98] sm:$0xff]
        %v2316 = vld [vmem:[%s2295 + $0xa0] sm:$0xff]
        %v2317 = vld [vmem:[%s2295 + $0xa8] sm:$0xff]
        %v2318 = vld [vmem:[%s2295 + $0xb0] sm:$0xff]
        %v2319 = vld [vmem:[%s2295 + $0xb8] sm:$0xff]
        %v2320 = vld [vmem:[%s2295 + $0xc0] sm:$0xff]
        %v2321 = vld [vmem:[%s2295 + $0xc8] sm:$0xff]
        %v2322 = vld [vmem:[%s2295 + $0xd0] sm:$0xff]
        %v2323 = vld [vmem:[%s2295 + $0xd8] sm:$0xff]
        %v2324 = vld [vmem:[%s2295 + $0xe0] sm:$0xff]
        %v2325 = vld [vmem:[%s2295 + $0xe8] sm:$0xff]
        %v2326 = vld [vmem:[%s2295 + $0xf0] sm:$0xff]
        %v2327 = vld [vmem:[%s2295 + $0xf8] sm:$0xff]
        %vm2328 = vsmask.f32 6400
        %v2329 = vrot.slane %v544, 1
        %v2330 = vrot.slane %v546, 2
        %v2331 = vor.u32 %v2329, %v2330
        %v2332 = vrot.slane %v555, 1
        %v2333 = vrot.slane %v551, 2
        %v2334 = vor.u32 %v2332, %v2333
        %v2335 = vsel %vm2328, %v2331, %v2334
        %v2370 = vunpack.c.l.b16 %v2296
        %v2371 = vunpack.c.h.b16 %v2296
        %v2372 = vunpack.c.l.b16 %v2297
        %v2373 = vunpack.c.h.b16 %v2297
        %v2374 = vunpack.c.l.b16 %v2298
        %v2375 = vunpack.c.h.b16 %v2298
        %v2376 = vunpack.c.l.b16 %v2299
        %v2377 = vunpack.c.h.b16 %v2299
        %v2378 = vunpack.c.l.b16 %v2300
        %v2379 = vunpack.c.h.b16 %v2300
        %v2380 = vunpack.c.l.b16 %v2301
        %v2381 = vunpack.c.h.b16 %v2301
        %v2382 = vunpack.c.l.b16 %v2302
        %v2383 = vunpack.c.h.b16 %v2302
        %v2384 = vunpack.c.l.b16 %v2303
        %v2385 = vunpack.c.h.b16 %v2303
        %v2386 = vunpack.c.l.b16 %v2304
        %v2387 = vunpack.c.h.b16 %v2304
        %v2388 = vunpack.c.l.b16 %v2305
        %v2389 = vunpack.c.h.b16 %v2305
        %v2390 = vunpack.c.l.b16 %v2306
        %v2391 = vunpack.c.h.b16 %v2306
        %v2392 = vunpack.c.l.b16 %v2307
        %v2393 = vunpack.c.h.b16 %v2307
        %v2394 = vunpack.c.l.b16 %v2308
        %v2395 = vunpack.c.h.b16 %v2308
        %v2396 = vunpack.c.l.b16 %v2309
        %v2397 = vunpack.c.h.b16 %v2309
        %v2398 = vunpack.c.l.b16 %v2310
        %v2399 = vunpack.c.h.b16 %v2310
        %v2400 = vunpack.c.l.b16 %v2311
        %v2401 = vunpack.c.h.b16 %v2311
        %v2402 = vunpack.c.l.b16 %v2312
        %v2403 = vunpack.c.h.b16 %v2312
        %v2404 = vunpack.c.l.b16 %v2313
        %v2405 = vunpack.c.h.b16 %v2313
        %v2406 = vunpack.c.l.b16 %v2314
        %v2407 = vunpack.c.h.b16 %v2314
        %v2408 = vunpack.c.l.b16 %v2315
        %v2409 = vunpack.c.h.b16 %v2315
        %v2410 = vunpack.c.l.b16 %v2316
        %v2411 = vunpack.c.h.b16 %v2316
        %v2412 = vunpack.c.l.b16 %v2317
        %v2413 = vunpack.c.h.b16 %v2317
        %v2414 = vunpack.c.l.b16 %v2318
        %v2415 = vunpack.c.h.b16 %v2318
        %v2416 = vunpack.c.l.b16 %v2319
        %v2417 = vunpack.c.h.b16 %v2319
        %v2418 = vunpack.c.l.b16 %v2320
        %v2419 = vunpack.c.h.b16 %v2320
        %v2420 = vunpack.c.l.b16 %v2321
        %v2421 = vunpack.c.h.b16 %v2321
        %v2422 = vunpack.c.l.b16 %v2322
        %v2423 = vunpack.c.h.b16 %v2322
        %v2424 = vunpack.c.l.b16 %v2323
        %v2425 = vunpack.c.h.b16 %v2323
        %v2426 = vunpack.c.l.b16 %v2324
        %v2427 = vunpack.c.h.b16 %v2324
        %v2428 = vunpack.c.l.b16 %v2325
        %v2429 = vunpack.c.h.b16 %v2325
        %v2430 = vunpack.c.l.b16 %v2326
        %v2431 = vunpack.c.h.b16 %v2326
        %v2432 = vunpack.c.l.b16 %v2327
        %v2433 = vunpack.c.h.b16 %v2327
        %v2434 = vpack.c.b16 %v2374, %v2370
        %v2435 = vpack.c.b16 %v2375, %v2371
        %v2436 = vpack.c.b16 %v2376, %v2372
        %v2437 = vpack.c.b16 %v2377, %v2373
        %v2438 = vpack.c.b16 %v2382, %v2378
        %v2439 = vpack.c.b16 %v2383, %v2379
        %v2440 = vpack.c.b16 %v2384, %v2380
        %v2441 = vpack.c.b16 %v2385, %v2381
        %v2442 = vpack.c.b16 %v2390, %v2386
        %v2443 = vpack.c.b16 %v2391, %v2387
        %v2444 = vpack.c.b16 %v2392, %v2388
        %v2445 = vpack.c.b16 %v2393, %v2389
        %v2446 = vpack.c.b16 %v2398, %v2394
        %v2447 = vpack.c.b16 %v2399, %v2395
        %v2448 = vpack.c.b16 %v2400, %v2396
        %v2449 = vpack.c.b16 %v2401, %v2397
        %v2450 = vpack.c.b16 %v2406, %v2402
        %v2451 = vpack.c.b16 %v2407, %v2403
        %v2452 = vpack.c.b16 %v2408, %v2404
        %v2453 = vpack.c.b16 %v2409, %v2405
        %v2454 = vpack.c.b16 %v2414, %v2410
        %v2455 = vpack.c.b16 %v2415, %v2411
        %v2456 = vpack.c.b16 %v2416, %v2412
        %v2457 = vpack.c.b16 %v2417, %v2413
        %v2458 = vpack.c.b16 %v2422, %v2418
        %v2459 = vpack.c.b16 %v2423, %v2419
        %v2460 = vpack.c.b16 %v2424, %v2420
        %v2461 = vpack.c.b16 %v2425, %v2421
        %v2462 = vpack.c.b16 %v2430, %v2426
        %v2463 = vpack.c.b16 %v2431, %v2427
        %v2464 = vpack.c.b16 %v2432, %v2428
        %v2465 = vpack.c.b16 %v2433, %v2429
        %2498 = vmatprep.subr.bf16.mxu0 %v2435
        %2499 = vmatpush1.bf16.msra.mxu0 %v2434
        %2500 = vmatprep.subr.bf16.mxu0 %v2439
        %2501 = vmatpush1.bf16.msra.mxu0 %v2438
        %2502 = vmatprep.subr.bf16.mxu0 %v2443
        %2503 = vmatpush1.bf16.msra.mxu0 %v2442
        %2504 = vmatprep.subr.bf16.mxu0 %v2447
        %2505 = vmatpush1.bf16.msra.mxu0 %v2446
        %2506 = vmatprep.subr.bf16.mxu0 %v2451
        %2507 = vmatpush1.bf16.msra.mxu0 %v2450
        %2508 = vmatprep.subr.bf16.mxu0 %v2455
        %2509 = vmatpush1.bf16.msra.mxu0 %v2454
        %2510 = vmatprep.subr.bf16.mxu0 %v2459
        %2511 = vmatpush1.bf16.msra.mxu0 %v2458
        %2512 = vmatprep.subr.bf16.mxu0 %v2463
        %2513 = vmatpush1.bf16.msra.mxu0 %v2462
        %2514 = vmatprep.subr.bf16.mxu0 0
        %2515 = vmatpush1.bf16.msra.mxu0 0
        %2516 = vmatprep.subr.bf16.mxu0 0
        %2517 = vmatpush1.bf16.msra.mxu0 0
        %2518 = vmatprep.subr.bf16.mxu0 0
        %2519 = vmatpush1.bf16.msra.mxu0 0
        %2520 = vmatprep.subr.bf16.mxu0 0
        %2521 = vmatpush1.bf16.msra.mxu0 0
        %2522 = vmatprep.subr.bf16.mxu0 0
        %2523 = vmatpush1.bf16.msra.mxu0 0
        %2524 = vmatprep.subr.bf16.mxu0 0
        %2525 = vmatpush1.bf16.msra.mxu0 0
        %2526 = vmatprep.subr.bf16.mxu0 0
        %2527 = vmatpush1.bf16.msra.mxu0 0
        %2528 = vmatprep.subr.bf16.mxu0 0
        %2529 = vmatpush1.bf16.msra.mxu0 0
        %2530 = vmatprep.mubr.bf16.mxu0 0
        %2531 = vmatmul.mubr.bf16.gmra.mrb[0].mxu0 %v2335
        %v2532 = vpop.f32.mrb[0].mxu0
        %v2533 = vadd.f32 0.0, %v2532
        %v2534 = vpop.f32.mrb[0].mxu0
        %v2535 = vadd.f32 0.0, %v2534
        %v2536 = vpop.f32.mrb[0].mxu0
        %v2537 = vadd.f32 0.0, %v2536
        %v2538 = vpop.f32.mrb[0].mxu0
        %v2539 = vadd.f32 0.0, %v2538
        %2540 = vmatprep.mubr.bf16.mxu0 0
        %2541 = vmatmul.mubr.bf16.gmra.mrb[0].mxu0 %v2334
        %v2542 = vpop.f32.mrb[0].mxu0
        %v2543 = vadd.f32 0.0, %v2542
        %v2544 = vpop.f32.mrb[0].mxu0
        %v2545 = vadd.f32 0.0, %v2544
        %v2546 = vpop.f32.mrb[0].mxu0
        %v2547 = vadd.f32 0.0, %v2546
        %v2548 = vpop.f32.mrb[0].mxu0
        %v2549 = vadd.f32 0.0, %v2548
        %2550 = vdwg.mxu0
        %2551 = vmatprep.subr.bf16.mxu0 %v2437
        %2552 = vmatpush1.bf16.msra.mxu0 %v2436
        %2553 = vmatprep.subr.bf16.mxu0 %v2441
        %2554 = vmatpush1.bf16.msra.mxu0 %v2440
        %2555 = vmatprep.subr.bf16.mxu0 %v2445
        %2556 = vmatpush1.bf16.msra.mxu0 %v2444
        %2557 = vmatprep.subr.bf16.mxu0 %v2449
        %2558 = vmatpush1.bf16.msra.mxu0 %v2448
        %2559 = vmatprep.subr.bf16.mxu0 %v2453
        %2560 = vmatpush1.bf16.msra.mxu0 %v2452
        %2561 = vmatprep.subr.bf16.mxu0 %v2457
        %2562 = vmatpush1.bf16.msra.mxu0 %v2456
        %2563 = vmatprep.subr.bf16.mxu0 %v2461
        %2564 = vmatpush1.bf16.msra.mxu0 %v2460
        %2565 = vmatprep.subr.bf16.mxu0 %v2465
        %2566 = vmatpush1.bf16.msra.mxu0 %v2464
        %2567 = vmatprep.subr.bf16.mxu0 0
        %2568 = vmatpush1.bf16.msra.mxu0 0
        %2569 = vmatprep.subr.bf16.mxu0 0
        %2570 = vmatpush1.bf16.msra.mxu0 0
        %2571 = vmatprep.subr.bf16.mxu0 0
        %2572 = vmatpush1.bf16.msra.mxu0 0
        %2573 = vmatprep.subr.bf16.mxu0 0
        %2574 = vmatpush1.bf16.msra.mxu0 0
        %2575 = vmatprep.subr.bf16.mxu0 0
        %2576 = vmatpush1.bf16.msra.mxu0 0
        %2577 = vmatprep.subr.bf16.mxu0 0
        %2578 = vmatpush1.bf16.msra.mxu0 0
        %2579 = vmatprep.subr.bf16.mxu0 0
        %2580 = vmatpush1.bf16.msra.mxu0 0
        %2581 = vmatprep.subr.bf16.mxu0 0
        %2582 = vmatpush1.bf16.msra.mxu0 0
        %2583 = vmatprep.mubr.bf16.mxu0 0
        %2584 = vmatmul.mubr.bf16.gmra.mrb[0].mxu0 %v2335
        %v2585 = vpop.f32.mrb[0].mxu0
        %v2586 = vadd.f32 0.0, %v2585
        %v2587 = vpop.f32.mrb[0].mxu0
        %v2588 = vadd.f32 0.0, %v2587
        %v2589 = vpop.f32.mrb[0].mxu0
        %v2590 = vadd.f32 0.0, %v2589
        %v2591 = vpop.f32.mrb[0].mxu0
        %v2592 = vadd.f32 0.0, %v2591
        %2593 = vmatprep.mubr.bf16.mxu0 0
        %2594 = vmatmul.mubr.bf16.gmra.mrb[0].mxu0 %v2334
        %v2595 = vpop.f32.mrb[0].mxu0
        %v2596 = vadd.f32 0.0, %v2595
        %v2597 = vpop.f32.mrb[0].mxu0
        %v2598 = vadd.f32 0.0, %v2597
        %v2599 = vpop.f32.mrb[0].mxu0
        %v2600 = vadd.f32 0.0, %v2599
        %v2601 = vpop.f32.mrb[0].mxu0
        %v2602 = vadd.f32 0.0, %v2601
        %2603 = vdwg.mxu0
        %s2604 = scalar_lea.vmem %s2, 768
        %v2605 = vld [vmem:[%s2604] sm:$0xff]
        %v2606 = vld [vmem:[%s2604 + $0x8] sm:$0xff]
        %v2607 = vld [vmem:[%s2604 + $0x10] sm:$0xff]
        %v2608 = vld [vmem:[%s2604 + $0x18] sm:$0xff]
        %v2609 = vld [vmem:[%s2604 + $0x20] sm:$0xff]
        %v2610 = vld [vmem:[%s2604 + $0x28] sm:$0xff]
        %v2611 = vld [vmem:[%s2604 + $0x30] sm:$0xff]
        %v2612 = vld [vmem:[%s2604 + $0x38] sm:$0xff]
        %v2613 = vld [vmem:[%s2604 + $0x40] sm:$0xff]
        %v2614 = vld [vmem:[%s2604 + $0x48] sm:$0xff]
        %v2615 = vld [vmem:[%s2604 + $0x50] sm:$0xff]
        %v2616 = vld [vmem:[%s2604 + $0x58] sm:$0xff]
        %v2617 = vld [vmem:[%s2604 + $0x60] sm:$0xff]
        %v2618 = vld [vmem:[%s2604 + $0x68] sm:$0xff]
        %v2619 = vld [vmem:[%s2604 + $0x70] sm:$0xff]
        %v2620 = vld [vmem:[%s2604 + $0x78] sm:$0xff]
        %v2621 = vld [vmem:[%s2604 + $0x80] sm:$0xff]
        %v2622 = vld [vmem:[%s2604 + $0x88] sm:$0xff]
        %v2623 = vld [vmem:[%s2604 + $0x90] sm:$0xff]
        %v2624 = vld [vmem:[%s2604 + $0x98] sm:$0xff]
        %v2625 = vld [vmem:[%s2604 + $0xa0] sm:$0xff]
        %v2626 = vld [vmem:[%s2604 + $0xa8] sm:$0xff]
        %v2627 = vld [vmem:[%s2604 + $0xb0] sm:$0xff]
        %v2628 = vld [vmem:[%s2604 + $0xb8] sm:$0xff]
        %v2629 = vld [vmem:[%s2604 + $0xc0] sm:$0xff]
        %v2630 = vld [vmem:[%s2604 + $0xc8] sm:$0xff]
        %v2631 = vld [vmem:[%s2604 + $0xd0] sm:$0xff]
        %v2632 = vld [vmem:[%s2604 + $0xd8] sm:$0xff]
        %v2633 = vld [vmem:[%s2604 + $0xe0] sm:$0xff]
        %v2634 = vld [vmem:[%s2604 + $0xe8] sm:$0xff]
        %v2635 = vld [vmem:[%s2604 + $0xf0] sm:$0xff]
        %v2636 = vld [vmem:[%s2604 + $0xf8] sm:$0xff]
        %v2669 = vunpack.c.l.b16 %v2605
        %v2670 = vunpack.c.h.b16 %v2605
        %v2671 = vunpack.c.l.b16 %v2606
        %v2672 = vunpack.c.h.b16 %v2606
        %v2673 = vunpack.c.l.b16 %v2607
        %v2674 = vunpack.c.h.b16 %v2607
        %v2675 = vunpack.c.l.b16 %v2608
        %v2676 = vunpack.c.h.b16 %v2608
        %v2677 = vunpack.c.l.b16 %v2609
        %v2678 = vunpack.c.h.b16 %v2609
        %v2679 = vunpack.c.l.b16 %v2610
        %v2680 = vunpack.c.h.b16 %v2610
        %v2681 = vunpack.c.l.b16 %v2611
        %v2682 = vunpack.c.h.b16 %v2611
        %v2683 = vunpack.c.l.b16 %v2612
        %v2684 = vunpack.c.h.b16 %v2612
        %v2685 = vunpack.c.l.b16 %v2613
        %v2686 = vunpack.c.h.b16 %v2613
        %v2687 = vunpack.c.l.b16 %v2614
        %v2688 = vunpack.c.h.b16 %v2614
        %v2689 = vunpack.c.l.b16 %v2615
        %v2690 = vunpack.c.h.b16 %v2615
        %v2691 = vunpack.c.l.b16 %v2616
        %v2692 = vunpack.c.h.b16 %v2616
        %v2693 = vunpack.c.l.b16 %v2617
        %v2694 = vunpack.c.h.b16 %v2617
        %v2695 = vunpack.c.l.b16 %v2618
        %v2696 = vunpack.c.h.b16 %v2618
        %v2697 = vunpack.c.l.b16 %v2619
        %v2698 = vunpack.c.h.b16 %v2619
        %v2699 = vunpack.c.l.b16 %v2620
        %v2700 = vunpack.c.h.b16 %v2620
        %v2701 = vunpack.c.l.b16 %v2621
        %v2702 = vunpack.c.h.b16 %v2621
        %v2703 = vunpack.c.l.b16 %v2622
        %v2704 = vunpack.c.h.b16 %v2622
        %v2705 = vunpack.c.l.b16 %v2623
        %v2706 = vunpack.c.h.b16 %v2623
        %v2707 = vunpack.c.l.b16 %v2624
        %v2708 = vunpack.c.h.b16 %v2624
        %v2709 = vunpack.c.l.b16 %v2625
        %v2710 = vunpack.c.h.b16 %v2625
        %v2711 = vunpack.c.l.b16 %v2626
        %v2712 = vunpack.c.h.b16 %v2626
        %v2713 = vunpack.c.l.b16 %v2627
        %v2714 = vunpack.c.h.b16 %v2627
        %v2715 = vunpack.c.l.b16 %v2628
        %v2716 = vunpack.c.h.b16 %v2628
        %v2717 = vunpack.c.l.b16 %v2629
        %v2718 = vunpack.c.h.b16 %v2629
        %v2719 = vunpack.c.l.b16 %v2630
        %v2720 = vunpack.c.h.b16 %v2630
        %v2721 = vunpack.c.l.b16 %v2631
        %v2722 = vunpack.c.h.b16 %v2631
        %v2723 = vunpack.c.l.b16 %v2632
        %v2724 = vunpack.c.h.b16 %v2632
        %v2725 = vunpack.c.l.b16 %v2633
        %v2726 = vunpack.c.h.b16 %v2633
        %v2727 = vunpack.c.l.b16 %v2634
        %v2728 = vunpack.c.h.b16 %v2634
        %v2729 = vunpack.c.l.b16 %v2635
        %v2730 = vunpack.c.h.b16 %v2635
        %v2731 = vunpack.c.l.b16 %v2636
        %v2732 = vunpack.c.h.b16 %v2636
        %v2733 = vpack.c.b16 %v2673, %v2669
        %v2734 = vpack.c.b16 %v2674, %v2670
        %v2735 = vpack.c.b16 %v2675, %v2671
        %v2736 = vpack.c.b16 %v2676, %v2672
        %v2737 = vpack.c.b16 %v2681, %v2677
        %v2738 = vpack.c.b16 %v2682, %v2678
        %v2739 = vpack.c.b16 %v2683, %v2679
        %v2740 = vpack.c.b16 %v2684, %v2680
        %v2741 = vpack.c.b16 %v2689, %v2685
        %v2742 = vpack.c.b16 %v2690, %v2686
        %v2743 = vpack.c.b16 %v2691, %v2687
        %v2744 = vpack.c.b16 %v2692, %v2688
        %v2745 = vpack.c.b16 %v2697, %v2693
        %v2746 = vpack.c.b16 %v2698, %v2694
        %v2747 = vpack.c.b16 %v2699, %v2695
        %v2748 = vpack.c.b16 %v2700, %v2696
        %v2749 = vpack.c.b16 %v2705, %v2701
        %v2750 = vpack.c.b16 %v2706, %v2702
        %v2751 = vpack.c.b16 %v2707, %v2703
        %v2752 = vpack.c.b16 %v2708, %v2704
        %v2753 = vpack.c.b16 %v2713, %v2709
        %v2754 = vpack.c.b16 %v2714, %v2710
        %v2755 = vpack.c.b16 %v2715, %v2711
        %v2756 = vpack.c.b16 %v2716, %v2712
        %v2757 = vpack.c.b16 %v2721, %v2717
        %v2758 = vpack.c.b16 %v2722, %v2718
        %v2759 = vpack.c.b16 %v2723, %v2719
        %v2760 = vpack.c.b16 %v2724, %v2720
        %v2761 = vpack.c.b16 %v2729, %v2725
        %v2762 = vpack.c.b16 %v2730, %v2726
        %v2763 = vpack.c.b16 %v2731, %v2727
        %v2764 = vpack.c.b16 %v2732, %v2728
        %2797 = vmatprep.subr.bf16.mxu0 %v2734
        %2798 = vmatpush1.bf16.msra.mxu0 %v2733
        %2799 = vmatprep.subr.bf16.mxu0 %v2738
        %2800 = vmatpush1.bf16.msra.mxu0 %v2737
        %2801 = vmatprep.subr.bf16.mxu0 %v2742
        %2802 = vmatpush1.bf16.msra.mxu0 %v2741
        %2803 = vmatprep.subr.bf16.mxu0 %v2746
        %2804 = vmatpush1.bf16.msra.mxu0 %v2745
        %2805 = vmatprep.subr.bf16.mxu0 %v2750
        %2806 = vmatpush1.bf16.msra.mxu0 %v2749
        %2807 = vmatprep.subr.bf16.mxu0 %v2754
        %2808 = vmatpush1.bf16.msra.mxu0 %v2753
        %2809 = vmatprep.subr.bf16.mxu0 %v2758
        %2810 = vmatpush1.bf16.msra.mxu0 %v2757
        %2811 = vmatprep.subr.bf16.mxu0 %v2762
        %2812 = vmatpush1.bf16.msra.mxu0 %v2761
        %2813 = vmatprep.subr.bf16.mxu0 0
        %2814 = vmatpush1.bf16.msra.mxu0 0
        %2815 = vmatprep.subr.bf16.mxu0 0
        %2816 = vmatpush1.bf16.msra.mxu0 0
        %2817 = vmatprep.subr.bf16.mxu0 0
        %2818 = vmatpush1.bf16.msra.mxu0 0
        %2819 = vmatprep.subr.bf16.mxu0 0
        %2820 = vmatpush1.bf16.msra.mxu0 0
        %2821 = vmatprep.subr.bf16.mxu0 0
        %2822 = vmatpush1.bf16.msra.mxu0 0
        %2823 = vmatprep.subr.bf16.mxu0 0
        %2824 = vmatpush1.bf16.msra.mxu0 0
        %2825 = vmatprep.subr.bf16.mxu0 0
        %2826 = vmatpush1.bf16.msra.mxu0 0
        %2827 = vmatprep.subr.bf16.mxu0 0
        %2828 = vmatpush1.bf16.msra.mxu0 0
        %2829 = vmatprep.mubr.bf16.mxu0 0
        %2830 = vmatmul.mubr.bf16.gmra.mrb[0].mxu0 %v2335
        %v2831 = vpop.f32.mrb[0].mxu0
        %v2832 = vadd.f32 0.0, %v2831
        %v2833 = vpop.f32.mrb[0].mxu0
        %v2834 = vadd.f32 0.0, %v2833
        %v2835 = vpop.f32.mrb[0].mxu0
        %v2836 = vadd.f32 0.0, %v2835
        %v2837 = vpop.f32.mrb[0].mxu0
        %v2838 = vadd.f32 0.0, %v2837
        %2839 = vmatprep.mubr.bf16.mxu0 0
        %2840 = vmatmul.mubr.bf16.gmra.mrb[0].mxu0 %v2334
        %v2841 = vpop.f32.mrb[0].mxu0
        %v2842 = vadd.f32 0.0, %v2841
        %v2843 = vpop.f32.mrb[0].mxu0
        %v2844 = vadd.f32 0.0, %v2843
        %v2845 = vpop.f32.mrb[0].mxu0
        %v2846 = vadd.f32 0.0, %v2845
        %v2847 = vpop.f32.mrb[0].mxu0
        %v2848 = vadd.f32 0.0, %v2847
        %2849 = vdwg.mxu0
        %2850 = vmatprep.subr.bf16.mxu0 %v2736
        %2851 = vmatpush1.bf16.msra.mxu0 %v2735
        %2852 = vmatprep.subr.bf16.mxu0 %v2740
        %2853 = vmatpush1.bf16.msra.mxu0 %v2739
        %2854 = vmatprep.subr.bf16.mxu0 %v2744
        %2855 = vmatpush1.bf16.msra.mxu0 %v2743
        %2856 = vmatprep.subr.bf16.mxu0 %v2748
        %2857 = vmatpush1.bf16.msra.mxu0 %v2747
        %2858 = vmatprep.subr.bf16.mxu0 %v2752
        %2859 = vmatpush1.bf16.msra.mxu0 %v2751
        %2860 = vmatprep.subr.bf16.mxu0 %v2756
        %2861 = vmatpush1.bf16.msra.mxu0 %v2755
        %2862 = vmatprep.subr.bf16.mxu0 %v2760
        %2863 = vmatpush1.bf16.msra.mxu0 %v2759
        %2864 = vmatprep.subr.bf16.mxu0 %v2764
        %2865 = vmatpush1.bf16.msra.mxu0 %v2763
        %2866 = vmatprep.subr.bf16.mxu0 0
        %2867 = vmatpush1.bf16.msra.mxu0 0
        %2868 = vmatprep.subr.bf16.mxu0 0
        %2869 = vmatpush1.bf16.msra.mxu0 0
        %2870 = vmatprep.subr.bf16.mxu0 0
        %2871 = vmatpush1.bf16.msra.mxu0 0
        %2872 = vmatprep.subr.bf16.mxu0 0
        %2873 = vmatpush1.bf16.msra.mxu0 0
        %2874 = vmatprep.subr.bf16.mxu0 0
        %2875 = vmatpush1.bf16.msra.mxu0 0
        %2876 = vmatprep.subr.bf16.mxu0 0
        %2877 = vmatpush1.bf16.msra.mxu0 0
        %2878 = vmatprep.subr.bf16.mxu0 0
        %2879 = vmatpush1.bf16.msra.mxu0 0
        %2880 = vmatprep.subr.bf16.mxu0 0
        %2881 = vmatpush1.bf16.msra.mxu0 0
        %2882 = vmatprep.mubr.bf16.mxu0 0
        %2883 = vmatmul.mubr.bf16.gmra.mrb[0].mxu0 %v2335
        %v2884 = vpop.f32.mrb[0].mxu0
        %v2885 = vadd.f32 0.0, %v2884
        %v2886 = vpop.f32.mrb[0].mxu0
        %v2887 = vadd.f32 0.0, %v2886
        %v2888 = vpop.f32.mrb[0].mxu0
        %v2889 = vadd.f32 0.0, %v2888
        %v2890 = vpop.f32.mrb[0].mxu0
        %v2891 = vadd.f32 0.0, %v2890
        %2892 = vmatprep.mubr.bf16.mxu0 0
        %2893 = vmatmul.mubr.bf16.gmra.mrb[0].mxu0 %v2334
        %v2894 = vpop.f32.mrb[0].mxu0
        %v2895 = vadd.f32 0.0, %v2894
        %v2896 = vpop.f32.mrb[0].mxu0
        %v2897 = vadd.f32 0.0, %v2896
        %v2898 = vpop.f32.mrb[0].mxu0
        %v2899 = vadd.f32 0.0, %v2898
        %v2900 = vpop.f32.mrb[0].mxu0
        %v2901 = vadd.f32 0.0, %v2900
        %2902 = vdwg.mxu0
        %v2903 = vadd.f32 %v2263, %v2533
        %v2904 = vadd.f32 %v2264, %v2535
        %v2905 = vadd.f32 %v2265, %v2586
        %v2906 = vadd.f32 %v2266, %v2588
        %v2907 = vadd.f32 %v2267, %v2537
        %v2908 = vadd.f32 %v2268, %v2539
        %v2909 = vadd.f32 %v2269, %v2590
        %v2910 = vadd.f32 %v2270, %v2592
        %v2911 = vadd.f32 %v2271, %v2543
        %v2912 = vadd.f32 %v2272, %v2545
        %v2913 = vadd.f32 %v2273, %v2596
        %v2914 = vadd.f32 %v2274, %v2598
        %v2915 = vadd.f32 %v2275, %v2547
        %v2916 = vadd.f32 %v2276, %v2549
        %v2917 = vadd.f32 %v2277, %v2600
        %v2918 = vadd.f32 %v2278, %v2602
        %v2919 = vadd.f32 %v2279, %v2832
        %v2920 = vadd.f32 %v2280, %v2834
        %v2921 = vadd.f32 %v2281, %v2885
        %v2922 = vadd.f32 %v2282, %v2887
        %v2923 = vadd.f32 %v2283, %v2836
        %v2924 = vadd.f32 %v2284, %v2838
        %v2925 = vadd.f32 %v2285, %v2889
        %v2926 = vadd.f32 %v2286, %v2891
        %v2927 = vadd.f32 %v2287, %v2842
        %v2928 = vadd.f32 %v2288, %v2844
        %v2929 = vadd.f32 %v2289, %v2895
        %v2930 = vadd.f32 %v2290, %v2897
        %v2931 = vadd.f32 %v2291, %v2846
        %v2932 = vadd.f32 %v2292, %v2848
        %v2933 = vadd.f32 %v2293, %v2899
        %v2934 = vadd.f32 %v2294, %v2901
        %s2935 = scalar_lea.vmem %s1, 1024
        %v2936 = vld [vmem:[%s2935] sm:$0xff]
        %v2937 = vld [vmem:[%s2935 + $0x8] sm:$0xff]
        %v2938 = vld [vmem:[%s2935 + $0x10] sm:$0xff]
        %v2939 = vld [vmem:[%s2935 + $0x18] sm:$0xff]
        %v2940 = vld [vmem:[%s2935 + $0x20] sm:$0xff]
        %v2941 = vld [vmem:[%s2935 + $0x28] sm:$0xff]
        %v2942 = vld [vmem:[%s2935 + $0x30] sm:$0xff]
        %v2943 = vld [vmem:[%s2935 + $0x38] sm:$0xff]
        %v2944 = vld [vmem:[%s2935 + $0x40] sm:$0xff]
        %v2945 = vld [vmem:[%s2935 + $0x48] sm:$0xff]
        %v2946 = vld [vmem:[%s2935 + $0x50] sm:$0xff]
        %v2947 = vld [vmem:[%s2935 + $0x58] sm:$0xff]
        %v2948 = vld [vmem:[%s2935 + $0x60] sm:$0xff]
        %v2949 = vld [vmem:[%s2935 + $0x68] sm:$0xff]
        %v2950 = vld [vmem:[%s2935 + $0x70] sm:$0xff]
        %v2951 = vld [vmem:[%s2935 + $0x78] sm:$0xff]
        %v2952 = vld [vmem:[%s2935 + $0x80] sm:$0xff]
        %v2953 = vld [vmem:[%s2935 + $0x88] sm:$0xff]
        %v2954 = vld [vmem:[%s2935 + $0x90] sm:$0xff]
        %v2955 = vld [vmem:[%s2935 + $0x98] sm:$0xff]
        %v2956 = vld [vmem:[%s2935 + $0xa0] sm:$0xff]
        %v2957 = vld [vmem:[%s2935 + $0xa8] sm:$0xff]
        %v2958 = vld [vmem:[%s2935 + $0xb0] sm:$0xff]
        %v2959 = vld [vmem:[%s2935 + $0xb8] sm:$0xff]
        %v2960 = vld [vmem:[%s2935 + $0xc0] sm:$0xff]
        %v2961 = vld [vmem:[%s2935 + $0xc8] sm:$0xff]
        %v2962 = vld [vmem:[%s2935 + $0xd0] sm:$0xff]
        %v2963 = vld [vmem:[%s2935 + $0xd8] sm:$0xff]
        %v2964 = vld [vmem:[%s2935 + $0xe0] sm:$0xff]
        %v2965 = vld [vmem:[%s2935 + $0xe8] sm:$0xff]
        %v2966 = vld [vmem:[%s2935 + $0xf0] sm:$0xff]
        %v2967 = vld [vmem:[%s2935 + $0xf8] sm:$0xff]
        %vm2968 = vcmask 1045504
        %v2969 = vrot.slane %v443, 2
        %v2970 = vrot.slane %v444, 2
        %v2971 = vsel %vm2968, %v2969, %v2970
        %v3006 = vunpack.c.l.b16 %v2936
        %v3007 = vunpack.c.h.b16 %v2936
        %v3008 = vunpack.c.l.b16 %v2937
        %v3009 = vunpack.c.h.b16 %v2937
        %v3010 = vunpack.c.l.b16 %v2938
        %v3011 = vunpack.c.h.b16 %v2938
        %v3012 = vunpack.c.l.b16 %v2939
        %v3013 = vunpack.c.h.b16 %v2939
        %v3014 = vunpack.c.l.b16 %v2940
        %v3015 = vunpack.c.h.b16 %v2940
        %v3016 = vunpack.c.l.b16 %v2941
        %v3017 = vunpack.c.h.b16 %v2941
        %v3018 = vunpack.c.l.b16 %v2942
        %v3019 = vunpack.c.h.b16 %v2942
        %v3020 = vunpack.c.l.b16 %v2943
        %v3021 = vunpack.c.h.b16 %v2943
        %v3022 = vunpack.c.l.b16 %v2944
        %v3023 = vunpack.c.h.b16 %v2944
        %v3024 = vunpack.c.l.b16 %v2945
        %v3025 = vunpack.c.h.b16 %v2945
        %v3026 = vunpack.c.l.b16 %v2946
        %v3027 = vunpack.c.h.b16 %v2946
        %v3028 = vunpack.c.l.b16 %v2947
        %v3029 = vunpack.c.h.b16 %v2947
        %v3030 = vunpack.c.l.b16 %v2948
        %v3031 = vunpack.c.h.b16 %v2948
        %v3032 = vunpack.c.l.b16 %v2949
        %v3033 = vunpack.c.h.b16 %v2949
        %v3034 = vunpack.c.l.b16 %v2950
        %v3035 = vunpack.c.h.b16 %v2950
        %v3036 = vunpack.c.l.b16 %v2951
        %v3037 = vunpack.c.h.b16 %v2951
        %v3038 = vunpack.c.l.b16 %v2952
        %v3039 = vunpack.c.h.b16 %v2952
        %v3040 = vunpack.c.l.b16 %v2953
        %v3041 = vunpack.c.h.b16 %v2953
        %v3042 = vunpack.c.l.b16 %v2954
        %v3043 = vunpack.c.h.b16 %v2954
        %v3044 = vunpack.c.l.b16 %v2955
        %v3045 = vunpack.c.h.b16 %v2955
        %v3046 = vunpack.c.l.b16 %v2956
        %v3047 = vunpack.c.h.b16 %v2956
        %v3048 = vunpack.c.l.b16 %v2957
        %v3049 = vunpack.c.h.b16 %v2957
        %v3050 = vunpack.c.l.b16 %v2958
        %v3051 = vunpack.c.h.b16 %v2958
        %v3052 = vunpack.c.l.b16 %v2959
        %v3053 = vunpack.c.h.b16 %v2959
        %v3054 = vunpack.c.l.b16 %v2960
        %v3055 = vunpack.c.h.b16 %v2960
        %v3056 = vunpack.c.l.b16 %v2961
        %v3057 = vunpack.c.h.b16 %v2961
        %v3058 = vunpack.c.l.b16 %v2962
        %v3059 = vunpack.c.h.b16 %v2962
        %v3060 = vunpack.c.l.b16 %v2963
        %v3061 = vunpack.c.h.b16 %v2963
        %v3062 = vunpack.c.l.b16 %v2964
        %v3063 = vunpack.c.h.b16 %v2964
        %v3064 = vunpack.c.l.b16 %v2965
        %v3065 = vunpack.c.h.b16 %v2965
        %v3066 = vunpack.c.l.b16 %v2966
        %v3067 = vunpack.c.h.b16 %v2966
        %v3068 = vunpack.c.l.b16 %v2967
        %v3069 = vunpack.c.h.b16 %v2967
        %v3070 = vpack.c.b16 %v3010, %v3006
        %v3071 = vpack.c.b16 %v3011, %v3007
        %v3072 = vpack.c.b16 %v3012, %v3008
        %v3073 = vpack.c.b16 %v3013, %v3009
        %v3074 = vpack.c.b16 %v3018, %v3014
        %v3075 = vpack.c.b16 %v3019, %v3015
        %v3076 = vpack.c.b16 %v3020, %v3016
        %v3077 = vpack.c.b16 %v3021, %v3017
        %v3078 = vpack.c.b16 %v3026, %v3022
        %v3079 = vpack.c.b16 %v3027, %v3023
        %v3080 = vpack.c.b16 %v3028, %v3024
        %v3081 = vpack.c.b16 %v3029, %v3025
        %v3082 = vpack.c.b16 %v3034, %v3030
        %v3083 = vpack.c.b16 %v3035, %v3031
        %v3084 = vpack.c.b16 %v3036, %v3032
        %v3085 = vpack.c.b16 %v3037, %v3033
        %v3086 = vpack.c.b16 %v3042, %v3038
        %v3087 = vpack.c.b16 %v3043, %v3039
        %v3088 = vpack.c.b16 %v3044, %v3040
        %v3089 = vpack.c.b16 %v3045, %v3041
        %v3090 = vpack.c.b16 %v3050, %v3046
        %v3091 = vpack.c.b16 %v3051, %v3047
        %v3092 = vpack.c.b16 %v3052, %v3048
        %v3093 = vpack.c.b16 %v3053, %v3049
        %v3094 = vpack.c.b16 %v3058, %v3054
        %v3095 = vpack.c.b16 %v3059, %v3055
        %v3096 = vpack.c.b16 %v3060, %v3056
        %v3097 = vpack.c.b16 %v3061, %v3057
        %v3098 = vpack.c.b16 %v3066, %v3062
        %v3099 = vpack.c.b16 %v3067, %v3063
        %v3100 = vpack.c.b16 %v3068, %v3064
        %v3101 = vpack.c.b16 %v3069, %v3065
        %3134 = vmatprep.subr.bf16.mxu0 %v3071
        %3135 = vmatpush1.bf16.msra.mxu0 %v3070
        %3136 = vmatprep.subr.bf16.mxu0 %v3075
        %3137 = vmatpush1.bf16.msra.mxu0 %v3074
        %3138 = vmatprep.subr.bf16.mxu0 %v3079
        %3139 = vmatpush1.bf16.msra.mxu0 %v3078
        %3140 = vmatprep.subr.bf16.mxu0 %v3083
        %3141 = vmatpush1.bf16.msra.mxu0 %v3082
        %3142 = vmatprep.subr.bf16.mxu0 %v3087
        %3143 = vmatpush1.bf16.msra.mxu0 %v3086
        %3144 = vmatprep.subr.bf16.mxu0 %v3091
        %3145 = vmatpush1.bf16.msra.mxu0 %v3090
        %3146 = vmatprep.subr.bf16.mxu0 %v3095
        %3147 = vmatpush1.bf16.msra.mxu0 %v3094
        %3148 = vmatprep.subr.bf16.mxu0 %v3099
        %3149 = vmatpush1.bf16.msra.mxu0 %v3098
        %3150 = vmatprep.subr.bf16.mxu0 0
        %3151 = vmatpush1.bf16.msra.mxu0 0
        %3152 = vmatprep.subr.bf16.mxu0 0
        %3153 = vmatpush1.bf16.msra.mxu0 0
        %3154 = vmatprep.subr.bf16.mxu0 0
        %3155 = vmatpush1.bf16.msra.mxu0 0
        %3156 = vmatprep.subr.bf16.mxu0 0
        %3157 = vmatpush1.bf16.msra.mxu0 0
        %3158 = vmatprep.subr.bf16.mxu0 0
        %3159 = vmatpush1.bf16.msra.mxu0 0
        %3160 = vmatprep.subr.bf16.mxu0 0
        %3161 = vmatpush1.bf16.msra.mxu0 0
        %3162 = vmatprep.subr.bf16.mxu0 0
        %3163 = vmatpush1.bf16.msra.mxu0 0
        %3164 = vmatprep.subr.bf16.mxu0 0
        %3165 = vmatpush1.bf16.msra.mxu0 0
        %3166 = vmatprep.mubr.bf16.mxu0 0
        %3167 = vmatmul.mubr.bf16.gmra.mrb[0].mxu0 %v2971
        %v3168 = vpop.f32.mrb[0].mxu0
        %v3169 = vadd.f32 0.0, %v3168
        %v3170 = vpop.f32.mrb[0].mxu0
        %v3171 = vadd.f32 0.0, %v3170
        %v3172 = vpop.f32.mrb[0].mxu0
        %v3173 = vadd.f32 0.0, %v3172
        %v3174 = vpop.f32.mrb[0].mxu0
        %v3175 = vadd.f32 0.0, %v3174
        %3176 = vmatprep.mubr.bf16.mxu0 0
        %3177 = vmatmul.mubr.bf16.gmra.mrb[0].mxu0 %v2970
        %v3178 = vpop.f32.mrb[0].mxu0
        %v3179 = vadd.f32 0.0, %v3178
        %v3180 = vpop.f32.mrb[0].mxu0
        %v3181 = vadd.f32 0.0, %v3180
        %v3182 = vpop.f32.mrb[0].mxu0
        %v3183 = vadd.f32 0.0, %v3182
        %v3184 = vpop.f32.mrb[0].mxu0
        %v3185 = vadd.f32 0.0, %v3184
        %3186 = vdwg.mxu0
        %3187 = vmatprep.subr.bf16.mxu0 %v3073
        %3188 = vmatpush1.bf16.msra.mxu0 %v3072
        %3189 = vmatprep.subr.bf16.mxu0 %v3077
        %3190 = vmatpush1.bf16.msra.mxu0 %v3076
        %3191 = vmatprep.subr.bf16.mxu0 %v3081
        %3192 = vmatpush1.bf16.msra.mxu0 %v3080
        %3193 = vmatprep.subr.bf16.mxu0 %v3085
        %3194 = vmatpush1.bf16.msra.mxu0 %v3084
        %3195 = vmatprep.subr.bf16.mxu0 %v3089
        %3196 = vmatpush1.bf16.msra.mxu0 %v3088
        %3197 = vmatprep.subr.bf16.mxu0 %v3093
        %3198 = vmatpush1.bf16.msra.mxu0 %v3092
        %3199 = vmatprep.subr.bf16.mxu0 %v3097
        %3200 = vmatpush1.bf16.msra.mxu0 %v3096
        %3201 = vmatprep.subr.bf16.mxu0 %v3101
        %3202 = vmatpush1.bf16.msra.mxu0 %v3100
        %3203 = vmatprep.subr.bf16.mxu0 0
        %3204 = vmatpush1.bf16.msra.mxu0 0
        %3205 = vmatprep.subr.bf16.mxu0 0
        %3206 = vmatpush1.bf16.msra.mxu0 0
        %3207 = vmatprep.subr.bf16.mxu0 0
        %3208 = vmatpush1.bf16.msra.mxu0 0
        %3209 = vmatprep.subr.bf16.mxu0 0
        %3210 = vmatpush1.bf16.msra.mxu0 0
        %3211 = vmatprep.subr.bf16.mxu0 0
        %3212 = vmatpush1.bf16.msra.mxu0 0
        %3213 = vmatprep.subr.bf16.mxu0 0
        %3214 = vmatpush1.bf16.msra.mxu0 0
        %3215 = vmatprep.subr.bf16.mxu0 0
        %3216 = vmatpush1.bf16.msra.mxu0 0
        %3217 = vmatprep.subr.bf16.mxu0 0
        %3218 = vmatpush1.bf16.msra.mxu0 0
        %3219 = vmatprep.mubr.bf16.mxu0 0
        %3220 = vmatmul.mubr.bf16.gmra.mrb[0].mxu0 %v2971
        %v3221 = vpop.f32.mrb[0].mxu0
        %v3222 = vadd.f32 0.0, %v3221
        %v3223 = vpop.f32.mrb[0].mxu0
        %v3224 = vadd.f32 0.0, %v3223
        %v3225 = vpop.f32.mrb[0].mxu0
        %v3226 = vadd.f32 0.0, %v3225
        %v3227 = vpop.f32.mrb[0].mxu0
        %v3228 = vadd.f32 0.0, %v3227
        %3229 = vmatprep.mubr.bf16.mxu0 0
        %3230 = vmatmul.mubr.bf16.gmra.mrb[0].mxu0 %v2970
        %v3231 = vpop.f32.mrb[0].mxu0
        %v3232 = vadd.f32 0.0, %v3231
        %v3233 = vpop.f32.mrb[0].mxu0
        %v3234 = vadd.f32 0.0, %v3233
        %v3235 = vpop.f32.mrb[0].mxu0
        %v3236 = vadd.f32 0.0, %v3235
        %v3237 = vpop.f32.mrb[0].mxu0
        %v3238 = vadd.f32 0.0, %v3237
        %3239 = vdwg.mxu0
        %s3240 = scalar_lea.vmem %s2, 1024
        %v3241 = vld [vmem:[%s3240] sm:$0xff]
        %v3242 = vld [vmem:[%s3240 + $0x8] sm:$0xff]
        %v3243 = vld [vmem:[%s3240 + $0x10] sm:$0xff]
        %v3244 = vld [vmem:[%s3240 + $0x18] sm:$0xff]
        %v3245 = vld [vmem:[%s3240 + $0x20] sm:$0xff]
        %v3246 = vld [vmem:[%s3240 + $0x28] sm:$0xff]
        %v3247 = vld [vmem:[%s3240 + $0x30] sm:$0xff]
        %v3248 = vld [vmem:[%s3240 + $0x38] sm:$0xff]
        %v3249 = vld [vmem:[%s3240 + $0x40] sm:$0xff]
        %v3250 = vld [vmem:[%s3240 + $0x48] sm:$0xff]
        %v3251 = vld [vmem:[%s3240 + $0x50] sm:$0xff]
        %v3252 = vld [vmem:[%s3240 + $0x58] sm:$0xff]
        %v3253 = vld [vmem:[%s3240 + $0x60] sm:$0xff]
        %v3254 = vld [vmem:[%s3240 + $0x68] sm:$0xff]
        %v3255 = vld [vmem:[%s3240 + $0x70] sm:$0xff]
        %v3256 = vld [vmem:[%s3240 + $0x78] sm:$0xff]
        %v3257 = vld [vmem:[%s3240 + $0x80] sm:$0xff]
        %v3258 = vld [vmem:[%s3240 + $0x88] sm:$0xff]
        %v3259 = vld [vmem:[%s3240 + $0x90] sm:$0xff]
        %v3260 = vld [vmem:[%s3240 + $0x98] sm:$0xff]
        %v3261 = vld [vmem:[%s3240 + $0xa0] sm:$0xff]
        %v3262 = vld [vmem:[%s3240 + $0xa8] sm:$0xff]
        %v3263 = vld [vmem:[%s3240 + $0xb0] sm:$0xff]
        %v3264 = vld [vmem:[%s3240 + $0xb8] sm:$0xff]
        %v3265 = vld [vmem:[%s3240 + $0xc0] sm:$0xff]
        %v3266 = vld [vmem:[%s3240 + $0xc8] sm:$0xff]
        %v3267 = vld [vmem:[%s3240 + $0xd0] sm:$0xff]
        %v3268 = vld [vmem:[%s3240 + $0xd8] sm:$0xff]
        %v3269 = vld [vmem:[%s3240 + $0xe0] sm:$0xff]
        %v3270 = vld [vmem:[%s3240 + $0xe8] sm:$0xff]
        %v3271 = vld [vmem:[%s3240 + $0xf0] sm:$0xff]
        %v3272 = vld [vmem:[%s3240 + $0xf8] sm:$0xff]
        %v3305 = vunpack.c.l.b16 %v3241
        %v3306 = vunpack.c.h.b16 %v3241
        %v3307 = vunpack.c.l.b16 %v3242
        %v3308 = vunpack.c.h.b16 %v3242
        %v3309 = vunpack.c.l.b16 %v3243
        %v3310 = vunpack.c.h.b16 %v3243
        %v3311 = vunpack.c.l.b16 %v3244
        %v3312 = vunpack.c.h.b16 %v3244
        %v3313 = vunpack.c.l.b16 %v3245
        %v3314 = vunpack.c.h.b16 %v3245
        %v3315 = vunpack.c.l.b16 %v3246
        %v3316 = vunpack.c.h.b16 %v3246
        %v3317 = vunpack.c.l.b16 %v3247
        %v3318 = vunpack.c.h.b16 %v3247
        %v3319 = vunpack.c.l.b16 %v3248
        %v3320 = vunpack.c.h.b16 %v3248
        %v3321 = vunpack.c.l.b16 %v3249
        %v3322 = vunpack.c.h.b16 %v3249
        %v3323 = vunpack.c.l.b16 %v3250
        %v3324 = vunpack.c.h.b16 %v3250
        %v3325 = vunpack.c.l.b16 %v3251
        %v3326 = vunpack.c.h.b16 %v3251
        %v3327 = vunpack.c.l.b16 %v3252
        %v3328 = vunpack.c.h.b16 %v3252
        %v3329 = vunpack.c.l.b16 %v3253
        %v3330 = vunpack.c.h.b16 %v3253
        %v3331 = vunpack.c.l.b16 %v3254
        %v3332 = vunpack.c.h.b16 %v3254
        %v3333 = vunpack.c.l.b16 %v3255
        %v3334 = vunpack.c.h.b16 %v3255
        %v3335 = vunpack.c.l.b16 %v3256
        %v3336 = vunpack.c.h.b16 %v3256
        %v3337 = vunpack.c.l.b16 %v3257
        %v3338 = vunpack.c.h.b16 %v3257
        %v3339 = vunpack.c.l.b16 %v3258
        %v3340 = vunpack.c.h.b16 %v3258
        %v3341 = vunpack.c.l.b16 %v3259
        %v3342 = vunpack.c.h.b16 %v3259
        %v3343 = vunpack.c.l.b16 %v3260
        %v3344 = vunpack.c.h.b16 %v3260
        %v3345 = vunpack.c.l.b16 %v3261
        %v3346 = vunpack.c.h.b16 %v3261
        %v3347 = vunpack.c.l.b16 %v3262
        %v3348 = vunpack.c.h.b16 %v3262
        %v3349 = vunpack.c.l.b16 %v3263
        %v3350 = vunpack.c.h.b16 %v3263
        %v3351 = vunpack.c.l.b16 %v3264
        %v3352 = vunpack.c.h.b16 %v3264
        %v3353 = vunpack.c.l.b16 %v3265
        %v3354 = vunpack.c.h.b16 %v3265
        %v3355 = vunpack.c.l.b16 %v3266
        %v3356 = vunpack.c.h.b16 %v3266
        %v3357 = vunpack.c.l.b16 %v3267
        %v3358 = vunpack.c.h.b16 %v3267
        %v3359 = vunpack.c.l.b16 %v3268
        %v3360 = vunpack.c.h.b16 %v3268
        %v3361 = vunpack.c.l.b16 %v3269
        %v3362 = vunpack.c.h.b16 %v3269
        %v3363 = vunpack.c.l.b16 %v3270
        %v3364 = vunpack.c.h.b16 %v3270
        %v3365 = vunpack.c.l.b16 %v3271
        %v3366 = vunpack.c.h.b16 %v3271
        %v3367 = vunpack.c.l.b16 %v3272
        %v3368 = vunpack.c.h.b16 %v3272
        %v3369 = vpack.c.b16 %v3309, %v3305
        %v3370 = vpack.c.b16 %v3310, %v3306
        %v3371 = vpack.c.b16 %v3311, %v3307
        %v3372 = vpack.c.b16 %v3312, %v3308
        %v3373 = vpack.c.b16 %v3317, %v3313
        %v3374 = vpack.c.b16 %v3318, %v3314
        %v3375 = vpack.c.b16 %v3319, %v3315
        %v3376 = vpack.c.b16 %v3320, %v3316
        %v3377 = vpack.c.b16 %v3325, %v3321
        %v3378 = vpack.c.b16 %v3326, %v3322
        %v3379 = vpack.c.b16 %v3327, %v3323
        %v3380 = vpack.c.b16 %v3328, %v3324
        %v3381 = vpack.c.b16 %v3333, %v3329
        %v3382 = vpack.c.b16 %v3334, %v3330
        %v3383 = vpack.c.b16 %v3335, %v3331
        %v3384 = vpack.c.b16 %v3336, %v3332
        %v3385 = vpack.c.b16 %v3341, %v3337
        %v3386 = vpack.c.b16 %v3342, %v3338
        %v3387 = vpack.c.b16 %v3343, %v3339
        %v3388 = vpack.c.b16 %v3344, %v3340
        %v3389 = vpack.c.b16 %v3349, %v3345
        %v3390 = vpack.c.b16 %v3350, %v3346
        %v3391 = vpack.c.b16 %v3351, %v3347
        %v3392 = vpack.c.b16 %v3352, %v3348
        %v3393 = vpack.c.b16 %v3357, %v3353
        %v3394 = vpack.c.b16 %v3358, %v3354
        %v3395 = vpack.c.b16 %v3359, %v3355
        %v3396 = vpack.c.b16 %v3360, %v3356
        %v3397 = vpack.c.b16 %v3365, %v3361
        %v3398 = vpack.c.b16 %v3366, %v3362
        %v3399 = vpack.c.b16 %v3367, %v3363
        %v3400 = vpack.c.b16 %v3368, %v3364
        %3433 = vmatprep.subr.bf16.mxu0 %v3370
        %3434 = vmatpush1.bf16.msra.mxu0 %v3369
        %3435 = vmatprep.subr.bf16.mxu0 %v3374
        %3436 = vmatpush1.bf16.msra.mxu0 %v3373
        %3437 = vmatprep.subr.bf16.mxu0 %v3378
        %3438 = vmatpush1.bf16.msra.mxu0 %v3377
        %3439 = vmatprep.subr.bf16.mxu0 %v3382
        %3440 = vmatpush1.bf16.msra.mxu0 %v3381
        %3441 = vmatprep.subr.bf16.mxu0 %v3386
        %3442 = vmatpush1.bf16.msra.mxu0 %v3385
        %3443 = vmatprep.subr.bf16.mxu0 %v3390
        %3444 = vmatpush1.bf16.msra.mxu0 %v3389
        %3445 = vmatprep.subr.bf16.mxu0 %v3394
        %3446 = vmatpush1.bf16.msra.mxu0 %v3393
        %3447 = vmatprep.subr.bf16.mxu0 %v3398
        %3448 = vmatpush1.bf16.msra.mxu0 %v3397
        %3449 = vmatprep.subr.bf16.mxu0 0
        %3450 = vmatpush1.bf16.msra.mxu0 0
        %3451 = vmatprep.subr.bf16.mxu0 0
        %3452 = vmatpush1.bf16.msra.mxu0 0
        %3453 = vmatprep.subr.bf16.mxu0 0
        %3454 = vmatpush1.bf16.msra.mxu0 0
        %3455 = vmatprep.subr.bf16.mxu0 0
        %3456 = vmatpush1.bf16.msra.mxu0 0
        %3457 = vmatprep.subr.bf16.mxu0 0
        %3458 = vmatpush1.bf16.msra.mxu0 0
        %3459 = vmatprep.subr.bf16.mxu0 0
        %3460 = vmatpush1.bf16.msra.mxu0 0
        %3461 = vmatprep.subr.bf16.mxu0 0
        %3462 = vmatpush1.bf16.msra.mxu0 0
        %3463 = vmatprep.subr.bf16.mxu0 0
        %3464 = vmatpush1.bf16.msra.mxu0 0
        %3465 = vmatprep.mubr.bf16.mxu0 0
        %3466 = vmatmul.mubr.bf16.gmra.mrb[0].mxu0 %v2971
        %v3467 = vpop.f32.mrb[0].mxu0
        %v3468 = vadd.f32 0.0, %v3467
        %v3469 = vpop.f32.mrb[0].mxu0
        %v3470 = vadd.f32 0.0, %v3469
        %v3471 = vpop.f32.mrb[0].mxu0
        %v3472 = vadd.f32 0.0, %v3471
        %v3473 = vpop.f32.mrb[0].mxu0
        %v3474 = vadd.f32 0.0, %v3473
        %3475 = vmatprep.mubr.bf16.mxu0 0
        %3476 = vmatmul.mubr.bf16.gmra.mrb[0].mxu0 %v2970
        %v3477 = vpop.f32.mrb[0].mxu0
        %v3478 = vadd.f32 0.0, %v3477
        %v3479 = vpop.f32.mrb[0].mxu0
        %v3480 = vadd.f32 0.0, %v3479
        %v3481 = vpop.f32.mrb[0].mxu0
        %v3482 = vadd.f32 0.0, %v3481
        %v3483 = vpop.f32.mrb[0].mxu0
        %v3484 = vadd.f32 0.0, %v3483
        %3485 = vdwg.mxu0
        %3486 = vmatprep.subr.bf16.mxu0 %v3372
        %3487 = vmatpush1.bf16.msra.mxu0 %v3371
        %3488 = vmatprep.subr.bf16.mxu0 %v3376
        %3489 = vmatpush1.bf16.msra.mxu0 %v3375
        %3490 = vmatprep.subr.bf16.mxu0 %v3380
        %3491 = vmatpush1.bf16.msra.mxu0 %v3379
        %3492 = vmatprep.subr.bf16.mxu0 %v3384
        %3493 = vmatpush1.bf16.msra.mxu0 %v3383
        %3494 = vmatprep.subr.bf16.mxu0 %v3388
        %3495 = vmatpush1.bf16.msra.mxu0 %v3387
        %3496 = vmatprep.subr.bf16.mxu0 %v3392
        %3497 = vmatpush1.bf16.msra.mxu0 %v3391
        %3498 = vmatprep.subr.bf16.mxu0 %v3396
        %3499 = vmatpush1.bf16.msra.mxu0 %v3395
        %3500 = vmatprep.subr.bf16.mxu0 %v3400
        %3501 = vmatpush1.bf16.msra.mxu0 %v3399
        %3502 = vmatprep.subr.bf16.mxu0 0
        %3503 = vmatpush1.bf16.msra.mxu0 0
        %3504 = vmatprep.subr.bf16.mxu0 0
        %3505 = vmatpush1.bf16.msra.mxu0 0
        %3506 = vmatprep.subr.bf16.mxu0 0
        %3507 = vmatpush1.bf16.msra.mxu0 0
        %3508 = vmatprep.subr.bf16.mxu0 0
        %3509 = vmatpush1.bf16.msra.mxu0 0
        %3510 = vmatprep.subr.bf16.mxu0 0
        %3511 = vmatpush1.bf16.msra.mxu0 0
        %3512 = vmatprep.subr.bf16.mxu0 0
        %3513 = vmatpush1.bf16.msra.mxu0 0
        %3514 = vmatprep.subr.bf16.mxu0 0
        %3515 = vmatpush1.bf16.msra.mxu0 0
        %3516 = vmatprep.subr.bf16.mxu0 0
        %3517 = vmatpush1.bf16.msra.mxu0 0
        %3518 = vmatprep.mubr.bf16.mxu0 0
        %3519 = vmatmul.mubr.bf16.gmra.mrb[0].mxu0 %v2971
        %v3520 = vpop.f32.mrb[0].mxu0
        %v3521 = vadd.f32 0.0, %v3520
        %v3522 = vpop.f32.mrb[0].mxu0
        %v3523 = vadd.f32 0.0, %v3522
        %v3524 = vpop.f32.mrb[0].mxu0
        %v3525 = vadd.f32 0.0, %v3524
        %v3526 = vpop.f32.mrb[0].mxu0
        %v3527 = vadd.f32 0.0, %v3526
        %3528 = vmatprep.mubr.bf16.mxu0 0
        %3529 = vmatmul.mubr.bf16.gmra.mrb[0].mxu0 %v2970
        %v3530 = vpop.f32.mrb[0].mxu0
        %v3531 = vadd.f32 0.0, %v3530
        %v3532 = vpop.f32.mrb[0].mxu0
        %v3533 = vadd.f32 0.0, %v3532
        %v3534 = vpop.f32.mrb[0].mxu0
        %v3535 = vadd.f32 0.0, %v3534
        %v3536 = vpop.f32.mrb[0].mxu0
        %v3537 = vadd.f32 0.0, %v3536
        %3538 = vdwg.mxu0
        %v3539 = vadd.f32 %v2903, %v3169
        %v3540 = vadd.f32 %v2904, %v3171
        %v3541 = vadd.f32 %v2905, %v3222
        %v3542 = vadd.f32 %v2906, %v3224
        %v3543 = vadd.f32 %v2907, %v3173
        %v3544 = vadd.f32 %v2908, %v3175
        %v3545 = vadd.f32 %v2909, %v3226
        %v3546 = vadd.f32 %v2910, %v3228
        %v3547 = vadd.f32 %v2911, %v3179
        %v3548 = vadd.f32 %v2912, %v3181
        %v3549 = vadd.f32 %v2913, %v3232
        %v3550 = vadd.f32 %v2914, %v3234
        %v3551 = vadd.f32 %v2915, %v3183
        %v3552 = vadd.f32 %v2916, %v3185
        %v3553 = vadd.f32 %v2917, %v3236
        %v3554 = vadd.f32 %v2918, %v3238
        %v3555 = vadd.f32 %v2919, %v3468
        %v3556 = vadd.f32 %v2920, %v3470
        %v3557 = vadd.f32 %v2921, %v3521
        %v3558 = vadd.f32 %v2922, %v3523
        %v3559 = vadd.f32 %v2923, %v3472
        %v3560 = vadd.f32 %v2924, %v3474
        %v3561 = vadd.f32 %v2925, %v3525
        %v3562 = vadd.f32 %v2926, %v3527
        %v3563 = vadd.f32 %v2927, %v3478
        %v3564 = vadd.f32 %v2928, %v3480
        %v3565 = vadd.f32 %v2929, %v3531
        %v3566 = vadd.f32 %v2930, %v3533
        %v3567 = vadd.f32 %v2931, %v3482
        %v3568 = vadd.f32 %v2932, %v3484
        %v3569 = vadd.f32 %v2933, %v3535
        %v3570 = vadd.f32 %v2934, %v3537
        %v3571 = vmax.f32 %v3539, %v3555
        %v3572 = vmax.f32 %v3540, %v3556
        %v3573 = vmax.f32 %v3541, %v3557
        %v3574 = vmax.f32 %v3542, %v3558
        %v3575 = vmax.f32 %v3543, %v3559
        %v3576 = vmax.f32 %v3544, %v3560
        %v3577 = vmax.f32 %v3545, %v3561
        %v3578 = vmax.f32 %v3546, %v3562
        %v3579 = vmax.f32 %v3547, %v3563
        %v3580 = vmax.f32 %v3548, %v3564
        %v3581 = vmax.f32 %v3549, %v3565
        %v3582 = vmax.f32 %v3550, %v3566
        %v3583 = vmax.f32 %v3551, %v3567
        %v3584 = vmax.f32 %v3552, %v3568
        %v3585 = vmax.f32 %v3553, %v3569
        %v3586 = vmax.f32 %v3554, %v3570
        %v3587 = vlaneseq
        %v3588 = vshrl.u32 %v3587, 7
        %v3589 = vadd.s32 %v3588, 8
        %v3590 = vlaneseq
        %v3591 = vand.u32 %v3590, 127
        %v3592 = vmul.u32 %v3588, 2
        %v3593 = vmul.u32 %v3589, 2
        %vm3594 = vcmp.eq.s32.totalorder %v3591, %v3592
        %vm3595 = vcmp.eq.s32.totalorder %v3591, %v3593
        %v3596 = vsel %vm3594, 1, 0
        %v3597 = vsel %vm3595, 1, 0
        %v3598 = vcvt.s32.f32 %v3596
        %v3599 = vcvt.s32.f32 %v3597
        %v3600 = vadd.s32 %v3592, 1
        %v3601 = vadd.s32 %v3593, 1
        %vm3602 = vcmp.eq.s32.totalorder %v3591, %v3600
        %vm3603 = vcmp.eq.s32.totalorder %v3591, %v3601
        %v3604 = vsel %vm3602, 1, 0
        %v3605 = vsel %vm3603, 1, 0
        %v3606 = vcvt.s32.f32 %v3604
        %v3607 = vcvt.s32.f32 %v3605
        %vm3608 = vcmask 228352
        %v3610 = vsel %vm3608, %v3598, 0
        %v3613 = vsel %vm3608, %v3599, 0
        %vm3615 = vcmask 1043456
        %v3617 = vsel %vm3615, %v3583, 0
        %v3620 = vsel %vm3615, %v3584, 0
        %v3623 = vsel %vm3615, %v3585, 0
        %v3626 = vsel %vm3615, %v3586, 0
        %3628 = vmatprep.subr.mxu0 %v3572
        %3629 = vmatpush1.msra.mxu0 %v3571
        %3630 = vmatprep.subr.mxu0 %v3576
        %3631 = vmatpush1.msra.mxu0 %v3575
        %3632 = vmatprep.subr.mxu0 %v3580
        %3633 = vmatpush1.msra.mxu0 %v3579
        %3634 = vmatprep.subr.mxu0 %v3620
        %3635 = vmatpush1.msra.mxu0 %v3617
        %3636 = vmatprep.subr.mxu0 0.0
        %3637 = vmatpush1.msra.mxu0 0.0
        %3638 = vmatprep.subr.mxu0 0.0
        %3639 = vmatpush1.msra.mxu0 0.0
        %3640 = vmatprep.subr.mxu0 0.0
        %3641 = vmatpush1.msra.mxu0 0.0
        %3642 = vmatprep.subr.mxu0 0.0
        %3643 = vmatpush1.msra.mxu0 0.0
        %3644 = vmatprep.subr.mxu0 0.0
        %3645 = vmatpush1.msra.mxu0 0.0
        %3646 = vmatprep.subr.mxu0 0.0
        %3647 = vmatpush1.msra.mxu0 0.0
        %3648 = vmatprep.subr.mxu0 0.0
        %3649 = vmatpush1.msra.mxu0 0.0
        %3650 = vmatprep.subr.mxu0 0.0
        %3651 = vmatpush1.msra.mxu0 0.0
        %3652 = vmatprep.subr.mxu0 0.0
        %3653 = vmatpush1.msra.mxu0 0.0
        %3654 = vmatprep.subr.mxu0 0.0
        %3655 = vmatpush1.msra.mxu0 0.0
        %3656 = vmatprep.subr.mxu0 0.0
        %3657 = vmatpush1.msra.mxu0 0.0
        %3658 = vmatprep.subr.mxu0 0.0
        %3659 = vmatpush1.msra.mxu0 0.0
        %3660 = vmatprep.subr.mxu0 0.0
        %3661 = vmatpush1.msra.mxu0 0.0
        %3662 = vmatprep.subr.mxu0 0.0
        %3663 = vmatpush1.msra.mxu0 0.0
        %3664 = vmatprep.subr.mxu0 0.0
        %3665 = vmatpush1.msra.mxu0 0.0
        %3666 = vmatprep.subr.mxu0 0.0
        %3667 = vmatpush1.msra.mxu0 0.0
        %3668 = vmatprep.subr.mxu0 0.0
        %3669 = vmatpush1.msra.mxu0 0.0
        %3670 = vmatprep.subr.mxu0 0.0
        %3671 = vmatpush1.msra.mxu0 0.0
        %3672 = vmatprep.subr.mxu0 0.0
        %3673 = vmatpush1.msra.mxu0 0.0
        %3674 = vmatprep.subr.mxu0 0.0
        %3675 = vmatpush1.msra.mxu0 0.0
        %3676 = vmatprep.subr.mxu0 0.0
        %3677 = vmatpush1.msra.mxu0 0.0
        %3678 = vmatprep.subr.mxu0 0.0
        %3679 = vmatpush1.msra.mxu0 0.0
        %3680 = vmatprep.subr.mxu0 0.0
        %3681 = vmatpush1.msra.mxu0 0.0
        %3682 = vmatprep.subr.mxu0 0.0
        %3683 = vmatpush1.msra.mxu0 0.0
        %3684 = vmatprep.subr.mxu0 0.0
        %3685 = vmatpush1.msra.mxu0 0.0
        %3686 = vmatprep.subr.mxu0 0.0
        %3687 = vmatpush1.msra.mxu0 0.0
        %3688 = vmatprep.subr.mxu0 0.0
        %3689 = vmatpush1.msra.mxu0 0.0
        %3690 = vmatprep.subr.mxu0 0.0
        %3691 = vmatpush1.msra.mxu0 0.0
        %3692 = vmatprep.mubr.f32.mxu0 0.0
        %3693 = vmatmul.mubr.f32.gmra.mrb[0].mxu0 %v3610
        %v3694 = vpop.f32.mrb[0].mxu0
        %v3695 = vadd.f32 0.0, %v3694
        %v3696 = vpop.f32.mrb[0].mxu0
        %v3697 = vadd.f32 0.0, %v3696
        %3698 = vmatprep.mubr.f32.mxu0 0.0
        %3699 = vmatmul.mubr.f32.gmra.mrb[0].mxu0 %v3613
        %v3700 = vpop.f32.mrb[0].mxu0
        %v3701 = vadd.f32 0.0, %v3700
        %v3702 = vpop.f32.mrb[0].mxu0
        %v3703 = vadd.f32 0.0, %v3702
        %3704 = vdwg.mxu0
        %3705 = vmatprep.subr.mxu0 %v3574
        %3706 = vmatpush1.msra.mxu0 %v3573
        %3707 = vmatprep.subr.mxu0 %v3578
        %3708 = vmatpush1.msra.mxu0 %v3577
        %3709 = vmatprep.subr.mxu0 %v3582
        %3710 = vmatpush1.msra.mxu0 %v3581
        %3711 = vmatprep.subr.mxu0 %v3626
        %3712 = vmatpush1.msra.mxu0 %v3623
        %3713 = vmatprep.subr.mxu0 0.0
        %3714 = vmatpush1.msra.mxu0 0.0
        %3715 = vmatprep.subr.mxu0 0.0
        %3716 = vmatpush1.msra.mxu0 0.0
        %3717 = vmatprep.subr.mxu0 0.0
        %3718 = vmatpush1.msra.mxu0 0.0
        %3719 = vmatprep.subr.mxu0 0.0
        %3720 = vmatpush1.msra.mxu0 0.0
        %3721 = vmatprep.subr.mxu0 0.0
        %3722 = vmatpush1.msra.mxu0 0.0
        %3723 = vmatprep.subr.mxu0 0.0
        %3724 = vmatpush1.msra.mxu0 0.0
        %3725 = vmatprep.subr.mxu0 0.0
        %3726 = vmatpush1.msra.mxu0 0.0
        %3727 = vmatprep.subr.mxu0 0.0
        %3728 = vmatpush1.msra.mxu0 0.0
        %3729 = vmatprep.subr.mxu0 0.0
        %3730 = vmatpush1.msra.mxu0 0.0
        %3731 = vmatprep.subr.mxu0 0.0
        %3732 = vmatpush1.msra.mxu0 0.0
        %3733 = vmatprep.subr.mxu0 0.0
        %3734 = vmatpush1.msra.mxu0 0.0
        %3735 = vmatprep.subr.mxu0 0.0
        %3736 = vmatpush1.msra.mxu0 0.0
        %3737 = vmatprep.subr.mxu0 0.0
        %3738 = vmatpush1.msra.mxu0 0.0
        %3739 = vmatprep.subr.mxu0 0.0
        %3740 = vmatpush1.msra.mxu0 0.0
        %3741 = vmatprep.subr.mxu0 0.0
        %3742 = vmatpush1.msra.mxu0 0.0
        %3743 = vmatprep.subr.mxu0 0.0
        %3744 = vmatpush1.msra.mxu0 0.0
        %3745 = vmatprep.subr.mxu0 0.0
        %3746 = vmatpush1.msra.mxu0 0.0
        %3747 = vmatprep.subr.mxu0 0.0
        %3748 = vmatpush1.msra.mxu0 0.0
        %3749 = vmatprep.subr.mxu0 0.0
        %3750 = vmatpush1.msra.mxu0 0.0
        %3751 = vmatprep.subr.mxu0 0.0
        %3752 = vmatpush1.msra.mxu0 0.0
        %3753 = vmatprep.subr.mxu0 0.0
        %3754 = vmatpush1.msra.mxu0 0.0
        %3755 = vmatprep.subr.mxu0 0.0
        %3756 = vmatpush1.msra.mxu0 0.0
        %3757 = vmatprep.subr.mxu0 0.0
        %3758 = vmatpush1.msra.mxu0 0.0
        %3759 = vmatprep.subr.mxu0 0.0
        %3760 = vmatpush1.msra.mxu0 0.0
        %3761 = vmatprep.subr.mxu0 0.0
        %3762 = vmatpush1.msra.mxu0 0.0
        %3763 = vmatprep.subr.mxu0 0.0
        %3764 = vmatpush1.msra.mxu0 0.0
        %3765 = vmatprep.subr.mxu0 0.0
        %3766 = vmatpush1.msra.mxu0 0.0
        %3767 = vmatprep.subr.mxu0 0.0
        %3768 = vmatpush1.msra.mxu0 0.0
        %3769 = vmatprep.mubr.f32.mxu0 0.0
        %3770 = vmatmul.mubr.f32.gmra.mrb[0].mxu0 %v3610
        %v3771 = vpop.f32.mrb[0].mxu0
        %v3772 = vadd.f32 0.0, %v3771
        %v3773 = vpop.f32.mrb[0].mxu0
        %v3774 = vadd.f32 0.0, %v3773
        %3775 = vmatprep.mubr.f32.mxu0 0.0
        %3776 = vmatmul.mubr.f32.gmra.mrb[0].mxu0 %v3613
        %v3777 = vpop.f32.mrb[0].mxu0
        %v3778 = vadd.f32 0.0, %v3777
        %v3779 = vpop.f32.mrb[0].mxu0
        %v3780 = vadd.f32 0.0, %v3779
        %3781 = vdwg.mxu0
        %v3783 = vsel %vm3608, %v3606, 0
        %v3786 = vsel %vm3608, %v3607, 0
        %3788 = vmatprep.subr.mxu0 %v3572
        %3789 = vmatpush1.msra.mxu0 %v3571
        %3790 = vmatprep.subr.mxu0 %v3576
        %3791 = vmatpush1.msra.mxu0 %v3575
        %3792 = vmatprep.subr.mxu0 %v3580
        %3793 = vmatpush1.msra.mxu0 %v3579
        %3794 = vmatprep.subr.mxu0 %v3620
        %3795 = vmatpush1.msra.mxu0 %v3617
        %3796 = vmatprep.subr.mxu0 0.0
        %3797 = vmatpush1.msra.mxu0 0.0
        %3798 = vmatprep.subr.mxu0 0.0
        %3799 = vmatpush1.msra.mxu0 0.0
        %3800 = vmatprep.subr.mxu0 0.0
        %3801 = vmatpush1.msra.mxu0 0.0
        %3802 = vmatprep.subr.mxu0 0.0
        %3803 = vmatpush1.msra.mxu0 0.0
        %3804 = vmatprep.subr.mxu0 0.0
        %3805 = vmatpush1.msra.mxu0 0.0
        %3806 = vmatprep.subr.mxu0 0.0
        %3807 = vmatpush1.msra.mxu0 0.0
        %3808 = vmatprep.subr.mxu0 0.0
        %3809 = vmatpush1.msra.mxu0 0.0
        %3810 = vmatprep.subr.mxu0 0.0
        %3811 = vmatpush1.msra.mxu0 0.0
        %3812 = vmatprep.subr.mxu0 0.0
        %3813 = vmatpush1.msra.mxu0 0.0
        %3814 = vmatprep.subr.mxu0 0.0
        %3815 = vmatpush1.msra.mxu0 0.0
        %3816 = vmatprep.subr.mxu0 0.0
        %3817 = vmatpush1.msra.mxu0 0.0
        %3818 = vmatprep.subr.mxu0 0.0
        %3819 = vmatpush1.msra.mxu0 0.0
        %3820 = vmatprep.subr.mxu0 0.0
        %3821 = vmatpush1.msra.mxu0 0.0
        %3822 = vmatprep.subr.mxu0 0.0
        %3823 = vmatpush1.msra.mxu0 0.0
        %3824 = vmatprep.subr.mxu0 0.0
        %3825 = vmatpush1.msra.mxu0 0.0
        %3826 = vmatprep.subr.mxu0 0.0
        %3827 = vmatpush1.msra.mxu0 0.0
        %3828 = vmatprep.subr.mxu0 0.0
        %3829 = vmatpush1.msra.mxu0 0.0
        %3830 = vmatprep.subr.mxu0 0.0
        %3831 = vmatpush1.msra.mxu0 0.0
        %3832 = vmatprep.subr.mxu0 0.0
        %3833 = vmatpush1.msra.mxu0 0.0
        %3834 = vmatprep.subr.mxu0 0.0
        %3835 = vmatpush1.msra.mxu0 0.0
        %3836 = vmatprep.subr.mxu0 0.0
        %3837 = vmatpush1.msra.mxu0 0.0
        %3838 = vmatprep.subr.mxu0 0.0
        %3839 = vmatpush1.msra.mxu0 0.0
        %3840 = vmatprep.subr.mxu0 0.0
        %3841 = vmatpush1.msra.mxu0 0.0
        %3842 = vmatprep.subr.mxu0 0.0
        %3843 = vmatpush1.msra.mxu0 0.0
        %3844 = vmatprep.subr.mxu0 0.0
        %3845 = vmatpush1.msra.mxu0 0.0
        %3846 = vmatprep.subr.mxu0 0.0
        %3847 = vmatpush1.msra.mxu0 0.0
        %3848 = vmatprep.subr.mxu0 0.0
        %3849 = vmatpush1.msra.mxu0 0.0
        %3850 = vmatprep.subr.mxu0 0.0
        %3851 = vmatpush1.msra.mxu0 0.0
        %3852 = vmatprep.mubr.f32.mxu0 0.0
        %3853 = vmatmul.mubr.f32.gmra.mrb[0].mxu0 %v3783
        %v3854 = vpop.f32.mrb[0].mxu0
        %v3855 = vadd.f32 0.0, %v3854
        %v3856 = vpop.f32.mrb[0].mxu0
        %v3857 = vadd.f32 0.0, %v3856
        %3858 = vmatprep.mubr.f32.mxu0 0.0
        %3859 = vmatmul.mubr.f32.gmra.mrb[0].mxu0 %v3786
        %v3860 = vpop.f32.mrb[0].mxu0
        %v3861 = vadd.f32 0.0, %v3860
        %v3862 = vpop.f32.mrb[0].mxu0
        %v3863 = vadd.f32 0.0, %v3862
        %3864 = vdwg.mxu0
        %3865 = vmatprep.subr.mxu0 %v3574
        %3866 = vmatpush1.msra.mxu0 %v3573
        %3867 = vmatprep.subr.mxu0 %v3578
        %3868 = vmatpush1.msra.mxu0 %v3577
        %3869 = vmatprep.subr.mxu0 %v3582
        %3870 = vmatpush1.msra.mxu0 %v3581
        %3871 = vmatprep.subr.mxu0 %v3626
        %3872 = vmatpush1.msra.mxu0 %v3623
        %3873 = vmatprep.subr.mxu0 0.0
        %3874 = vmatpush1.msra.mxu0 0.0
        %3875 = vmatprep.subr.mxu0 0.0
        %3876 = vmatpush1.msra.mxu0 0.0
        %3877 = vmatprep.subr.mxu0 0.0
        %3878 = vmatpush1.msra.mxu0 0.0
        %3879 = vmatprep.subr.mxu0 0.0
        %3880 = vmatpush1.msra.mxu0 0.0
        %3881 = vmatprep.subr.mxu0 0.0
        %3882 = vmatpush1.msra.mxu0 0.0
        %3883 = vmatprep.subr.mxu0 0.0
        %3884 = vmatpush1.msra.mxu0 0.0
        %3885 = vmatprep.subr.mxu0 0.0
        %3886 = vmatpush1.msra.mxu0 0.0
        %3887 = vmatprep.subr.mxu0 0.0
        %3888 = vmatpush1.msra.mxu0 0.0
        %3889 = vmatprep.subr.mxu0 0.0
        %3890 = vmatpush1.msra.mxu0 0.0
        %3891 = vmatprep.subr.mxu0 0.0
        %3892 = vmatpush1.msra.mxu0 0.0
        %3893 = vmatprep.subr.mxu0 0.0
        %3894 = vmatpush1.msra.mxu0 0.0
        %3895 = vmatprep.subr.mxu0 0.0
        %3896 = vmatpush1.msra.mxu0 0.0
        %3897 = vmatprep.subr.mxu0 0.0
        %3898 = vmatpush1.msra.mxu0 0.0
        %3899 = vmatprep.subr.mxu0 0.0
        %3900 = vmatpush1.msra.mxu0 0.0
        %3901 = vmatprep.subr.mxu0 0.0
        %3902 = vmatpush1.msra.mxu0 0.0
        %3903 = vmatprep.subr.mxu0 0.0
        %3904 = vmatpush1.msra.mxu0 0.0
        %3905 = vmatprep.subr.mxu0 0.0
        %3906 = vmatpush1.msra.mxu0 0.0
        %3907 = vmatprep.subr.mxu0 0.0
        %3908 = vmatpush1.msra.mxu0 0.0
        %3909 = vmatprep.subr.mxu0 0.0
        %3910 = vmatpush1.msra.mxu0 0.0
        %3911 = vmatprep.subr.mxu0 0.0
        %3912 = vmatpush1.msra.mxu0 0.0
        %3913 = vmatprep.subr.mxu0 0.0
        %3914 = vmatpush1.msra.mxu0 0.0
        %3915 = vmatprep.subr.mxu0 0.0
        %3916 = vmatpush1.msra.mxu0 0.0
        %3917 = vmatprep.subr.mxu0 0.0
        %3918 = vmatpush1.msra.mxu0 0.0
        %3919 = vmatprep.subr.mxu0 0.0
        %3920 = vmatpush1.msra.mxu0 0.0
        %3921 = vmatprep.subr.mxu0 0.0
        %3922 = vmatpush1.msra.mxu0 0.0
        %3923 = vmatprep.subr.mxu0 0.0
        %3924 = vmatpush1.msra.mxu0 0.0
        %3925 = vmatprep.subr.mxu0 0.0
        %3926 = vmatpush1.msra.mxu0 0.0
        %3927 = vmatprep.subr.mxu0 0.0
        %3928 = vmatpush1.msra.mxu0 0.0
        %3929 = vmatprep.mubr.f32.mxu0 0.0
        %3930 = vmatmul.mubr.f32.gmra.mrb[0].mxu0 %v3783
        %v3931 = vpop.f32.mrb[0].mxu0
        %v3932 = vadd.f32 0.0, %v3931
        %v3933 = vpop.f32.mrb[0].mxu0
        %v3934 = vadd.f32 0.0, %v3933
        %3935 = vmatprep.mubr.f32.mxu0 0.0
        %3936 = vmatmul.mubr.f32.gmra.mrb[0].mxu0 %v3786
        %v3937 = vpop.f32.mrb[0].mxu0
        %v3938 = vadd.f32 0.0, %v3937
        %v3939 = vpop.f32.mrb[0].mxu0
        %v3940 = vadd.f32 0.0, %v3939
        %3941 = vdwg.mxu0
        %v3942 = vmax.f32 %v3695, %v3855
        %v3943 = vmax.f32 %v3697, %v3857
        %v3944 = vmax.f32 %v3772, %v3932
        %v3945 = vmax.f32 %v3774, %v3934
        %v3946 = vmax.f32 %v3701, %v3861
        %v3947 = vmax.f32 %v3703, %v3863
        %v3948 = vmax.f32 %v3778, %v3938
        %v3949 = vmax.f32 %v3780, %v3940
        %v3950 = vld [vmem:[%s3] sm:$0xf]
        %v3952 = vlaneseq
        %v3953 = vshrl.u32 %v3952, 7
        %v3954 = vsub.s32 0, %v3953
        %v3955 = vrot.slane %v3950, %v3954
        %v3956 = vlaneseq
        %v3957 = vshrl.u32 %v3956, 7
        %v3958 = vsub.s32 1, %v3957
        %v3959 = vrot.slane %v3950, %v3958
        %v3960 = vlaneseq
        %v3961 = vshrl.u32 %v3960, 7
        %v3962 = vsub.s32 2, %v3961
        %v3963 = vrot.slane %v3950, %v3962
        %v3964 = vlaneseq
        %v3965 = vshrl.u32 %v3964, 7
        %v3966 = vsub.s32 3, %v3965
        %v3967 = vrot.slane %v3950, %v3966
        %v3972 = vadd.f32 %v3942, %v3955
        %v3973 = vadd.f32 %v3943, %v3959
        %v3974 = vadd.f32 %v3944, %v3963
        %v3975 = vadd.f32 %v3945, %v3967
        %v3976 = vadd.f32 %v3946, %v3955
        %v3977 = vadd.f32 %v3947, %v3959
        %v3978 = vadd.f32 %v3948, %v3963
        %v3979 = vadd.f32 %v3949, %v3967
        %v3980 = vmax.f32 %v3972, 0.0
        %v3981 = vmax.f32 %v3973, 0.0
        %v3982 = vmax.f32 %v3974, 0.0
        %v3983 = vmax.f32 %v3975, 0.0
        %v3984 = vmax.f32 %v3976, 0.0
        %v3985 = vmax.f32 %v3977, 0.0
        %v3986 = vmax.f32 %v3978, 0.0
        %v3987 = vmax.f32 %v3979, 0.0
        %v3988 = vpack.c.bf16 %v3984, %v3980
        %v3989 = vpack.c.bf16 %v3985, %v3981
        %v3990 = vpack.c.bf16 %v3986, %v3982
        %v3991 = vpack.c.bf16 %v3987, %v3983
        %v3992 = vld [vmem:[%s4] sm:$0xff]
        %v3993 = vld [vmem:[%s4 + $0x8] sm:$0xff]
        %v3994 = vld [vmem:[%s4 + $0x10] sm:$0xff]
        %v3995 = vld [vmem:[%s4 + $0x18] sm:$0xff]
        %v3996 = vld [vmem:[%s4 + $0x20] sm:$0xff]
        %v3997 = vld [vmem:[%s4 + $0x28] sm:$0xff]
        %v3998 = vld [vmem:[%s4 + $0x30] sm:$0xff]
        %v3999 = vld [vmem:[%s4 + $0x38] sm:$0xff]
        %v4000 = vld [vmem:[%s4 + $0x40] sm:$0xff]
        %v4001 = vld [vmem:[%s4 + $0x48] sm:$0xff]
        %v4002 = vld [vmem:[%s4 + $0x50] sm:$0xff]
        %v4003 = vld [vmem:[%s4 + $0x58] sm:$0xff]
        %v4004 = vld [vmem:[%s4 + $0x60] sm:$0xff]
        %v4005 = vld [vmem:[%s4 + $0x68] sm:$0xff]
        %v4006 = vld [vmem:[%s4 + $0x70] sm:$0xff]
        %v4007 = vld [vmem:[%s4 + $0x78] sm:$0xff]
        %v4008 = vld [vmem:[%s4 + $0x80] sm:$0xff]
        %v4009 = vld [vmem:[%s4 + $0x88] sm:$0xff]
        %v4010 = vld [vmem:[%s4 + $0x90] sm:$0xff]
        %v4011 = vld [vmem:[%s4 + $0x98] sm:$0xff]
        %v4012 = vld [vmem:[%s4 + $0xa0] sm:$0xff]
        %v4013 = vld [vmem:[%s4 + $0xa8] sm:$0xff]
        %v4014 = vld [vmem:[%s4 + $0xb0] sm:$0xff]
        %v4015 = vld [vmem:[%s4 + $0xb8] sm:$0xff]
        %v4016 = vld [vmem:[%s4 + $0xc0] sm:$0xff]
        %v4017 = vld [vmem:[%s4 + $0xc8] sm:$0xff]
        %v4018 = vld [vmem:[%s4 + $0xd0] sm:$0xff]
        %v4019 = vld [vmem:[%s4 + $0xd8] sm:$0xff]
        %v4020 = vld [vmem:[%s4 + $0xe0] sm:$0xff]
        %v4021 = vld [vmem:[%s4 + $0xe8] sm:$0xff]
        %v4022 = vld [vmem:[%s4 + $0xf0] sm:$0xff]
        %v4023 = vld [vmem:[%s4 + $0xf8] sm:$0xff]
        %v4024 = vld [vmem:[%s4 + $0x100] sm:$0xff]
        %v4025 = vld [vmem:[%s4 + $0x108] sm:$0xff]
        %v4026 = vld [vmem:[%s4 + $0x110] sm:$0xff]
        %v4027 = vld [vmem:[%s4 + $0x118] sm:$0xff]
        %v4028 = vld [vmem:[%s4 + $0x120] sm:$0xff]
        %v4029 = vld [vmem:[%s4 + $0x128] sm:$0xff]
        %v4030 = vld [vmem:[%s4 + $0x130] sm:$0xff]
        %v4031 = vld [vmem:[%s4 + $0x138] sm:$0xff]
        %v4032 = vld [vmem:[%s4 + $0x140] sm:$0xff]
        %v4033 = vld [vmem:[%s4 + $0x148] sm:$0xff]
        %v4034 = vld [vmem:[%s4 + $0x150] sm:$0xff]
        %v4035 = vld [vmem:[%s4 + $0x158] sm:$0xff]
        %v4036 = vld [vmem:[%s4 + $0x160] sm:$0xff]
        %v4037 = vld [vmem:[%s4 + $0x168] sm:$0xff]
        %v4038 = vld [vmem:[%s4 + $0x170] sm:$0xff]
        %v4039 = vld [vmem:[%s4 + $0x178] sm:$0xff]
        %v4040 = vld [vmem:[%s4 + $0x180] sm:$0xff]
        %v4041 = vld [vmem:[%s4 + $0x188] sm:$0xff]
        %v4042 = vld [vmem:[%s4 + $0x190] sm:$0xff]
        %v4043 = vld [vmem:[%s4 + $0x198] sm:$0xff]
        %v4044 = vld [vmem:[%s4 + $0x1a0] sm:$0xff]
        %v4045 = vld [vmem:[%s4 + $0x1a8] sm:$0xff]
        %v4046 = vld [vmem:[%s4 + $0x1b0] sm:$0xff]
        %v4047 = vld [vmem:[%s4 + $0x1b8] sm:$0xff]
        %v4048 = vld [vmem:[%s5] sm:$0xff]
        %v4049 = vld [vmem:[%s5 + $0x8] sm:$0xff]
        %v4050 = vld [vmem:[%s5 + $0x10] sm:$0xff]
        %v4051 = vld [vmem:[%s5 + $0x18] sm:$0xff]
        %v4052 = vld [vmem:[%s5 + $0x20] sm:$0xff]
        %v4053 = vld [vmem:[%s5 + $0x28] sm:$0xff]
        %v4054 = vld [vmem:[%s5 + $0x30] sm:$0xff]
        %v4055 = vld [vmem:[%s5 + $0x38] sm:$0xff]
        %v4056 = vld [vmem:[%s5 + $0x40] sm:$0xff]
        %v4057 = vld [vmem:[%s5 + $0x48] sm:$0xff]
        %v4058 = vld [vmem:[%s5 + $0x50] sm:$0xff]
        %v4059 = vld [vmem:[%s5 + $0x58] sm:$0xff]
        %v4060 = vld [vmem:[%s5 + $0x60] sm:$0xff]
        %v4061 = vld [vmem:[%s5 + $0x68] sm:$0xff]
        %v4062 = vld [vmem:[%s5 + $0x70] sm:$0xff]
        %v4063 = vld [vmem:[%s5 + $0x78] sm:$0xff]
        %v4064 = vld [vmem:[%s5 + $0x80] sm:$0xff]
        %v4065 = vld [vmem:[%s5 + $0x88] sm:$0xff]
        %v4066 = vld [vmem:[%s5 + $0x90] sm:$0xff]
        %v4067 = vld [vmem:[%s5 + $0x98] sm:$0xff]
        %v4068 = vld [vmem:[%s5 + $0xa0] sm:$0xff]
        %v4069 = vld [vmem:[%s5 + $0xa8] sm:$0xff]
        %v4070 = vld [vmem:[%s5 + $0xb0] sm:$0xff]
        %v4071 = vld [vmem:[%s5 + $0xb8] sm:$0xff]
        %v4072 = vld [vmem:[%s5 + $0xc0] sm:$0xff]
        %v4073 = vld [vmem:[%s5 + $0xc8] sm:$0xff]
        %v4074 = vld [vmem:[%s5 + $0xd0] sm:$0xff]
        %v4075 = vld [vmem:[%s5 + $0xd8] sm:$0xff]
        %v4076 = vld [vmem:[%s5 + $0xe0] sm:$0xff]
        %v4077 = vld [vmem:[%s5 + $0xe8] sm:$0xff]
        %v4078 = vld [vmem:[%s5 + $0xf0] sm:$0xff]
        %v4079 = vld [vmem:[%s5 + $0xf8] sm:$0xff]
        %v4080 = vld [vmem:[%s5 + $0x100] sm:$0xff]
        %v4081 = vld [vmem:[%s5 + $0x108] sm:$0xff]
        %v4082 = vld [vmem:[%s5 + $0x110] sm:$0xff]
        %v4083 = vld [vmem:[%s5 + $0x118] sm:$0xff]
        %v4084 = vld [vmem:[%s5 + $0x120] sm:$0xff]
        %v4085 = vld [vmem:[%s5 + $0x128] sm:$0xff]
        %v4086 = vld [vmem:[%s5 + $0x130] sm:$0xff]
        %v4087 = vld [vmem:[%s5 + $0x138] sm:$0xff]
        %v4088 = vld [vmem:[%s5 + $0x140] sm:$0xff]
        %v4089 = vld [vmem:[%s5 + $0x148] sm:$0xff]
        %v4090 = vld [vmem:[%s5 + $0x150] sm:$0xff]
        %v4091 = vld [vmem:[%s5 + $0x158] sm:$0xff]
        %v4092 = vld [vmem:[%s5 + $0x160] sm:$0xff]
        %v4093 = vld [vmem:[%s5 + $0x168] sm:$0xff]
        %v4094 = vld [vmem:[%s5 + $0x170] sm:$0xff]
        %v4095 = vld [vmem:[%s5 + $0x178] sm:$0xff]
        %v4096 = vld [vmem:[%s5 + $0x180] sm:$0xff]
        %v4097 = vld [vmem:[%s5 + $0x188] sm:$0xff]
        %v4098 = vld [vmem:[%s5 + $0x190] sm:$0xff]
        %v4099 = vld [vmem:[%s5 + $0x198] sm:$0xff]
        %v4100 = vld [vmem:[%s5 + $0x1a0] sm:$0xff]
        %v4101 = vld [vmem:[%s5 + $0x1a8] sm:$0xff]
        %v4102 = vld [vmem:[%s5 + $0x1b0] sm:$0xff]
        %v4103 = vld [vmem:[%s5 + $0x1b8] sm:$0xff]
        %s4104 = scalar_lea.vmem %s4, 448
        %v4105 = vld [vmem:[%s4104] sm:$0xff]
        %v4106 = vld [vmem:[%s4104 + $0x8] sm:$0xff]
        %v4107 = vld [vmem:[%s4104 + $0x10] sm:$0xff]
        %v4108 = vld [vmem:[%s4104 + $0x18] sm:$0xff]
        %v4109 = vld [vmem:[%s4104 + $0x20] sm:$0xff]
        %v4110 = vld [vmem:[%s4104 + $0x28] sm:$0xff]
        %v4111 = vld [vmem:[%s4104 + $0x30] sm:$0xff]
        %v4112 = vld [vmem:[%s4104 + $0x38] sm:$0xff]
        %v4113 = vld [vmem:[%s4104 + $0x40] sm:$0xff]
        %v4114 = vld [vmem:[%s4104 + $0x48] sm:$0xff]
        %v4115 = vld [vmem:[%s4104 + $0x50] sm:$0xff]
        %v4116 = vld [vmem:[%s4104 + $0x58] sm:$0xff]
        %v4117 = vld [vmem:[%s4104 + $0x60] sm:$0xff]
        %v4118 = vld [vmem:[%s4104 + $0x68] sm:$0xff]
        %v4119 = vld [vmem:[%s4104 + $0x70] sm:$0xff]
        %v4120 = vld [vmem:[%s4104 + $0x78] sm:$0xff]
        %v4121 = vld [vmem:[%s4104 + $0x80] sm:$0xff]
        %v4122 = vld [vmem:[%s4104 + $0x88] sm:$0xff]
        %v4123 = vld [vmem:[%s4104 + $0x90] sm:$0xff]
        %v4124 = vld [vmem:[%s4104 + $0x98] sm:$0xff]
        %v4125 = vld [vmem:[%s4104 + $0xa0] sm:$0xff]
        %v4126 = vld [vmem:[%s4104 + $0xa8] sm:$0xff]
        %v4127 = vld [vmem:[%s4104 + $0xb0] sm:$0xff]
        %v4128 = vld [vmem:[%s4104 + $0xb8] sm:$0xff]
        %v4129 = vld [vmem:[%s4104 + $0xc0] sm:$0xff]
        %v4130 = vld [vmem:[%s4104 + $0xc8] sm:$0xff]
        %v4131 = vld [vmem:[%s4104 + $0xd0] sm:$0xff]
        %v4132 = vld [vmem:[%s4104 + $0xd8] sm:$0xff]
        %v4133 = vld [vmem:[%s4104 + $0xe0] sm:$0xff]
        %v4134 = vld [vmem:[%s4104 + $0xe8] sm:$0xff]
        %v4135 = vld [vmem:[%s4104 + $0xf0] sm:$0xff]
        %v4136 = vld [vmem:[%s4104 + $0xf8] sm:$0xff]
        %v4137 = vld [vmem:[%s4104 + $0x100] sm:$0xff]
        %v4138 = vld [vmem:[%s4104 + $0x108] sm:$0xff]
        %v4139 = vld [vmem:[%s4104 + $0x110] sm:$0xff]
        %v4140 = vld [vmem:[%s4104 + $0x118] sm:$0xff]
        %v4141 = vld [vmem:[%s4104 + $0x120] sm:$0xff]
        %v4142 = vld [vmem:[%s4104 + $0x128] sm:$0xff]
        %v4143 = vld [vmem:[%s4104 + $0x130] sm:$0xff]
        %v4144 = vld [vmem:[%s4104 + $0x138] sm:$0xff]
        %v4145 = vld [vmem:[%s4104 + $0x140] sm:$0xff]
        %v4146 = vld [vmem:[%s4104 + $0x148] sm:$0xff]
        %v4147 = vld [vmem:[%s4104 + $0x150] sm:$0xff]
        %v4148 = vld [vmem:[%s4104 + $0x158] sm:$0xff]
        %v4149 = vld [vmem:[%s4104 + $0x160] sm:$0xff]
        %v4150 = vld [vmem:[%s4104 + $0x168] sm:$0xff]
        %v4151 = vld [vmem:[%s4104 + $0x170] sm:$0xff]
        %v4152 = vld [vmem:[%s4104 + $0x178] sm:$0xff]
        %v4153 = vld [vmem:[%s4104 + $0x180] sm:$0xff]
        %v4154 = vld [vmem:[%s4104 + $0x188] sm:$0xff]
        %v4155 = vld [vmem:[%s4104 + $0x190] sm:$0xff]
        %v4156 = vld [vmem:[%s4104 + $0x198] sm:$0xff]
        %v4157 = vld [vmem:[%s4104 + $0x1a0] sm:$0xff]
        %v4158 = vld [vmem:[%s4104 + $0x1a8] sm:$0xff]
        %v4159 = vld [vmem:[%s4104 + $0x1b0] sm:$0xff]
        %v4160 = vld [vmem:[%s4104 + $0x1b8] sm:$0xff]
        %v4162 = vshrl.u32 %v3988, 16
        %v4164 = vshll.u32 %v3988, 16
        %v4166 = vrot.slane %v4164, 1
        %v4167 = vor.u32 %v4162, %v4166
        %v4169 = vshrl.u32 %v3989, 16
        %v4171 = vshll.u32 %v3989, 16
        %v4173 = vrot.slane %v4171, 1
        %v4174 = vor.u32 %v4169, %v4173
        %v4176 = vshrl.u32 %v3990, 16
        %v4178 = vshll.u32 %v3990, 16
        %v4180 = vrot.slane %v4178, 1
        %v4181 = vor.u32 %v4176, %v4180
        %v4183 = vshrl.u32 %v3991, 16
        %v4185 = vshll.u32 %v3991, 16
        %v4187 = vrot.slane %v4185, 1
        %v4188 = vor.u32 %v4183, %v4187
        %v4248 = vunpack.c.l.b16 %v4105
        %v4249 = vunpack.c.h.b16 %v4105
        %v4250 = vunpack.c.l.b16 %v4106
        %v4251 = vunpack.c.h.b16 %v4106
        %v4252 = vunpack.c.l.b16 %v4107
        %v4253 = vunpack.c.h.b16 %v4107
        %v4254 = vunpack.c.l.b16 %v4108
        %v4255 = vunpack.c.h.b16 %v4108
        %v4256 = vunpack.c.l.b16 %v4109
        %v4257 = vunpack.c.h.b16 %v4109
        %v4258 = vunpack.c.l.b16 %v4110
        %v4259 = vunpack.c.h.b16 %v4110
        %v4260 = vunpack.c.l.b16 %v4111
        %v4261 = vunpack.c.h.b16 %v4111
        %v4262 = vunpack.c.l.b16 %v4112
        %v4263 = vunpack.c.h.b16 %v4112
        %v4264 = vunpack.c.l.b16 %v4113
        %v4265 = vunpack.c.h.b16 %v4113
        %v4266 = vunpack.c.l.b16 %v4114
        %v4267 = vunpack.c.h.b16 %v4114
        %v4268 = vunpack.c.l.b16 %v4115
        %v4269 = vunpack.c.h.b16 %v4115
        %v4270 = vunpack.c.l.b16 %v4116
        %v4271 = vunpack.c.h.b16 %v4116
        %v4272 = vunpack.c.l.b16 %v4117
        %v4273 = vunpack.c.h.b16 %v4117
        %v4274 = vunpack.c.l.b16 %v4118
        %v4275 = vunpack.c.h.b16 %v4118
        %v4276 = vunpack.c.l.b16 %v4119
        %v4277 = vunpack.c.h.b16 %v4119
        %v4278 = vunpack.c.l.b16 %v4120
        %v4279 = vunpack.c.h.b16 %v4120
        %v4280 = vunpack.c.l.b16 %v4121
        %v4281 = vunpack.c.h.b16 %v4121
        %v4282 = vunpack.c.l.b16 %v4122
        %v4283 = vunpack.c.h.b16 %v4122
        %v4284 = vunpack.c.l.b16 %v4123
        %v4285 = vunpack.c.h.b16 %v4123
        %v4286 = vunpack.c.l.b16 %v4124
        %v4287 = vunpack.c.h.b16 %v4124
        %v4288 = vunpack.c.l.b16 %v4125
        %v4289 = vunpack.c.h.b16 %v4125
        %v4290 = vunpack.c.l.b16 %v4126
        %v4291 = vunpack.c.h.b16 %v4126
        %v4292 = vunpack.c.l.b16 %v4127
        %v4293 = vunpack.c.h.b16 %v4127
        %v4294 = vunpack.c.l.b16 %v4128
        %v4295 = vunpack.c.h.b16 %v4128
        %v4296 = vunpack.c.l.b16 %v4129
        %v4297 = vunpack.c.h.b16 %v4129
        %v4298 = vunpack.c.l.b16 %v4130
        %v4299 = vunpack.c.h.b16 %v4130
        %v4300 = vunpack.c.l.b16 %v4131
        %v4301 = vunpack.c.h.b16 %v4131
        %v4302 = vunpack.c.l.b16 %v4132
        %v4303 = vunpack.c.h.b16 %v4132
        %v4304 = vunpack.c.l.b16 %v4133
        %v4305 = vunpack.c.h.b16 %v4133
        %v4306 = vunpack.c.l.b16 %v4134
        %v4307 = vunpack.c.h.b16 %v4134
        %v4308 = vunpack.c.l.b16 %v4135
        %v4309 = vunpack.c.h.b16 %v4135
        %v4310 = vunpack.c.l.b16 %v4136
        %v4311 = vunpack.c.h.b16 %v4136
        %v4312 = vunpack.c.l.b16 %v4137
        %v4313 = vunpack.c.h.b16 %v4137
        %v4314 = vunpack.c.l.b16 %v4138
        %v4315 = vunpack.c.h.b16 %v4138
        %v4316 = vunpack.c.l.b16 %v4139
        %v4317 = vunpack.c.h.b16 %v4139
        %v4318 = vunpack.c.l.b16 %v4140
        %v4319 = vunpack.c.h.b16 %v4140
        %v4320 = vunpack.c.l.b16 %v4141
        %v4321 = vunpack.c.h.b16 %v4141
        %v4322 = vunpack.c.l.b16 %v4142
        %v4323 = vunpack.c.h.b16 %v4142
        %v4324 = vunpack.c.l.b16 %v4143
        %v4325 = vunpack.c.h.b16 %v4143
        %v4326 = vunpack.c.l.b16 %v4144
        %v4327 = vunpack.c.h.b16 %v4144
        %v4328 = vunpack.c.l.b16 %v4145
        %v4329 = vunpack.c.h.b16 %v4145
        %v4330 = vunpack.c.l.b16 %v4146
        %v4331 = vunpack.c.h.b16 %v4146
        %v4332 = vunpack.c.l.b16 %v4147
        %v4333 = vunpack.c.h.b16 %v4147
        %v4334 = vunpack.c.l.b16 %v4148
        %v4335 = vunpack.c.h.b16 %v4148
        %v4336 = vunpack.c.l.b16 %v4149
        %v4337 = vunpack.c.h.b16 %v4149
        %v4338 = vunpack.c.l.b16 %v4150
        %v4339 = vunpack.c.h.b16 %v4150
        %v4340 = vunpack.c.l.b16 %v4151
        %v4341 = vunpack.c.h.b16 %v4151
        %v4342 = vunpack.c.l.b16 %v4152
        %v4343 = vunpack.c.h.b16 %v4152
        %v4344 = vunpack.c.l.b16 %v4153
        %v4345 = vunpack.c.h.b16 %v4153
        %v4346 = vunpack.c.l.b16 %v4154
        %v4347 = vunpack.c.h.b16 %v4154
        %v4348 = vunpack.c.l.b16 %v4155
        %v4349 = vunpack.c.h.b16 %v4155
        %v4350 = vunpack.c.l.b16 %v4156
        %v4351 = vunpack.c.h.b16 %v4156
        %v4352 = vunpack.c.l.b16 %v4157
        %v4353 = vunpack.c.h.b16 %v4157
        %v4354 = vunpack.c.l.b16 %v4158
        %v4355 = vunpack.c.h.b16 %v4158
        %v4356 = vunpack.c.l.b16 %v4159
        %v4357 = vunpack.c.h.b16 %v4159
        %v4358 = vunpack.c.l.b16 %v4160
        %v4359 = vunpack.c.h.b16 %v4160
        %v4360 = vpack.c.b16 %v4250, %v4248
        %v4361 = vpack.c.b16 %v4251, %v4249
        %v4362 = vpack.c.b16 %v4254, %v4252
        %v4363 = vpack.c.b16 %v4255, %v4253
        %v4364 = vpack.c.b16 %v4258, %v4256
        %v4365 = vpack.c.b16 %v4259, %v4257
        %v4366 = vpack.c.b16 %v4262, %v4260
        %v4367 = vpack.c.b16 %v4263, %v4261
        %v4368 = vpack.c.b16 %v4266, %v4264
        %v4369 = vpack.c.b16 %v4267, %v4265
        %v4370 = vpack.c.b16 %v4270, %v4268
        %v4371 = vpack.c.b16 %v4271, %v4269
        %v4372 = vpack.c.b16 %v4274, %v4272
        %v4373 = vpack.c.b16 %v4275, %v4273
        %v4374 = vpack.c.b16 %v4278, %v4276
        %v4375 = vpack.c.b16 %v4279, %v4277
        %v4376 = vpack.c.b16 %v4282, %v4280
        %v4377 = vpack.c.b16 %v4283, %v4281
        %v4378 = vpack.c.b16 %v4286, %v4284
        %v4379 = vpack.c.b16 %v4287, %v4285
        %v4380 = vpack.c.b16 %v4290, %v4288
        %v4381 = vpack.c.b16 %v4291, %v4289
        %v4382 = vpack.c.b16 %v4294, %v4292
        %v4383 = vpack.c.b16 %v4295, %v4293
        %v4384 = vpack.c.b16 %v4298, %v4296
        %v4385 = vpack.c.b16 %v4299, %v4297
        %v4386 = vpack.c.b16 %v4302, %v4300
        %v4387 = vpack.c.b16 %v4303, %v4301
        %v4388 = vpack.c.b16 %v4306, %v4304
        %v4389 = vpack.c.b16 %v4307, %v4305
        %v4390 = vpack.c.b16 %v4310, %v4308
        %v4391 = vpack.c.b16 %v4311, %v4309
        %v4392 = vpack.c.b16 %v4314, %v4312
        %v4393 = vpack.c.b16 %v4315, %v4313
        %v4394 = vpack.c.b16 %v4318, %v4316
        %v4395 = vpack.c.b16 %v4319, %v4317
        %v4396 = vpack.c.b16 %v4322, %v4320
        %v4397 = vpack.c.b16 %v4323, %v4321
        %v4398 = vpack.c.b16 %v4326, %v4324
        %v4399 = vpack.c.b16 %v4327, %v4325
        %v4400 = vpack.c.b16 %v4330, %v4328
        %v4401 = vpack.c.b16 %v4331, %v4329
        %v4402 = vpack.c.b16 %v4334, %v4332
        %v4403 = vpack.c.b16 %v4335, %v4333
        %v4404 = vpack.c.b16 %v4338, %v4336
        %v4405 = vpack.c.b16 %v4339, %v4337
        %v4406 = vpack.c.b16 %v4342, %v4340
        %v4407 = vpack.c.b16 %v4343, %v4341
        %v4408 = vpack.c.b16 %v4346, %v4344
        %v4409 = vpack.c.b16 %v4347, %v4345
        %v4410 = vpack.c.b16 %v4350, %v4348
        %v4411 = vpack.c.b16 %v4351, %v4349
        %v4412 = vpack.c.b16 %v4354, %v4352
        %v4413 = vpack.c.b16 %v4355, %v4353
        %v4414 = vpack.c.b16 %v4358, %v4356
        %v4415 = vpack.c.b16 %v4359, %v4357
        %vm4472 = vcmask 523264
        %v4474 = vsel %vm4472, %v4188, 0
        %4476 = vmatprep.subr.bf16.mxu0 %v4361
        %4477 = vmatpush1.bf16.msra.mxu0 %v4360
        %4478 = vmatprep.subr.bf16.mxu0 %v4363
        %4479 = vmatpush1.bf16.msra.mxu0 %v4362
        %4480 = vmatprep.subr.bf16.mxu0 %v4365
        %4481 = vmatpush1.bf16.msra.mxu0 %v4364
        %4482 = vmatprep.subr.bf16.mxu0 %v4367
        %4483 = vmatpush1.bf16.msra.mxu0 %v4366
        %4484 = vmatprep.subr.bf16.mxu0 %v4369
        %4485 = vmatpush1.bf16.msra.mxu0 %v4368
        %4486 = vmatprep.subr.bf16.mxu0 %v4371
        %4487 = vmatpush1.bf16.msra.mxu0 %v4370
        %4488 = vmatprep.subr.bf16.mxu0 %v4373
        %4489 = vmatpush1.bf16.msra.mxu0 %v4372
        %4490 = vmatprep.subr.bf16.mxu0 %v4375
        %4491 = vmatpush1.bf16.msra.mxu0 %v4374
        %4492 = vmatprep.subr.bf16.mxu0 %v4377
        %4493 = vmatpush1.bf16.msra.mxu0 %v4376
        %4494 = vmatprep.subr.bf16.mxu0 %v4379
        %4495 = vmatpush1.bf16.msra.mxu0 %v4378
        %4496 = vmatprep.subr.bf16.mxu0 %v4381
        %4497 = vmatpush1.bf16.msra.mxu0 %v4380
        %4498 = vmatprep.subr.bf16.mxu0 %v4383
        %4499 = vmatpush1.bf16.msra.mxu0 %v4382
        %4500 = vmatprep.subr.bf16.mxu0 %v4385
        %4501 = vmatpush1.bf16.msra.mxu0 %v4384
        %4502 = vmatprep.subr.bf16.mxu0 %v4387
        %4503 = vmatpush1.bf16.msra.mxu0 %v4386
        %4504 = vmatprep.subr.bf16.mxu0 %v4389
        %4505 = vmatpush1.bf16.msra.mxu0 %v4388
        %4506 = vmatprep.subr.bf16.mxu0 %v4391
        %4507 = vmatpush1.bf16.msra.mxu0 %v4390
        %4508 = vmatprep.mubr.bf16.mxu0 %v4174
        %4509 = vmatmul.mubr.bf16.gmra.mrb[0].mxu0 %v4167
        %v4510 = vpop.f32.mrb[0].mxu0
        %v4511 = vadd.f32 0.0, %v4510
        %v4512 = vpop.f32.mrb[0].mxu0
        %v4513 = vadd.f32 0.0, %v4512
        %v4514 = vpop.f32.mrb[0].mxu0
        %v4515 = vadd.f32 0.0, %v4514
        %v4516 = vpop.f32.mrb[0].mxu0
        %v4517 = vadd.f32 0.0, %v4516
        %4518 = vdwg.mxu0
        %4519 = vmatprep.subr.bf16.mxu0 %v4393
        %4520 = vmatpush1.bf16.msra.mxu0 %v4392
        %4521 = vmatprep.subr.bf16.mxu0 %v4395
        %4522 = vmatpush1.bf16.msra.mxu0 %v4394
        %4523 = vmatprep.subr.bf16.mxu0 %v4397
        %4524 = vmatpush1.bf16.msra.mxu0 %v4396
        %4525 = vmatprep.subr.bf16.mxu0 %v4399
        %4526 = vmatpush1.bf16.msra.mxu0 %v4398
        %4527 = vmatprep.subr.bf16.mxu0 %v4401
        %4528 = vmatpush1.bf16.msra.mxu0 %v4400
        %4529 = vmatprep.subr.bf16.mxu0 %v4403
        %4530 = vmatpush1.bf16.msra.mxu0 %v4402
        %4531 = vmatprep.subr.bf16.mxu0 %v4405
        %4532 = vmatpush1.bf16.msra.mxu0 %v4404
        %4533 = vmatprep.subr.bf16.mxu0 %v4407
        %4534 = vmatpush1.bf16.msra.mxu0 %v4406
        %4535 = vmatprep.subr.bf16.mxu0 %v4409
        %4536 = vmatpush1.bf16.msra.mxu0 %v4408
        %4537 = vmatprep.subr.bf16.mxu0 %v4411
        %4538 = vmatpush1.bf16.msra.mxu0 %v4410
        %4539 = vmatprep.subr.bf16.mxu0 %v4413
        %4540 = vmatpush1.bf16.msra.mxu0 %v4412
        %4541 = vmatprep.subr.bf16.mxu0 %v4415
        %4542 = vmatpush1.bf16.msra.mxu0 %v4414
        %4543 = vmatprep.subr.bf16.mxu0 0
        %4544 = vmatpush1.bf16.msra.mxu0 0
        %4545 = vmatprep.subr.bf16.mxu0 0
        %4546 = vmatpush1.bf16.msra.mxu0 0
        %4547 = vmatprep.subr.bf16.mxu0 0
        %4548 = vmatpush1.bf16.msra.mxu0 0
        %4549 = vmatprep.subr.bf16.mxu0 0
        %4550 = vmatpush1.bf16.msra.mxu0 0
        %4551 = vmatprep.mubr.bf16.mxu0 %v4474
        %4552 = vmatmul.mubr.bf16.gmra.mrb[0].mxu0 %v4181
        %v4553 = vpop.f32.mrb[0].mxu0
        %v4554 = vadd.f32 %v4511, %v4553
        %v4555 = vpop.f32.mrb[0].mxu0
        %v4556 = vadd.f32 %v4513, %v4555
        %v4557 = vpop.f32.mrb[0].mxu0
        %v4558 = vadd.f32 %v4515, %v4557
        %v4559 = vpop.f32.mrb[0].mxu0
        %v4560 = vadd.f32 %v4517, %v4559
        %4561 = vdwg.mxu0
        %s4562 = scalar_lea.vmem %s5, 448
        %v4563 = vld [vmem:[%s4562] sm:$0xff]
        %v4564 = vld [vmem:[%s4562 + $0x8] sm:$0xff]
        %v4565 = vld [vmem:[%s4562 + $0x10] sm:$0xff]
        %v4566 = vld [vmem:[%s4562 + $0x18] sm:$0xff]
        %v4567 = vld [vmem:[%s4562 + $0x20] sm:$0xff]
        %v4568 = vld [vmem:[%s4562 + $0x28] sm:$0xff]
        %v4569 = vld [vmem:[%s4562 + $0x30] sm:$0xff]
        %v4570 = vld [vmem:[%s4562 + $0x38] sm:$0xff]
        %v4571 = vld [vmem:[%s4562 + $0x40] sm:$0xff]
        %v4572 = vld [vmem:[%s4562 + $0x48] sm:$0xff]
        %v4573 = vld [vmem:[%s4562 + $0x50] sm:$0xff]
        %v4574 = vld [vmem:[%s4562 + $0x58] sm:$0xff]
        %v4575 = vld [vmem:[%s4562 + $0x60] sm:$0xff]
        %v4576 = vld [vmem:[%s4562 + $0x68] sm:$0xff]
        %v4577 = vld [vmem:[%s4562 + $0x70] sm:$0xff]
        %v4578 = vld [vmem:[%s4562 + $0x78] sm:$0xff]
        %v4579 = vld [vmem:[%s4562 + $0x80] sm:$0xff]
        %v4580 = vld [vmem:[%s4562 + $0x88] sm:$0xff]
        %v4581 = vld [vmem:[%s4562 + $0x90] sm:$0xff]
        %v4582 = vld [vmem:[%s4562 + $0x98] sm:$0xff]
        %v4583 = vld [vmem:[%s4562 + $0xa0] sm:$0xff]
        %v4584 = vld [vmem:[%s4562 + $0xa8] sm:$0xff]
        %v4585 = vld [vmem:[%s4562 + $0xb0] sm:$0xff]
        %v4586 = vld [vmem:[%s4562 + $0xb8] sm:$0xff]
        %v4587 = vld [vmem:[%s4562 + $0xc0] sm:$0xff]
        %v4588 = vld [vmem:[%s4562 + $0xc8] sm:$0xff]
        %v4589 = vld [vmem:[%s4562 + $0xd0] sm:$0xff]
        %v4590 = vld [vmem:[%s4562 + $0xd8] sm:$0xff]
        %v4591 = vld [vmem:[%s4562 + $0xe0] sm:$0xff]
        %v4592 = vld [vmem:[%s4562 + $0xe8] sm:$0xff]
        %v4593 = vld [vmem:[%s4562 + $0xf0] sm:$0xff]
        %v4594 = vld [vmem:[%s4562 + $0xf8] sm:$0xff]
        %v4595 = vld [vmem:[%s4562 + $0x100] sm:$0xff]
        %v4596 = vld [vmem:[%s4562 + $0x108] sm:$0xff]
        %v4597 = vld [vmem:[%s4562 + $0x110] sm:$0xff]
        %v4598 = vld [vmem:[%s4562 + $0x118] sm:$0xff]
        %v4599 = vld [vmem:[%s4562 + $0x120] sm:$0xff]
        %v4600 = vld [vmem:[%s4562 + $0x128] sm:$0xff]
        %v4601 = vld [vmem:[%s4562 + $0x130] sm:$0xff]
        %v4602 = vld [vmem:[%s4562 + $0x138] sm:$0xff]
        %v4603 = vld [vmem:[%s4562 + $0x140] sm:$0xff]
        %v4604 = vld [vmem:[%s4562 + $0x148] sm:$0xff]
        %v4605 = vld [vmem:[%s4562 + $0x150] sm:$0xff]
        %v4606 = vld [vmem:[%s4562 + $0x158] sm:$0xff]
        %v4607 = vld [vmem:[%s4562 + $0x160] sm:$0xff]
        %v4608 = vld [vmem:[%s4562 + $0x168] sm:$0xff]
        %v4609 = vld [vmem:[%s4562 + $0x170] sm:$0xff]
        %v4610 = vld [vmem:[%s4562 + $0x178] sm:$0xff]
        %v4611 = vld [vmem:[%s4562 + $0x180] sm:$0xff]
        %v4612 = vld [vmem:[%s4562 + $0x188] sm:$0xff]
        %v4613 = vld [vmem:[%s4562 + $0x190] sm:$0xff]
        %v4614 = vld [vmem:[%s4562 + $0x198] sm:$0xff]
        %v4615 = vld [vmem:[%s4562 + $0x1a0] sm:$0xff]
        %v4616 = vld [vmem:[%s4562 + $0x1a8] sm:$0xff]
        %v4617 = vld [vmem:[%s4562 + $0x1b0] sm:$0xff]
        %v4618 = vld [vmem:[%s4562 + $0x1b8] sm:$0xff]
        %v4675 = vunpack.c.l.b16 %v4563
        %v4676 = vunpack.c.h.b16 %v4563
        %v4677 = vunpack.c.l.b16 %v4564
        %v4678 = vunpack.c.h.b16 %v4564
        %v4679 = vunpack.c.l.b16 %v4565
        %v4680 = vunpack.c.h.b16 %v4565
        %v4681 = vunpack.c.l.b16 %v4566
        %v4682 = vunpack.c.h.b16 %v4566
        %v4683 = vunpack.c.l.b16 %v4567
        %v4684 = vunpack.c.h.b16 %v4567
        %v4685 = vunpack.c.l.b16 %v4568
        %v4686 = vunpack.c.h.b16 %v4568
        %v4687 = vunpack.c.l.b16 %v4569
        %v4688 = vunpack.c.h.b16 %v4569
        %v4689 = vunpack.c.l.b16 %v4570
        %v4690 = vunpack.c.h.b16 %v4570
        %v4691 = vunpack.c.l.b16 %v4571
        %v4692 = vunpack.c.h.b16 %v4571
        %v4693 = vunpack.c.l.b16 %v4572
        %v4694 = vunpack.c.h.b16 %v4572
        %v4695 = vunpack.c.l.b16 %v4573
        %v4696 = vunpack.c.h.b16 %v4573
        %v4697 = vunpack.c.l.b16 %v4574
        %v4698 = vunpack.c.h.b16 %v4574
        %v4699 = vunpack.c.l.b16 %v4575
        %v4700 = vunpack.c.h.b16 %v4575
        %v4701 = vunpack.c.l.b16 %v4576
        %v4702 = vunpack.c.h.b16 %v4576
        %v4703 = vunpack.c.l.b16 %v4577
        %v4704 = vunpack.c.h.b16 %v4577
        %v4705 = vunpack.c.l.b16 %v4578
        %v4706 = vunpack.c.h.b16 %v4578
        %v4707 = vunpack.c.l.b16 %v4579
        %v4708 = vunpack.c.h.b16 %v4579
        %v4709 = vunpack.c.l.b16 %v4580
        %v4710 = vunpack.c.h.b16 %v4580
        %v4711 = vunpack.c.l.b16 %v4581
        %v4712 = vunpack.c.h.b16 %v4581
        %v4713 = vunpack.c.l.b16 %v4582
        %v4714 = vunpack.c.h.b16 %v4582
        %v4715 = vunpack.c.l.b16 %v4583
        %v4716 = vunpack.c.h.b16 %v4583
        %v4717 = vunpack.c.l.b16 %v4584
        %v4718 = vunpack.c.h.b16 %v4584
        %v4719 = vunpack.c.l.b16 %v4585
        %v4720 = vunpack.c.h.b16 %v4585
        %v4721 = vunpack.c.l.b16 %v4586
        %v4722 = vunpack.c.h.b16 %v4586
        %v4723 = vunpack.c.l.b16 %v4587
        %v4724 = vunpack.c.h.b16 %v4587
        %v4725 = vunpack.c.l.b16 %v4588
        %v4726 = vunpack.c.h.b16 %v4588
        %v4727 = vunpack.c.l.b16 %v4589
        %v4728 = vunpack.c.h.b16 %v4589
        %v4729 = vunpack.c.l.b16 %v4590
        %v4730 = vunpack.c.h.b16 %v4590
        %v4731 = vunpack.c.l.b16 %v4591
        %v4732 = vunpack.c.h.b16 %v4591
        %v4733 = vunpack.c.l.b16 %v4592
        %v4734 = vunpack.c.h.b16 %v4592
        %v4735 = vunpack.c.l.b16 %v4593
        %v4736 = vunpack.c.h.b16 %v4593
        %v4737 = vunpack.c.l.b16 %v4594
        %v4738 = vunpack.c.h.b16 %v4594
        %v4739 = vunpack.c.l.b16 %v4595
        %v4740 = vunpack.c.h.b16 %v4595
        %v4741 = vunpack.c.l.b16 %v4596
        %v4742 = vunpack.c.h.b16 %v4596
        %v4743 = vunpack.c.l.b16 %v4597
        %v4744 = vunpack.c.h.b16 %v4597
        %v4745 = vunpack.c.l.b16 %v4598
        %v4746 = vunpack.c.h.b16 %v4598
        %v4747 = vunpack.c.l.b16 %v4599
        %v4748 = vunpack.c.h.b16 %v4599
        %v4749 = vunpack.c.l.b16 %v4600
        %v4750 = vunpack.c.h.b16 %v4600
        %v4751 = vunpack.c.l.b16 %v4601
        %v4752 = vunpack.c.h.b16 %v4601
        %v4753 = vunpack.c.l.b16 %v4602
        %v4754 = vunpack.c.h.b16 %v4602
        %v4755 = vunpack.c.l.b16 %v4603
        %v4756 = vunpack.c.h.b16 %v4603
        %v4757 = vunpack.c.l.b16 %v4604
        %v4758 = vunpack.c.h.b16 %v4604
        %v4759 = vunpack.c.l.b16 %v4605
        %v4760 = vunpack.c.h.b16 %v4605
        %v4761 = vunpack.c.l.b16 %v4606
        %v4762 = vunpack.c.h.b16 %v4606
        %v4763 = vunpack.c.l.b16 %v4607
        %v4764 = vunpack.c.h.b16 %v4607
        %v4765 = vunpack.c.l.b16 %v4608
        %v4766 = vunpack.c.h.b16 %v4608
        %v4767 = vunpack.c.l.b16 %v4609
        %v4768 = vunpack.c.h.b16 %v4609
        %v4769 = vunpack.c.l.b16 %v4610
        %v4770 = vunpack.c.h.b16 %v4610
        %v4771 = vunpack.c.l.b16 %v4611
        %v4772 = vunpack.c.h.b16 %v4611
        %v4773 = vunpack.c.l.b16 %v4612
        %v4774 = vunpack.c.h.b16 %v4612
        %v4775 = vunpack.c.l.b16 %v4613
        %v4776 = vunpack.c.h.b16 %v4613
        %v4777 = vunpack.c.l.b16 %v4614
        %v4778 = vunpack.c.h.b16 %v4614
        %v4779 = vunpack.c.l.b16 %v4615
        %v4780 = vunpack.c.h.b16 %v4615
        %v4781 = vunpack.c.l.b16 %v4616
        %v4782 = vunpack.c.h.b16 %v4616
        %v4783 = vunpack.c.l.b16 %v4617
        %v4784 = vunpack.c.h.b16 %v4617
        %v4785 = vunpack.c.l.b16 %v4618
        %v4786 = vunpack.c.h.b16 %v4618
        %v4787 = vpack.c.b16 %v4677, %v4675
        %v4788 = vpack.c.b16 %v4678, %v4676
        %v4789 = vpack.c.b16 %v4681, %v4679
        %v4790 = vpack.c.b16 %v4682, %v4680
        %v4791 = vpack.c.b16 %v4685, %v4683
        %v4792 = vpack.c.b16 %v4686, %v4684
        %v4793 = vpack.c.b16 %v4689, %v4687
        %v4794 = vpack.c.b16 %v4690, %v4688
        %v4795 = vpack.c.b16 %v4693, %v4691
        %v4796 = vpack.c.b16 %v4694, %v4692
        %v4797 = vpack.c.b16 %v4697, %v4695
        %v4798 = vpack.c.b16 %v4698, %v4696
        %v4799 = vpack.c.b16 %v4701, %v4699
        %v4800 = vpack.c.b16 %v4702, %v4700
        %v4801 = vpack.c.b16 %v4705, %v4703
        %v4802 = vpack.c.b16 %v4706, %v4704
        %v4803 = vpack.c.b16 %v4709, %v4707
        %v4804 = vpack.c.b16 %v4710, %v4708
        %v4805 = vpack.c.b16 %v4713, %v4711
        %v4806 = vpack.c.b16 %v4714, %v4712
        %v4807 = vpack.c.b16 %v4717, %v4715
        %v4808 = vpack.c.b16 %v4718, %v4716
        %v4809 = vpack.c.b16 %v4721, %v4719
        %v4810 = vpack.c.b16 %v4722, %v4720
        %v4811 = vpack.c.b16 %v4725, %v4723
        %v4812 = vpack.c.b16 %v4726, %v4724
        %v4813 = vpack.c.b16 %v4729, %v4727
        %v4814 = vpack.c.b16 %v4730, %v4728
        %v4815 = vpack.c.b16 %v4733, %v4731
        %v4816 = vpack.c.b16 %v4734, %v4732
        %v4817 = vpack.c.b16 %v4737, %v4735
        %v4818 = vpack.c.b16 %v4738, %v4736
        %v4819 = vpack.c.b16 %v4741, %v4739
        %v4820 = vpack.c.b16 %v4742, %v4740
        %v4821 = vpack.c.b16 %v4745, %v4743
        %v4822 = vpack.c.b16 %v4746, %v4744
        %v4823 = vpack.c.b16 %v4749, %v4747
        %v4824 = vpack.c.b16 %v4750, %v4748
        %v4825 = vpack.c.b16 %v4753, %v4751
        %v4826 = vpack.c.b16 %v4754, %v4752
        %v4827 = vpack.c.b16 %v4757, %v4755
        %v4828 = vpack.c.b16 %v4758, %v4756
        %v4829 = vpack.c.b16 %v4761, %v4759
        %v4830 = vpack.c.b16 %v4762, %v4760
        %v4831 = vpack.c.b16 %v4765, %v4763
        %v4832 = vpack.c.b16 %v4766, %v4764
        %v4833 = vpack.c.b16 %v4769, %v4767
        %v4834 = vpack.c.b16 %v4770, %v4768
        %v4835 = vpack.c.b16 %v4773, %v4771
        %v4836 = vpack.c.b16 %v4774, %v4772
        %v4837 = vpack.c.b16 %v4777, %v4775
        %v4838 = vpack.c.b16 %v4778, %v4776
        %v4839 = vpack.c.b16 %v4781, %v4779
        %v4840 = vpack.c.b16 %v4782, %v4780
        %v4841 = vpack.c.b16 %v4785, %v4783
        %v4842 = vpack.c.b16 %v4786, %v4784
        %4899 = vmatprep.subr.bf16.mxu0 %v4788
        %4900 = vmatpush1.bf16.msra.mxu0 %v4787
        %4901 = vmatprep.subr.bf16.mxu0 %v4790
        %4902 = vmatpush1.bf16.msra.mxu0 %v4789
        %4903 = vmatprep.subr.bf16.mxu0 %v4792
        %4904 = vmatpush1.bf16.msra.mxu0 %v4791
        %4905 = vmatprep.subr.bf16.mxu0 %v4794
        %4906 = vmatpush1.bf16.msra.mxu0 %v4793
        %4907 = vmatprep.subr.bf16.mxu0 %v4796
        %4908 = vmatpush1.bf16.msra.mxu0 %v4795
        %4909 = vmatprep.subr.bf16.mxu0 %v4798
        %4910 = vmatpush1.bf16.msra.mxu0 %v4797
        %4911 = vmatprep.subr.bf16.mxu0 %v4800
        %4912 = vmatpush1.bf16.msra.mxu0 %v4799
        %4913 = vmatprep.subr.bf16.mxu0 %v4802
        %4914 = vmatpush1.bf16.msra.mxu0 %v4801
        %4915 = vmatprep.subr.bf16.mxu0 %v4804
        %4916 = vmatpush1.bf16.msra.mxu0 %v4803
        %4917 = vmatprep.subr.bf16.mxu0 %v4806
        %4918 = vmatpush1.bf16.msra.mxu0 %v4805
        %4919 = vmatprep.subr.bf16.mxu0 %v4808
        %4920 = vmatpush1.bf16.msra.mxu0 %v4807
        %4921 = vmatprep.subr.bf16.mxu0 %v4810
        %4922 = vmatpush1.bf16.msra.mxu0 %v4809
        %4923 = vmatprep.subr.bf16.mxu0 %v4812
        %4924 = vmatpush1.bf16.msra.mxu0 %v4811
        %4925 = vmatprep.subr.bf16.mxu0 %v4814
        %4926 = vmatpush1.bf16.msra.mxu0 %v4813
        %4927 = vmatprep.subr.bf16.mxu0 %v4816
        %4928 = vmatpush1.bf16.msra.mxu0 %v4815
        %4929 = vmatprep.subr.bf16.mxu0 %v4818
        %4930 = vmatpush1.bf16.msra.mxu0 %v4817
        %4931 = vmatprep.mubr.bf16.mxu0 %v4174
        %4932 = vmatmul.mubr.bf16.gmra.mrb[0].mxu0 %v4167
        %v4933 = vpop.f32.mrb[0].mxu0
        %v4934 = vadd.f32 0.0, %v4933
        %v4935 = vpop.f32.mrb[0].mxu0
        %v4936 = vadd.f32 0.0, %v4935
        %v4937 = vpop.f32.mrb[0].mxu0
        %v4938 = vadd.f32 0.0, %v4937
        %v4939 = vpop.f32.mrb[0].mxu0
        %v4940 = vadd.f32 0.0, %v4939
        %4941 = vdwg.mxu0
        %4942 = vmatprep.subr.bf16.mxu0 %v4820
        %4943 = vmatpush1.bf16.msra.mxu0 %v4819
        %4944 = vmatprep.subr.bf16.mxu0 %v4822
        %4945 = vmatpush1.bf16.msra.mxu0 %v4821
        %4946 = vmatprep.subr.bf16.mxu0 %v4824
        %4947 = vmatpush1.bf16.msra.mxu0 %v4823
        %4948 = vmatprep.subr.bf16.mxu0 %v4826
        %4949 = vmatpush1.bf16.msra.mxu0 %v4825
        %4950 = vmatprep.subr.bf16.mxu0 %v4828
        %4951 = vmatpush1.bf16.msra.mxu0 %v4827
        %4952 = vmatprep.subr.bf16.mxu0 %v4830
        %4953 = vmatpush1.bf16.msra.mxu0 %v4829
        %4954 = vmatprep.subr.bf16.mxu0 %v4832
        %4955 = vmatpush1.bf16.msra.mxu0 %v4831
        %4956 = vmatprep.subr.bf16.mxu0 %v4834
        %4957 = vmatpush1.bf16.msra.mxu0 %v4833
        %4958 = vmatprep.subr.bf16.mxu0 %v4836
        %4959 = vmatpush1.bf16.msra.mxu0 %v4835
        %4960 = vmatprep.subr.bf16.mxu0 %v4838
        %4961 = vmatpush1.bf16.msra.mxu0 %v4837
        %4962 = vmatprep.subr.bf16.mxu0 %v4840
        %4963 = vmatpush1.bf16.msra.mxu0 %v4839
        %4964 = vmatprep.subr.bf16.mxu0 %v4842
        %4965 = vmatpush1.bf16.msra.mxu0 %v4841
        %4966 = vmatprep.subr.bf16.mxu0 0
        %4967 = vmatpush1.bf16.msra.mxu0 0
        %4968 = vmatprep.subr.bf16.mxu0 0
        %4969 = vmatpush1.bf16.msra.mxu0 0
        %4970 = vmatprep.subr.bf16.mxu0 0
        %4971 = vmatpush1.bf16.msra.mxu0 0
        %4972 = vmatprep.subr.bf16.mxu0 0
        %4973 = vmatpush1.bf16.msra.mxu0 0
        %4974 = vmatprep.mubr.bf16.mxu0 %v4474
        %4975 = vmatmul.mubr.bf16.gmra.mrb[0].mxu0 %v4181
        %v4976 = vpop.f32.mrb[0].mxu0
        %v4977 = vadd.f32 %v4934, %v4976
        %v4978 = vpop.f32.mrb[0].mxu0
        %v4979 = vadd.f32 %v4936, %v4978
        %v4980 = vpop.f32.mrb[0].mxu0
        %v4981 = vadd.f32 %v4938, %v4980
        %v4982 = vpop.f32.mrb[0].mxu0
        %v4983 = vadd.f32 %v4940, %v4982
        %4984 = vdwg.mxu0
        %v5041 = vunpack.c.l.b16 %v3992
        %v5042 = vunpack.c.h.b16 %v3992
        %v5043 = vunpack.c.l.b16 %v3993
        %v5044 = vunpack.c.h.b16 %v3993
        %v5045 = vunpack.c.l.b16 %v3994
        %v5046 = vunpack.c.h.b16 %v3994
        %v5047 = vunpack.c.l.b16 %v3995
        %v5048 = vunpack.c.h.b16 %v3995
        %v5049 = vunpack.c.l.b16 %v3996
        %v5050 = vunpack.c.h.b16 %v3996
        %v5051 = vunpack.c.l.b16 %v3997
        %v5052 = vunpack.c.h.b16 %v3997
        %v5053 = vunpack.c.l.b16 %v3998
        %v5054 = vunpack.c.h.b16 %v3998
        %v5055 = vunpack.c.l.b16 %v3999
        %v5056 = vunpack.c.h.b16 %v3999
        %v5057 = vunpack.c.l.b16 %v4000
        %v5058 = vunpack.c.h.b16 %v4000
        %v5059 = vunpack.c.l.b16 %v4001
        %v5060 = vunpack.c.h.b16 %v4001
        %v5061 = vunpack.c.l.b16 %v4002
        %v5062 = vunpack.c.h.b16 %v4002
        %v5063 = vunpack.c.l.b16 %v4003
        %v5064 = vunpack.c.h.b16 %v4003
        %v5065 = vunpack.c.l.b16 %v4004
        %v5066 = vunpack.c.h.b16 %v4004
        %v5067 = vunpack.c.l.b16 %v4005
        %v5068 = vunpack.c.h.b16 %v4005
        %v5069 = vunpack.c.l.b16 %v4006
        %v5070 = vunpack.c.h.b16 %v4006
        %v5071 = vunpack.c.l.b16 %v4007
        %v5072 = vunpack.c.h.b16 %v4007
        %v5073 = vunpack.c.l.b16 %v4008
        %v5074 = vunpack.c.h.b16 %v4008
        %v5075 = vunpack.c.l.b16 %v4009
        %v5076 = vunpack.c.h.b16 %v4009
        %v5077 = vunpack.c.l.b16 %v4010
        %v5078 = vunpack.c.h.b16 %v4010
        %v5079 = vunpack.c.l.b16 %v4011
        %v5080 = vunpack.c.h.b16 %v4011
        %v5081 = vunpack.c.l.b16 %v4012
        %v5082 = vunpack.c.h.b16 %v4012
        %v5083 = vunpack.c.l.b16 %v4013
        %v5084 = vunpack.c.h.b16 %v4013
        %v5085 = vunpack.c.l.b16 %v4014
        %v5086 = vunpack.c.h.b16 %v4014
        %v5087 = vunpack.c.l.b16 %v4015
        %v5088 = vunpack.c.h.b16 %v4015
        %v5089 = vunpack.c.l.b16 %v4016
        %v5090 = vunpack.c.h.b16 %v4016
        %v5091 = vunpack.c.l.b16 %v4017
        %v5092 = vunpack.c.h.b16 %v4017
        %v5093 = vunpack.c.l.b16 %v4018
        %v5094 = vunpack.c.h.b16 %v4018
        %v5095 = vunpack.c.l.b16 %v4019
        %v5096 = vunpack.c.h.b16 %v4019
        %v5097 = vunpack.c.l.b16 %v4020
        %v5098 = vunpack.c.h.b16 %v4020
        %v5099 = vunpack.c.l.b16 %v4021
        %v5100 = vunpack.c.h.b16 %v4021
        %v5101 = vunpack.c.l.b16 %v4022
        %v5102 = vunpack.c.h.b16 %v4022
        %v5103 = vunpack.c.l.b16 %v4023
        %v5104 = vunpack.c.h.b16 %v4023
        %v5105 = vunpack.c.l.b16 %v4024
        %v5106 = vunpack.c.h.b16 %v4024
        %v5107 = vunpack.c.l.b16 %v4025
        %v5108 = vunpack.c.h.b16 %v4025
        %v5109 = vunpack.c.l.b16 %v4026
        %v5110 = vunpack.c.h.b16 %v4026
        %v5111 = vunpack.c.l.b16 %v4027
        %v5112 = vunpack.c.h.b16 %v4027
        %v5113 = vunpack.c.l.b16 %v4028
        %v5114 = vunpack.c.h.b16 %v4028
        %v5115 = vunpack.c.l.b16 %v4029
        %v5116 = vunpack.c.h.b16 %v4029
        %v5117 = vunpack.c.l.b16 %v4030
        %v5118 = vunpack.c.h.b16 %v4030
        %v5119 = vunpack.c.l.b16 %v4031
        %v5120 = vunpack.c.h.b16 %v4031
        %v5121 = vunpack.c.l.b16 %v4032
        %v5122 = vunpack.c.h.b16 %v4032
        %v5123 = vunpack.c.l.b16 %v4033
        %v5124 = vunpack.c.h.b16 %v4033
        %v5125 = vunpack.c.l.b16 %v4034
        %v5126 = vunpack.c.h.b16 %v4034
        %v5127 = vunpack.c.l.b16 %v4035
        %v5128 = vunpack.c.h.b16 %v4035
        %v5129 = vunpack.c.l.b16 %v4036
        %v5130 = vunpack.c.h.b16 %v4036
        %v5131 = vunpack.c.l.b16 %v4037
        %v5132 = vunpack.c.h.b16 %v4037
        %v5133 = vunpack.c.l.b16 %v4038
        %v5134 = vunpack.c.h.b16 %v4038
        %v5135 = vunpack.c.l.b16 %v4039
        %v5136 = vunpack.c.h.b16 %v4039
        %v5137 = vunpack.c.l.b16 %v4040
        %v5138 = vunpack.c.h.b16 %v4040
        %v5139 = vunpack.c.l.b16 %v4041
        %v5140 = vunpack.c.h.b16 %v4041
        %v5141 = vunpack.c.l.b16 %v4042
        %v5142 = vunpack.c.h.b16 %v4042
        %v5143 = vunpack.c.l.b16 %v4043
        %v5144 = vunpack.c.h.b16 %v4043
        %v5145 = vunpack.c.l.b16 %v4044
        %v5146 = vunpack.c.h.b16 %v4044
        %v5147 = vunpack.c.l.b16 %v4045
        %v5148 = vunpack.c.h.b16 %v4045
        %v5149 = vunpack.c.l.b16 %v4046
        %v5150 = vunpack.c.h.b16 %v4046
        %v5151 = vunpack.c.l.b16 %v4047
        %v5152 = vunpack.c.h.b16 %v4047
        %v5153 = vpack.c.b16 %v5043, %v5041
        %v5154 = vpack.c.b16 %v5044, %v5042
        %v5155 = vpack.c.b16 %v5047, %v5045
        %v5156 = vpack.c.b16 %v5048, %v5046
        %v5157 = vpack.c.b16 %v5051, %v5049
        %v5158 = vpack.c.b16 %v5052, %v5050
        %v5159 = vpack.c.b16 %v5055, %v5053
        %v5160 = vpack.c.b16 %v5056, %v5054
        %v5161 = vpack.c.b16 %v5059, %v5057
        %v5162 = vpack.c.b16 %v5060, %v5058
        %v5163 = vpack.c.b16 %v5063, %v5061
        %v5164 = vpack.c.b16 %v5064, %v5062
        %v5165 = vpack.c.b16 %v5067, %v5065
        %v5166 = vpack.c.b16 %v5068, %v5066
        %v5167 = vpack.c.b16 %v5071, %v5069
        %v5168 = vpack.c.b16 %v5072, %v5070
        %v5169 = vpack.c.b16 %v5075, %v5073
        %v5170 = vpack.c.b16 %v5076, %v5074
        %v5171 = vpack.c.b16 %v5079, %v5077
        %v5172 = vpack.c.b16 %v5080, %v5078
        %v5173 = vpack.c.b16 %v5083, %v5081
        %v5174 = vpack.c.b16 %v5084, %v5082
        %v5175 = vpack.c.b16 %v5087, %v5085
        %v5176 = vpack.c.b16 %v5088, %v5086
        %v5177 = vpack.c.b16 %v5091, %v5089
        %v5178 = vpack.c.b16 %v5092, %v5090
        %v5179 = vpack.c.b16 %v5095, %v5093
        %v5180 = vpack.c.b16 %v5096, %v5094
        %v5181 = vpack.c.b16 %v5099, %v5097
        %v5182 = vpack.c.b16 %v5100, %v5098
        %v5183 = vpack.c.b16 %v5103, %v5101
        %v5184 = vpack.c.b16 %v5104, %v5102
        %v5185 = vpack.c.b16 %v5107, %v5105
        %v5186 = vpack.c.b16 %v5108, %v5106
        %v5187 = vpack.c.b16 %v5111, %v5109
        %v5188 = vpack.c.b16 %v5112, %v5110
        %v5189 = vpack.c.b16 %v5115, %v5113
        %v5190 = vpack.c.b16 %v5116, %v5114
        %v5191 = vpack.c.b16 %v5119, %v5117
        %v5192 = vpack.c.b16 %v5120, %v5118
        %v5193 = vpack.c.b16 %v5123, %v5121
        %v5194 = vpack.c.b16 %v5124, %v5122
        %v5195 = vpack.c.b16 %v5127, %v5125
        %v5196 = vpack.c.b16 %v5128, %v5126
        %v5197 = vpack.c.b16 %v5131, %v5129
        %v5198 = vpack.c.b16 %v5132, %v5130
        %v5199 = vpack.c.b16 %v5135, %v5133
        %v5200 = vpack.c.b16 %v5136, %v5134
        %v5201 = vpack.c.b16 %v5139, %v5137
        %v5202 = vpack.c.b16 %v5140, %v5138
        %v5203 = vpack.c.b16 %v5143, %v5141
        %v5204 = vpack.c.b16 %v5144, %v5142
        %v5205 = vpack.c.b16 %v5147, %v5145
        %v5206 = vpack.c.b16 %v5148, %v5146
        %v5207 = vpack.c.b16 %v5151, %v5149
        %v5208 = vpack.c.b16 %v5152, %v5150
        %v5265 = vsel %vm4472, %v3991, 0
        %5267 = vmatprep.subr.bf16.mxu0 %v5154
        %5268 = vmatpush1.bf16.msra.mxu0 %v5153
        %5269 = vmatprep.subr.bf16.mxu0 %v5156
        %5270 = vmatpush1.bf16.msra.mxu0 %v5155
        %5271 = vmatprep.subr.bf16.mxu0 %v5158
        %5272 = vmatpush1.bf16.msra.mxu0 %v5157
        %5273 = vmatprep.subr.bf16.mxu0 %v5160
        %5274 = vmatpush1.bf16.msra.mxu0 %v5159
        %5275 = vmatprep.subr.bf16.mxu0 %v5162
        %5276 = vmatpush1.bf16.msra.mxu0 %v5161
        %5277 = vmatprep.subr.bf16.mxu0 %v5164
        %5278 = vmatpush1.bf16.msra.mxu0 %v5163
        %5279 = vmatprep.subr.bf16.mxu0 %v5166
        %5280 = vmatpush1.bf16.msra.mxu0 %v5165
        %5281 = vmatprep.subr.bf16.mxu0 %v5168
        %5282 = vmatpush1.bf16.msra.mxu0 %v5167
        %5283 = vmatprep.subr.bf16.mxu0 %v5170
        %5284 = vmatpush1.bf16.msra.mxu0 %v5169
        %5285 = vmatprep.subr.bf16.mxu0 %v5172
        %5286 = vmatpush1.bf16.msra.mxu0 %v5171
        %5287 = vmatprep.subr.bf16.mxu0 %v5174
        %5288 = vmatpush1.bf16.msra.mxu0 %v5173
        %5289 = vmatprep.subr.bf16.mxu0 %v5176
        %5290 = vmatpush1.bf16.msra.mxu0 %v5175
        %5291 = vmatprep.subr.bf16.mxu0 %v5178
        %5292 = vmatpush1.bf16.msra.mxu0 %v5177
        %5293 = vmatprep.subr.bf16.mxu0 %v5180
        %5294 = vmatpush1.bf16.msra.mxu0 %v5179
        %5295 = vmatprep.subr.bf16.mxu0 %v5182
        %5296 = vmatpush1.bf16.msra.mxu0 %v5181
        %5297 = vmatprep.subr.bf16.mxu0 %v5184
        %5298 = vmatpush1.bf16.msra.mxu0 %v5183
        %5299 = vmatprep.mubr.bf16.mxu0 %v3989
        %5300 = vmatmul.mubr.bf16.gmra.mrb[0].mxu0 %v3988
        %v5301 = vpop.f32.mrb[0].mxu0
        %v5302 = vadd.f32 %v4554, %v5301
        %v5303 = vpop.f32.mrb[0].mxu0
        %v5304 = vadd.f32 %v4556, %v5303
        %v5305 = vpop.f32.mrb[0].mxu0
        %v5306 = vadd.f32 %v4558, %v5305
        %v5307 = vpop.f32.mrb[0].mxu0
        %v5308 = vadd.f32 %v4560, %v5307
        %5309 = vdwg.mxu0
        %5310 = vmatprep.subr.bf16.mxu0 %v5186
        %5311 = vmatpush1.bf16.msra.mxu0 %v5185
        %5312 = vmatprep.subr.bf16.mxu0 %v5188
        %5313 = vmatpush1.bf16.msra.mxu0 %v5187
        %5314 = vmatprep.subr.bf16.mxu0 %v5190
        %5315 = vmatpush1.bf16.msra.mxu0 %v5189
        %5316 = vmatprep.subr.bf16.mxu0 %v5192
        %5317 = vmatpush1.bf16.msra.mxu0 %v5191
        %5318 = vmatprep.subr.bf16.mxu0 %v5194
        %5319 = vmatpush1.bf16.msra.mxu0 %v5193
        %5320 = vmatprep.subr.bf16.mxu0 %v5196
        %5321 = vmatpush1.bf16.msra.mxu0 %v5195
        %5322 = vmatprep.subr.bf16.mxu0 %v5198
        %5323 = vmatpush1.bf16.msra.mxu0 %v5197
        %5324 = vmatprep.subr.bf16.mxu0 %v5200
        %5325 = vmatpush1.bf16.msra.mxu0 %v5199
        %5326 = vmatprep.subr.bf16.mxu0 %v5202
        %5327 = vmatpush1.bf16.msra.mxu0 %v5201
        %5328 = vmatprep.subr.bf16.mxu0 %v5204
        %5329 = vmatpush1.bf16.msra.mxu0 %v5203
        %5330 = vmatprep.subr.bf16.mxu0 %v5206
        %5331 = vmatpush1.bf16.msra.mxu0 %v5205
        %5332 = vmatprep.subr.bf16.mxu0 %v5208
        %5333 = vmatpush1.bf16.msra.mxu0 %v5207
        %5334 = vmatprep.subr.bf16.mxu0 0
        %5335 = vmatpush1.bf16.msra.mxu0 0
        %5336 = vmatprep.subr.bf16.mxu0 0
        %5337 = vmatpush1.bf16.msra.mxu0 0
        %5338 = vmatprep.subr.bf16.mxu0 0
        %5339 = vmatpush1.bf16.msra.mxu0 0
        %5340 = vmatprep.subr.bf16.mxu0 0
        %5341 = vmatpush1.bf16.msra.mxu0 0
        %5342 = vmatprep.mubr.bf16.mxu0 %v5265
        %5343 = vmatmul.mubr.bf16.gmra.mrb[0].mxu0 %v3990
        %v5344 = vpop.f32.mrb[0].mxu0
        %v5345 = vadd.f32 %v5302, %v5344
        %v5346 = vpop.f32.mrb[0].mxu0
        %v5347 = vadd.f32 %v5304, %v5346
        %v5348 = vpop.f32.mrb[0].mxu0
        %v5349 = vadd.f32 %v5306, %v5348
        %v5350 = vpop.f32.mrb[0].mxu0
        %v5351 = vadd.f32 %v5308, %v5350
        %5352 = vdwg.mxu0
        %v5409 = vunpack.c.l.b16 %v4048
        %v5410 = vunpack.c.h.b16 %v4048
        %v5411 = vunpack.c.l.b16 %v4049
        %v5412 = vunpack.c.h.b16 %v4049
        %v5413 = vunpack.c.l.b16 %v4050
        %v5414 = vunpack.c.h.b16 %v4050
        %v5415 = vunpack.c.l.b16 %v4051
        %v5416 = vunpack.c.h.b16 %v4051
        %v5417 = vunpack.c.l.b16 %v4052
        %v5418 = vunpack.c.h.b16 %v4052
        %v5419 = vunpack.c.l.b16 %v4053
        %v5420 = vunpack.c.h.b16 %v4053
        %v5421 = vunpack.c.l.b16 %v4054
        %v5422 = vunpack.c.h.b16 %v4054
        %v5423 = vunpack.c.l.b16 %v4055
        %v5424 = vunpack.c.h.b16 %v4055
        %v5425 = vunpack.c.l.b16 %v4056
        %v5426 = vunpack.c.h.b16 %v4056
        %v5427 = vunpack.c.l.b16 %v4057
        %v5428 = vunpack.c.h.b16 %v4057
        %v5429 = vunpack.c.l.b16 %v4058
        %v5430 = vunpack.c.h.b16 %v4058
        %v5431 = vunpack.c.l.b16 %v4059
        %v5432 = vunpack.c.h.b16 %v4059
        %v5433 = vunpack.c.l.b16 %v4060
        %v5434 = vunpack.c.h.b16 %v4060
        %v5435 = vunpack.c.l.b16 %v4061
        %v5436 = vunpack.c.h.b16 %v4061
        %v5437 = vunpack.c.l.b16 %v4062
        %v5438 = vunpack.c.h.b16 %v4062
        %v5439 = vunpack.c.l.b16 %v4063
        %v5440 = vunpack.c.h.b16 %v4063
        %v5441 = vunpack.c.l.b16 %v4064
        %v5442 = vunpack.c.h.b16 %v4064
        %v5443 = vunpack.c.l.b16 %v4065
        %v5444 = vunpack.c.h.b16 %v4065
        %v5445 = vunpack.c.l.b16 %v4066
        %v5446 = vunpack.c.h.b16 %v4066
        %v5447 = vunpack.c.l.b16 %v4067
        %v5448 = vunpack.c.h.b16 %v4067
        %v5449 = vunpack.c.l.b16 %v4068
        %v5450 = vunpack.c.h.b16 %v4068
        %v5451 = vunpack.c.l.b16 %v4069
        %v5452 = vunpack.c.h.b16 %v4069
        %v5453 = vunpack.c.l.b16 %v4070
        %v5454 = vunpack.c.h.b16 %v4070
        %v5455 = vunpack.c.l.b16 %v4071
        %v5456 = vunpack.c.h.b16 %v4071
        %v5457 = vunpack.c.l.b16 %v4072
        %v5458 = vunpack.c.h.b16 %v4072
        %v5459 = vunpack.c.l.b16 %v4073
        %v5460 = vunpack.c.h.b16 %v4073
        %v5461 = vunpack.c.l.b16 %v4074
        %v5462 = vunpack.c.h.b16 %v4074
        %v5463 = vunpack.c.l.b16 %v4075
        %v5464 = vunpack.c.h.b16 %v4075
        %v5465 = vunpack.c.l.b16 %v4076
        %v5466 = vunpack.c.h.b16 %v4076
        %v5467 = vunpack.c.l.b16 %v4077
        %v5468 = vunpack.c.h.b16 %v4077
        %v5469 = vunpack.c.l.b16 %v4078
        %v5470 = vunpack.c.h.b16 %v4078
        %v5471 = vunpack.c.l.b16 %v4079
        %v5472 = vunpack.c.h.b16 %v4079
        %v5473 = vunpack.c.l.b16 %v4080
        %v5474 = vunpack.c.h.b16 %v4080
        %v5475 = vunpack.c.l.b16 %v4081
        %v5476 = vunpack.c.h.b16 %v4081
        %v5477 = vunpack.c.l.b16 %v4082
        %v5478 = vunpack.c.h.b16 %v4082
        %v5479 = vunpack.c.l.b16 %v4083
        %v5480 = vunpack.c.h.b16 %v4083
        %v5481 = vunpack.c.l.b16 %v4084
        %v5482 = vunpack.c.h.b16 %v4084
        %v5483 = vunpack.c.l.b16 %v4085
        %v5484 = vunpack.c.h.b16 %v4085
        %v5485 = vunpack.c.l.b16 %v4086
        %v5486 = vunpack.c.h.b16 %v4086
        %v5487 = vunpack.c.l.b16 %v4087
        %v5488 = vunpack.c.h.b16 %v4087
        %v5489 = vunpack.c.l.b16 %v4088
        %v5490 = vunpack.c.h.b16 %v4088
        %v5491 = vunpack.c.l.b16 %v4089
        %v5492 = vunpack.c.h.b16 %v4089
        %v5493 = vunpack.c.l.b16 %v4090
        %v5494 = vunpack.c.h.b16 %v4090
        %v5495 = vunpack.c.l.b16 %v4091
        %v5496 = vunpack.c.h.b16 %v4091
        %v5497 = vunpack.c.l.b16 %v4092
        %v5498 = vunpack.c.h.b16 %v4092
        %v5499 = vunpack.c.l.b16 %v4093
        %v5500 = vunpack.c.h.b16 %v4093
        %v5501 = vunpack.c.l.b16 %v4094
        %v5502 = vunpack.c.h.b16 %v4094
        %v5503 = vunpack.c.l.b16 %v4095
        %v5504 = vunpack.c.h.b16 %v4095
        %v5505 = vunpack.c.l.b16 %v4096
        %v5506 = vunpack.c.h.b16 %v4096
        %v5507 = vunpack.c.l.b16 %v4097
        %v5508 = vunpack.c.h.b16 %v4097
        %v5509 = vunpack.c.l.b16 %v4098
        %v5510 = vunpack.c.h.b16 %v4098
        %v5511 = vunpack.c.l.b16 %v4099
        %v5512 = vunpack.c.h.b16 %v4099
        %v5513 = vunpack.c.l.b16 %v4100
        %v5514 = vunpack.c.h.b16 %v4100
        %v5515 = vunpack.c.l.b16 %v4101
        %v5516 = vunpack.c.h.b16 %v4101
        %v5517 = vunpack.c.l.b16 %v4102
        %v5518 = vunpack.c.h.b16 %v4102
        %v5519 = vunpack.c.l.b16 %v4103
        %v5520 = vunpack.c.h.b16 %v4103
        %v5521 = vpack.c.b16 %v5411, %v5409
        %v5522 = vpack.c.b16 %v5412, %v5410
        %v5523 = vpack.c.b16 %v5415, %v5413
        %v5524 = vpack.c.b16 %v5416, %v5414
        %v5525 = vpack.c.b16 %v5419, %v5417
        %v5526 = vpack.c.b16 %v5420, %v5418
        %v5527 = vpack.c.b16 %v5423, %v5421
        %v5528 = vpack.c.b16 %v5424, %v5422
        %v5529 = vpack.c.b16 %v5427, %v5425
        %v5530 = vpack.c.b16 %v5428, %v5426
        %v5531 = vpack.c.b16 %v5431, %v5429
        %v5532 = vpack.c.b16 %v5432, %v5430
        %v5533 = vpack.c.b16 %v5435, %v5433
        %v5534 = vpack.c.b16 %v5436, %v5434
        %v5535 = vpack.c.b16 %v5439, %v5437
        %v5536 = vpack.c.b16 %v5440, %v5438
        %v5537 = vpack.c.b16 %v5443, %v5441
        %v5538 = vpack.c.b16 %v5444, %v5442
        %v5539 = vpack.c.b16 %v5447, %v5445
        %v5540 = vpack.c.b16 %v5448, %v5446
        %v5541 = vpack.c.b16 %v5451, %v5449
        %v5542 = vpack.c.b16 %v5452, %v5450
        %v5543 = vpack.c.b16 %v5455, %v5453
        %v5544 = vpack.c.b16 %v5456, %v5454
        %v5545 = vpack.c.b16 %v5459, %v5457
        %v5546 = vpack.c.b16 %v5460, %v5458
        %v5547 = vpack.c.b16 %v5463, %v5461
        %v5548 = vpack.c.b16 %v5464, %v5462
        %v5549 = vpack.c.b16 %v5467, %v5465
        %v5550 = vpack.c.b16 %v5468, %v5466
        %v5551 = vpack.c.b16 %v5471, %v5469
        %v5552 = vpack.c.b16 %v5472, %v5470
        %v5553 = vpack.c.b16 %v5475, %v5473
        %v5554 = vpack.c.b16 %v5476, %v5474
        %v5555 = vpack.c.b16 %v5479, %v5477
        %v5556 = vpack.c.b16 %v5480, %v5478
        %v5557 = vpack.c.b16 %v5483, %v5481
        %v5558 = vpack.c.b16 %v5484, %v5482
        %v5559 = vpack.c.b16 %v5487, %v5485
        %v5560 = vpack.c.b16 %v5488, %v5486
        %v5561 = vpack.c.b16 %v5491, %v5489
        %v5562 = vpack.c.b16 %v5492, %v5490
        %v5563 = vpack.c.b16 %v5495, %v5493
        %v5564 = vpack.c.b16 %v5496, %v5494
        %v5565 = vpack.c.b16 %v5499, %v5497
        %v5566 = vpack.c.b16 %v5500, %v5498
        %v5567 = vpack.c.b16 %v5503, %v5501
        %v5568 = vpack.c.b16 %v5504, %v5502
        %v5569 = vpack.c.b16 %v5507, %v5505
        %v5570 = vpack.c.b16 %v5508, %v5506
        %v5571 = vpack.c.b16 %v5511, %v5509
        %v5572 = vpack.c.b16 %v5512, %v5510
        %v5573 = vpack.c.b16 %v5515, %v5513
        %v5574 = vpack.c.b16 %v5516, %v5514
        %v5575 = vpack.c.b16 %v5519, %v5517
        %v5576 = vpack.c.b16 %v5520, %v5518
        %5633 = vmatprep.subr.bf16.mxu0 %v5522
        %5634 = vmatpush1.bf16.msra.mxu0 %v5521
        %5635 = vmatprep.subr.bf16.mxu0 %v5524
        %5636 = vmatpush1.bf16.msra.mxu0 %v5523
        %5637 = vmatprep.subr.bf16.mxu0 %v5526
        %5638 = vmatpush1.bf16.msra.mxu0 %v5525
        %5639 = vmatprep.subr.bf16.mxu0 %v5528
        %5640 = vmatpush1.bf16.msra.mxu0 %v5527
        %5641 = vmatprep.subr.bf16.mxu0 %v5530
        %5642 = vmatpush1.bf16.msra.mxu0 %v5529
        %5643 = vmatprep.subr.bf16.mxu0 %v5532
        %5644 = vmatpush1.bf16.msra.mxu0 %v5531
        %5645 = vmatprep.subr.bf16.mxu0 %v5534
        %5646 = vmatpush1.bf16.msra.mxu0 %v5533
        %5647 = vmatprep.subr.bf16.mxu0 %v5536
        %5648 = vmatpush1.bf16.msra.mxu0 %v5535
        %5649 = vmatprep.subr.bf16.mxu0 %v5538
        %5650 = vmatpush1.bf16.msra.mxu0 %v5537
        %5651 = vmatprep.subr.bf16.mxu0 %v5540
        %5652 = vmatpush1.bf16.msra.mxu0 %v5539
        %5653 = vmatprep.subr.bf16.mxu0 %v5542
        %5654 = vmatpush1.bf16.msra.mxu0 %v5541
        %5655 = vmatprep.subr.bf16.mxu0 %v5544
        %5656 = vmatpush1.bf16.msra.mxu0 %v5543
        %5657 = vmatprep.subr.bf16.mxu0 %v5546
        %5658 = vmatpush1.bf16.msra.mxu0 %v5545
        %5659 = vmatprep.subr.bf16.mxu0 %v5548
        %5660 = vmatpush1.bf16.msra.mxu0 %v5547
        %5661 = vmatprep.subr.bf16.mxu0 %v5550
        %5662 = vmatpush1.bf16.msra.mxu0 %v5549
        %5663 = vmatprep.subr.bf16.mxu0 %v5552
        %5664 = vmatpush1.bf16.msra.mxu0 %v5551
        %5665 = vmatprep.mubr.bf16.mxu0 %v3989
        %5666 = vmatmul.mubr.bf16.gmra.mrb[0].mxu0 %v3988
        %v5667 = vpop.f32.mrb[0].mxu0
        %v5668 = vadd.f32 %v4977, %v5667
        %v5669 = vpop.f32.mrb[0].mxu0
        %v5670 = vadd.f32 %v4979, %v5669
        %v5671 = vpop.f32.mrb[0].mxu0
        %v5672 = vadd.f32 %v4981, %v5671
        %v5673 = vpop.f32.mrb[0].mxu0
        %v5674 = vadd.f32 %v4983, %v5673
        %5675 = vdwg.mxu0
        %5676 = vmatprep.subr.bf16.mxu0 %v5554
        %5677 = vmatpush1.bf16.msra.mxu0 %v5553
        %5678 = vmatprep.subr.bf16.mxu0 %v5556
        %5679 = vmatpush1.bf16.msra.mxu0 %v5555
        %5680 = vmatprep.subr.bf16.mxu0 %v5558
        %5681 = vmatpush1.bf16.msra.mxu0 %v5557
        %5682 = vmatprep.subr.bf16.mxu0 %v5560
        %5683 = vmatpush1.bf16.msra.mxu0 %v5559
        %5684 = vmatprep.subr.bf16.mxu0 %v5562
        %5685 = vmatpush1.bf16.msra.mxu0 %v5561
        %5686 = vmatprep.subr.bf16.mxu0 %v5564
        %5687 = vmatpush1.bf16.msra.mxu0 %v5563
        %5688 = vmatprep.subr.bf16.mxu0 %v5566
        %5689 = vmatpush1.bf16.msra.mxu0 %v5565
        %5690 = vmatprep.subr.bf16.mxu0 %v5568
        %5691 = vmatpush1.bf16.msra.mxu0 %v5567
        %5692 = vmatprep.subr.bf16.mxu0 %v5570
        %5693 = vmatpush1.bf16.msra.mxu0 %v5569
        %5694 = vmatprep.subr.bf16.mxu0 %v5572
        %5695 = vmatpush1.bf16.msra.mxu0 %v5571
        %5696 = vmatprep.subr.bf16.mxu0 %v5574
        %5697 = vmatpush1.bf16.msra.mxu0 %v5573
        %5698 = vmatprep.subr.bf16.mxu0 %v5576
        %5699 = vmatpush1.bf16.msra.mxu0 %v5575
        %5700 = vmatprep.subr.bf16.mxu0 0
        %5701 = vmatpush1.bf16.msra.mxu0 0
        %5702 = vmatprep.subr.bf16.mxu0 0
        %5703 = vmatpush1.bf16.msra.mxu0 0
        %5704 = vmatprep.subr.bf16.mxu0 0
        %5705 = vmatpush1.bf16.msra.mxu0 0
        %5706 = vmatprep.subr.bf16.mxu0 0
        %5707 = vmatpush1.bf16.msra.mxu0 0
        %5708 = vmatprep.mubr.bf16.mxu0 %v5265
        %5709 = vmatmul.mubr.bf16.gmra.mrb[0].mxu0 %v3990
        %v5710 = vpop.f32.mrb[0].mxu0
        %v5711 = vadd.f32 %v5668, %v5710
        %v5712 = vpop.f32.mrb[0].mxu0
        %v5713 = vadd.f32 %v5670, %v5712
        %v5714 = vpop.f32.mrb[0].mxu0
        %v5715 = vadd.f32 %v5672, %v5714
        %v5716 = vpop.f32.mrb[0].mxu0
        %v5717 = vadd.f32 %v5674, %v5716
        %5718 = vdwg.mxu0
        %s5719 = scalar_lea.vmem %s4, 896
        %v5720 = vld [vmem:[%s5719] sm:$0xff]
        %v5721 = vld [vmem:[%s5719 + $0x8] sm:$0xff]
        %v5722 = vld [vmem:[%s5719 + $0x10] sm:$0xff]
        %v5723 = vld [vmem:[%s5719 + $0x18] sm:$0xff]
        %v5724 = vld [vmem:[%s5719 + $0x20] sm:$0xff]
        %v5725 = vld [vmem:[%s5719 + $0x28] sm:$0xff]
        %v5726 = vld [vmem:[%s5719 + $0x30] sm:$0xff]
        %v5727 = vld [vmem:[%s5719 + $0x38] sm:$0xff]
        %v5728 = vld [vmem:[%s5719 + $0x40] sm:$0xff]
        %v5729 = vld [vmem:[%s5719 + $0x48] sm:$0xff]
        %v5730 = vld [vmem:[%s5719 + $0x50] sm:$0xff]
        %v5731 = vld [vmem:[%s5719 + $0x58] sm:$0xff]
        %v5732 = vld [vmem:[%s5719 + $0x60] sm:$0xff]
        %v5733 = vld [vmem:[%s5719 + $0x68] sm:$0xff]
        %v5734 = vld [vmem:[%s5719 + $0x70] sm:$0xff]
        %v5735 = vld [vmem:[%s5719 + $0x78] sm:$0xff]
        %v5736 = vld [vmem:[%s5719 + $0x80] sm:$0xff]
        %v5737 = vld [vmem:[%s5719 + $0x88] sm:$0xff]
        %v5738 = vld [vmem:[%s5719 + $0x90] sm:$0xff]
        %v5739 = vld [vmem:[%s5719 + $0x98] sm:$0xff]
        %v5740 = vld [vmem:[%s5719 + $0xa0] sm:$0xff]
        %v5741 = vld [vmem:[%s5719 + $0xa8] sm:$0xff]
        %v5742 = vld [vmem:[%s5719 + $0xb0] sm:$0xff]
        %v5743 = vld [vmem:[%s5719 + $0xb8] sm:$0xff]
        %v5744 = vld [vmem:[%s5719 + $0xc0] sm:$0xff]
        %v5745 = vld [vmem:[%s5719 + $0xc8] sm:$0xff]
        %v5746 = vld [vmem:[%s5719 + $0xd0] sm:$0xff]
        %v5747 = vld [vmem:[%s5719 + $0xd8] sm:$0xff]
        %v5748 = vld [vmem:[%s5719 + $0xe0] sm:$0xff]
        %v5749 = vld [vmem:[%s5719 + $0xe8] sm:$0xff]
        %v5750 = vld [vmem:[%s5719 + $0xf0] sm:$0xff]
        %v5751 = vld [vmem:[%s5719 + $0xf8] sm:$0xff]
        %v5752 = vld [vmem:[%s5719 + $0x100] sm:$0xff]
        %v5753 = vld [vmem:[%s5719 + $0x108] sm:$0xff]
        %v5754 = vld [vmem:[%s5719 + $0x110] sm:$0xff]
        %v5755 = vld [vmem:[%s5719 + $0x118] sm:$0xff]
        %v5756 = vld [vmem:[%s5719 + $0x120] sm:$0xff]
        %v5757 = vld [vmem:[%s5719 + $0x128] sm:$0xff]
        %v5758 = vld [vmem:[%s5719 + $0x130] sm:$0xff]
        %v5759 = vld [vmem:[%s5719 + $0x138] sm:$0xff]
        %v5760 = vld [vmem:[%s5719 + $0x140] sm:$0xff]
        %v5761 = vld [vmem:[%s5719 + $0x148] sm:$0xff]
        %v5762 = vld [vmem:[%s5719 + $0x150] sm:$0xff]
        %v5763 = vld [vmem:[%s5719 + $0x158] sm:$0xff]
        %v5764 = vld [vmem:[%s5719 + $0x160] sm:$0xff]
        %v5765 = vld [vmem:[%s5719 + $0x168] sm:$0xff]
        %v5766 = vld [vmem:[%s5719 + $0x170] sm:$0xff]
        %v5767 = vld [vmem:[%s5719 + $0x178] sm:$0xff]
        %v5768 = vld [vmem:[%s5719 + $0x180] sm:$0xff]
        %v5769 = vld [vmem:[%s5719 + $0x188] sm:$0xff]
        %v5770 = vld [vmem:[%s5719 + $0x190] sm:$0xff]
        %v5771 = vld [vmem:[%s5719 + $0x198] sm:$0xff]
        %v5772 = vld [vmem:[%s5719 + $0x1a0] sm:$0xff]
        %v5773 = vld [vmem:[%s5719 + $0x1a8] sm:$0xff]
        %v5774 = vld [vmem:[%s5719 + $0x1b0] sm:$0xff]
        %v5775 = vld [vmem:[%s5719 + $0x1b8] sm:$0xff]
        %v5780 = vrot.slane %v3988, 1
        %v5781 = vrot.slane %v3989, 1
        %v5782 = vrot.slane %v3990, 1
        %v5783 = vrot.slane %v3991, 1
        %v5843 = vunpack.c.l.b16 %v5720
        %v5844 = vunpack.c.h.b16 %v5720
        %v5845 = vunpack.c.l.b16 %v5721
        %v5846 = vunpack.c.h.b16 %v5721
        %v5847 = vunpack.c.l.b16 %v5722
        %v5848 = vunpack.c.h.b16 %v5722
        %v5849 = vunpack.c.l.b16 %v5723
        %v5850 = vunpack.c.h.b16 %v5723
        %v5851 = vunpack.c.l.b16 %v5724
        %v5852 = vunpack.c.h.b16 %v5724
        %v5853 = vunpack.c.l.b16 %v5725
        %v5854 = vunpack.c.h.b16 %v5725
        %v5855 = vunpack.c.l.b16 %v5726
        %v5856 = vunpack.c.h.b16 %v5726
        %v5857 = vunpack.c.l.b16 %v5727
        %v5858 = vunpack.c.h.b16 %v5727
        %v5859 = vunpack.c.l.b16 %v5728
        %v5860 = vunpack.c.h.b16 %v5728
        %v5861 = vunpack.c.l.b16 %v5729
        %v5862 = vunpack.c.h.b16 %v5729
        %v5863 = vunpack.c.l.b16 %v5730
        %v5864 = vunpack.c.h.b16 %v5730
        %v5865 = vunpack.c.l.b16 %v5731
        %v5866 = vunpack.c.h.b16 %v5731
        %v5867 = vunpack.c.l.b16 %v5732
        %v5868 = vunpack.c.h.b16 %v5732
        %v5869 = vunpack.c.l.b16 %v5733
        %v5870 = vunpack.c.h.b16 %v5733
        %v5871 = vunpack.c.l.b16 %v5734
        %v5872 = vunpack.c.h.b16 %v5734
        %v5873 = vunpack.c.l.b16 %v5735
        %v5874 = vunpack.c.h.b16 %v5735
        %v5875 = vunpack.c.l.b16 %v5736
        %v5876 = vunpack.c.h.b16 %v5736
        %v5877 = vunpack.c.l.b16 %v5737
        %v5878 = vunpack.c.h.b16 %v5737
        %v5879 = vunpack.c.l.b16 %v5738
        %v5880 = vunpack.c.h.b16 %v5738
        %v5881 = vunpack.c.l.b16 %v5739
        %v5882 = vunpack.c.h.b16 %v5739
        %v5883 = vunpack.c.l.b16 %v5740
        %v5884 = vunpack.c.h.b16 %v5740
        %v5885 = vunpack.c.l.b16 %v5741
        %v5886 = vunpack.c.h.b16 %v5741
        %v5887 = vunpack.c.l.b16 %v5742
        %v5888 = vunpack.c.h.b16 %v5742
        %v5889 = vunpack.c.l.b16 %v5743
        %v5890 = vunpack.c.h.b16 %v5743
        %v5891 = vunpack.c.l.b16 %v5744
        %v5892 = vunpack.c.h.b16 %v5744
        %v5893 = vunpack.c.l.b16 %v5745
        %v5894 = vunpack.c.h.b16 %v5745
        %v5895 = vunpack.c.l.b16 %v5746
        %v5896 = vunpack.c.h.b16 %v5746
        %v5897 = vunpack.c.l.b16 %v5747
        %v5898 = vunpack.c.h.b16 %v5747
        %v5899 = vunpack.c.l.b16 %v5748
        %v5900 = vunpack.c.h.b16 %v5748
        %v5901 = vunpack.c.l.b16 %v5749
        %v5902 = vunpack.c.h.b16 %v5749
        %v5903 = vunpack.c.l.b16 %v5750
        %v5904 = vunpack.c.h.b16 %v5750
        %v5905 = vunpack.c.l.b16 %v5751
        %v5906 = vunpack.c.h.b16 %v5751
        %v5907 = vunpack.c.l.b16 %v5752
        %v5908 = vunpack.c.h.b16 %v5752
        %v5909 = vunpack.c.l.b16 %v5753
        %v5910 = vunpack.c.h.b16 %v5753
        %v5911 = vunpack.c.l.b16 %v5754
        %v5912 = vunpack.c.h.b16 %v5754
        %v5913 = vunpack.c.l.b16 %v5755
        %v5914 = vunpack.c.h.b16 %v5755
        %v5915 = vunpack.c.l.b16 %v5756
        %v5916 = vunpack.c.h.b16 %v5756
        %v5917 = vunpack.c.l.b16 %v5757
        %v5918 = vunpack.c.h.b16 %v5757
        %v5919 = vunpack.c.l.b16 %v5758
        %v5920 = vunpack.c.h.b16 %v5758
        %v5921 = vunpack.c.l.b16 %v5759
        %v5922 = vunpack.c.h.b16 %v5759
        %v5923 = vunpack.c.l.b16 %v5760
        %v5924 = vunpack.c.h.b16 %v5760
        %v5925 = vunpack.c.l.b16 %v5761
        %v5926 = vunpack.c.h.b16 %v5761
        %v5927 = vunpack.c.l.b16 %v5762
        %v5928 = vunpack.c.h.b16 %v5762
        %v5929 = vunpack.c.l.b16 %v5763
        %v5930 = vunpack.c.h.b16 %v5763
        %v5931 = vunpack.c.l.b16 %v5764
        %v5932 = vunpack.c.h.b16 %v5764
        %v5933 = vunpack.c.l.b16 %v5765
        %v5934 = vunpack.c.h.b16 %v5765
        %v5935 = vunpack.c.l.b16 %v5766
        %v5936 = vunpack.c.h.b16 %v5766
        %v5937 = vunpack.c.l.b16 %v5767
        %v5938 = vunpack.c.h.b16 %v5767
        %v5939 = vunpack.c.l.b16 %v5768
        %v5940 = vunpack.c.h.b16 %v5768
        %v5941 = vunpack.c.l.b16 %v5769
        %v5942 = vunpack.c.h.b16 %v5769
        %v5943 = vunpack.c.l.b16 %v5770
        %v5944 = vunpack.c.h.b16 %v5770
        %v5945 = vunpack.c.l.b16 %v5771
        %v5946 = vunpack.c.h.b16 %v5771
        %v5947 = vunpack.c.l.b16 %v5772
        %v5948 = vunpack.c.h.b16 %v5772
        %v5949 = vunpack.c.l.b16 %v5773
        %v5950 = vunpack.c.h.b16 %v5773
        %v5951 = vunpack.c.l.b16 %v5774
        %v5952 = vunpack.c.h.b16 %v5774
        %v5953 = vunpack.c.l.b16 %v5775
        %v5954 = vunpack.c.h.b16 %v5775
        %v5955 = vpack.c.b16 %v5845, %v5843
        %v5956 = vpack.c.b16 %v5846, %v5844
        %v5957 = vpack.c.b16 %v5849, %v5847
        %v5958 = vpack.c.b16 %v5850, %v5848
        %v5959 = vpack.c.b16 %v5853, %v5851
        %v5960 = vpack.c.b16 %v5854, %v5852
        %v5961 = vpack.c.b16 %v5857, %v5855
        %v5962 = vpack.c.b16 %v5858, %v5856
        %v5963 = vpack.c.b16 %v5861, %v5859
        %v5964 = vpack.c.b16 %v5862, %v5860
        %v5965 = vpack.c.b16 %v5865, %v5863
        %v5966 = vpack.c.b16 %v5866, %v5864
        %v5967 = vpack.c.b16 %v5869, %v5867
        %v5968 = vpack.c.b16 %v5870, %v5868
        %v5969 = vpack.c.b16 %v5873, %v5871
        %v5970 = vpack.c.b16 %v5874, %v5872
        %v5971 = vpack.c.b16 %v5877, %v5875
        %v5972 = vpack.c.b16 %v5878, %v5876
        %v5973 = vpack.c.b16 %v5881, %v5879
        %v5974 = vpack.c.b16 %v5882, %v5880
        %v5975 = vpack.c.b16 %v5885, %v5883
        %v5976 = vpack.c.b16 %v5886, %v5884
        %v5977 = vpack.c.b16 %v5889, %v5887
        %v5978 = vpack.c.b16 %v5890, %v5888
        %v5979 = vpack.c.b16 %v5893, %v5891
        %v5980 = vpack.c.b16 %v5894, %v5892
        %v5981 = vpack.c.b16 %v5897, %v5895
        %v5982 = vpack.c.b16 %v5898, %v5896
        %v5983 = vpack.c.b16 %v5901, %v5899
        %v5984 = vpack.c.b16 %v5902, %v5900
        %v5985 = vpack.c.b16 %v5905, %v5903
        %v5986 = vpack.c.b16 %v5906, %v5904
        %v5987 = vpack.c.b16 %v5909, %v5907
        %v5988 = vpack.c.b16 %v5910, %v5908
        %v5989 = vpack.c.b16 %v5913, %v5911
        %v5990 = vpack.c.b16 %v5914, %v5912
        %v5991 = vpack.c.b16 %v5917, %v5915
        %v5992 = vpack.c.b16 %v5918, %v5916
        %v5993 = vpack.c.b16 %v5921, %v5919
        %v5994 = vpack.c.b16 %v5922, %v5920
        %v5995 = vpack.c.b16 %v5925, %v5923
        %v5996 = vpack.c.b16 %v5926, %v5924
        %v5997 = vpack.c.b16 %v5929, %v5927
        %v5998 = vpack.c.b16 %v5930, %v5928
        %v5999 = vpack.c.b16 %v5933, %v5931
        %v6000 = vpack.c.b16 %v5934, %v5932
        %v6001 = vpack.c.b16 %v5937, %v5935
        %v6002 = vpack.c.b16 %v5938, %v5936
        %v6003 = vpack.c.b16 %v5941, %v5939
        %v6004 = vpack.c.b16 %v5942, %v5940
        %v6005 = vpack.c.b16 %v5945, %v5943
        %v6006 = vpack.c.b16 %v5946, %v5944
        %v6007 = vpack.c.b16 %v5949, %v5947
        %v6008 = vpack.c.b16 %v5950, %v5948
        %v6009 = vpack.c.b16 %v5953, %v5951
        %v6010 = vpack.c.b16 %v5954, %v5952
        %v6068 = vsel %vm4472, %v5783, 0
        %6070 = vmatprep.subr.bf16.mxu0 %v5956
        %6071 = vmatpush1.bf16.msra.mxu0 %v5955
        %6072 = vmatprep.subr.bf16.mxu0 %v5958
        %6073 = vmatpush1.bf16.msra.mxu0 %v5957
        %6074 = vmatprep.subr.bf16.mxu0 %v5960
        %6075 = vmatpush1.bf16.msra.mxu0 %v5959
        %6076 = vmatprep.subr.bf16.mxu0 %v5962
        %6077 = vmatpush1.bf16.msra.mxu0 %v5961
        %6078 = vmatprep.subr.bf16.mxu0 %v5964
        %6079 = vmatpush1.bf16.msra.mxu0 %v5963
        %6080 = vmatprep.subr.bf16.mxu0 %v5966
        %6081 = vmatpush1.bf16.msra.mxu0 %v5965
        %6082 = vmatprep.subr.bf16.mxu0 %v5968
        %6083 = vmatpush1.bf16.msra.mxu0 %v5967
        %6084 = vmatprep.subr.bf16.mxu0 %v5970
        %6085 = vmatpush1.bf16.msra.mxu0 %v5969
        %6086 = vmatprep.subr.bf16.mxu0 %v5972
        %6087 = vmatpush1.bf16.msra.mxu0 %v5971
        %6088 = vmatprep.subr.bf16.mxu0 %v5974
        %6089 = vmatpush1.bf16.msra.mxu0 %v5973
        %6090 = vmatprep.subr.bf16.mxu0 %v5976
        %6091 = vmatpush1.bf16.msra.mxu0 %v5975
        %6092 = vmatprep.subr.bf16.mxu0 %v5978
        %6093 = vmatpush1.bf16.msra.mxu0 %v5977
        %6094 = vmatprep.subr.bf16.mxu0 %v5980
        %6095 = vmatpush1.bf16.msra.mxu0 %v5979
        %6096 = vmatprep.subr.bf16.mxu0 %v5982
        %6097 = vmatpush1.bf16.msra.mxu0 %v5981
        %6098 = vmatprep.subr.bf16.mxu0 %v5984
        %6099 = vmatpush1.bf16.msra.mxu0 %v5983
        %6100 = vmatprep.subr.bf16.mxu0 %v5986
        %6101 = vmatpush1.bf16.msra.mxu0 %v5985
        %6102 = vmatprep.mubr.bf16.mxu0 %v5781
        %6103 = vmatmul.mubr.bf16.gmra.mrb[0].mxu0 %v5780
        %v6104 = vpop.f32.mrb[0].mxu0
        %v6105 = vadd.f32 0.0, %v6104
        %v6106 = vpop.f32.mrb[0].mxu0
        %v6107 = vadd.f32 0.0, %v6106
        %v6108 = vpop.f32.mrb[0].mxu0
        %v6109 = vadd.f32 0.0, %v6108
        %v6110 = vpop.f32.mrb[0].mxu0
        %v6111 = vadd.f32 0.0, %v6110
        %6112 = vdwg.mxu0
        %6113 = vmatprep.subr.bf16.mxu0 %v5988
        %6114 = vmatpush1.bf16.msra.mxu0 %v5987
        %6115 = vmatprep.subr.bf16.mxu0 %v5990
        %6116 = vmatpush1.bf16.msra.mxu0 %v5989
        %6117 = vmatprep.subr.bf16.mxu0 %v5992
        %6118 = vmatpush1.bf16.msra.mxu0 %v5991
        %6119 = vmatprep.subr.bf16.mxu0 %v5994
        %6120 = vmatpush1.bf16.msra.mxu0 %v5993
        %6121 = vmatprep.subr.bf16.mxu0 %v5996
        %6122 = vmatpush1.bf16.msra.mxu0 %v5995
        %6123 = vmatprep.subr.bf16.mxu0 %v5998
        %6124 = vmatpush1.bf16.msra.mxu0 %v5997
        %6125 = vmatprep.subr.bf16.mxu0 %v6000
        %6126 = vmatpush1.bf16.msra.mxu0 %v5999
        %6127 = vmatprep.subr.bf16.mxu0 %v6002
        %6128 = vmatpush1.bf16.msra.mxu0 %v6001
        %6129 = vmatprep.subr.bf16.mxu0 %v6004
        %6130 = vmatpush1.bf16.msra.mxu0 %v6003
        %6131 = vmatprep.subr.bf16.mxu0 %v6006
        %6132 = vmatpush1.bf16.msra.mxu0 %v6005
        %6133 = vmatprep.subr.bf16.mxu0 %v6008
        %6134 = vmatpush1.bf16.msra.mxu0 %v6007
        %6135 = vmatprep.subr.bf16.mxu0 %v6010
        %6136 = vmatpush1.bf16.msra.mxu0 %v6009
        %6137 = vmatprep.subr.bf16.mxu0 0
        %6138 = vmatpush1.bf16.msra.mxu0 0
        %6139 = vmatprep.subr.bf16.mxu0 0
        %6140 = vmatpush1.bf16.msra.mxu0 0
        %6141 = vmatprep.subr.bf16.mxu0 0
        %6142 = vmatpush1.bf16.msra.mxu0 0
        %6143 = vmatprep.subr.bf16.mxu0 0
        %6144 = vmatpush1.bf16.msra.mxu0 0
        %6145 = vmatprep.mubr.bf16.mxu0 %v6068
        %6146 = vmatmul.mubr.bf16.gmra.mrb[0].mxu0 %v5782
        %v6147 = vpop.f32.mrb[0].mxu0
        %v6148 = vadd.f32 %v6105, %v6147
        %v6149 = vpop.f32.mrb[0].mxu0
        %v6150 = vadd.f32 %v6107, %v6149
        %v6151 = vpop.f32.mrb[0].mxu0
        %v6152 = vadd.f32 %v6109, %v6151
        %v6153 = vpop.f32.mrb[0].mxu0
        %v6154 = vadd.f32 %v6111, %v6153
        %6155 = vdwg.mxu0
        %s6156 = scalar_lea.vmem %s5, 896
        %v6157 = vld [vmem:[%s6156] sm:$0xff]
        %v6158 = vld [vmem:[%s6156 + $0x8] sm:$0xff]
        %v6159 = vld [vmem:[%s6156 + $0x10] sm:$0xff]
        %v6160 = vld [vmem:[%s6156 + $0x18] sm:$0xff]
        %v6161 = vld [vmem:[%s6156 + $0x20] sm:$0xff]
        %v6162 = vld [vmem:[%s6156 + $0x28] sm:$0xff]
        %v6163 = vld [vmem:[%s6156 + $0x30] sm:$0xff]
        %v6164 = vld [vmem:[%s6156 + $0x38] sm:$0xff]
        %v6165 = vld [vmem:[%s6156 + $0x40] sm:$0xff]
        %v6166 = vld [vmem:[%s6156 + $0x48] sm:$0xff]
        %v6167 = vld [vmem:[%s6156 + $0x50] sm:$0xff]
        %v6168 = vld [vmem:[%s6156 + $0x58] sm:$0xff]
        %v6169 = vld [vmem:[%s6156 + $0x60] sm:$0xff]
        %v6170 = vld [vmem:[%s6156 + $0x68] sm:$0xff]
        %v6171 = vld [vmem:[%s6156 + $0x70] sm:$0xff]
        %v6172 = vld [vmem:[%s6156 + $0x78] sm:$0xff]
        %v6173 = vld [vmem:[%s6156 + $0x80] sm:$0xff]
        %v6174 = vld [vmem:[%s6156 + $0x88] sm:$0xff]
        %v6175 = vld [vmem:[%s6156 + $0x90] sm:$0xff]
        %v6176 = vld [vmem:[%s6156 + $0x98] sm:$0xff]
        %v6177 = vld [vmem:[%s6156 + $0xa0] sm:$0xff]
        %v6178 = vld [vmem:[%s6156 + $0xa8] sm:$0xff]
        %v6179 = vld [vmem:[%s6156 + $0xb0] sm:$0xff]
        %v6180 = vld [vmem:[%s6156 + $0xb8] sm:$0xff]
        %v6181 = vld [vmem:[%s6156 + $0xc0] sm:$0xff]
        %v6182 = vld [vmem:[%s6156 + $0xc8] sm:$0xff]
        %v6183 = vld [vmem:[%s6156 + $0xd0] sm:$0xff]
        %v6184 = vld [vmem:[%s6156 + $0xd8] sm:$0xff]
        %v6185 = vld [vmem:[%s6156 + $0xe0] sm:$0xff]
        %v6186 = vld [vmem:[%s6156 + $0xe8] sm:$0xff]
        %v6187 = vld [vmem:[%s6156 + $0xf0] sm:$0xff]
        %v6188 = vld [vmem:[%s6156 + $0xf8] sm:$0xff]
        %v6189 = vld [vmem:[%s6156 + $0x100] sm:$0xff]
        %v6190 = vld [vmem:[%s6156 + $0x108] sm:$0xff]
        %v6191 = vld [vmem:[%s6156 + $0x110] sm:$0xff]
        %v6192 = vld [vmem:[%s6156 + $0x118] sm:$0xff]
        %v6193 = vld [vmem:[%s6156 + $0x120] sm:$0xff]
        %v6194 = vld [vmem:[%s6156 + $0x128] sm:$0xff]
        %v6195 = vld [vmem:[%s6156 + $0x130] sm:$0xff]
        %v6196 = vld [vmem:[%s6156 + $0x138] sm:$0xff]
        %v6197 = vld [vmem:[%s6156 + $0x140] sm:$0xff]
        %v6198 = vld [vmem:[%s6156 + $0x148] sm:$0xff]
        %v6199 = vld [vmem:[%s6156 + $0x150] sm:$0xff]
        %v6200 = vld [vmem:[%s6156 + $0x158] sm:$0xff]
        %v6201 = vld [vmem:[%s6156 + $0x160] sm:$0xff]
        %v6202 = vld [vmem:[%s6156 + $0x168] sm:$0xff]
        %v6203 = vld [vmem:[%s6156 + $0x170] sm:$0xff]
        %v6204 = vld [vmem:[%s6156 + $0x178] sm:$0xff]
        %v6205 = vld [vmem:[%s6156 + $0x180] sm:$0xff]
        %v6206 = vld [vmem:[%s6156 + $0x188] sm:$0xff]
        %v6207 = vld [vmem:[%s6156 + $0x190] sm:$0xff]
        %v6208 = vld [vmem:[%s6156 + $0x198] sm:$0xff]
        %v6209 = vld [vmem:[%s6156 + $0x1a0] sm:$0xff]
        %v6210 = vld [vmem:[%s6156 + $0x1a8] sm:$0xff]
        %v6211 = vld [vmem:[%s6156 + $0x1b0] sm:$0xff]
        %v6212 = vld [vmem:[%s6156 + $0x1b8] sm:$0xff]
        %v6269 = vunpack.c.l.b16 %v6157
        %v6270 = vunpack.c.h.b16 %v6157
        %v6271 = vunpack.c.l.b16 %v6158
        %v6272 = vunpack.c.h.b16 %v6158
        %v6273 = vunpack.c.l.b16 %v6159
        %v6274 = vunpack.c.h.b16 %v6159
        %v6275 = vunpack.c.l.b16 %v6160
        %v6276 = vunpack.c.h.b16 %v6160
        %v6277 = vunpack.c.l.b16 %v6161
        %v6278 = vunpack.c.h.b16 %v6161
        %v6279 = vunpack.c.l.b16 %v6162
        %v6280 = vunpack.c.h.b16 %v6162
        %v6281 = vunpack.c.l.b16 %v6163
        %v6282 = vunpack.c.h.b16 %v6163
        %v6283 = vunpack.c.l.b16 %v6164
        %v6284 = vunpack.c.h.b16 %v6164
        %v6285 = vunpack.c.l.b16 %v6165
        %v6286 = vunpack.c.h.b16 %v6165
        %v6287 = vunpack.c.l.b16 %v6166
        %v6288 = vunpack.c.h.b16 %v6166
        %v6289 = vunpack.c.l.b16 %v6167
        %v6290 = vunpack.c.h.b16 %v6167
        %v6291 = vunpack.c.l.b16 %v6168
        %v6292 = vunpack.c.h.b16 %v6168
        %v6293 = vunpack.c.l.b16 %v6169
        %v6294 = vunpack.c.h.b16 %v6169
        %v6295 = vunpack.c.l.b16 %v6170
        %v6296 = vunpack.c.h.b16 %v6170
        %v6297 = vunpack.c.l.b16 %v6171
        %v6298 = vunpack.c.h.b16 %v6171
        %v6299 = vunpack.c.l.b16 %v6172
        %v6300 = vunpack.c.h.b16 %v6172
        %v6301 = vunpack.c.l.b16 %v6173
        %v6302 = vunpack.c.h.b16 %v6173
        %v6303 = vunpack.c.l.b16 %v6174
        %v6304 = vunpack.c.h.b16 %v6174
        %v6305 = vunpack.c.l.b16 %v6175
        %v6306 = vunpack.c.h.b16 %v6175
        %v6307 = vunpack.c.l.b16 %v6176
        %v6308 = vunpack.c.h.b16 %v6176
        %v6309 = vunpack.c.l.b16 %v6177
        %v6310 = vunpack.c.h.b16 %v6177
        %v6311 = vunpack.c.l.b16 %v6178
        %v6312 = vunpack.c.h.b16 %v6178
        %v6313 = vunpack.c.l.b16 %v6179
        %v6314 = vunpack.c.h.b16 %v6179
        %v6315 = vunpack.c.l.b16 %v6180
        %v6316 = vunpack.c.h.b16 %v6180
        %v6317 = vunpack.c.l.b16 %v6181
        %v6318 = vunpack.c.h.b16 %v6181
        %v6319 = vunpack.c.l.b16 %v6182
        %v6320 = vunpack.c.h.b16 %v6182
        %v6321 = vunpack.c.l.b16 %v6183
        %v6322 = vunpack.c.h.b16 %v6183
        %v6323 = vunpack.c.l.b16 %v6184
        %v6324 = vunpack.c.h.b16 %v6184
        %v6325 = vunpack.c.l.b16 %v6185
        %v6326 = vunpack.c.h.b16 %v6185
        %v6327 = vunpack.c.l.b16 %v6186
        %v6328 = vunpack.c.h.b16 %v6186
        %v6329 = vunpack.c.l.b16 %v6187
        %v6330 = vunpack.c.h.b16 %v6187
        %v6331 = vunpack.c.l.b16 %v6188
        %v6332 = vunpack.c.h.b16 %v6188
        %v6333 = vunpack.c.l.b16 %v6189
        %v6334 = vunpack.c.h.b16 %v6189
        %v6335 = vunpack.c.l.b16 %v6190
        %v6336 = vunpack.c.h.b16 %v6190
        %v6337 = vunpack.c.l.b16 %v6191
        %v6338 = vunpack.c.h.b16 %v6191
        %v6339 = vunpack.c.l.b16 %v6192
        %v6340 = vunpack.c.h.b16 %v6192
        %v6341 = vunpack.c.l.b16 %v6193
        %v6342 = vunpack.c.h.b16 %v6193
        %v6343 = vunpack.c.l.b16 %v6194
        %v6344 = vunpack.c.h.b16 %v6194
        %v6345 = vunpack.c.l.b16 %v6195
        %v6346 = vunpack.c.h.b16 %v6195
        %v6347 = vunpack.c.l.b16 %v6196
        %v6348 = vunpack.c.h.b16 %v6196
        %v6349 = vunpack.c.l.b16 %v6197
        %v6350 = vunpack.c.h.b16 %v6197
        %v6351 = vunpack.c.l.b16 %v6198
        %v6352 = vunpack.c.h.b16 %v6198
        %v6353 = vunpack.c.l.b16 %v6199
        %v6354 = vunpack.c.h.b16 %v6199
        %v6355 = vunpack.c.l.b16 %v6200
        %v6356 = vunpack.c.h.b16 %v6200
        %v6357 = vunpack.c.l.b16 %v6201
        %v6358 = vunpack.c.h.b16 %v6201
        %v6359 = vunpack.c.l.b16 %v6202
        %v6360 = vunpack.c.h.b16 %v6202
        %v6361 = vunpack.c.l.b16 %v6203
        %v6362 = vunpack.c.h.b16 %v6203
        %v6363 = vunpack.c.l.b16 %v6204
        %v6364 = vunpack.c.h.b16 %v6204
        %v6365 = vunpack.c.l.b16 %v6205
        %v6366 = vunpack.c.h.b16 %v6205
        %v6367 = vunpack.c.l.b16 %v6206
        %v6368 = vunpack.c.h.b16 %v6206
        %v6369 = vunpack.c.l.b16 %v6207
        %v6370 = vunpack.c.h.b16 %v6207
        %v6371 = vunpack.c.l.b16 %v6208
        %v6372 = vunpack.c.h.b16 %v6208
        %v6373 = vunpack.c.l.b16 %v6209
        %v6374 = vunpack.c.h.b16 %v6209
        %v6375 = vunpack.c.l.b16 %v6210
        %v6376 = vunpack.c.h.b16 %v6210
        %v6377 = vunpack.c.l.b16 %v6211
        %v6378 = vunpack.c.h.b16 %v6211
        %v6379 = vunpack.c.l.b16 %v6212
        %v6380 = vunpack.c.h.b16 %v6212
        %v6381 = vpack.c.b16 %v6271, %v6269
        %v6382 = vpack.c.b16 %v6272, %v6270
        %v6383 = vpack.c.b16 %v6275, %v6273
        %v6384 = vpack.c.b16 %v6276, %v6274
        %v6385 = vpack.c.b16 %v6279, %v6277
        %v6386 = vpack.c.b16 %v6280, %v6278
        %v6387 = vpack.c.b16 %v6283, %v6281
        %v6388 = vpack.c.b16 %v6284, %v6282
        %v6389 = vpack.c.b16 %v6287, %v6285
        %v6390 = vpack.c.b16 %v6288, %v6286
        %v6391 = vpack.c.b16 %v6291, %v6289
        %v6392 = vpack.c.b16 %v6292, %v6290
        %v6393 = vpack.c.b16 %v6295, %v6293
        %v6394 = vpack.c.b16 %v6296, %v6294
        %v6395 = vpack.c.b16 %v6299, %v6297
        %v6396 = vpack.c.b16 %v6300, %v6298
        %v6397 = vpack.c.b16 %v6303, %v6301
        %v6398 = vpack.c.b16 %v6304, %v6302
        %v6399 = vpack.c.b16 %v6307, %v6305
        %v6400 = vpack.c.b16 %v6308, %v6306
        %v6401 = vpack.c.b16 %v6311, %v6309
        %v6402 = vpack.c.b16 %v6312, %v6310
        %v6403 = vpack.c.b16 %v6315, %v6313
        %v6404 = vpack.c.b16 %v6316, %v6314
        %v6405 = vpack.c.b16 %v6319, %v6317
        %v6406 = vpack.c.b16 %v6320, %v6318
        %v6407 = vpack.c.b16 %v6323, %v6321
        %v6408 = vpack.c.b16 %v6324, %v6322
        %v6409 = vpack.c.b16 %v6327, %v6325
        %v6410 = vpack.c.b16 %v6328, %v6326
        %v6411 = vpack.c.b16 %v6331, %v6329
        %v6412 = vpack.c.b16 %v6332, %v6330
        %v6413 = vpack.c.b16 %v6335, %v6333
        %v6414 = vpack.c.b16 %v6336, %v6334
        %v6415 = vpack.c.b16 %v6339, %v6337
        %v6416 = vpack.c.b16 %v6340, %v6338
        %v6417 = vpack.c.b16 %v6343, %v6341
        %v6418 = vpack.c.b16 %v6344, %v6342
        %v6419 = vpack.c.b16 %v6347, %v6345
        %v6420 = vpack.c.b16 %v6348, %v6346
        %v6421 = vpack.c.b16 %v6351, %v6349
        %v6422 = vpack.c.b16 %v6352, %v6350
        %v6423 = vpack.c.b16 %v6355, %v6353
        %v6424 = vpack.c.b16 %v6356, %v6354
        %v6425 = vpack.c.b16 %v6359, %v6357
        %v6426 = vpack.c.b16 %v6360, %v6358
        %v6427 = vpack.c.b16 %v6363, %v6361
        %v6428 = vpack.c.b16 %v6364, %v6362
        %v6429 = vpack.c.b16 %v6367, %v6365
        %v6430 = vpack.c.b16 %v6368, %v6366
        %v6431 = vpack.c.b16 %v6371, %v6369
        %v6432 = vpack.c.b16 %v6372, %v6370
        %v6433 = vpack.c.b16 %v6375, %v6373
        %v6434 = vpack.c.b16 %v6376, %v6374
        %v6435 = vpack.c.b16 %v6379, %v6377
        %v6436 = vpack.c.b16 %v6380, %v6378
        %6493 = vmatprep.subr.bf16.mxu0 %v6382
        %6494 = vmatpush1.bf16.msra.mxu0 %v6381
        %6495 = vmatprep.subr.bf16.mxu0 %v6384
        %6496 = vmatpush1.bf16.msra.mxu0 %v6383
        %6497 = vmatprep.subr.bf16.mxu0 %v6386
        %6498 = vmatpush1.bf16.msra.mxu0 %v6385
        %6499 = vmatprep.subr.bf16.mxu0 %v6388
        %6500 = vmatpush1.bf16.msra.mxu0 %v6387
        %6501 = vmatprep.subr.bf16.mxu0 %v6390
        %6502 = vmatpush1.bf16.msra.mxu0 %v6389
        %6503 = vmatprep.subr.bf16.mxu0 %v6392
        %6504 = vmatpush1.bf16.msra.mxu0 %v6391
        %6505 = vmatprep.subr.bf16.mxu0 %v6394
        %6506 = vmatpush1.bf16.msra.mxu0 %v6393
        %6507 = vmatprep.subr.bf16.mxu0 %v6396
        %6508 = vmatpush1.bf16.msra.mxu0 %v6395
        %6509 = vmatprep.subr.bf16.mxu0 %v6398
        %6510 = vmatpush1.bf16.msra.mxu0 %v6397
        %6511 = vmatprep.subr.bf16.mxu0 %v6400
        %6512 = vmatpush1.bf16.msra.mxu0 %v6399
        %6513 = vmatprep.subr.bf16.mxu0 %v6402
        %6514 = vmatpush1.bf16.msra.mxu0 %v6401
        %6515 = vmatprep.subr.bf16.mxu0 %v6404
        %6516 = vmatpush1.bf16.msra.mxu0 %v6403
        %6517 = vmatprep.subr.bf16.mxu0 %v6406
        %6518 = vmatpush1.bf16.msra.mxu0 %v6405
        %6519 = vmatprep.subr.bf16.mxu0 %v6408
        %6520 = vmatpush1.bf16.msra.mxu0 %v6407
        %6521 = vmatprep.subr.bf16.mxu0 %v6410
        %6522 = vmatpush1.bf16.msra.mxu0 %v6409
        %6523 = vmatprep.subr.bf16.mxu0 %v6412
        %6524 = vmatpush1.bf16.msra.mxu0 %v6411
        %6525 = vmatprep.mubr.bf16.mxu0 %v5781
        %6526 = vmatmul.mubr.bf16.gmra.mrb[0].mxu0 %v5780
        %v6527 = vpop.f32.mrb[0].mxu0
        %v6528 = vadd.f32 0.0, %v6527
        %v6529 = vpop.f32.mrb[0].mxu0
        %v6530 = vadd.f32 0.0, %v6529
        %v6531 = vpop.f32.mrb[0].mxu0
        %v6532 = vadd.f32 0.0, %v6531
        %v6533 = vpop.f32.mrb[0].mxu0
        %v6534 = vadd.f32 0.0, %v6533
        %6535 = vdwg.mxu0
        %6536 = vmatprep.subr.bf16.mxu0 %v6414
        %6537 = vmatpush1.bf16.msra.mxu0 %v6413
        %6538 = vmatprep.subr.bf16.mxu0 %v6416
        %6539 = vmatpush1.bf16.msra.mxu0 %v6415
        %6540 = vmatprep.subr.bf16.mxu0 %v6418
        %6541 = vmatpush1.bf16.msra.mxu0 %v6417
        %6542 = vmatprep.subr.bf16.mxu0 %v6420
        %6543 = vmatpush1.bf16.msra.mxu0 %v6419
        %6544 = vmatprep.subr.bf16.mxu0 %v6422
        %6545 = vmatpush1.bf16.msra.mxu0 %v6421
        %6546 = vmatprep.subr.bf16.mxu0 %v6424
        %6547 = vmatpush1.bf16.msra.mxu0 %v6423
        %6548 = vmatprep.subr.bf16.mxu0 %v6426
        %6549 = vmatpush1.bf16.msra.mxu0 %v6425
        %6550 = vmatprep.subr.bf16.mxu0 %v6428
        %6551 = vmatpush1.bf16.msra.mxu0 %v6427
        %6552 = vmatprep.subr.bf16.mxu0 %v6430
        %6553 = vmatpush1.bf16.msra.mxu0 %v6429
        %6554 = vmatprep.subr.bf16.mxu0 %v6432
        %6555 = vmatpush1.bf16.msra.mxu0 %v6431
        %6556 = vmatprep.subr.bf16.mxu0 %v6434
        %6557 = vmatpush1.bf16.msra.mxu0 %v6433
        %6558 = vmatprep.subr.bf16.mxu0 %v6436
        %6559 = vmatpush1.bf16.msra.mxu0 %v6435
        %6560 = vmatprep.subr.bf16.mxu0 0
        %6561 = vmatpush1.bf16.msra.mxu0 0
        %6562 = vmatprep.subr.bf16.mxu0 0
        %6563 = vmatpush1.bf16.msra.mxu0 0
        %6564 = vmatprep.subr.bf16.mxu0 0
        %6565 = vmatpush1.bf16.msra.mxu0 0
        %6566 = vmatprep.subr.bf16.mxu0 0
        %6567 = vmatpush1.bf16.msra.mxu0 0
        %6568 = vmatprep.mubr.bf16.mxu0 %v6068
        %6569 = vmatmul.mubr.bf16.gmra.mrb[0].mxu0 %v5782
        %v6570 = vpop.f32.mrb[0].mxu0
        %v6571 = vadd.f32 %v6528, %v6570
        %v6572 = vpop.f32.mrb[0].mxu0
        %v6573 = vadd.f32 %v6530, %v6572
        %v6574 = vpop.f32.mrb[0].mxu0
        %v6575 = vadd.f32 %v6532, %v6574
        %v6576 = vpop.f32.mrb[0].mxu0
        %v6577 = vadd.f32 %v6534, %v6576
        %6578 = vdwg.mxu0
        %v6579 = vadd.f32 %v5345, %v6148
        %v6580 = vadd.f32 %v5347, %v6150
        %v6581 = vadd.f32 %v5349, %v6152
        %v6582 = vadd.f32 %v5351, %v6154
        %v6583 = vadd.f32 %v5711, %v6571
        %v6584 = vadd.f32 %v5713, %v6573
        %v6585 = vadd.f32 %v5715, %v6575
        %v6586 = vadd.f32 %v5717, %v6577
        %s6587 = scalar_lea.vmem %s4, 1344
        %v6588 = vld [vmem:[%s6587] sm:$0xff]
        %v6589 = vld [vmem:[%s6587 + $0x8] sm:$0xff]
        %v6590 = vld [vmem:[%s6587 + $0x10] sm:$0xff]
        %v6591 = vld [vmem:[%s6587 + $0x18] sm:$0xff]
        %v6592 = vld [vmem:[%s6587 + $0x20] sm:$0xff]
        %v6593 = vld [vmem:[%s6587 + $0x28] sm:$0xff]
        %v6594 = vld [vmem:[%s6587 + $0x30] sm:$0xff]
        %v6595 = vld [vmem:[%s6587 + $0x38] sm:$0xff]
        %v6596 = vld [vmem:[%s6587 + $0x40] sm:$0xff]
        %v6597 = vld [vmem:[%s6587 + $0x48] sm:$0xff]
        %v6598 = vld [vmem:[%s6587 + $0x50] sm:$0xff]
        %v6599 = vld [vmem:[%s6587 + $0x58] sm:$0xff]
        %v6600 = vld [vmem:[%s6587 + $0x60] sm:$0xff]
        %v6601 = vld [vmem:[%s6587 + $0x68] sm:$0xff]
        %v6602 = vld [vmem:[%s6587 + $0x70] sm:$0xff]
        %v6603 = vld [vmem:[%s6587 + $0x78] sm:$0xff]
        %v6604 = vld [vmem:[%s6587 + $0x80] sm:$0xff]
        %v6605 = vld [vmem:[%s6587 + $0x88] sm:$0xff]
        %v6606 = vld [vmem:[%s6587 + $0x90] sm:$0xff]
        %v6607 = vld [vmem:[%s6587 + $0x98] sm:$0xff]
        %v6608 = vld [vmem:[%s6587 + $0xa0] sm:$0xff]
        %v6609 = vld [vmem:[%s6587 + $0xa8] sm:$0xff]
        %v6610 = vld [vmem:[%s6587 + $0xb0] sm:$0xff]
        %v6611 = vld [vmem:[%s6587 + $0xb8] sm:$0xff]
        %v6612 = vld [vmem:[%s6587 + $0xc0] sm:$0xff]
        %v6613 = vld [vmem:[%s6587 + $0xc8] sm:$0xff]
        %v6614 = vld [vmem:[%s6587 + $0xd0] sm:$0xff]
        %v6615 = vld [vmem:[%s6587 + $0xd8] sm:$0xff]
        %v6616 = vld [vmem:[%s6587 + $0xe0] sm:$0xff]
        %v6617 = vld [vmem:[%s6587 + $0xe8] sm:$0xff]
        %v6618 = vld [vmem:[%s6587 + $0xf0] sm:$0xff]
        %v6619 = vld [vmem:[%s6587 + $0xf8] sm:$0xff]
        %v6620 = vld [vmem:[%s6587 + $0x100] sm:$0xff]
        %v6621 = vld [vmem:[%s6587 + $0x108] sm:$0xff]
        %v6622 = vld [vmem:[%s6587 + $0x110] sm:$0xff]
        %v6623 = vld [vmem:[%s6587 + $0x118] sm:$0xff]
        %v6624 = vld [vmem:[%s6587 + $0x120] sm:$0xff]
        %v6625 = vld [vmem:[%s6587 + $0x128] sm:$0xff]
        %v6626 = vld [vmem:[%s6587 + $0x130] sm:$0xff]
        %v6627 = vld [vmem:[%s6587 + $0x138] sm:$0xff]
        %v6628 = vld [vmem:[%s6587 + $0x140] sm:$0xff]
        %v6629 = vld [vmem:[%s6587 + $0x148] sm:$0xff]
        %v6630 = vld [vmem:[%s6587 + $0x150] sm:$0xff]
        %v6631 = vld [vmem:[%s6587 + $0x158] sm:$0xff]
        %v6632 = vld [vmem:[%s6587 + $0x160] sm:$0xff]
        %v6633 = vld [vmem:[%s6587 + $0x168] sm:$0xff]
        %v6634 = vld [vmem:[%s6587 + $0x170] sm:$0xff]
        %v6635 = vld [vmem:[%s6587 + $0x178] sm:$0xff]
        %v6636 = vld [vmem:[%s6587 + $0x180] sm:$0xff]
        %v6637 = vld [vmem:[%s6587 + $0x188] sm:$0xff]
        %v6638 = vld [vmem:[%s6587 + $0x190] sm:$0xff]
        %v6639 = vld [vmem:[%s6587 + $0x198] sm:$0xff]
        %v6640 = vld [vmem:[%s6587 + $0x1a0] sm:$0xff]
        %v6641 = vld [vmem:[%s6587 + $0x1a8] sm:$0xff]
        %v6642 = vld [vmem:[%s6587 + $0x1b0] sm:$0xff]
        %v6643 = vld [vmem:[%s6587 + $0x1b8] sm:$0xff]
        %v6644 = vrot.slane %v4162, 1
        %v6645 = vrot.slane %v4164, 2
        %v6646 = vor.u32 %v6644, %v6645
        %v6647 = vrot.slane %v4169, 1
        %v6648 = vrot.slane %v4171, 2
        %v6649 = vor.u32 %v6647, %v6648
        %v6650 = vrot.slane %v4176, 1
        %v6651 = vrot.slane %v4178, 2
        %v6652 = vor.u32 %v6650, %v6651
        %v6653 = vrot.slane %v4183, 1
        %v6654 = vrot.slane %v4185, 2
        %v6655 = vor.u32 %v6653, %v6654
        %v6715 = vunpack.c.l.b16 %v6588
        %v6716 = vunpack.c.h.b16 %v6588
        %v6717 = vunpack.c.l.b16 %v6589
        %v6718 = vunpack.c.h.b16 %v6589
        %v6719 = vunpack.c.l.b16 %v6590
        %v6720 = vunpack.c.h.b16 %v6590
        %v6721 = vunpack.c.l.b16 %v6591
        %v6722 = vunpack.c.h.b16 %v6591
        %v6723 = vunpack.c.l.b16 %v6592
        %v6724 = vunpack.c.h.b16 %v6592
        %v6725 = vunpack.c.l.b16 %v6593
        %v6726 = vunpack.c.h.b16 %v6593
        %v6727 = vunpack.c.l.b16 %v6594
        %v6728 = vunpack.c.h.b16 %v6594
        %v6729 = vunpack.c.l.b16 %v6595
        %v6730 = vunpack.c.h.b16 %v6595
        %v6731 = vunpack.c.l.b16 %v6596
        %v6732 = vunpack.c.h.b16 %v6596
        %v6733 = vunpack.c.l.b16 %v6597
        %v6734 = vunpack.c.h.b16 %v6597
        %v6735 = vunpack.c.l.b16 %v6598
        %v6736 = vunpack.c.h.b16 %v6598
        %v6737 = vunpack.c.l.b16 %v6599
        %v6738 = vunpack.c.h.b16 %v6599
        %v6739 = vunpack.c.l.b16 %v6600
        %v6740 = vunpack.c.h.b16 %v6600
        %v6741 = vunpack.c.l.b16 %v6601
        %v6742 = vunpack.c.h.b16 %v6601
        %v6743 = vunpack.c.l.b16 %v6602
        %v6744 = vunpack.c.h.b16 %v6602
        %v6745 = vunpack.c.l.b16 %v6603
        %v6746 = vunpack.c.h.b16 %v6603
        %v6747 = vunpack.c.l.b16 %v6604
        %v6748 = vunpack.c.h.b16 %v6604
        %v6749 = vunpack.c.l.b16 %v6605
        %v6750 = vunpack.c.h.b16 %v6605
        %v6751 = vunpack.c.l.b16 %v6606
        %v6752 = vunpack.c.h.b16 %v6606
        %v6753 = vunpack.c.l.b16 %v6607
        %v6754 = vunpack.c.h.b16 %v6607
        %v6755 = vunpack.c.l.b16 %v6608
        %v6756 = vunpack.c.h.b16 %v6608
        %v6757 = vunpack.c.l.b16 %v6609
        %v6758 = vunpack.c.h.b16 %v6609
        %v6759 = vunpack.c.l.b16 %v6610
        %v6760 = vunpack.c.h.b16 %v6610
        %v6761 = vunpack.c.l.b16 %v6611
        %v6762 = vunpack.c.h.b16 %v6611
        %v6763 = vunpack.c.l.b16 %v6612
        %v6764 = vunpack.c.h.b16 %v6612
        %v6765 = vunpack.c.l.b16 %v6613
        %v6766 = vunpack.c.h.b16 %v6613
        %v6767 = vunpack.c.l.b16 %v6614
        %v6768 = vunpack.c.h.b16 %v6614
        %v6769 = vunpack.c.l.b16 %v6615
        %v6770 = vunpack.c.h.b16 %v6615
        %v6771 = vunpack.c.l.b16 %v6616
        %v6772 = vunpack.c.h.b16 %v6616
        %v6773 = vunpack.c.l.b16 %v6617
        %v6774 = vunpack.c.h.b16 %v6617
        %v6775 = vunpack.c.l.b16 %v6618
        %v6776 = vunpack.c.h.b16 %v6618
        %v6777 = vunpack.c.l.b16 %v6619
        %v6778 = vunpack.c.h.b16 %v6619
        %v6779 = vunpack.c.l.b16 %v6620
        %v6780 = vunpack.c.h.b16 %v6620
        %v6781 = vunpack.c.l.b16 %v6621
        %v6782 = vunpack.c.h.b16 %v6621
        %v6783 = vunpack.c.l.b16 %v6622
        %v6784 = vunpack.c.h.b16 %v6622
        %v6785 = vunpack.c.l.b16 %v6623
        %v6786 = vunpack.c.h.b16 %v6623
        %v6787 = vunpack.c.l.b16 %v6624
        %v6788 = vunpack.c.h.b16 %v6624
        %v6789 = vunpack.c.l.b16 %v6625
        %v6790 = vunpack.c.h.b16 %v6625
        %v6791 = vunpack.c.l.b16 %v6626
        %v6792 = vunpack.c.h.b16 %v6626
        %v6793 = vunpack.c.l.b16 %v6627
        %v6794 = vunpack.c.h.b16 %v6627
        %v6795 = vunpack.c.l.b16 %v6628
        %v6796 = vunpack.c.h.b16 %v6628
        %v6797 = vunpack.c.l.b16 %v6629
        %v6798 = vunpack.c.h.b16 %v6629
        %v6799 = vunpack.c.l.b16 %v6630
        %v6800 = vunpack.c.h.b16 %v6630
        %v6801 = vunpack.c.l.b16 %v6631
        %v6802 = vunpack.c.h.b16 %v6631
        %v6803 = vunpack.c.l.b16 %v6632
        %v6804 = vunpack.c.h.b16 %v6632
        %v6805 = vunpack.c.l.b16 %v6633
        %v6806 = vunpack.c.h.b16 %v6633
        %v6807 = vunpack.c.l.b16 %v6634
        %v6808 = vunpack.c.h.b16 %v6634
        %v6809 = vunpack.c.l.b16 %v6635
        %v6810 = vunpack.c.h.b16 %v6635
        %v6811 = vunpack.c.l.b16 %v6636
        %v6812 = vunpack.c.h.b16 %v6636
        %v6813 = vunpack.c.l.b16 %v6637
        %v6814 = vunpack.c.h.b16 %v6637
        %v6815 = vunpack.c.l.b16 %v6638
        %v6816 = vunpack.c.h.b16 %v6638
        %v6817 = vunpack.c.l.b16 %v6639
        %v6818 = vunpack.c.h.b16 %v6639
        %v6819 = vunpack.c.l.b16 %v6640
        %v6820 = vunpack.c.h.b16 %v6640
        %v6821 = vunpack.c.l.b16 %v6641
        %v6822 = vunpack.c.h.b16 %v6641
        %v6823 = vunpack.c.l.b16 %v6642
        %v6824 = vunpack.c.h.b16 %v6642
        %v6825 = vunpack.c.l.b16 %v6643
        %v6826 = vunpack.c.h.b16 %v6643
        %v6827 = vpack.c.b16 %v6717, %v6715
        %v6828 = vpack.c.b16 %v6718, %v6716
        %v6829 = vpack.c.b16 %v6721, %v6719
        %v6830 = vpack.c.b16 %v6722, %v6720
        %v6831 = vpack.c.b16 %v6725, %v6723
        %v6832 = vpack.c.b16 %v6726, %v6724
        %v6833 = vpack.c.b16 %v6729, %v6727
        %v6834 = vpack.c.b16 %v6730, %v6728
        %v6835 = vpack.c.b16 %v6733, %v6731
        %v6836 = vpack.c.b16 %v6734, %v6732
        %v6837 = vpack.c.b16 %v6737, %v6735
        %v6838 = vpack.c.b16 %v6738, %v6736
        %v6839 = vpack.c.b16 %v6741, %v6739
        %v6840 = vpack.c.b16 %v6742, %v6740
        %v6841 = vpack.c.b16 %v6745, %v6743
        %v6842 = vpack.c.b16 %v6746, %v6744
        %v6843 = vpack.c.b16 %v6749, %v6747
        %v6844 = vpack.c.b16 %v6750, %v6748
        %v6845 = vpack.c.b16 %v6753, %v6751
        %v6846 = vpack.c.b16 %v6754, %v6752
        %v6847 = vpack.c.b16 %v6757, %v6755
        %v6848 = vpack.c.b16 %v6758, %v6756
        %v6849 = vpack.c.b16 %v6761, %v6759
        %v6850 = vpack.c.b16 %v6762, %v6760
        %v6851 = vpack.c.b16 %v6765, %v6763
        %v6852 = vpack.c.b16 %v6766, %v6764
        %v6853 = vpack.c.b16 %v6769, %v6767
        %v6854 = vpack.c.b16 %v6770, %v6768
        %v6855 = vpack.c.b16 %v6773, %v6771
        %v6856 = vpack.c.b16 %v6774, %v6772
        %v6857 = vpack.c.b16 %v6777, %v6775
        %v6858 = vpack.c.b16 %v6778, %v6776
        %v6859 = vpack.c.b16 %v6781, %v6779
        %v6860 = vpack.c.b16 %v6782, %v6780
        %v6861 = vpack.c.b16 %v6785, %v6783
        %v6862 = vpack.c.b16 %v6786, %v6784
        %v6863 = vpack.c.b16 %v6789, %v6787
        %v6864 = vpack.c.b16 %v6790, %v6788
        %v6865 = vpack.c.b16 %v6793, %v6791
        %v6866 = vpack.c.b16 %v6794, %v6792
        %v6867 = vpack.c.b16 %v6797, %v6795
        %v6868 = vpack.c.b16 %v6798, %v6796
        %v6869 = vpack.c.b16 %v6801, %v6799
        %v6870 = vpack.c.b16 %v6802, %v6800
        %v6871 = vpack.c.b16 %v6805, %v6803
        %v6872 = vpack.c.b16 %v6806, %v6804
        %v6873 = vpack.c.b16 %v6809, %v6807
        %v6874 = vpack.c.b16 %v6810, %v6808
        %v6875 = vpack.c.b16 %v6813, %v6811
        %v6876 = vpack.c.b16 %v6814, %v6812
        %v6877 = vpack.c.b16 %v6817, %v6815
        %v6878 = vpack.c.b16 %v6818, %v6816
        %v6879 = vpack.c.b16 %v6821, %v6819
        %v6880 = vpack.c.b16 %v6822, %v6820
        %v6881 = vpack.c.b16 %v6825, %v6823
        %v6882 = vpack.c.b16 %v6826, %v6824
        %v6940 = vsel %vm4472, %v6655, 0
        %6942 = vmatprep.subr.bf16.mxu0 %v6828
        %6943 = vmatpush1.bf16.msra.mxu0 %v6827
        %6944 = vmatprep.subr.bf16.mxu0 %v6830
        %6945 = vmatpush1.bf16.msra.mxu0 %v6829
        %6946 = vmatprep.subr.bf16.mxu0 %v6832
        %6947 = vmatpush1.bf16.msra.mxu0 %v6831
        %6948 = vmatprep.subr.bf16.mxu0 %v6834
        %6949 = vmatpush1.bf16.msra.mxu0 %v6833
        %6950 = vmatprep.subr.bf16.mxu0 %v6836
        %6951 = vmatpush1.bf16.msra.mxu0 %v6835
        %6952 = vmatprep.subr.bf16.mxu0 %v6838
        %6953 = vmatpush1.bf16.msra.mxu0 %v6837
        %6954 = vmatprep.subr.bf16.mxu0 %v6840
        %6955 = vmatpush1.bf16.msra.mxu0 %v6839
        %6956 = vmatprep.subr.bf16.mxu0 %v6842
        %6957 = vmatpush1.bf16.msra.mxu0 %v6841
        %6958 = vmatprep.subr.bf16.mxu0 %v6844
        %6959 = vmatpush1.bf16.msra.mxu0 %v6843
        %6960 = vmatprep.subr.bf16.mxu0 %v6846
        %6961 = vmatpush1.bf16.msra.mxu0 %v6845
        %6962 = vmatprep.subr.bf16.mxu0 %v6848
        %6963 = vmatpush1.bf16.msra.mxu0 %v6847
        %6964 = vmatprep.subr.bf16.mxu0 %v6850
        %6965 = vmatpush1.bf16.msra.mxu0 %v6849
        %6966 = vmatprep.subr.bf16.mxu0 %v6852
        %6967 = vmatpush1.bf16.msra.mxu0 %v6851
        %6968 = vmatprep.subr.bf16.mxu0 %v6854
        %6969 = vmatpush1.bf16.msra.mxu0 %v6853
        %6970 = vmatprep.subr.bf16.mxu0 %v6856
        %6971 = vmatpush1.bf16.msra.mxu0 %v6855
        %6972 = vmatprep.subr.bf16.mxu0 %v6858
        %6973 = vmatpush1.bf16.msra.mxu0 %v6857
        %6974 = vmatprep.mubr.bf16.mxu0 %v6649
        %6975 = vmatmul.mubr.bf16.gmra.mrb[0].mxu0 %v6646
        %v6976 = vpop.f32.mrb[0].mxu0
        %v6977 = vadd.f32 0.0, %v6976
        %v6978 = vpop.f32.mrb[0].mxu0
        %v6979 = vadd.f32 0.0, %v6978
        %v6980 = vpop.f32.mrb[0].mxu0
        %v6981 = vadd.f32 0.0, %v6980
        %v6982 = vpop.f32.mrb[0].mxu0
        %v6983 = vadd.f32 0.0, %v6982
        %6984 = vdwg.mxu0
        %6985 = vmatprep.subr.bf16.mxu0 %v6860
        %6986 = vmatpush1.bf16.msra.mxu0 %v6859
        %6987 = vmatprep.subr.bf16.mxu0 %v6862
        %6988 = vmatpush1.bf16.msra.mxu0 %v6861
        %6989 = vmatprep.subr.bf16.mxu0 %v6864
        %6990 = vmatpush1.bf16.msra.mxu0 %v6863
        %6991 = vmatprep.subr.bf16.mxu0 %v6866
        %6992 = vmatpush1.bf16.msra.mxu0 %v6865
        %6993 = vmatprep.subr.bf16.mxu0 %v6868
        %6994 = vmatpush1.bf16.msra.mxu0 %v6867
        %6995 = vmatprep.subr.bf16.mxu0 %v6870
        %6996 = vmatpush1.bf16.msra.mxu0 %v6869
        %6997 = vmatprep.subr.bf16.mxu0 %v6872
        %6998 = vmatpush1.bf16.msra.mxu0 %v6871
        %6999 = vmatprep.subr.bf16.mxu0 %v6874
        %7000 = vmatpush1.bf16.msra.mxu0 %v6873
        %7001 = vmatprep.subr.bf16.mxu0 %v6876
        %7002 = vmatpush1.bf16.msra.mxu0 %v6875
        %7003 = vmatprep.subr.bf16.mxu0 %v6878
        %7004 = vmatpush1.bf16.msra.mxu0 %v6877
        %7005 = vmatprep.subr.bf16.mxu0 %v6880
        %7006 = vmatpush1.bf16.msra.mxu0 %v6879
        %7007 = vmatprep.subr.bf16.mxu0 %v6882
        %7008 = vmatpush1.bf16.msra.mxu0 %v6881
        %7009 = vmatprep.subr.bf16.mxu0 0
        %7010 = vmatpush1.bf16.msra.mxu0 0
        %7011 = vmatprep.subr.bf16.mxu0 0
        %7012 = vmatpush1.bf16.msra.mxu0 0
        %7013 = vmatprep.subr.bf16.mxu0 0
        %7014 = vmatpush1.bf16.msra.mxu0 0
        %7015 = vmatprep.subr.bf16.mxu0 0
        %7016 = vmatpush1.bf16.msra.mxu0 0
        %7017 = vmatprep.mubr.bf16.mxu0 %v6940
        %7018 = vmatmul.mubr.bf16.gmra.mrb[0].mxu0 %v6652
        %v7019 = vpop.f32.mrb[0].mxu0
        %v7020 = vadd.f32 %v6977, %v7019
        %v7021 = vpop.f32.mrb[0].mxu0
        %v7022 = vadd.f32 %v6979, %v7021
        %v7023 = vpop.f32.mrb[0].mxu0
        %v7024 = vadd.f32 %v6981, %v7023
        %v7025 = vpop.f32.mrb[0].mxu0
        %v7026 = vadd.f32 %v6983, %v7025
        %7027 = vdwg.mxu0
        %s7028 = scalar_lea.vmem %s5, 1344
        %v7029 = vld [vmem:[%s7028] sm:$0xff]
        %v7030 = vld [vmem:[%s7028 + $0x8] sm:$0xff]
        %v7031 = vld [vmem:[%s7028 + $0x10] sm:$0xff]
        %v7032 = vld [vmem:[%s7028 + $0x18] sm:$0xff]
        %v7033 = vld [vmem:[%s7028 + $0x20] sm:$0xff]
        %v7034 = vld [vmem:[%s7028 + $0x28] sm:$0xff]
        %v7035 = vld [vmem:[%s7028 + $0x30] sm:$0xff]
        %v7036 = vld [vmem:[%s7028 + $0x38] sm:$0xff]
        %v7037 = vld [vmem:[%s7028 + $0x40] sm:$0xff]
        %v7038 = vld [vmem:[%s7028 + $0x48] sm:$0xff]
        %v7039 = vld [vmem:[%s7028 + $0x50] sm:$0xff]
        %v7040 = vld [vmem:[%s7028 + $0x58] sm:$0xff]
        %v7041 = vld [vmem:[%s7028 + $0x60] sm:$0xff]
        %v7042 = vld [vmem:[%s7028 + $0x68] sm:$0xff]
        %v7043 = vld [vmem:[%s7028 + $0x70] sm:$0xff]
        %v7044 = vld [vmem:[%s7028 + $0x78] sm:$0xff]
        %v7045 = vld [vmem:[%s7028 + $0x80] sm:$0xff]
        %v7046 = vld [vmem:[%s7028 + $0x88] sm:$0xff]
        %v7047 = vld [vmem:[%s7028 + $0x90] sm:$0xff]
        %v7048 = vld [vmem:[%s7028 + $0x98] sm:$0xff]
        %v7049 = vld [vmem:[%s7028 + $0xa0] sm:$0xff]
        %v7050 = vld [vmem:[%s7028 + $0xa8] sm:$0xff]
        %v7051 = vld [vmem:[%s7028 + $0xb0] sm:$0xff]
        %v7052 = vld [vmem:[%s7028 + $0xb8] sm:$0xff]
        %v7053 = vld [vmem:[%s7028 + $0xc0] sm:$0xff]
        %v7054 = vld [vmem:[%s7028 + $0xc8] sm:$0xff]
        %v7055 = vld [vmem:[%s7028 + $0xd0] sm:$0xff]
        %v7056 = vld [vmem:[%s7028 + $0xd8] sm:$0xff]
        %v7057 = vld [vmem:[%s7028 + $0xe0] sm:$0xff]
        %v7058 = vld [vmem:[%s7028 + $0xe8] sm:$0xff]
        %v7059 = vld [vmem:[%s7028 + $0xf0] sm:$0xff]
        %v7060 = vld [vmem:[%s7028 + $0xf8] sm:$0xff]
        %v7061 = vld [vmem:[%s7028 + $0x100] sm:$0xff]
        %v7062 = vld [vmem:[%s7028 + $0x108] sm:$0xff]
        %v7063 = vld [vmem:[%s7028 + $0x110] sm:$0xff]
        %v7064 = vld [vmem:[%s7028 + $0x118] sm:$0xff]
        %v7065 = vld [vmem:[%s7028 + $0x120] sm:$0xff]
        %v7066 = vld [vmem:[%s7028 + $0x128] sm:$0xff]
        %v7067 = vld [vmem:[%s7028 + $0x130] sm:$0xff]
        %v7068 = vld [vmem:[%s7028 + $0x138] sm:$0xff]
        %v7069 = vld [vmem:[%s7028 + $0x140] sm:$0xff]
        %v7070 = vld [vmem:[%s7028 + $0x148] sm:$0xff]
        %v7071 = vld [vmem:[%s7028 + $0x150] sm:$0xff]
        %v7072 = vld [vmem:[%s7028 + $0x158] sm:$0xff]
        %v7073 = vld [vmem:[%s7028 + $0x160] sm:$0xff]
        %v7074 = vld [vmem:[%s7028 + $0x168] sm:$0xff]
        %v7075 = vld [vmem:[%s7028 + $0x170] sm:$0xff]
        %v7076 = vld [vmem:[%s7028 + $0x178] sm:$0xff]
        %v7077 = vld [vmem:[%s7028 + $0x180] sm:$0xff]
        %v7078 = vld [vmem:[%s7028 + $0x188] sm:$0xff]
        %v7079 = vld [vmem:[%s7028 + $0x190] sm:$0xff]
        %v7080 = vld [vmem:[%s7028 + $0x198] sm:$0xff]
        %v7081 = vld [vmem:[%s7028 + $0x1a0] sm:$0xff]
        %v7082 = vld [vmem:[%s7028 + $0x1a8] sm:$0xff]
        %v7083 = vld [vmem:[%s7028 + $0x1b0] sm:$0xff]
        %v7084 = vld [vmem:[%s7028 + $0x1b8] sm:$0xff]
        %v7141 = vunpack.c.l.b16 %v7029
        %v7142 = vunpack.c.h.b16 %v7029
        %v7143 = vunpack.c.l.b16 %v7030
        %v7144 = vunpack.c.h.b16 %v7030
        %v7145 = vunpack.c.l.b16 %v7031
        %v7146 = vunpack.c.h.b16 %v7031
        %v7147 = vunpack.c.l.b16 %v7032
        %v7148 = vunpack.c.h.b16 %v7032
        %v7149 = vunpack.c.l.b16 %v7033
        %v7150 = vunpack.c.h.b16 %v7033
        %v7151 = vunpack.c.l.b16 %v7034
        %v7152 = vunpack.c.h.b16 %v7034
        %v7153 = vunpack.c.l.b16 %v7035
        %v7154 = vunpack.c.h.b16 %v7035
        %v7155 = vunpack.c.l.b16 %v7036
        %v7156 = vunpack.c.h.b16 %v7036
        %v7157 = vunpack.c.l.b16 %v7037
        %v7158 = vunpack.c.h.b16 %v7037
        %v7159 = vunpack.c.l.b16 %v7038
        %v7160 = vunpack.c.h.b16 %v7038
        %v7161 = vunpack.c.l.b16 %v7039
        %v7162 = vunpack.c.h.b16 %v7039
        %v7163 = vunpack.c.l.b16 %v7040
        %v7164 = vunpack.c.h.b16 %v7040
        %v7165 = vunpack.c.l.b16 %v7041
        %v7166 = vunpack.c.h.b16 %v7041
        %v7167 = vunpack.c.l.b16 %v7042
        %v7168 = vunpack.c.h.b16 %v7042
        %v7169 = vunpack.c.l.b16 %v7043
        %v7170 = vunpack.c.h.b16 %v7043
        %v7171 = vunpack.c.l.b16 %v7044
        %v7172 = vunpack.c.h.b16 %v7044
        %v7173 = vunpack.c.l.b16 %v7045
        %v7174 = vunpack.c.h.b16 %v7045
        %v7175 = vunpack.c.l.b16 %v7046
        %v7176 = vunpack.c.h.b16 %v7046
        %v7177 = vunpack.c.l.b16 %v7047
        %v7178 = vunpack.c.h.b16 %v7047
        %v7179 = vunpack.c.l.b16 %v7048
        %v7180 = vunpack.c.h.b16 %v7048
        %v7181 = vunpack.c.l.b16 %v7049
        %v7182 = vunpack.c.h.b16 %v7049
        %v7183 = vunpack.c.l.b16 %v7050
        %v7184 = vunpack.c.h.b16 %v7050
        %v7185 = vunpack.c.l.b16 %v7051
        %v7186 = vunpack.c.h.b16 %v7051
        %v7187 = vunpack.c.l.b16 %v7052
        %v7188 = vunpack.c.h.b16 %v7052
        %v7189 = vunpack.c.l.b16 %v7053
        %v7190 = vunpack.c.h.b16 %v7053
        %v7191 = vunpack.c.l.b16 %v7054
        %v7192 = vunpack.c.h.b16 %v7054
        %v7193 = vunpack.c.l.b16 %v7055
        %v7194 = vunpack.c.h.b16 %v7055
        %v7195 = vunpack.c.l.b16 %v7056
        %v7196 = vunpack.c.h.b16 %v7056
        %v7197 = vunpack.c.l.b16 %v7057
        %v7198 = vunpack.c.h.b16 %v7057
        %v7199 = vunpack.c.l.b16 %v7058
        %v7200 = vunpack.c.h.b16 %v7058
        %v7201 = vunpack.c.l.b16 %v7059
        %v7202 = vunpack.c.h.b16 %v7059
        %v7203 = vunpack.c.l.b16 %v7060
        %v7204 = vunpack.c.h.b16 %v7060
        %v7205 = vunpack.c.l.b16 %v7061
        %v7206 = vunpack.c.h.b16 %v7061
        %v7207 = vunpack.c.l.b16 %v7062
        %v7208 = vunpack.c.h.b16 %v7062
        %v7209 = vunpack.c.l.b16 %v7063
        %v7210 = vunpack.c.h.b16 %v7063
        %v7211 = vunpack.c.l.b16 %v7064
        %v7212 = vunpack.c.h.b16 %v7064
        %v7213 = vunpack.c.l.b16 %v7065
        %v7214 = vunpack.c.h.b16 %v7065
        %v7215 = vunpack.c.l.b16 %v7066
        %v7216 = vunpack.c.h.b16 %v7066
        %v7217 = vunpack.c.l.b16 %v7067
        %v7218 = vunpack.c.h.b16 %v7067
        %v7219 = vunpack.c.l.b16 %v7068
        %v7220 = vunpack.c.h.b16 %v7068
        %v7221 = vunpack.c.l.b16 %v7069
        %v7222 = vunpack.c.h.b16 %v7069
        %v7223 = vunpack.c.l.b16 %v7070
        %v7224 = vunpack.c.h.b16 %v7070
        %v7225 = vunpack.c.l.b16 %v7071
        %v7226 = vunpack.c.h.b16 %v7071
        %v7227 = vunpack.c.l.b16 %v7072
        %v7228 = vunpack.c.h.b16 %v7072
        %v7229 = vunpack.c.l.b16 %v7073
        %v7230 = vunpack.c.h.b16 %v7073
        %v7231 = vunpack.c.l.b16 %v7074
        %v7232 = vunpack.c.h.b16 %v7074
        %v7233 = vunpack.c.l.b16 %v7075
        %v7234 = vunpack.c.h.b16 %v7075
        %v7235 = vunpack.c.l.b16 %v7076
        %v7236 = vunpack.c.h.b16 %v7076
        %v7237 = vunpack.c.l.b16 %v7077
        %v7238 = vunpack.c.h.b16 %v7077
        %v7239 = vunpack.c.l.b16 %v7078
        %v7240 = vunpack.c.h.b16 %v7078
        %v7241 = vunpack.c.l.b16 %v7079
        %v7242 = vunpack.c.h.b16 %v7079
        %v7243 = vunpack.c.l.b16 %v7080
        %v7244 = vunpack.c.h.b16 %v7080
        %v7245 = vunpack.c.l.b16 %v7081
        %v7246 = vunpack.c.h.b16 %v7081
        %v7247 = vunpack.c.l.b16 %v7082
        %v7248 = vunpack.c.h.b16 %v7082
        %v7249 = vunpack.c.l.b16 %v7083
        %v7250 = vunpack.c.h.b16 %v7083
        %v7251 = vunpack.c.l.b16 %v7084
        %v7252 = vunpack.c.h.b16 %v7084
        %v7253 = vpack.c.b16 %v7143, %v7141
        %v7254 = vpack.c.b16 %v7144, %v7142
        %v7255 = vpack.c.b16 %v7147, %v7145
        %v7256 = vpack.c.b16 %v7148, %v7146
        %v7257 = vpack.c.b16 %v7151, %v7149
        %v7258 = vpack.c.b16 %v7152, %v7150
        %v7259 = vpack.c.b16 %v7155, %v7153
        %v7260 = vpack.c.b16 %v7156, %v7154
        %v7261 = vpack.c.b16 %v7159, %v7157
        %v7262 = vpack.c.b16 %v7160, %v7158
        %v7263 = vpack.c.b16 %v7163, %v7161
        %v7264 = vpack.c.b16 %v7164, %v7162
        %v7265 = vpack.c.b16 %v7167, %v7165
        %v7266 = vpack.c.b16 %v7168, %v7166
        %v7267 = vpack.c.b16 %v7171, %v7169
        %v7268 = vpack.c.b16 %v7172, %v7170
        %v7269 = vpack.c.b16 %v7175, %v7173
        %v7270 = vpack.c.b16 %v7176, %v7174
        %v7271 = vpack.c.b16 %v7179, %v7177
        %v7272 = vpack.c.b16 %v7180, %v7178
        %v7273 = vpack.c.b16 %v7183, %v7181
        %v7274 = vpack.c.b16 %v7184, %v7182
        %v7275 = vpack.c.b16 %v7187, %v7185
        %v7276 = vpack.c.b16 %v7188, %v7186
        %v7277 = vpack.c.b16 %v7191, %v7189
        %v7278 = vpack.c.b16 %v7192, %v7190
        %v7279 = vpack.c.b16 %v7195, %v7193
        %v7280 = vpack.c.b16 %v7196, %v7194
        %v7281 = vpack.c.b16 %v7199, %v7197
        %v7282 = vpack.c.b16 %v7200, %v7198
        %v7283 = vpack.c.b16 %v7203, %v7201
        %v7284 = vpack.c.b16 %v7204, %v7202
        %v7285 = vpack.c.b16 %v7207, %v7205
        %v7286 = vpack.c.b16 %v7208, %v7206
        %v7287 = vpack.c.b16 %v7211, %v7209
        %v7288 = vpack.c.b16 %v7212, %v7210
        %v7289 = vpack.c.b16 %v7215, %v7213
        %v7290 = vpack.c.b16 %v7216, %v7214
        %v7291 = vpack.c.b16 %v7219, %v7217
        %v7292 = vpack.c.b16 %v7220, %v7218
        %v7293 = vpack.c.b16 %v7223, %v7221
        %v7294 = vpack.c.b16 %v7224, %v7222
        %v7295 = vpack.c.b16 %v7227, %v7225
        %v7296 = vpack.c.b16 %v7228, %v7226
        %v7297 = vpack.c.b16 %v7231, %v7229
        %v7298 = vpack.c.b16 %v7232, %v7230
        %v7299 = vpack.c.b16 %v7235, %v7233
        %v7300 = vpack.c.b16 %v7236, %v7234
        %v7301 = vpack.c.b16 %v7239, %v7237
        %v7302 = vpack.c.b16 %v7240, %v7238
        %v7303 = vpack.c.b16 %v7243, %v7241
        %v7304 = vpack.c.b16 %v7244, %v7242
        %v7305 = vpack.c.b16 %v7247, %v7245
        %v7306 = vpack.c.b16 %v7248, %v7246
        %v7307 = vpack.c.b16 %v7251, %v7249
        %v7308 = vpack.c.b16 %v7252, %v7250
        %7365 = vmatprep.subr.bf16.mxu0 %v7254
        %7366 = vmatpush1.bf16.msra.mxu0 %v7253
        %7367 = vmatprep.subr.bf16.mxu0 %v7256
        %7368 = vmatpush1.bf16.msra.mxu0 %v7255
        %7369 = vmatprep.subr.bf16.mxu0 %v7258
        %7370 = vmatpush1.bf16.msra.mxu0 %v7257
        %7371 = vmatprep.subr.bf16.mxu0 %v7260
        %7372 = vmatpush1.bf16.msra.mxu0 %v7259
        %7373 = vmatprep.subr.bf16.mxu0 %v7262
        %7374 = vmatpush1.bf16.msra.mxu0 %v7261
        %7375 = vmatprep.subr.bf16.mxu0 %v7264
        %7376 = vmatpush1.bf16.msra.mxu0 %v7263
        %7377 = vmatprep.subr.bf16.mxu0 %v7266
        %7378 = vmatpush1.bf16.msra.mxu0 %v7265
        %7379 = vmatprep.subr.bf16.mxu0 %v7268
        %7380 = vmatpush1.bf16.msra.mxu0 %v7267
        %7381 = vmatprep.subr.bf16.mxu0 %v7270
        %7382 = vmatpush1.bf16.msra.mxu0 %v7269
        %7383 = vmatprep.subr.bf16.mxu0 %v7272
        %7384 = vmatpush1.bf16.msra.mxu0 %v7271
        %7385 = vmatprep.subr.bf16.mxu0 %v7274
        %7386 = vmatpush1.bf16.msra.mxu0 %v7273
        %7387 = vmatprep.subr.bf16.mxu0 %v7276
        %7388 = vmatpush1.bf16.msra.mxu0 %v7275
        %7389 = vmatprep.subr.bf16.mxu0 %v7278
        %7390 = vmatpush1.bf16.msra.mxu0 %v7277
        %7391 = vmatprep.subr.bf16.mxu0 %v7280
        %7392 = vmatpush1.bf16.msra.mxu0 %v7279
        %7393 = vmatprep.subr.bf16.mxu0 %v7282
        %7394 = vmatpush1.bf16.msra.mxu0 %v7281
        %7395 = vmatprep.subr.bf16.mxu0 %v7284
        %7396 = vmatpush1.bf16.msra.mxu0 %v7283
        %7397 = vmatprep.mubr.bf16.mxu0 %v6649
        %7398 = vmatmul.mubr.bf16.gmra.mrb[0].mxu0 %v6646
        %v7399 = vpop.f32.mrb[0].mxu0
        %v7400 = vadd.f32 0.0, %v7399
        %v7401 = vpop.f32.mrb[0].mxu0
        %v7402 = vadd.f32 0.0, %v7401
        %v7403 = vpop.f32.mrb[0].mxu0
        %v7404 = vadd.f32 0.0, %v7403
        %v7405 = vpop.f32.mrb[0].mxu0
        %v7406 = vadd.f32 0.0, %v7405
        %7407 = vdwg.mxu0
        %7408 = vmatprep.subr.bf16.mxu0 %v7286
        %7409 = vmatpush1.bf16.msra.mxu0 %v7285
        %7410 = vmatprep.subr.bf16.mxu0 %v7288
        %7411 = vmatpush1.bf16.msra.mxu0 %v7287
        %7412 = vmatprep.subr.bf16.mxu0 %v7290
        %7413 = vmatpush1.bf16.msra.mxu0 %v7289
        %7414 = vmatprep.subr.bf16.mxu0 %v7292
        %7415 = vmatpush1.bf16.msra.mxu0 %v7291
        %7416 = vmatprep.subr.bf16.mxu0 %v7294
        %7417 = vmatpush1.bf16.msra.mxu0 %v7293
        %7418 = vmatprep.subr.bf16.mxu0 %v7296
        %7419 = vmatpush1.bf16.msra.mxu0 %v7295
        %7420 = vmatprep.subr.bf16.mxu0 %v7298
        %7421 = vmatpush1.bf16.msra.mxu0 %v7297
        %7422 = vmatprep.subr.bf16.mxu0 %v7300
        %7423 = vmatpush1.bf16.msra.mxu0 %v7299
        %7424 = vmatprep.subr.bf16.mxu0 %v7302
        %7425 = vmatpush1.bf16.msra.mxu0 %v7301
        %7426 = vmatprep.subr.bf16.mxu0 %v7304
        %7427 = vmatpush1.bf16.msra.mxu0 %v7303
        %7428 = vmatprep.subr.bf16.mxu0 %v7306
        %7429 = vmatpush1.bf16.msra.mxu0 %v7305
        %7430 = vmatprep.subr.bf16.mxu0 %v7308
        %7431 = vmatpush1.bf16.msra.mxu0 %v7307
        %7432 = vmatprep.subr.bf16.mxu0 0
        %7433 = vmatpush1.bf16.msra.mxu0 0
        %7434 = vmatprep.subr.bf16.mxu0 0
        %7435 = vmatpush1.bf16.msra.mxu0 0
        %7436 = vmatprep.subr.bf16.mxu0 0
        %7437 = vmatpush1.bf16.msra.mxu0 0
        %7438 = vmatprep.subr.bf16.mxu0 0
        %7439 = vmatpush1.bf16.msra.mxu0 0
        %7440 = vmatprep.mubr.bf16.mxu0 %v6940
        %7441 = vmatmul.mubr.bf16.gmra.mrb[0].mxu0 %v6652
        %v7442 = vpop.f32.mrb[0].mxu0
        %v7443 = vadd.f32 %v7400, %v7442
        %v7444 = vpop.f32.mrb[0].mxu0
        %v7445 = vadd.f32 %v7402, %v7444
        %v7446 = vpop.f32.mrb[0].mxu0
        %v7447 = vadd.f32 %v7404, %v7446
        %v7448 = vpop.f32.mrb[0].mxu0
        %v7449 = vadd.f32 %v7406, %v7448
        %7450 = vdwg.mxu0
        %v7451 = vadd.f32 %v6579, %v7020
        %v7452 = vadd.f32 %v6580, %v7022
        %v7453 = vadd.f32 %v6581, %v7024
        %v7454 = vadd.f32 %v6582, %v7026
        %v7455 = vadd.f32 %v6583, %v7443
        %v7456 = vadd.f32 %v6584, %v7445
        %v7457 = vadd.f32 %v6585, %v7447
        %v7458 = vadd.f32 %v6586, %v7449
        %s7459 = scalar_lea.vmem %s4, 1792
        %v7460 = vld [vmem:[%s7459] sm:$0xff]
        %v7461 = vld [vmem:[%s7459 + $0x8] sm:$0xff]
        %v7462 = vld [vmem:[%s7459 + $0x10] sm:$0xff]
        %v7463 = vld [vmem:[%s7459 + $0x18] sm:$0xff]
        %v7464 = vld [vmem:[%s7459 + $0x20] sm:$0xff]
        %v7465 = vld [vmem:[%s7459 + $0x28] sm:$0xff]
        %v7466 = vld [vmem:[%s7459 + $0x30] sm:$0xff]
        %v7467 = vld [vmem:[%s7459 + $0x38] sm:$0xff]
        %v7468 = vld [vmem:[%s7459 + $0x40] sm:$0xff]
        %v7469 = vld [vmem:[%s7459 + $0x48] sm:$0xff]
        %v7470 = vld [vmem:[%s7459 + $0x50] sm:$0xff]
        %v7471 = vld [vmem:[%s7459 + $0x58] sm:$0xff]
        %v7472 = vld [vmem:[%s7459 + $0x60] sm:$0xff]
        %v7473 = vld [vmem:[%s7459 + $0x68] sm:$0xff]
        %v7474 = vld [vmem:[%s7459 + $0x70] sm:$0xff]
        %v7475 = vld [vmem:[%s7459 + $0x78] sm:$0xff]
        %v7476 = vld [vmem:[%s7459 + $0x80] sm:$0xff]
        %v7477 = vld [vmem:[%s7459 + $0x88] sm:$0xff]
        %v7478 = vld [vmem:[%s7459 + $0x90] sm:$0xff]
        %v7479 = vld [vmem:[%s7459 + $0x98] sm:$0xff]
        %v7480 = vld [vmem:[%s7459 + $0xa0] sm:$0xff]
        %v7481 = vld [vmem:[%s7459 + $0xa8] sm:$0xff]
        %v7482 = vld [vmem:[%s7459 + $0xb0] sm:$0xff]
        %v7483 = vld [vmem:[%s7459 + $0xb8] sm:$0xff]
        %v7484 = vld [vmem:[%s7459 + $0xc0] sm:$0xff]
        %v7485 = vld [vmem:[%s7459 + $0xc8] sm:$0xff]
        %v7486 = vld [vmem:[%s7459 + $0xd0] sm:$0xff]
        %v7487 = vld [vmem:[%s7459 + $0xd8] sm:$0xff]
        %v7488 = vld [vmem:[%s7459 + $0xe0] sm:$0xff]
        %v7489 = vld [vmem:[%s7459 + $0xe8] sm:$0xff]
        %v7490 = vld [vmem:[%s7459 + $0xf0] sm:$0xff]
        %v7491 = vld [vmem:[%s7459 + $0xf8] sm:$0xff]
        %v7492 = vld [vmem:[%s7459 + $0x100] sm:$0xff]
        %v7493 = vld [vmem:[%s7459 + $0x108] sm:$0xff]
        %v7494 = vld [vmem:[%s7459 + $0x110] sm:$0xff]
        %v7495 = vld [vmem:[%s7459 + $0x118] sm:$0xff]
        %v7496 = vld [vmem:[%s7459 + $0x120] sm:$0xff]
        %v7497 = vld [vmem:[%s7459 + $0x128] sm:$0xff]
        %v7498 = vld [vmem:[%s7459 + $0x130] sm:$0xff]
        %v7499 = vld [vmem:[%s7459 + $0x138] sm:$0xff]
        %v7500 = vld [vmem:[%s7459 + $0x140] sm:$0xff]
        %v7501 = vld [vmem:[%s7459 + $0x148] sm:$0xff]
        %v7502 = vld [vmem:[%s7459 + $0x150] sm:$0xff]
        %v7503 = vld [vmem:[%s7459 + $0x158] sm:$0xff]
        %v7504 = vld [vmem:[%s7459 + $0x160] sm:$0xff]
        %v7505 = vld [vmem:[%s7459 + $0x168] sm:$0xff]
        %v7506 = vld [vmem:[%s7459 + $0x170] sm:$0xff]
        %v7507 = vld [vmem:[%s7459 + $0x178] sm:$0xff]
        %v7508 = vld [vmem:[%s7459 + $0x180] sm:$0xff]
        %v7509 = vld [vmem:[%s7459 + $0x188] sm:$0xff]
        %v7510 = vld [vmem:[%s7459 + $0x190] sm:$0xff]
        %v7511 = vld [vmem:[%s7459 + $0x198] sm:$0xff]
        %v7512 = vld [vmem:[%s7459 + $0x1a0] sm:$0xff]
        %v7513 = vld [vmem:[%s7459 + $0x1a8] sm:$0xff]
        %v7514 = vld [vmem:[%s7459 + $0x1b0] sm:$0xff]
        %v7515 = vld [vmem:[%s7459 + $0x1b8] sm:$0xff]
        %v7516 = vrot.slane %v3988, 2
        %v7517 = vrot.slane %v3989, 2
        %v7518 = vrot.slane %v3990, 2
        %v7519 = vrot.slane %v3991, 2
        %v7579 = vunpack.c.l.b16 %v7460
        %v7580 = vunpack.c.h.b16 %v7460
        %v7581 = vunpack.c.l.b16 %v7461
        %v7582 = vunpack.c.h.b16 %v7461
        %v7583 = vunpack.c.l.b16 %v7462
        %v7584 = vunpack.c.h.b16 %v7462
        %v7585 = vunpack.c.l.b16 %v7463
        %v7586 = vunpack.c.h.b16 %v7463
        %v7587 = vunpack.c.l.b16 %v7464
        %v7588 = vunpack.c.h.b16 %v7464
        %v7589 = vunpack.c.l.b16 %v7465
        %v7590 = vunpack.c.h.b16 %v7465
        %v7591 = vunpack.c.l.b16 %v7466
        %v7592 = vunpack.c.h.b16 %v7466
        %v7593 = vunpack.c.l.b16 %v7467
        %v7594 = vunpack.c.h.b16 %v7467
        %v7595 = vunpack.c.l.b16 %v7468
        %v7596 = vunpack.c.h.b16 %v7468
        %v7597 = vunpack.c.l.b16 %v7469
        %v7598 = vunpack.c.h.b16 %v7469
        %v7599 = vunpack.c.l.b16 %v7470
        %v7600 = vunpack.c.h.b16 %v7470
        %v7601 = vunpack.c.l.b16 %v7471
        %v7602 = vunpack.c.h.b16 %v7471
        %v7603 = vunpack.c.l.b16 %v7472
        %v7604 = vunpack.c.h.b16 %v7472
        %v7605 = vunpack.c.l.b16 %v7473
        %v7606 = vunpack.c.h.b16 %v7473
        %v7607 = vunpack.c.l.b16 %v7474
        %v7608 = vunpack.c.h.b16 %v7474
        %v7609 = vunpack.c.l.b16 %v7475
        %v7610 = vunpack.c.h.b16 %v7475
        %v7611 = vunpack.c.l.b16 %v7476
        %v7612 = vunpack.c.h.b16 %v7476
        %v7613 = vunpack.c.l.b16 %v7477
        %v7614 = vunpack.c.h.b16 %v7477
        %v7615 = vunpack.c.l.b16 %v7478
        %v7616 = vunpack.c.h.b16 %v7478
        %v7617 = vunpack.c.l.b16 %v7479
        %v7618 = vunpack.c.h.b16 %v7479
        %v7619 = vunpack.c.l.b16 %v7480
        %v7620 = vunpack.c.h.b16 %v7480
        %v7621 = vunpack.c.l.b16 %v7481
        %v7622 = vunpack.c.h.b16 %v7481
        %v7623 = vunpack.c.l.b16 %v7482
        %v7624 = vunpack.c.h.b16 %v7482
        %v7625 = vunpack.c.l.b16 %v7483
        %v7626 = vunpack.c.h.b16 %v7483
        %v7627 = vunpack.c.l.b16 %v7484
        %v7628 = vunpack.c.h.b16 %v7484
        %v7629 = vunpack.c.l.b16 %v7485
        %v7630 = vunpack.c.h.b16 %v7485
        %v7631 = vunpack.c.l.b16 %v7486
        %v7632 = vunpack.c.h.b16 %v7486
        %v7633 = vunpack.c.l.b16 %v7487
        %v7634 = vunpack.c.h.b16 %v7487
        %v7635 = vunpack.c.l.b16 %v7488
        %v7636 = vunpack.c.h.b16 %v7488
        %v7637 = vunpack.c.l.b16 %v7489
        %v7638 = vunpack.c.h.b16 %v7489
        %v7639 = vunpack.c.l.b16 %v7490
        %v7640 = vunpack.c.h.b16 %v7490
        %v7641 = vunpack.c.l.b16 %v7491
        %v7642 = vunpack.c.h.b16 %v7491
        %v7643 = vunpack.c.l.b16 %v7492
        %v7644 = vunpack.c.h.b16 %v7492
        %v7645 = vunpack.c.l.b16 %v7493
        %v7646 = vunpack.c.h.b16 %v7493
        %v7647 = vunpack.c.l.b16 %v7494
        %v7648 = vunpack.c.h.b16 %v7494
        %v7649 = vunpack.c.l.b16 %v7495
        %v7650 = vunpack.c.h.b16 %v7495
        %v7651 = vunpack.c.l.b16 %v7496
        %v7652 = vunpack.c.h.b16 %v7496
        %v7653 = vunpack.c.l.b16 %v7497
        %v7654 = vunpack.c.h.b16 %v7497
        %v7655 = vunpack.c.l.b16 %v7498
        %v7656 = vunpack.c.h.b16 %v7498
        %v7657 = vunpack.c.l.b16 %v7499
        %v7658 = vunpack.c.h.b16 %v7499
        %v7659 = vunpack.c.l.b16 %v7500
        %v7660 = vunpack.c.h.b16 %v7500
        %v7661 = vunpack.c.l.b16 %v7501
        %v7662 = vunpack.c.h.b16 %v7501
        %v7663 = vunpack.c.l.b16 %v7502
        %v7664 = vunpack.c.h.b16 %v7502
        %v7665 = vunpack.c.l.b16 %v7503
        %v7666 = vunpack.c.h.b16 %v7503
        %v7667 = vunpack.c.l.b16 %v7504
        %v7668 = vunpack.c.h.b16 %v7504
        %v7669 = vunpack.c.l.b16 %v7505
        %v7670 = vunpack.c.h.b16 %v7505
        %v7671 = vunpack.c.l.b16 %v7506
        %v7672 = vunpack.c.h.b16 %v7506
        %v7673 = vunpack.c.l.b16 %v7507
        %v7674 = vunpack.c.h.b16 %v7507
        %v7675 = vunpack.c.l.b16 %v7508
        %v7676 = vunpack.c.h.b16 %v7508
        %v7677 = vunpack.c.l.b16 %v7509
        %v7678 = vunpack.c.h.b16 %v7509
        %v7679 = vunpack.c.l.b16 %v7510
        %v7680 = vunpack.c.h.b16 %v7510
        %v7681 = vunpack.c.l.b16 %v7511
        %v7682 = vunpack.c.h.b16 %v7511
        %v7683 = vunpack.c.l.b16 %v7512
        %v7684 = vunpack.c.h.b16 %v7512
        %v7685 = vunpack.c.l.b16 %v7513
        %v7686 = vunpack.c.h.b16 %v7513
        %v7687 = vunpack.c.l.b16 %v7514
        %v7688 = vunpack.c.h.b16 %v7514
        %v7689 = vunpack.c.l.b16 %v7515
        %v7690 = vunpack.c.h.b16 %v7515
        %v7691 = vpack.c.b16 %v7581, %v7579
        %v7692 = vpack.c.b16 %v7582, %v7580
        %v7693 = vpack.c.b16 %v7585, %v7583
        %v7694 = vpack.c.b16 %v7586, %v7584
        %v7695 = vpack.c.b16 %v7589, %v7587
        %v7696 = vpack.c.b16 %v7590, %v7588
        %v7697 = vpack.c.b16 %v7593, %v7591
        %v7698 = vpack.c.b16 %v7594, %v7592
        %v7699 = vpack.c.b16 %v7597, %v7595
        %v7700 = vpack.c.b16 %v7598, %v7596
        %v7701 = vpack.c.b16 %v7601, %v7599
        %v7702 = vpack.c.b16 %v7602, %v7600
        %v7703 = vpack.c.b16 %v7605, %v7603
        %v7704 = vpack.c.b16 %v7606, %v7604
        %v7705 = vpack.c.b16 %v7609, %v7607
        %v7706 = vpack.c.b16 %v7610, %v7608
        %v7707 = vpack.c.b16 %v7613, %v7611
        %v7708 = vpack.c.b16 %v7614, %v7612
        %v7709 = vpack.c.b16 %v7617, %v7615
        %v7710 = vpack.c.b16 %v7618, %v7616
        %v7711 = vpack.c.b16 %v7621, %v7619
        %v7712 = vpack.c.b16 %v7622, %v7620
        %v7713 = vpack.c.b16 %v7625, %v7623
        %v7714 = vpack.c.b16 %v7626, %v7624
        %v7715 = vpack.c.b16 %v7629, %v7627
        %v7716 = vpack.c.b16 %v7630, %v7628
        %v7717 = vpack.c.b16 %v7633, %v7631
        %v7718 = vpack.c.b16 %v7634, %v7632
        %v7719 = vpack.c.b16 %v7637, %v7635
        %v7720 = vpack.c.b16 %v7638, %v7636
        %v7721 = vpack.c.b16 %v7641, %v7639
        %v7722 = vpack.c.b16 %v7642, %v7640
        %v7723 = vpack.c.b16 %v7645, %v7643
        %v7724 = vpack.c.b16 %v7646, %v7644
        %v7725 = vpack.c.b16 %v7649, %v7647
        %v7726 = vpack.c.b16 %v7650, %v7648
        %v7727 = vpack.c.b16 %v7653, %v7651
        %v7728 = vpack.c.b16 %v7654, %v7652
        %v7729 = vpack.c.b16 %v7657, %v7655
        %v7730 = vpack.c.b16 %v7658, %v7656
        %v7731 = vpack.c.b16 %v7661, %v7659
        %v7732 = vpack.c.b16 %v7662, %v7660
        %v7733 = vpack.c.b16 %v7665, %v7663
        %v7734 = vpack.c.b16 %v7666, %v7664
        %v7735 = vpack.c.b16 %v7669, %v7667
        %v7736 = vpack.c.b16 %v7670, %v7668
        %v7737 = vpack.c.b16 %v7673, %v7671
        %v7738 = vpack.c.b16 %v7674, %v7672
        %v7739 = vpack.c.b16 %v7677, %v7675
        %v7740 = vpack.c.b16 %v7678, %v7676
        %v7741 = vpack.c.b16 %v7681, %v7679
        %v7742 = vpack.c.b16 %v7682, %v7680
        %v7743 = vpack.c.b16 %v7685, %v7683
        %v7744 = vpack.c.b16 %v7686, %v7684
        %v7745 = vpack.c.b16 %v7689, %v7687
        %v7746 = vpack.c.b16 %v7690, %v7688
        %v7804 = vsel %vm4472, %v7519, 0
        %7806 = vmatprep.subr.bf16.mxu0 %v7692
        %7807 = vmatpush1.bf16.msra.mxu0 %v7691
        %7808 = vmatprep.subr.bf16.mxu0 %v7694
        %7809 = vmatpush1.bf16.msra.mxu0 %v7693
        %7810 = vmatprep.subr.bf16.mxu0 %v7696
        %7811 = vmatpush1.bf16.msra.mxu0 %v7695
        %7812 = vmatprep.subr.bf16.mxu0 %v7698
        %7813 = vmatpush1.bf16.msra.mxu0 %v7697
        %7814 = vmatprep.subr.bf16.mxu0 %v7700
        %7815 = vmatpush1.bf16.msra.mxu0 %v7699
        %7816 = vmatprep.subr.bf16.mxu0 %v7702
        %7817 = vmatpush1.bf16.msra.mxu0 %v7701
        %7818 = vmatprep.subr.bf16.mxu0 %v7704
        %7819 = vmatpush1.bf16.msra.mxu0 %v7703
        %7820 = vmatprep.subr.bf16.mxu0 %v7706
        %7821 = vmatpush1.bf16.msra.mxu0 %v7705
        %7822 = vmatprep.subr.bf16.mxu0 %v7708
        %7823 = vmatpush1.bf16.msra.mxu0 %v7707
        %7824 = vmatprep.subr.bf16.mxu0 %v7710
        %7825 = vmatpush1.bf16.msra.mxu0 %v7709
        %7826 = vmatprep.subr.bf16.mxu0 %v7712
        %7827 = vmatpush1.bf16.msra.mxu0 %v7711
        %7828 = vmatprep.subr.bf16.mxu0 %v7714
        %7829 = vmatpush1.bf16.msra.mxu0 %v7713
        %7830 = vmatprep.subr.bf16.mxu0 %v7716
        %7831 = vmatpush1.bf16.msra.mxu0 %v7715
        %7832 = vmatprep.subr.bf16.mxu0 %v7718
        %7833 = vmatpush1.bf16.msra.mxu0 %v7717
        %7834 = vmatprep.subr.bf16.mxu0 %v7720
        %7835 = vmatpush1.bf16.msra.mxu0 %v7719
        %7836 = vmatprep.subr.bf16.mxu0 %v7722
        %7837 = vmatpush1.bf16.msra.mxu0 %v7721
        %7838 = vmatprep.mubr.bf16.mxu0 %v7517
        %7839 = vmatmul.mubr.bf16.gmra.mrb[0].mxu0 %v7516
        %v7840 = vpop.f32.mrb[0].mxu0
        %v7841 = vadd.f32 0.0, %v7840
        %v7842 = vpop.f32.mrb[0].mxu0
        %v7843 = vadd.f32 0.0, %v7842
        %v7844 = vpop.f32.mrb[0].mxu0
        %v7845 = vadd.f32 0.0, %v7844
        %v7846 = vpop.f32.mrb[0].mxu0
        %v7847 = vadd.f32 0.0, %v7846
        %7848 = vdwg.mxu0
        %7849 = vmatprep.subr.bf16.mxu0 %v7724
        %7850 = vmatpush1.bf16.msra.mxu0 %v7723
        %7851 = vmatprep.subr.bf16.mxu0 %v7726
        %7852 = vmatpush1.bf16.msra.mxu0 %v7725
        %7853 = vmatprep.subr.bf16.mxu0 %v7728
        %7854 = vmatpush1.bf16.msra.mxu0 %v7727
        %7855 = vmatprep.subr.bf16.mxu0 %v7730
        %7856 = vmatpush1.bf16.msra.mxu0 %v7729
        %7857 = vmatprep.subr.bf16.mxu0 %v7732
        %7858 = vmatpush1.bf16.msra.mxu0 %v7731
        %7859 = vmatprep.subr.bf16.mxu0 %v7734
        %7860 = vmatpush1.bf16.msra.mxu0 %v7733
        %7861 = vmatprep.subr.bf16.mxu0 %v7736
        %7862 = vmatpush1.bf16.msra.mxu0 %v7735
        %7863 = vmatprep.subr.bf16.mxu0 %v7738
        %7864 = vmatpush1.bf16.msra.mxu0 %v7737
        %7865 = vmatprep.subr.bf16.mxu0 %v7740
        %7866 = vmatpush1.bf16.msra.mxu0 %v7739
        %7867 = vmatprep.subr.bf16.mxu0 %v7742
        %7868 = vmatpush1.bf16.msra.mxu0 %v7741
        %7869 = vmatprep.subr.bf16.mxu0 %v7744
        %7870 = vmatpush1.bf16.msra.mxu0 %v7743
        %7871 = vmatprep.subr.bf16.mxu0 %v7746
        %7872 = vmatpush1.bf16.msra.mxu0 %v7745
        %7873 = vmatprep.subr.bf16.mxu0 0
        %7874 = vmatpush1.bf16.msra.mxu0 0
        %7875 = vmatprep.subr.bf16.mxu0 0
        %7876 = vmatpush1.bf16.msra.mxu0 0
        %7877 = vmatprep.subr.bf16.mxu0 0
        %7878 = vmatpush1.bf16.msra.mxu0 0
        %7879 = vmatprep.subr.bf16.mxu0 0
        %7880 = vmatpush1.bf16.msra.mxu0 0
        %7881 = vmatprep.mubr.bf16.mxu0 %v7804
        %7882 = vmatmul.mubr.bf16.gmra.mrb[0].mxu0 %v7518
        %v7883 = vpop.f32.mrb[0].mxu0
        %v7884 = vadd.f32 %v7841, %v7883
        %v7885 = vpop.f32.mrb[0].mxu0
        %v7886 = vadd.f32 %v7843, %v7885
        %v7887 = vpop.f32.mrb[0].mxu0
        %v7888 = vadd.f32 %v7845, %v7887
        %v7889 = vpop.f32.mrb[0].mxu0
        %v7890 = vadd.f32 %v7847, %v7889
        %7891 = vdwg.mxu0
        %s7892 = scalar_lea.vmem %s5, 1792
        %v7893 = vld [vmem:[%s7892] sm:$0xff]
        %v7894 = vld [vmem:[%s7892 + $0x8] sm:$0xff]
        %v7895 = vld [vmem:[%s7892 + $0x10] sm:$0xff]
        %v7896 = vld [vmem:[%s7892 + $0x18] sm:$0xff]
        %v7897 = vld [vmem:[%s7892 + $0x20] sm:$0xff]
        %v7898 = vld [vmem:[%s7892 + $0x28] sm:$0xff]
        %v7899 = vld [vmem:[%s7892 + $0x30] sm:$0xff]
        %v7900 = vld [vmem:[%s7892 + $0x38] sm:$0xff]
        %v7901 = vld [vmem:[%s7892 + $0x40] sm:$0xff]
        %v7902 = vld [vmem:[%s7892 + $0x48] sm:$0xff]
        %v7903 = vld [vmem:[%s7892 + $0x50] sm:$0xff]
        %v7904 = vld [vmem:[%s7892 + $0x58] sm:$0xff]
        %v7905 = vld [vmem:[%s7892 + $0x60] sm:$0xff]
        %v7906 = vld [vmem:[%s7892 + $0x68] sm:$0xff]
        %v7907 = vld [vmem:[%s7892 + $0x70] sm:$0xff]
        %v7908 = vld [vmem:[%s7892 + $0x78] sm:$0xff]
        %v7909 = vld [vmem:[%s7892 + $0x80] sm:$0xff]
        %v7910 = vld [vmem:[%s7892 + $0x88] sm:$0xff]
        %v7911 = vld [vmem:[%s7892 + $0x90] sm:$0xff]
        %v7912 = vld [vmem:[%s7892 + $0x98] sm:$0xff]
        %v7913 = vld [vmem:[%s7892 + $0xa0] sm:$0xff]
        %v7914 = vld [vmem:[%s7892 + $0xa8] sm:$0xff]
        %v7915 = vld [vmem:[%s7892 + $0xb0] sm:$0xff]
        %v7916 = vld [vmem:[%s7892 + $0xb8] sm:$0xff]
        %v7917 = vld [vmem:[%s7892 + $0xc0] sm:$0xff]
        %v7918 = vld [vmem:[%s7892 + $0xc8] sm:$0xff]
        %v7919 = vld [vmem:[%s7892 + $0xd0] sm:$0xff]
        %v7920 = vld [vmem:[%s7892 + $0xd8] sm:$0xff]
        %v7921 = vld [vmem:[%s7892 + $0xe0] sm:$0xff]
        %v7922 = vld [vmem:[%s7892 + $0xe8] sm:$0xff]
        %v7923 = vld [vmem:[%s7892 + $0xf0] sm:$0xff]
        %v7924 = vld [vmem:[%s7892 + $0xf8] sm:$0xff]
        %v7925 = vld [vmem:[%s7892 + $0x100] sm:$0xff]
        %v7926 = vld [vmem:[%s7892 + $0x108] sm:$0xff]
        %v7927 = vld [vmem:[%s7892 + $0x110] sm:$0xff]
        %v7928 = vld [vmem:[%s7892 + $0x118] sm:$0xff]
        %v7929 = vld [vmem:[%s7892 + $0x120] sm:$0xff]
        %v7930 = vld [vmem:[%s7892 + $0x128] sm:$0xff]
        %v7931 = vld [vmem:[%s7892 + $0x130] sm:$0xff]
        %v7932 = vld [vmem:[%s7892 + $0x138] sm:$0xff]
        %v7933 = vld [vmem:[%s7892 + $0x140] sm:$0xff]
        %v7934 = vld [vmem:[%s7892 + $0x148] sm:$0xff]
        %v7935 = vld [vmem:[%s7892 + $0x150] sm:$0xff]
        %v7936 = vld [vmem:[%s7892 + $0x158] sm:$0xff]
        %v7937 = vld [vmem:[%s7892 + $0x160] sm:$0xff]
        %v7938 = vld [vmem:[%s7892 + $0x168] sm:$0xff]
        %v7939 = vld [vmem:[%s7892 + $0x170] sm:$0xff]
        %v7940 = vld [vmem:[%s7892 + $0x178] sm:$0xff]
        %v7941 = vld [vmem:[%s7892 + $0x180] sm:$0xff]
        %v7942 = vld [vmem:[%s7892 + $0x188] sm:$0xff]
        %v7943 = vld [vmem:[%s7892 + $0x190] sm:$0xff]
        %v7944 = vld [vmem:[%s7892 + $0x198] sm:$0xff]
        %v7945 = vld [vmem:[%s7892 + $0x1a0] sm:$0xff]
        %v7946 = vld [vmem:[%s7892 + $0x1a8] sm:$0xff]
        %v7947 = vld [vmem:[%s7892 + $0x1b0] sm:$0xff]
        %v7948 = vld [vmem:[%s7892 + $0x1b8] sm:$0xff]
        %v8005 = vunpack.c.l.b16 %v7893
        %v8006 = vunpack.c.h.b16 %v7893
        %v8007 = vunpack.c.l.b16 %v7894
        %v8008 = vunpack.c.h.b16 %v7894
        %v8009 = vunpack.c.l.b16 %v7895
        %v8010 = vunpack.c.h.b16 %v7895
        %v8011 = vunpack.c.l.b16 %v7896
        %v8012 = vunpack.c.h.b16 %v7896
        %v8013 = vunpack.c.l.b16 %v7897
        %v8014 = vunpack.c.h.b16 %v7897
        %v8015 = vunpack.c.l.b16 %v7898
        %v8016 = vunpack.c.h.b16 %v7898
        %v8017 = vunpack.c.l.b16 %v7899
        %v8018 = vunpack.c.h.b16 %v7899
        %v8019 = vunpack.c.l.b16 %v7900
        %v8020 = vunpack.c.h.b16 %v7900
        %v8021 = vunpack.c.l.b16 %v7901
        %v8022 = vunpack.c.h.b16 %v7901
        %v8023 = vunpack.c.l.b16 %v7902
        %v8024 = vunpack.c.h.b16 %v7902
        %v8025 = vunpack.c.l.b16 %v7903
        %v8026 = vunpack.c.h.b16 %v7903
        %v8027 = vunpack.c.l.b16 %v7904
        %v8028 = vunpack.c.h.b16 %v7904
        %v8029 = vunpack.c.l.b16 %v7905
        %v8030 = vunpack.c.h.b16 %v7905
        %v8031 = vunpack.c.l.b16 %v7906
        %v8032 = vunpack.c.h.b16 %v7906
        %v8033 = vunpack.c.l.b16 %v7907
        %v8034 = vunpack.c.h.b16 %v7907
        %v8035 = vunpack.c.l.b16 %v7908
        %v8036 = vunpack.c.h.b16 %v7908
        %v8037 = vunpack.c.l.b16 %v7909
        %v8038 = vunpack.c.h.b16 %v7909
        %v8039 = vunpack.c.l.b16 %v7910
        %v8040 = vunpack.c.h.b16 %v7910
        %v8041 = vunpack.c.l.b16 %v7911
        %v8042 = vunpack.c.h.b16 %v7911
        %v8043 = vunpack.c.l.b16 %v7912
        %v8044 = vunpack.c.h.b16 %v7912
        %v8045 = vunpack.c.l.b16 %v7913
        %v8046 = vunpack.c.h.b16 %v7913
        %v8047 = vunpack.c.l.b16 %v7914
        %v8048 = vunpack.c.h.b16 %v7914
        %v8049 = vunpack.c.l.b16 %v7915
        %v8050 = vunpack.c.h.b16 %v7915
        %v8051 = vunpack.c.l.b16 %v7916
        %v8052 = vunpack.c.h.b16 %v7916
        %v8053 = vunpack.c.l.b16 %v7917
        %v8054 = vunpack.c.h.b16 %v7917
        %v8055 = vunpack.c.l.b16 %v7918
        %v8056 = vunpack.c.h.b16 %v7918
        %v8057 = vunpack.c.l.b16 %v7919
        %v8058 = vunpack.c.h.b16 %v7919
        %v8059 = vunpack.c.l.b16 %v7920
        %v8060 = vunpack.c.h.b16 %v7920
        %v8061 = vunpack.c.l.b16 %v7921
        %v8062 = vunpack.c.h.b16 %v7921
        %v8063 = vunpack.c.l.b16 %v7922
        %v8064 = vunpack.c.h.b16 %v7922
        %v8065 = vunpack.c.l.b16 %v7923
        %v8066 = vunpack.c.h.b16 %v7923
        %v8067 = vunpack.c.l.b16 %v7924
        %v8068 = vunpack.c.h.b16 %v7924
        %v8069 = vunpack.c.l.b16 %v7925
        %v8070 = vunpack.c.h.b16 %v7925
        %v8071 = vunpack.c.l.b16 %v7926
        %v8072 = vunpack.c.h.b16 %v7926
        %v8073 = vunpack.c.l.b16 %v7927
        %v8074 = vunpack.c.h.b16 %v7927
        %v8075 = vunpack.c.l.b16 %v7928
        %v8076 = vunpack.c.h.b16 %v7928
        %v8077 = vunpack.c.l.b16 %v7929
        %v8078 = vunpack.c.h.b16 %v7929
        %v8079 = vunpack.c.l.b16 %v7930
        %v8080 = vunpack.c.h.b16 %v7930
        %v8081 = vunpack.c.l.b16 %v7931
        %v8082 = vunpack.c.h.b16 %v7931
        %v8083 = vunpack.c.l.b16 %v7932
        %v8084 = vunpack.c.h.b16 %v7932
        %v8085 = vunpack.c.l.b16 %v7933
        %v8086 = vunpack.c.h.b16 %v7933
        %v8087 = vunpack.c.l.b16 %v7934
        %v8088 = vunpack.c.h.b16 %v7934
        %v8089 = vunpack.c.l.b16 %v7935
        %v8090 = vunpack.c.h.b16 %v7935
        %v8091 = vunpack.c.l.b16 %v7936
        %v8092 = vunpack.c.h.b16 %v7936
        %v8093 = vunpack.c.l.b16 %v7937
        %v8094 = vunpack.c.h.b16 %v7937
        %v8095 = vunpack.c.l.b16 %v7938
        %v8096 = vunpack.c.h.b16 %v7938
        %v8097 = vunpack.c.l.b16 %v7939
        %v8098 = vunpack.c.h.b16 %v7939
        %v8099 = vunpack.c.l.b16 %v7940
        %v8100 = vunpack.c.h.b16 %v7940
        %v8101 = vunpack.c.l.b16 %v7941
        %v8102 = vunpack.c.h.b16 %v7941
        %v8103 = vunpack.c.l.b16 %v7942
        %v8104 = vunpack.c.h.b16 %v7942
        %v8105 = vunpack.c.l.b16 %v7943
        %v8106 = vunpack.c.h.b16 %v7943
        %v8107 = vunpack.c.l.b16 %v7944
        %v8108 = vunpack.c.h.b16 %v7944
        %v8109 = vunpack.c.l.b16 %v7945
        %v8110 = vunpack.c.h.b16 %v7945
        %v8111 = vunpack.c.l.b16 %v7946
        %v8112 = vunpack.c.h.b16 %v7946
        %v8113 = vunpack.c.l.b16 %v7947
        %v8114 = vunpack.c.h.b16 %v7947
        %v8115 = vunpack.c.l.b16 %v7948
        %v8116 = vunpack.c.h.b16 %v7948
        %v8117 = vpack.c.b16 %v8007, %v8005
        %v8118 = vpack.c.b16 %v8008, %v8006
        %v8119 = vpack.c.b16 %v8011, %v8009
        %v8120 = vpack.c.b16 %v8012, %v8010
        %v8121 = vpack.c.b16 %v8015, %v8013
        %v8122 = vpack.c.b16 %v8016, %v8014
        %v8123 = vpack.c.b16 %v8019, %v8017
        %v8124 = vpack.c.b16 %v8020, %v8018
        %v8125 = vpack.c.b16 %v8023, %v8021
        %v8126 = vpack.c.b16 %v8024, %v8022
        %v8127 = vpack.c.b16 %v8027, %v8025
        %v8128 = vpack.c.b16 %v8028, %v8026
        %v8129 = vpack.c.b16 %v8031, %v8029
        %v8130 = vpack.c.b16 %v8032, %v8030
        %v8131 = vpack.c.b16 %v8035, %v8033
        %v8132 = vpack.c.b16 %v8036, %v8034
        %v8133 = vpack.c.b16 %v8039, %v8037
        %v8134 = vpack.c.b16 %v8040, %v8038
        %v8135 = vpack.c.b16 %v8043, %v8041
        %v8136 = vpack.c.b16 %v8044, %v8042
        %v8137 = vpack.c.b16 %v8047, %v8045
        %v8138 = vpack.c.b16 %v8048, %v8046
        %v8139 = vpack.c.b16 %v8051, %v8049
        %v8140 = vpack.c.b16 %v8052, %v8050
        %v8141 = vpack.c.b16 %v8055, %v8053
        %v8142 = vpack.c.b16 %v8056, %v8054
        %v8143 = vpack.c.b16 %v8059, %v8057
        %v8144 = vpack.c.b16 %v8060, %v8058
        %v8145 = vpack.c.b16 %v8063, %v8061
        %v8146 = vpack.c.b16 %v8064, %v8062
        %v8147 = vpack.c.b16 %v8067, %v8065
        %v8148 = vpack.c.b16 %v8068, %v8066
        %v8149 = vpack.c.b16 %v8071, %v8069
        %v8150 = vpack.c.b16 %v8072, %v8070
        %v8151 = vpack.c.b16 %v8075, %v8073
        %v8152 = vpack.c.b16 %v8076, %v8074
        %v8153 = vpack.c.b16 %v8079, %v8077
        %v8154 = vpack.c.b16 %v8080, %v8078
        %v8155 = vpack.c.b16 %v8083, %v8081
        %v8156 = vpack.c.b16 %v8084, %v8082
        %v8157 = vpack.c.b16 %v8087, %v8085
        %v8158 = vpack.c.b16 %v8088, %v8086
        %v8159 = vpack.c.b16 %v8091, %v8089
        %v8160 = vpack.c.b16 %v8092, %v8090
        %v8161 = vpack.c.b16 %v8095, %v8093
        %v8162 = vpack.c.b16 %v8096, %v8094
        %v8163 = vpack.c.b16 %v8099, %v8097
        %v8164 = vpack.c.b16 %v8100, %v8098
        %v8165 = vpack.c.b16 %v8103, %v8101
        %v8166 = vpack.c.b16 %v8104, %v8102
        %v8167 = vpack.c.b16 %v8107, %v8105
        %v8168 = vpack.c.b16 %v8108, %v8106
        %v8169 = vpack.c.b16 %v8111, %v8109
        %v8170 = vpack.c.b16 %v8112, %v8110
        %v8171 = vpack.c.b16 %v8115, %v8113
        %v8172 = vpack.c.b16 %v8116, %v8114
        %8229 = vmatprep.subr.bf16.mxu0 %v8118
        %8230 = vmatpush1.bf16.msra.mxu0 %v8117
        %8231 = vmatprep.subr.bf16.mxu0 %v8120
        %8232 = vmatpush1.bf16.msra.mxu0 %v8119
        %8233 = vmatprep.subr.bf16.mxu0 %v8122
        %8234 = vmatpush1.bf16.msra.mxu0 %v8121
        %8235 = vmatprep.subr.bf16.mxu0 %v8124
        %8236 = vmatpush1.bf16.msra.mxu0 %v8123
        %8237 = vmatprep.subr.bf16.mxu0 %v8126
        %8238 = vmatpush1.bf16.msra.mxu0 %v8125
        %8239 = vmatprep.subr.bf16.mxu0 %v8128
        %8240 = vmatpush1.bf16.msra.mxu0 %v8127
        %8241 = vmatprep.subr.bf16.mxu0 %v8130
        %8242 = vmatpush1.bf16.msra.mxu0 %v8129
        %8243 = vmatprep.subr.bf16.mxu0 %v8132
        %8244 = vmatpush1.bf16.msra.mxu0 %v8131
        %8245 = vmatprep.subr.bf16.mxu0 %v8134
        %8246 = vmatpush1.bf16.msra.mxu0 %v8133
        %8247 = vmatprep.subr.bf16.mxu0 %v8136
        %8248 = vmatpush1.bf16.msra.mxu0 %v8135
        %8249 = vmatprep.subr.bf16.mxu0 %v8138
        %8250 = vmatpush1.bf16.msra.mxu0 %v8137
        %8251 = vmatprep.subr.bf16.mxu0 %v8140
        %8252 = vmatpush1.bf16.msra.mxu0 %v8139
        %8253 = vmatprep.subr.bf16.mxu0 %v8142
        %8254 = vmatpush1.bf16.msra.mxu0 %v8141
        %8255 = vmatprep.subr.bf16.mxu0 %v8144
        %8256 = vmatpush1.bf16.msra.mxu0 %v8143
        %8257 = vmatprep.subr.bf16.mxu0 %v8146
        %8258 = vmatpush1.bf16.msra.mxu0 %v8145
        %8259 = vmatprep.subr.bf16.mxu0 %v8148
        %8260 = vmatpush1.bf16.msra.mxu0 %v8147
        %8261 = vmatprep.mubr.bf16.mxu0 %v7517
        %8262 = vmatmul.mubr.bf16.gmra.mrb[0].mxu0 %v7516
        %v8263 = vpop.f32.mrb[0].mxu0
        %v8264 = vadd.f32 0.0, %v8263
        %v8265 = vpop.f32.mrb[0].mxu0
        %v8266 = vadd.f32 0.0, %v8265
        %v8267 = vpop.f32.mrb[0].mxu0
        %v8268 = vadd.f32 0.0, %v8267
        %v8269 = vpop.f32.mrb[0].mxu0
        %v8270 = vadd.f32 0.0, %v8269
        %8271 = vdwg.mxu0
        %8272 = vmatprep.subr.bf16.mxu0 %v8150
        %8273 = vmatpush1.bf16.msra.mxu0 %v8149
        %8274 = vmatprep.subr.bf16.mxu0 %v8152
        %8275 = vmatpush1.bf16.msra.mxu0 %v8151
        %8276 = vmatprep.subr.bf16.mxu0 %v8154
        %8277 = vmatpush1.bf16.msra.mxu0 %v8153
        %8278 = vmatprep.subr.bf16.mxu0 %v8156
        %8279 = vmatpush1.bf16.msra.mxu0 %v8155
        %8280 = vmatprep.subr.bf16.mxu0 %v8158
        %8281 = vmatpush1.bf16.msra.mxu0 %v8157
        %8282 = vmatprep.subr.bf16.mxu0 %v8160
        %8283 = vmatpush1.bf16.msra.mxu0 %v8159
        %8284 = vmatprep.subr.bf16.mxu0 %v8162
        %8285 = vmatpush1.bf16.msra.mxu0 %v8161
        %8286 = vmatprep.subr.bf16.mxu0 %v8164
        %8287 = vmatpush1.bf16.msra.mxu0 %v8163
        %8288 = vmatprep.subr.bf16.mxu0 %v8166
        %8289 = vmatpush1.bf16.msra.mxu0 %v8165
        %8290 = vmatprep.subr.bf16.mxu0 %v8168
        %8291 = vmatpush1.bf16.msra.mxu0 %v8167
        %8292 = vmatprep.subr.bf16.mxu0 %v8170
        %8293 = vmatpush1.bf16.msra.mxu0 %v8169
        %8294 = vmatprep.subr.bf16.mxu0 %v8172
        %8295 = vmatpush1.bf16.msra.mxu0 %v8171
        %8296 = vmatprep.subr.bf16.mxu0 0
        %8297 = vmatpush1.bf16.msra.mxu0 0
        %8298 = vmatprep.subr.bf16.mxu0 0
        %8299 = vmatpush1.bf16.msra.mxu0 0
        %8300 = vmatprep.subr.bf16.mxu0 0
        %8301 = vmatpush1.bf16.msra.mxu0 0
        %8302 = vmatprep.subr.bf16.mxu0 0
        %8303 = vmatpush1.bf16.msra.mxu0 0
        %8304 = vmatprep.mubr.bf16.mxu0 %v7804
        %8305 = vmatmul.mubr.bf16.gmra.mrb[0].mxu0 %v7518
        %v8306 = vpop.f32.mrb[0].mxu0
        %v8307 = vadd.f32 %v8264, %v8306
        %v8308 = vpop.f32.mrb[0].mxu0
        %v8309 = vadd.f32 %v8266, %v8308
        %v8310 = vpop.f32.mrb[0].mxu0
        %v8311 = vadd.f32 %v8268, %v8310
        %v8312 = vpop.f32.mrb[0].mxu0
        %v8313 = vadd.f32 %v8270, %v8312
        %8314 = vdwg.mxu0
        %v8315 = vadd.f32 %v7451, %v7884
        %v8316 = vadd.f32 %v7452, %v7886
        %v8317 = vadd.f32 %v7453, %v7888
        %v8318 = vadd.f32 %v7454, %v7890
        %v8319 = vadd.f32 %v7455, %v8307
        %v8320 = vadd.f32 %v7456, %v8309
        %v8321 = vadd.f32 %v7457, %v8311
        %v8322 = vadd.f32 %v7458, %v8313
        %v8323 = vmax.f32 %v8315, %v8319
        %v8324 = vmax.f32 %v8316, %v8320
        %v8325 = vmax.f32 %v8317, %v8321
        %v8326 = vmax.f32 %v8318, %v8322
        %vm8327 = vcmask 80896
        %v8328 = vsel %vm8327, %v3598, 0
        %vm8330 = vcmask 1041408
        %v8332 = vsel %vm8330, %v8325, 0
        %v8335 = vsel %vm8330, %v8326, 0
        %8337 = vmatprep.subr.mxu0 %v8324
        %8338 = vmatpush1.msra.mxu0 %v8323
        %8339 = vmatprep.subr.mxu0 %v8335
        %8340 = vmatpush1.msra.mxu0 %v8332
        %8341 = vmatprep.subr.mxu0 0.0
        %8342 = vmatpush1.msra.mxu0 0.0
        %8343 = vmatprep.subr.mxu0 0.0
        %8344 = vmatpush1.msra.mxu0 0.0
        %8345 = vmatprep.subr.mxu0 0.0
        %8346 = vmatpush1.msra.mxu0 0.0
        %8347 = vmatprep.subr.mxu0 0.0
        %8348 = vmatpush1.msra.mxu0 0.0
        %8349 = vmatprep.subr.mxu0 0.0
        %8350 = vmatpush1.msra.mxu0 0.0
        %8351 = vmatprep.subr.mxu0 0.0
        %8352 = vmatpush1.msra.mxu0 0.0
        %8353 = vmatprep.subr.mxu0 0.0
        %8354 = vmatpush1.msra.mxu0 0.0
        %8355 = vmatprep.subr.mxu0 0.0
        %8356 = vmatpush1.msra.mxu0 0.0
        %8357 = vmatprep.subr.mxu0 0.0
        %8358 = vmatpush1.msra.mxu0 0.0
        %8359 = vmatprep.subr.mxu0 0.0
        %8360 = vmatpush1.msra.mxu0 0.0
        %8361 = vmatprep.subr.mxu0 0.0
        %8362 = vmatpush1.msra.mxu0 0.0
        %8363 = vmatprep.subr.mxu0 0.0
        %8364 = vmatpush1.msra.mxu0 0.0
        %8365 = vmatprep.subr.mxu0 0.0
        %8366 = vmatpush1.msra.mxu0 0.0
        %8367 = vmatprep.subr.mxu0 0.0
        %8368 = vmatpush1.msra.mxu0 0.0
        %8369 = vmatprep.subr.mxu0 0.0
        %8370 = vmatpush1.msra.mxu0 0.0
        %8371 = vmatprep.subr.mxu0 0.0
        %8372 = vmatpush1.msra.mxu0 0.0
        %8373 = vmatprep.subr.mxu0 0.0
        %8374 = vmatpush1.msra.mxu0 0.0
        %8375 = vmatprep.subr.mxu0 0.0
        %8376 = vmatpush1.msra.mxu0 0.0
        %8377 = vmatprep.subr.mxu0 0.0
        %8378 = vmatpush1.msra.mxu0 0.0
        %8379 = vmatprep.subr.mxu0 0.0
        %8380 = vmatpush1.msra.mxu0 0.0
        %8381 = vmatprep.subr.mxu0 0.0
        %8382 = vmatpush1.msra.mxu0 0.0
        %8383 = vmatprep.subr.mxu0 0.0
        %8384 = vmatpush1.msra.mxu0 0.0
        %8385 = vmatprep.subr.mxu0 0.0
        %8386 = vmatpush1.msra.mxu0 0.0
        %8387 = vmatprep.subr.mxu0 0.0
        %8388 = vmatpush1.msra.mxu0 0.0
        %8389 = vmatprep.subr.mxu0 0.0
        %8390 = vmatpush1.msra.mxu0 0.0
        %8391 = vmatprep.subr.mxu0 0.0
        %8392 = vmatpush1.msra.mxu0 0.0
        %8393 = vmatprep.subr.mxu0 0.0
        %8394 = vmatpush1.msra.mxu0 0.0
        %8395 = vmatprep.subr.mxu0 0.0
        %8396 = vmatpush1.msra.mxu0 0.0
        %8397 = vmatprep.subr.mxu0 0.0
        %8398 = vmatpush1.msra.mxu0 0.0
        %8399 = vmatprep.subr.mxu0 0.0
        %8400 = vmatpush1.msra.mxu0 0.0
        %8401 = vmatprep.mubr.f32.mxu0 0.0
        %8402 = vmatmul.mubr.f32.gmra.mrb[0].mxu0 %v8328
        %v8403 = vpop.f32.mrb[0].mxu0
        %v8404 = vadd.f32 0.0, %v8403
        %v8405 = vpop.f32.mrb[0].mxu0
        %v8406 = vadd.f32 0.0, %v8405
        %8407 = vdwg.mxu0
        %v8408 = vsel %vm8327, %v3606, 0
        %8410 = vmatprep.subr.mxu0 %v8324
        %8411 = vmatpush1.msra.mxu0 %v8323
        %8412 = vmatprep.subr.mxu0 %v8335
        %8413 = vmatpush1.msra.mxu0 %v8332
        %8414 = vmatprep.subr.mxu0 0.0
        %8415 = vmatpush1.msra.mxu0 0.0
        %8416 = vmatprep.subr.mxu0 0.0
        %8417 = vmatpush1.msra.mxu0 0.0
        %8418 = vmatprep.subr.mxu0 0.0
        %8419 = vmatpush1.msra.mxu0 0.0
        %8420 = vmatprep.subr.mxu0 0.0
        %8421 = vmatpush1.msra.mxu0 0.0
        %8422 = vmatprep.subr.mxu0 0.0
        %8423 = vmatpush1.msra.mxu0 0.0
        %8424 = vmatprep.subr.mxu0 0.0
        %8425 = vmatpush1.msra.mxu0 0.0
        %8426 = vmatprep.subr.mxu0 0.0
        %8427 = vmatpush1.msra.mxu0 0.0
        %8428 = vmatprep.subr.mxu0 0.0
        %8429 = vmatpush1.msra.mxu0 0.0
        %8430 = vmatprep.subr.mxu0 0.0
        %8431 = vmatpush1.msra.mxu0 0.0
        %8432 = vmatprep.subr.mxu0 0.0
        %8433 = vmatpush1.msra.mxu0 0.0
        %8434 = vmatprep.subr.mxu0 0.0
        %8435 = vmatpush1.msra.mxu0 0.0
        %8436 = vmatprep.subr.mxu0 0.0
        %8437 = vmatpush1.msra.mxu0 0.0
        %8438 = vmatprep.subr.mxu0 0.0
        %8439 = vmatpush1.msra.mxu0 0.0
        %8440 = vmatprep.subr.mxu0 0.0
        %8441 = vmatpush1.msra.mxu0 0.0
        %8442 = vmatprep.subr.mxu0 0.0
        %8443 = vmatpush1.msra.mxu0 0.0
        %8444 = vmatprep.subr.mxu0 0.0
        %8445 = vmatpush1.msra.mxu0 0.0
        %8446 = vmatprep.subr.mxu0 0.0
        %8447 = vmatpush1.msra.mxu0 0.0
        %8448 = vmatprep.subr.mxu0 0.0
        %8449 = vmatpush1.msra.mxu0 0.0
        %8450 = vmatprep.subr.mxu0 0.0
        %8451 = vmatpush1.msra.mxu0 0.0
        %8452 = vmatprep.subr.mxu0 0.0
        %8453 = vmatpush1.msra.mxu0 0.0
        %8454 = vmatprep.subr.mxu0 0.0
        %8455 = vmatpush1.msra.mxu0 0.0
        %8456 = vmatprep.subr.mxu0 0.0
        %8457 = vmatpush1.msra.mxu0 0.0
        %8458 = vmatprep.subr.mxu0 0.0
        %8459 = vmatpush1.msra.mxu0 0.0
        %8460 = vmatprep.subr.mxu0 0.0
        %8461 = vmatpush1.msra.mxu0 0.0
        %8462 = vmatprep.subr.mxu0 0.0
        %8463 = vmatpush1.msra.mxu0 0.0
        %8464 = vmatprep.subr.mxu0 0.0
        %8465 = vmatpush1.msra.mxu0 0.0
        %8466 = vmatprep.subr.mxu0 0.0
        %8467 = vmatpush1.msra.mxu0 0.0
        %8468 = vmatprep.subr.mxu0 0.0
        %8469 = vmatpush1.msra.mxu0 0.0
        %8470 = vmatprep.subr.mxu0 0.0
        %8471 = vmatpush1.msra.mxu0 0.0
        %8472 = vmatprep.subr.mxu0 0.0
        %8473 = vmatpush1.msra.mxu0 0.0
        %8474 = vmatprep.mubr.f32.mxu0 0.0
        %8475 = vmatmul.mubr.f32.gmra.mrb[0].mxu0 %v8408
        %v8476 = vpop.f32.mrb[0].mxu0
        %v8477 = vadd.f32 0.0, %v8476
        %v8478 = vpop.f32.mrb[0].mxu0
        %v8479 = vadd.f32 0.0, %v8478
        %8480 = vdwg.mxu0
        %v8481 = vmax.f32 %v8404, %v8477
        %v8482 = vmax.f32 %v8406, %v8479
        %v8483 = vld [vmem:[%s6] sm:$0x3]
        %v8485 = vlaneseq
        %v8486 = vshrl.u32 %v8485, 7
        %v8487 = vsub.s32 0, %v8486
        %v8488 = vrot.slane %v8483, %v8487
        %v8489 = vlaneseq
        %v8490 = vshrl.u32 %v8489, 7
        %v8491 = vsub.s32 1, %v8490
        %v8492 = vrot.slane %v8483, %v8491
        %v8495 = vadd.f32 %v8481, %v8488
        %v8496 = vadd.f32 %v8482, %v8492
        %v8497 = vmax.f32 %v8495, 0.0
        %v8498 = vmax.f32 %v8496, 0.0
        %v8499 = vpack.c.bf16 %v8497, %v8497
        %v8500 = vpack.c.bf16 %v8498, %v8498
        %v8501 = vld [vmem:[%s7] sm:$0xf]
        %v8502 = vld [vmem:[%s7 + $0x4] sm:$0xf]
        %v8503 = vld [vmem:[%s7 + $0x8] sm:$0xf]
        %v8504 = vld [vmem:[%s7 + $0xc] sm:$0xf]
        %v8505 = vld [vmem:[%s7 + $0x10] sm:$0xf]
        %v8506 = vld [vmem:[%s7 + $0x14] sm:$0xf]
        %v8507 = vld [vmem:[%s7 + $0x18] sm:$0xf]
        %v8508 = vld [vmem:[%s7 + $0x1c] sm:$0xf]
        %v8509 = vld [vmem:[%s7 + $0x20] sm:$0xf]
        %v8510 = vld [vmem:[%s7 + $0x24] sm:$0xf]
        %v8511 = vld [vmem:[%s7 + $0x28] sm:$0xf]
        %v8512 = vld [vmem:[%s7 + $0x2c] sm:$0xf]
        %v8513 = vld [vmem:[%s7 + $0x30] sm:$0xf]
        %v8514 = vld [vmem:[%s7 + $0x34] sm:$0xf]
        %v8515 = vld [vmem:[%s7 + $0x38] sm:$0xf]
        %v8516 = vld [vmem:[%s7 + $0x3c] sm:$0xf]
        %v8517 = vld [vmem:[%s7 + $0x40] sm:$0xf]
        %v8518 = vld [vmem:[%s7 + $0x44] sm:$0xf]
        %v8519 = vld [vmem:[%s7 + $0x48] sm:$0xf]
        %v8520 = vld [vmem:[%s7 + $0x4c] sm:$0xf]
        %s8521 = scalar_lea.vmem %s7, 80
        %v8522 = vld [vmem:[%s8521] sm:$0xf]
        %v8523 = vld [vmem:[%s8521 + $0x4] sm:$0xf]
        %v8524 = vld [vmem:[%s8521 + $0x8] sm:$0xf]
        %v8525 = vld [vmem:[%s8521 + $0xc] sm:$0xf]
        %v8526 = vld [vmem:[%s8521 + $0x10] sm:$0xf]
        %v8527 = vld [vmem:[%s8521 + $0x14] sm:$0xf]
        %v8528 = vld [vmem:[%s8521 + $0x18] sm:$0xf]
        %v8529 = vld [vmem:[%s8521 + $0x1c] sm:$0xf]
        %v8530 = vld [vmem:[%s8521 + $0x20] sm:$0xf]
        %v8531 = vld [vmem:[%s8521 + $0x24] sm:$0xf]
        %v8532 = vld [vmem:[%s8521 + $0x28] sm:$0xf]
        %v8533 = vld [vmem:[%s8521 + $0x2c] sm:$0xf]
        %v8534 = vld [vmem:[%s8521 + $0x30] sm:$0xf]
        %v8535 = vld [vmem:[%s8521 + $0x34] sm:$0xf]
        %v8536 = vld [vmem:[%s8521 + $0x38] sm:$0xf]
        %v8537 = vld [vmem:[%s8521 + $0x3c] sm:$0xf]
        %v8538 = vld [vmem:[%s8521 + $0x40] sm:$0xf]
        %v8539 = vld [vmem:[%s8521 + $0x44] sm:$0xf]
        %v8540 = vld [vmem:[%s8521 + $0x48] sm:$0xf]
        %v8541 = vld [vmem:[%s8521 + $0x4c] sm:$0xf]
        %v8543 = vshrl.u32 %v8499, 16
        %v8545 = vshll.u32 %v8499, 16
        %v8547 = vrot.slane %v8545, 1
        %v8548 = vor.u32 %v8543, %v8547
        %v8550 = vshrl.u32 %v8500, 16
        %v8552 = vshll.u32 %v8500, 16
        %v8554 = vrot.slane %v8552, 1
        %v8555 = vor.u32 %v8550, %v8554
        %v8577 = vunpack.c.l.b16 %v8522
        %v8578 = vunpack.c.l.b16 %v8523
        %v8579 = vunpack.c.l.b16 %v8524
        %v8580 = vunpack.c.l.b16 %v8525
        %v8581 = vunpack.c.l.b16 %v8526
        %v8582 = vunpack.c.l.b16 %v8527
        %v8583 = vunpack.c.l.b16 %v8528
        %v8584 = vunpack.c.l.b16 %v8529
        %v8585 = vunpack.c.l.b16 %v8530
        %v8586 = vunpack.c.l.b16 %v8531
        %v8587 = vunpack.c.l.b16 %v8532
        %v8588 = vunpack.c.l.b16 %v8533
        %v8589 = vunpack.c.l.b16 %v8534
        %v8590 = vunpack.c.l.b16 %v8535
        %v8591 = vunpack.c.l.b16 %v8536
        %v8592 = vunpack.c.l.b16 %v8537
        %v8593 = vunpack.c.l.b16 %v8538
        %v8594 = vunpack.c.l.b16 %v8539
        %v8595 = vunpack.c.l.b16 %v8540
        %v8596 = vunpack.c.l.b16 %v8541
        %v8597 = vpack.c.b16 %v8578, %v8577
        %v8598 = vpack.c.b16 %v8580, %v8579
        %v8599 = vpack.c.b16 %v8582, %v8581
        %v8600 = vpack.c.b16 %v8584, %v8583
        %v8601 = vpack.c.b16 %v8586, %v8585
        %v8602 = vpack.c.b16 %v8588, %v8587
        %v8603 = vpack.c.b16 %v8590, %v8589
        %v8604 = vpack.c.b16 %v8592, %v8591
        %v8605 = vpack.c.b16 %v8594, %v8593
        %v8606 = vpack.c.b16 %v8596, %v8595
        %vm8617 = vcmask 261120
        %v8619 = vsel %vm8617, %v8555, 0
        %8621 = vmatprep.subr.bf16.mxu0 0
        %8622 = vmatpush1.bf16.msra.mxu0 %v8597
        %8623 = vmatprep.subr.bf16.mxu0 0
        %8624 = vmatpush1.bf16.msra.mxu0 %v8598
        %8625 = vmatprep.subr.bf16.mxu0 0
        %8626 = vmatpush1.bf16.msra.mxu0 %v8599
        %8627 = vmatprep.subr.bf16.mxu0 0
        %8628 = vmatpush1.bf16.msra.mxu0 %v8600
        %8629 = vmatprep.subr.bf16.mxu0 0
        %8630 = vmatpush1.bf16.msra.mxu0 %v8601
        %8631 = vmatprep.subr.bf16.mxu0 0
        %8632 = vmatpush1.bf16.msra.mxu0 %v8602
        %8633 = vmatprep.subr.bf16.mxu0 0
        %8634 = vmatpush1.bf16.msra.mxu0 %v8603
        %8635 = vmatprep.subr.bf16.mxu0 0
        %8636 = vmatpush1.bf16.msra.mxu0 %v8604
        %8637 = vmatprep.subr.bf16.mxu0 0
        %8638 = vmatpush1.bf16.msra.mxu0 %v8605
        %8639 = vmatprep.subr.bf16.mxu0 0
        %8640 = vmatpush1.bf16.msra.mxu0 %v8606
        %8641 = vmatprep.subr.bf16.mxu0 0
        %8642 = vmatpush1.bf16.msra.mxu0 0
        %8643 = vmatprep.subr.bf16.mxu0 0
        %8644 = vmatpush1.bf16.msra.mxu0 0
        %8645 = vmatprep.subr.bf16.mxu0 0
        %8646 = vmatpush1.bf16.msra.mxu0 0
        %8647 = vmatprep.subr.bf16.mxu0 0
        %8648 = vmatpush1.bf16.msra.mxu0 0
        %8649 = vmatprep.subr.bf16.mxu0 0
        %8650 = vmatpush1.bf16.msra.mxu0 0
        %8651 = vmatprep.subr.bf16.mxu0 0
        %8652 = vmatpush1.bf16.msra.mxu0 0
        %8653 = vmatprep.mubr.bf16.mxu0 %v8619
        %8654 = vmatmul.mubr.bf16.gmra.mrb[0].mxu0 %v8548
        %v8655 = vpop.f32.mrb[0].mxu0
        %v8656 = vadd.f32 0.0, %v8655
        %v8657 = vpop.f32.mrb[0].mxu0
        %v8658 = vpop.f32.mrb[0].mxu0
        %v8659 = vpop.f32.mrb[0].mxu0
        %8660 = vdwg.mxu0
        %v8681 = vunpack.c.l.b16 %v8501
        %v8682 = vunpack.c.l.b16 %v8502
        %v8683 = vunpack.c.l.b16 %v8503
        %v8684 = vunpack.c.l.b16 %v8504
        %v8685 = vunpack.c.l.b16 %v8505
        %v8686 = vunpack.c.l.b16 %v8506
        %v8687 = vunpack.c.l.b16 %v8507
        %v8688 = vunpack.c.l.b16 %v8508
        %v8689 = vunpack.c.l.b16 %v8509
        %v8690 = vunpack.c.l.b16 %v8510
        %v8691 = vunpack.c.l.b16 %v8511
        %v8692 = vunpack.c.l.b16 %v8512
        %v8693 = vunpack.c.l.b16 %v8513
        %v8694 = vunpack.c.l.b16 %v8514
        %v8695 = vunpack.c.l.b16 %v8515
        %v8696 = vunpack.c.l.b16 %v8516
        %v8697 = vunpack.c.l.b16 %v8517
        %v8698 = vunpack.c.l.b16 %v8518
        %v8699 = vunpack.c.l.b16 %v8519
        %v8700 = vunpack.c.l.b16 %v8520
        %v8701 = vpack.c.b16 %v8682, %v8681
        %v8702 = vpack.c.b16 %v8684, %v8683
        %v8703 = vpack.c.b16 %v8686, %v8685
        %v8704 = vpack.c.b16 %v8688, %v8687
        %v8705 = vpack.c.b16 %v8690, %v8689
        %v8706 = vpack.c.b16 %v8692, %v8691
        %v8707 = vpack.c.b16 %v8694, %v8693
        %v8708 = vpack.c.b16 %v8696, %v8695
        %v8709 = vpack.c.b16 %v8698, %v8697
        %v8710 = vpack.c.b16 %v8700, %v8699
        %v8721 = vsel %vm8617, %v8500, 0
        %8723 = vmatprep.subr.bf16.mxu0 0
        %8724 = vmatpush1.bf16.msra.mxu0 %v8701
        %8725 = vmatprep.subr.bf16.mxu0 0
        %8726 = vmatpush1.bf16.msra.mxu0 %v8702
        %8727 = vmatprep.subr.bf16.mxu0 0
        %8728 = vmatpush1.bf16.msra.mxu0 %v8703
        %8729 = vmatprep.subr.bf16.mxu0 0
        %8730 = vmatpush1.bf16.msra.mxu0 %v8704
        %8731 = vmatprep.subr.bf16.mxu0 0
        %8732 = vmatpush1.bf16.msra.mxu0 %v8705
        %8733 = vmatprep.subr.bf16.mxu0 0
        %8734 = vmatpush1.bf16.msra.mxu0 %v8706
        %8735 = vmatprep.subr.bf16.mxu0 0
        %8736 = vmatpush1.bf16.msra.mxu0 %v8707
        %8737 = vmatprep.subr.bf16.mxu0 0
        %8738 = vmatpush1.bf16.msra.mxu0 %v8708
        %8739 = vmatprep.subr.bf16.mxu0 0
        %8740 = vmatpush1.bf16.msra.mxu0 %v8709
        %8741 = vmatprep.subr.bf16.mxu0 0
        %8742 = vmatpush1.bf16.msra.mxu0 %v8710
        %8743 = vmatprep.subr.bf16.mxu0 0
        %8744 = vmatpush1.bf16.msra.mxu0 0
        %8745 = vmatprep.subr.bf16.mxu0 0
        %8746 = vmatpush1.bf16.msra.mxu0 0
        %8747 = vmatprep.subr.bf16.mxu0 0
        %8748 = vmatpush1.bf16.msra.mxu0 0
        %8749 = vmatprep.subr.bf16.mxu0 0
        %8750 = vmatpush1.bf16.msra.mxu0 0
        %8751 = vmatprep.subr.bf16.mxu0 0
        %8752 = vmatpush1.bf16.msra.mxu0 0
        %8753 = vmatprep.subr.bf16.mxu0 0
        %8754 = vmatpush1.bf16.msra.mxu0 0
        %8755 = vmatprep.mubr.bf16.mxu0 %v8721
        %8756 = vmatmul.mubr.bf16.gmra.mrb[0].mxu0 %v8499
        %v8757 = vpop.f32.mrb[0].mxu0
        %v8758 = vadd.f32 %v8656, %v8757
        %v8759 = vpop.f32.mrb[0].mxu0
        %v8760 = vpop.f32.mrb[0].mxu0
        %v8761 = vpop.f32.mrb[0].mxu0
        %8762 = vdwg.mxu0
        %s8763 = scalar_lea.vmem %s7, 160
        %v8764 = vld [vmem:[%s8763] sm:$0xf]
        %v8765 = vld [vmem:[%s8763 + $0x4] sm:$0xf]
        %v8766 = vld [vmem:[%s8763 + $0x8] sm:$0xf]
        %v8767 = vld [vmem:[%s8763 + $0xc] sm:$0xf]
        %v8768 = vld [vmem:[%s8763 + $0x10] sm:$0xf]
        %v8769 = vld [vmem:[%s8763 + $0x14] sm:$0xf]
        %v8770 = vld [vmem:[%s8763 + $0x18] sm:$0xf]
        %v8771 = vld [vmem:[%s8763 + $0x1c] sm:$0xf]
        %v8772 = vld [vmem:[%s8763 + $0x20] sm:$0xf]
        %v8773 = vld [vmem:[%s8763 + $0x24] sm:$0xf]
        %v8774 = vld [vmem:[%s8763 + $0x28] sm:$0xf]
        %v8775 = vld [vmem:[%s8763 + $0x2c] sm:$0xf]
        %v8776 = vld [vmem:[%s8763 + $0x30] sm:$0xf]
        %v8777 = vld [vmem:[%s8763 + $0x34] sm:$0xf]
        %v8778 = vld [vmem:[%s8763 + $0x38] sm:$0xf]
        %v8779 = vld [vmem:[%s8763 + $0x3c] sm:$0xf]
        %v8780 = vld [vmem:[%s8763 + $0x40] sm:$0xf]
        %v8781 = vld [vmem:[%s8763 + $0x44] sm:$0xf]
        %v8782 = vld [vmem:[%s8763 + $0x48] sm:$0xf]
        %v8783 = vld [vmem:[%s8763 + $0x4c] sm:$0xf]
        %v8786 = vrot.slane %v8499, 1
        %v8787 = vrot.slane %v8500, 1
        %v8809 = vunpack.c.l.b16 %v8764
        %v8810 = vunpack.c.l.b16 %v8765
        %v8811 = vunpack.c.l.b16 %v8766
        %v8812 = vunpack.c.l.b16 %v8767
        %v8813 = vunpack.c.l.b16 %v8768
        %v8814 = vunpack.c.l.b16 %v8769
        %v8815 = vunpack.c.l.b16 %v8770
        %v8816 = vunpack.c.l.b16 %v8771
        %v8817 = vunpack.c.l.b16 %v8772
        %v8818 = vunpack.c.l.b16 %v8773
        %v8819 = vunpack.c.l.b16 %v8774
        %v8820 = vunpack.c.l.b16 %v8775
        %v8821 = vunpack.c.l.b16 %v8776
        %v8822 = vunpack.c.l.b16 %v8777
        %v8823 = vunpack.c.l.b16 %v8778
        %v8824 = vunpack.c.l.b16 %v8779
        %v8825 = vunpack.c.l.b16 %v8780
        %v8826 = vunpack.c.l.b16 %v8781
        %v8827 = vunpack.c.l.b16 %v8782
        %v8828 = vunpack.c.l.b16 %v8783
        %v8829 = vpack.c.b16 %v8810, %v8809
        %v8830 = vpack.c.b16 %v8812, %v8811
        %v8831 = vpack.c.b16 %v8814, %v8813
        %v8832 = vpack.c.b16 %v8816, %v8815
        %v8833 = vpack.c.b16 %v8818, %v8817
        %v8834 = vpack.c.b16 %v8820, %v8819
        %v8835 = vpack.c.b16 %v8822, %v8821
        %v8836 = vpack.c.b16 %v8824, %v8823
        %v8837 = vpack.c.b16 %v8826, %v8825
        %v8838 = vpack.c.b16 %v8828, %v8827
        %v8850 = vsel %vm8617, %v8787, 0
        %8852 = vmatprep.subr.bf16.mxu0 0
        %8853 = vmatpush1.bf16.msra.mxu0 %v8829
        %8854 = vmatprep.subr.bf16.mxu0 0
        %8855 = vmatpush1.bf16.msra.mxu0 %v8830
        %8856 = vmatprep.subr.bf16.mxu0 0
        %8857 = vmatpush1.bf16.msra.mxu0 %v8831
        %8858 = vmatprep.subr.bf16.mxu0 0
        %8859 = vmatpush1.bf16.msra.mxu0 %v8832
        %8860 = vmatprep.subr.bf16.mxu0 0
        %8861 = vmatpush1.bf16.msra.mxu0 %v8833
        %8862 = vmatprep.subr.bf16.mxu0 0
        %8863 = vmatpush1.bf16.msra.mxu0 %v8834
        %8864 = vmatprep.subr.bf16.mxu0 0
        %8865 = vmatpush1.bf16.msra.mxu0 %v8835
        %8866 = vmatprep.subr.bf16.mxu0 0
        %8867 = vmatpush1.bf16.msra.mxu0 %v8836
        %8868 = vmatprep.subr.bf16.mxu0 0
        %8869 = vmatpush1.bf16.msra.mxu0 %v8837
        %8870 = vmatprep.subr.bf16.mxu0 0
        %8871 = vmatpush1.bf16.msra.mxu0 %v8838
        %8872 = vmatprep.subr.bf16.mxu0 0
        %8873 = vmatpush1.bf16.msra.mxu0 0
        %8874 = vmatprep.subr.bf16.mxu0 0
        %8875 = vmatpush1.bf16.msra.mxu0 0
        %8876 = vmatprep.subr.bf16.mxu0 0
        %8877 = vmatpush1.bf16.msra.mxu0 0
        %8878 = vmatprep.subr.bf16.mxu0 0
        %8879 = vmatpush1.bf16.msra.mxu0 0
        %8880 = vmatprep.subr.bf16.mxu0 0
        %8881 = vmatpush1.bf16.msra.mxu0 0
        %8882 = vmatprep.subr.bf16.mxu0 0
        %8883 = vmatpush1.bf16.msra.mxu0 0
        %8884 = vmatprep.mubr.bf16.mxu0 %v8850
        %8885 = vmatmul.mubr.bf16.gmra.mrb[0].mxu0 %v8786
        %v8886 = vpop.f32.mrb[0].mxu0
        %v8887 = vadd.f32 0.0, %v8886
        %v8888 = vpop.f32.mrb[0].mxu0
        %v8889 = vpop.f32.mrb[0].mxu0
        %v8890 = vpop.f32.mrb[0].mxu0
        %8891 = vdwg.mxu0
        %v8892 = vadd.f32 %v8758, %v8887
        %s8893 = scalar_lea.vmem %s7, 240
        %v8894 = vld [vmem:[%s8893] sm:$0xf]
        %v8895 = vld [vmem:[%s8893 + $0x4] sm:$0xf]
        %v8896 = vld [vmem:[%s8893 + $0x8] sm:$0xf]
        %v8897 = vld [vmem:[%s8893 + $0xc] sm:$0xf]
        %v8898 = vld [vmem:[%s8893 + $0x10] sm:$0xf]
        %v8899 = vld [vmem:[%s8893 + $0x14] sm:$0xf]
        %v8900 = vld [vmem:[%s8893 + $0x18] sm:$0xf]
        %v8901 = vld [vmem:[%s8893 + $0x1c] sm:$0xf]
        %v8902 = vld [vmem:[%s8893 + $0x20] sm:$0xf]
        %v8903 = vld [vmem:[%s8893 + $0x24] sm:$0xf]
        %v8904 = vld [vmem:[%s8893 + $0x28] sm:$0xf]
        %v8905 = vld [vmem:[%s8893 + $0x2c] sm:$0xf]
        %v8906 = vld [vmem:[%s8893 + $0x30] sm:$0xf]
        %v8907 = vld [vmem:[%s8893 + $0x34] sm:$0xf]
        %v8908 = vld [vmem:[%s8893 + $0x38] sm:$0xf]
        %v8909 = vld [vmem:[%s8893 + $0x3c] sm:$0xf]
        %v8910 = vld [vmem:[%s8893 + $0x40] sm:$0xf]
        %v8911 = vld [vmem:[%s8893 + $0x44] sm:$0xf]
        %v8912 = vld [vmem:[%s8893 + $0x48] sm:$0xf]
        %v8913 = vld [vmem:[%s8893 + $0x4c] sm:$0xf]
        %v8914 = vrot.slane %v8543, 1
        %v8915 = vrot.slane %v8545, 2
        %v8916 = vor.u32 %v8914, %v8915
        %v8917 = vrot.slane %v8550, 1
        %v8918 = vrot.slane %v8552, 2
        %v8919 = vor.u32 %v8917, %v8918
        %v8941 = vunpack.c.l.b16 %v8894
        %v8942 = vunpack.c.l.b16 %v8895
        %v8943 = vunpack.c.l.b16 %v8896
        %v8944 = vunpack.c.l.b16 %v8897
        %v8945 = vunpack.c.l.b16 %v8898
        %v8946 = vunpack.c.l.b16 %v8899
        %v8947 = vunpack.c.l.b16 %v8900
        %v8948 = vunpack.c.l.b16 %v8901
        %v8949 = vunpack.c.l.b16 %v8902
        %v8950 = vunpack.c.l.b16 %v8903
        %v8951 = vunpack.c.l.b16 %v8904
        %v8952 = vunpack.c.l.b16 %v8905
        %v8953 = vunpack.c.l.b16 %v8906
        %v8954 = vunpack.c.l.b16 %v8907
        %v8955 = vunpack.c.l.b16 %v8908
        %v8956 = vunpack.c.l.b16 %v8909
        %v8957 = vunpack.c.l.b16 %v8910
        %v8958 = vunpack.c.l.b16 %v8911
        %v8959 = vunpack.c.l.b16 %v8912
        %v8960 = vunpack.c.l.b16 %v8913
        %v8961 = vpack.c.b16 %v8942, %v8941
        %v8962 = vpack.c.b16 %v8944, %v8943
        %v8963 = vpack.c.b16 %v8946, %v8945
        %v8964 = vpack.c.b16 %v8948, %v8947
        %v8965 = vpack.c.b16 %v8950, %v8949
        %v8966 = vpack.c.b16 %v8952, %v8951
        %v8967 = vpack.c.b16 %v8954, %v8953
        %v8968 = vpack.c.b16 %v8956, %v8955
        %v8969 = vpack.c.b16 %v8958, %v8957
        %v8970 = vpack.c.b16 %v8960, %v8959
        %v8982 = vsel %vm8617, %v8919, 0
        %8984 = vmatprep.subr.bf16.mxu0 0
        %8985 = vmatpush1.bf16.msra.mxu0 %v8961
        %8986 = vmatprep.subr.bf16.mxu0 0
        %8987 = vmatpush1.bf16.msra.mxu0 %v8962
        %8988 = vmatprep.subr.bf16.mxu0 0
        %8989 = vmatpush1.bf16.msra.mxu0 %v8963
        %8990 = vmatprep.subr.bf16.mxu0 0
        %8991 = vmatpush1.bf16.msra.mxu0 %v8964
        %8992 = vmatprep.subr.bf16.mxu0 0
        %8993 = vmatpush1.bf16.msra.mxu0 %v8965
        %8994 = vmatprep.subr.bf16.mxu0 0
        %8995 = vmatpush1.bf16.msra.mxu0 %v8966
        %8996 = vmatprep.subr.bf16.mxu0 0
        %8997 = vmatpush1.bf16.msra.mxu0 %v8967
        %8998 = vmatprep.subr.bf16.mxu0 0
        %8999 = vmatpush1.bf16.msra.mxu0 %v8968
        %9000 = vmatprep.subr.bf16.mxu0 0
        %9001 = vmatpush1.bf16.msra.mxu0 %v8969
        %9002 = vmatprep.subr.bf16.mxu0 0
        %9003 = vmatpush1.bf16.msra.mxu0 %v8970
        %9004 = vmatprep.subr.bf16.mxu0 0
        %9005 = vmatpush1.bf16.msra.mxu0 0
        %9006 = vmatprep.subr.bf16.mxu0 0
        %9007 = vmatpush1.bf16.msra.mxu0 0
        %9008 = vmatprep.subr.bf16.mxu0 0
        %9009 = vmatpush1.bf16.msra.mxu0 0
        %9010 = vmatprep.subr.bf16.mxu0 0
        %9011 = vmatpush1.bf16.msra.mxu0 0
        %9012 = vmatprep.subr.bf16.mxu0 0
        %9013 = vmatpush1.bf16.msra.mxu0 0
        %9014 = vmatprep.subr.bf16.mxu0 0
        %9015 = vmatpush1.bf16.msra.mxu0 0
        %9016 = vmatprep.mubr.bf16.mxu0 %v8982
        %9017 = vmatmul.mubr.bf16.gmra.mrb[0].mxu0 %v8916
        %v9018 = vpop.f32.mrb[0].mxu0
        %v9019 = vadd.f32 0.0, %v9018
        %v9020 = vpop.f32.mrb[0].mxu0
        %v9021 = vpop.f32.mrb[0].mxu0
        %v9022 = vpop.f32.mrb[0].mxu0
        %9023 = vdwg.mxu0
        %v9024 = vadd.f32 %v8892, %v9019
        %v9025 = vld [vmem:[%s8] sm:$0x1]
        %v9027 = vlaneseq
        %v9028 = vshrl.u32 %v9027, 7
        %v9029 = vsub.s32 0, %v9028
        %v9030 = vrot.slane %v9025, %v9029
        %v9032 = vadd.f32 %v9024, %v9030
        %v9033 = vmax.f32 %v9032, 0.0
        %v9034 = vpack.c.bf16 %v9033, %v9033
        %v9035 = vld [vmem:[%s9] sm:$0xff]
        %v9036 = vld [vmem:[%s9 + $0x8] sm:$0xff]
        %v9037 = vld [vmem:[%s9 + $0x10] sm:$0xff]
        %v9038 = vld [vmem:[%s9 + $0x18] sm:$0xff]
        %v9039 = vld [vmem:[%s9 + $0x20] sm:$0xff]
        %v9040 = vld [vmem:[%s9 + $0x28] sm:$0xff]
        %v9041 = vld [vmem:[%s9 + $0x30] sm:$0xff]
        %v9042 = vld [vmem:[%s9 + $0x38] sm:$0xff]
        %v9043 = vld [vmem:[%s9 + $0x40] sm:$0xff]
        %v9044 = vld [vmem:[%s9 + $0x48] sm:$0xff]
        %v9045 = vld [vmem:[%s9 + $0x50] sm:$0xff]
        %v9046 = vld [vmem:[%s9 + $0x58] sm:$0xff]
        %v9047 = vld [vmem:[%s9 + $0x60] sm:$0xff]
        %v9048 = vld [vmem:[%s9 + $0x68] sm:$0xff]
        %v9049 = vld [vmem:[%s9 + $0x70] sm:$0xff]
        %v9050 = vld [vmem:[%s9 + $0x78] sm:$0xff]
        %s9051 = scalar_lea.vmem %s9, 128
        %v9052 = vld [vmem:[%s9051] sm:$0xff]
        %v9053 = vld [vmem:[%s9051 + $0x8] sm:$0xff]
        %v9054 = vld [vmem:[%s9051 + $0x10] sm:$0xff]
        %v9055 = vld [vmem:[%s9051 + $0x18] sm:$0xff]
        %v9056 = vld [vmem:[%s9051 + $0x20] sm:$0xff]
        %v9057 = vld [vmem:[%s9051 + $0x28] sm:$0xff]
        %v9058 = vld [vmem:[%s9051 + $0x30] sm:$0xff]
        %v9059 = vld [vmem:[%s9051 + $0x38] sm:$0xff]
        %v9060 = vld [vmem:[%s9051 + $0x40] sm:$0xff]
        %v9061 = vld [vmem:[%s9051 + $0x48] sm:$0xff]
        %v9062 = vld [vmem:[%s9051 + $0x50] sm:$0xff]
        %v9063 = vld [vmem:[%s9051 + $0x58] sm:$0xff]
        %v9064 = vld [vmem:[%s9051 + $0x60] sm:$0xff]
        %v9065 = vld [vmem:[%s9051 + $0x68] sm:$0xff]
        %v9066 = vld [vmem:[%s9051 + $0x70] sm:$0xff]
        %v9067 = vld [vmem:[%s9051 + $0x78] sm:$0xff]
        %v9069 = vshrl.u32 %v9034, 16
        %v9087 = vunpack.c.l.b16 %v9052
        %v9088 = vunpack.c.h.b16 %v9052
        %v9089 = vunpack.c.l.b16 %v9053
        %v9090 = vunpack.c.h.b16 %v9053
        %v9091 = vunpack.c.l.b16 %v9054
        %v9092 = vunpack.c.h.b16 %v9054
        %v9093 = vunpack.c.l.b16 %v9055
        %v9094 = vunpack.c.h.b16 %v9055
        %v9095 = vunpack.c.l.b16 %v9056
        %v9096 = vunpack.c.h.b16 %v9056
        %v9097 = vunpack.c.l.b16 %v9057
        %v9098 = vunpack.c.h.b16 %v9057
        %v9099 = vunpack.c.l.b16 %v9058
        %v9100 = vunpack.c.h.b16 %v9058
        %v9101 = vunpack.c.l.b16 %v9059
        %v9102 = vunpack.c.h.b16 %v9059
        %v9103 = vunpack.c.l.b16 %v9060
        %v9104 = vunpack.c.h.b16 %v9060
        %v9105 = vunpack.c.l.b16 %v9061
        %v9106 = vunpack.c.h.b16 %v9061
        %v9107 = vunpack.c.l.b16 %v9062
        %v9108 = vunpack.c.h.b16 %v9062
        %v9109 = vunpack.c.l.b16 %v9063
        %v9110 = vunpack.c.h.b16 %v9063
        %v9111 = vunpack.c.l.b16 %v9064
        %v9112 = vunpack.c.h.b16 %v9064
        %v9113 = vunpack.c.l.b16 %v9065
        %v9114 = vunpack.c.h.b16 %v9065
        %v9115 = vunpack.c.l.b16 %v9066
        %v9116 = vunpack.c.h.b16 %v9066
        %v9117 = vunpack.c.l.b16 %v9067
        %v9118 = vunpack.c.h.b16 %v9067
        %v9119 = vpack.c.b16 %v9091, %v9087
        %v9120 = vpack.c.b16 %v9092, %v9088
        %v9121 = vpack.c.b16 %v9093, %v9089
        %v9122 = vpack.c.b16 %v9094, %v9090
        %v9123 = vpack.c.b16 %v9099, %v9095
        %v9124 = vpack.c.b16 %v9100, %v9096
        %v9125 = vpack.c.b16 %v9101, %v9097
        %v9126 = vpack.c.b16 %v9102, %v9098
        %v9127 = vpack.c.b16 %v9107, %v9103
        %v9128 = vpack.c.b16 %v9108, %v9104
        %v9129 = vpack.c.b16 %v9109, %v9105
        %v9130 = vpack.c.b16 %v9110, %v9106
        %v9131 = vpack.c.b16 %v9115, %v9111
        %v9132 = vpack.c.b16 %v9116, %v9112
        %v9133 = vpack.c.b16 %v9117, %v9113
        %v9134 = vpack.c.b16 %v9118, %v9114
        %v9152 = vsel %vm4472, %v9069, 0
        %9154 = vmatprep.subr.bf16.mxu0 %v9120
        %9155 = vmatpush1.bf16.msra.mxu0 %v9119
        %9156 = vmatprep.subr.bf16.mxu0 %v9124
        %9157 = vmatpush1.bf16.msra.mxu0 %v9123
        %9158 = vmatprep.subr.bf16.mxu0 %v9128
        %9159 = vmatpush1.bf16.msra.mxu0 %v9127
        %9160 = vmatprep.subr.bf16.mxu0 %v9132
        %9161 = vmatpush1.bf16.msra.mxu0 %v9131
        %9162 = vmatprep.subr.bf16.mxu0 0
        %9163 = vmatpush1.bf16.msra.mxu0 0
        %9164 = vmatprep.subr.bf16.mxu0 0
        %9165 = vmatpush1.bf16.msra.mxu0 0
        %9166 = vmatprep.subr.bf16.mxu0 0
        %9167 = vmatpush1.bf16.msra.mxu0 0
        %9168 = vmatprep.subr.bf16.mxu0 0
        %9169 = vmatpush1.bf16.msra.mxu0 0
        %9170 = vmatprep.subr.bf16.mxu0 0
        %9171 = vmatpush1.bf16.msra.mxu0 0
        %9172 = vmatprep.subr.bf16.mxu0 0
        %9173 = vmatpush1.bf16.msra.mxu0 0
        %9174 = vmatprep.subr.bf16.mxu0 0
        %9175 = vmatpush1.bf16.msra.mxu0 0
        %9176 = vmatprep.subr.bf16.mxu0 0
        %9177 = vmatpush1.bf16.msra.mxu0 0
        %9178 = vmatprep.subr.bf16.mxu0 0
        %9179 = vmatpush1.bf16.msra.mxu0 0
        %9180 = vmatprep.subr.bf16.mxu0 0
        %9181 = vmatpush1.bf16.msra.mxu0 0
        %9182 = vmatprep.subr.bf16.mxu0 0
        %9183 = vmatpush1.bf16.msra.mxu0 0
        %9184 = vmatprep.subr.bf16.mxu0 0
        %9185 = vmatpush1.bf16.msra.mxu0 0
        %9186 = vmatprep.mubr.bf16.mxu0 0
        %9187 = vmatmul.mubr.bf16.gmra.mrb[0].mxu0 %v9152
        %v9188 = vpop.f32.mrb[0].mxu0
        %v9189 = vadd.f32 0.0, %v9188
        %v9190 = vpop.f32.mrb[0].mxu0
        %v9191 = vadd.f32 0.0, %v9190
        %v9192 = vpop.f32.mrb[0].mxu0
        %v9193 = vpop.f32.mrb[0].mxu0
        %9194 = vdwg.mxu0
        %9195 = vmatprep.subr.bf16.mxu0 %v9122
        %9196 = vmatpush1.bf16.msra.mxu0 %v9121
        %9197 = vmatprep.subr.bf16.mxu0 %v9126
        %9198 = vmatpush1.bf16.msra.mxu0 %v9125
        %9199 = vmatprep.subr.bf16.mxu0 %v9130
        %9200 = vmatpush1.bf16.msra.mxu0 %v9129
        %9201 = vmatprep.subr.bf16.mxu0 %v9134
        %9202 = vmatpush1.bf16.msra.mxu0 %v9133
        %9203 = vmatprep.subr.bf16.mxu0 0
        %9204 = vmatpush1.bf16.msra.mxu0 0
        %9205 = vmatprep.subr.bf16.mxu0 0
        %9206 = vmatpush1.bf16.msra.mxu0 0
        %9207 = vmatprep.subr.bf16.mxu0 0
        %9208 = vmatpush1.bf16.msra.mxu0 0
        %9209 = vmatprep.subr.bf16.mxu0 0
        %9210 = vmatpush1.bf16.msra.mxu0 0
        %9211 = vmatprep.subr.bf16.mxu0 0
        %9212 = vmatpush1.bf16.msra.mxu0 0
        %9213 = vmatprep.subr.bf16.mxu0 0
        %9214 = vmatpush1.bf16.msra.mxu0 0
        %9215 = vmatprep.subr.bf16.mxu0 0
        %9216 = vmatpush1.bf16.msra.mxu0 0
        %9217 = vmatprep.subr.bf16.mxu0 0
        %9218 = vmatpush1.bf16.msra.mxu0 0
        %9219 = vmatprep.subr.bf16.mxu0 0
        %9220 = vmatpush1.bf16.msra.mxu0 0
        %9221 = vmatprep.subr.bf16.mxu0 0
        %9222 = vmatpush1.bf16.msra.mxu0 0
        %9223 = vmatprep.subr.bf16.mxu0 0
        %9224 = vmatpush1.bf16.msra.mxu0 0
        %9225 = vmatprep.subr.bf16.mxu0 0
        %9226 = vmatpush1.bf16.msra.mxu0 0
        %9227 = vmatprep.mubr.bf16.mxu0 0
        %9228 = vmatmul.mubr.bf16.gmra.mrb[0].mxu0 %v9152
        %v9229 = vpop.f32.mrb[0].mxu0
        %v9230 = vadd.f32 0.0, %v9229
        %v9231 = vpop.f32.mrb[0].mxu0
        %v9232 = vadd.f32 0.0, %v9231
        %v9233 = vpop.f32.mrb[0].mxu0
        %v9234 = vpop.f32.mrb[0].mxu0
        %9235 = vdwg.mxu0
        %v9252 = vunpack.c.l.b16 %v9035
        %v9253 = vunpack.c.h.b16 %v9035
        %v9254 = vunpack.c.l.b16 %v9036
        %v9255 = vunpack.c.h.b16 %v9036
        %v9256 = vunpack.c.l.b16 %v9037
        %v9257 = vunpack.c.h.b16 %v9037
        %v9258 = vunpack.c.l.b16 %v9038
        %v9259 = vunpack.c.h.b16 %v9038
        %v9260 = vunpack.c.l.b16 %v9039
        %v9261 = vunpack.c.h.b16 %v9039
        %v9262 = vunpack.c.l.b16 %v9040
        %v9263 = vunpack.c.h.b16 %v9040
        %v9264 = vunpack.c.l.b16 %v9041
        %v9265 = vunpack.c.h.b16 %v9041
        %v9266 = vunpack.c.l.b16 %v9042
        %v9267 = vunpack.c.h.b16 %v9042
        %v9268 = vunpack.c.l.b16 %v9043
        %v9269 = vunpack.c.h.b16 %v9043
        %v9270 = vunpack.c.l.b16 %v9044
        %v9271 = vunpack.c.h.b16 %v9044
        %v9272 = vunpack.c.l.b16 %v9045
        %v9273 = vunpack.c.h.b16 %v9045
        %v9274 = vunpack.c.l.b16 %v9046
        %v9275 = vunpack.c.h.b16 %v9046
        %v9276 = vunpack.c.l.b16 %v9047
        %v9277 = vunpack.c.h.b16 %v9047
        %v9278 = vunpack.c.l.b16 %v9048
        %v9279 = vunpack.c.h.b16 %v9048
        %v9280 = vunpack.c.l.b16 %v9049
        %v9281 = vunpack.c.h.b16 %v9049
        %v9282 = vunpack.c.l.b16 %v9050
        %v9283 = vunpack.c.h.b16 %v9050
        %v9284 = vpack.c.b16 %v9256, %v9252
        %v9285 = vpack.c.b16 %v9257, %v9253
        %v9286 = vpack.c.b16 %v9258, %v9254
        %v9287 = vpack.c.b16 %v9259, %v9255
        %v9288 = vpack.c.b16 %v9264, %v9260
        %v9289 = vpack.c.b16 %v9265, %v9261
        %v9290 = vpack.c.b16 %v9266, %v9262
        %v9291 = vpack.c.b16 %v9267, %v9263
        %v9292 = vpack.c.b16 %v9272, %v9268
        %v9293 = vpack.c.b16 %v9273, %v9269
        %v9294 = vpack.c.b16 %v9274, %v9270
        %v9295 = vpack.c.b16 %v9275, %v9271
        %v9296 = vpack.c.b16 %v9280, %v9276
        %v9297 = vpack.c.b16 %v9281, %v9277
        %v9298 = vpack.c.b16 %v9282, %v9278
        %v9299 = vpack.c.b16 %v9283, %v9279
        %v9316 = vsel %vm4472, %v9034, 0
        %9318 = vmatprep.subr.bf16.mxu0 %v9285
        %9319 = vmatpush1.bf16.msra.mxu0 %v9284
        %9320 = vmatprep.subr.bf16.mxu0 %v9289
        %9321 = vmatpush1.bf16.msra.mxu0 %v9288
        %9322 = vmatprep.subr.bf16.mxu0 %v9293
        %9323 = vmatpush1.bf16.msra.mxu0 %v9292
        %9324 = vmatprep.subr.bf16.mxu0 %v9297
        %9325 = vmatpush1.bf16.msra.mxu0 %v9296
        %9326 = vmatprep.subr.bf16.mxu0 0
        %9327 = vmatpush1.bf16.msra.mxu0 0
        %9328 = vmatprep.subr.bf16.mxu0 0
        %9329 = vmatpush1.bf16.msra.mxu0 0
        %9330 = vmatprep.subr.bf16.mxu0 0
        %9331 = vmatpush1.bf16.msra.mxu0 0
        %9332 = vmatprep.subr.bf16.mxu0 0
        %9333 = vmatpush1.bf16.msra.mxu0 0
        %9334 = vmatprep.subr.bf16.mxu0 0
        %9335 = vmatpush1.bf16.msra.mxu0 0
        %9336 = vmatprep.subr.bf16.mxu0 0
        %9337 = vmatpush1.bf16.msra.mxu0 0
        %9338 = vmatprep.subr.bf16.mxu0 0
        %9339 = vmatpush1.bf16.msra.mxu0 0
        %9340 = vmatprep.subr.bf16.mxu0 0
        %9341 = vmatpush1.bf16.msra.mxu0 0
        %9342 = vmatprep.subr.bf16.mxu0 0
        %9343 = vmatpush1.bf16.msra.mxu0 0
        %9344 = vmatprep.subr.bf16.mxu0 0
        %9345 = vmatpush1.bf16.msra.mxu0 0
        %9346 = vmatprep.subr.bf16.mxu0 0
        %9347 = vmatpush1.bf16.msra.mxu0 0
        %9348 = vmatprep.subr.bf16.mxu0 0
        %9349 = vmatpush1.bf16.msra.mxu0 0
        %9350 = vmatprep.mubr.bf16.mxu0 0
        %9351 = vmatmul.mubr.bf16.gmra.mrb[0].mxu0 %v9316
        %v9352 = vpop.f32.mrb[0].mxu0
        %v9353 = vadd.f32 %v9189, %v9352
        %v9354 = vpop.f32.mrb[0].mxu0
        %v9355 = vadd.f32 %v9191, %v9354
        %v9356 = vpop.f32.mrb[0].mxu0
        %v9357 = vpop.f32.mrb[0].mxu0
        %9358 = vdwg.mxu0
        %9359 = vmatprep.subr.bf16.mxu0 %v9287
        %9360 = vmatpush1.bf16.msra.mxu0 %v9286
        %9361 = vmatprep.subr.bf16.mxu0 %v9291
        %9362 = vmatpush1.bf16.msra.mxu0 %v9290
        %9363 = vmatprep.subr.bf16.mxu0 %v9295
        %9364 = vmatpush1.bf16.msra.mxu0 %v9294
        %9365 = vmatprep.subr.bf16.mxu0 %v9299
        %9366 = vmatpush1.bf16.msra.mxu0 %v9298
        %9367 = vmatprep.subr.bf16.mxu0 0
        %9368 = vmatpush1.bf16.msra.mxu0 0
        %9369 = vmatprep.subr.bf16.mxu0 0
        %9370 = vmatpush1.bf16.msra.mxu0 0
        %9371 = vmatprep.subr.bf16.mxu0 0
        %9372 = vmatpush1.bf16.msra.mxu0 0
        %9373 = vmatprep.subr.bf16.mxu0 0
        %9374 = vmatpush1.bf16.msra.mxu0 0
        %9375 = vmatprep.subr.bf16.mxu0 0
        %9376 = vmatpush1.bf16.msra.mxu0 0
        %9377 = vmatprep.subr.bf16.mxu0 0
        %9378 = vmatpush1.bf16.msra.mxu0 0
        %9379 = vmatprep.subr.bf16.mxu0 0
        %9380 = vmatpush1.bf16.msra.mxu0 0
        %9381 = vmatprep.subr.bf16.mxu0 0
        %9382 = vmatpush1.bf16.msra.mxu0 0
        %9383 = vmatprep.subr.bf16.mxu0 0
        %9384 = vmatpush1.bf16.msra.mxu0 0
        %9385 = vmatprep.subr.bf16.mxu0 0
        %9386 = vmatpush1.bf16.msra.mxu0 0
        %9387 = vmatprep.subr.bf16.mxu0 0
        %9388 = vmatpush1.bf16.msra.mxu0 0
        %9389 = vmatprep.subr.bf16.mxu0 0
        %9390 = vmatpush1.bf16.msra.mxu0 0
        %9391 = vmatprep.mubr.bf16.mxu0 0
        %9392 = vmatmul.mubr.bf16.gmra.mrb[0].mxu0 %v9316
        %v9393 = vpop.f32.mrb[0].mxu0
        %v9394 = vadd.f32 %v9230, %v9393
        %v9395 = vpop.f32.mrb[0].mxu0
        %v9396 = vadd.f32 %v9232, %v9395
        %v9397 = vpop.f32.mrb[0].mxu0
        %v9398 = vpop.f32.mrb[0].mxu0
        %9399 = vdwg.mxu0
        %v9400 = vld [vmem:[%s10] sm:$0xf]
        %v9402 = vlaneseq
        %v9403 = vshrl.u32 %v9402, 7
        %v9404 = vsub.s32 0, %v9403
        %v9405 = vrot.slane %v9400, %v9404
        %v9406 = vlaneseq
        %v9407 = vshrl.u32 %v9406, 7
        %v9408 = vsub.s32 1, %v9407
        %v9409 = vrot.slane %v9400, %v9408
        %v9410 = vlaneseq
        %v9411 = vshrl.u32 %v9410, 7
        %v9412 = vsub.s32 2, %v9411
        %v9413 = vrot.slane %v9400, %v9412
        %v9414 = vlaneseq
        %v9415 = vshrl.u32 %v9414, 7
        %v9416 = vsub.s32 3, %v9415
        %v9417 = vrot.slane %v9400, %v9416
        %v9422 = vadd.f32 %v9353, %v9405
        %v9423 = vadd.f32 %v9355, %v9409
        %v9424 = vadd.f32 %v9394, %v9413
        %v9425 = vadd.f32 %v9396, %v9417
        %v9426 = vmax.f32 %v9422, 0.0
        %v9427 = vmax.f32 %v9423, 0.0
        %v9428 = vmax.f32 %v9424, 0.0
        %v9429 = vmax.f32 %v9425, 0.0
        %v9430 = vpack.c.bf16 %v9426, %v9426
        %v9431 = vpack.c.bf16 %v9427, %v9427
        %v9432 = vpack.c.bf16 %v9428, %v9428
        %v9433 = vpack.c.bf16 %v9429, %v9429
        %v9434 = vld [vmem:[%s11] sm:$0xf]
        %v9435 = vld [vmem:[%s11 + $0x4] sm:$0xf]
        %v9436 = vld [vmem:[%s11 + $0x8] sm:$0xf]
        %v9437 = vld [vmem:[%s11 + $0xc] sm:$0xf]
        %v9438 = vld [vmem:[%s11 + $0x10] sm:$0xf]
        %v9439 = vld [vmem:[%s11 + $0x14] sm:$0xf]
        %v9440 = vld [vmem:[%s11 + $0x18] sm:$0xf]
        %v9441 = vld [vmem:[%s11 + $0x1c] sm:$0xf]
        %v9442 = vld [vmem:[%s11 + $0x20] sm:$0xf]
        %v9443 = vld [vmem:[%s11 + $0x24] sm:$0xf]
        %v9444 = vld [vmem:[%s11 + $0x28] sm:$0xf]
        %v9445 = vld [vmem:[%s11 + $0x2c] sm:$0xf]
        %v9446 = vld [vmem:[%s11 + $0x30] sm:$0xf]
        %v9447 = vld [vmem:[%s11 + $0x34] sm:$0xf]
        %v9448 = vld [vmem:[%s11 + $0x38] sm:$0xf]
        %v9449 = vld [vmem:[%s11 + $0x3c] sm:$0xf]
        %v9450 = vld [vmem:[%s11 + $0x40] sm:$0xf]
        %v9451 = vld [vmem:[%s11 + $0x44] sm:$0xf]
        %v9452 = vld [vmem:[%s11 + $0x48] sm:$0xf]
        %v9453 = vld [vmem:[%s11 + $0x4c] sm:$0xf]
        %v9454 = vld [vmem:[%s11 + $0x50] sm:$0xf]
        %v9455 = vld [vmem:[%s11 + $0x54] sm:$0xf]
        %v9456 = vld [vmem:[%s11 + $0x58] sm:$0xf]
        %v9457 = vld [vmem:[%s11 + $0x5c] sm:$0xf]
        %v9458 = vld [vmem:[%s11 + $0x60] sm:$0xf]
        %v9459 = vld [vmem:[%s11 + $0x64] sm:$0xf]
        %v9460 = vld [vmem:[%s11 + $0x68] sm:$0xf]
        %v9461 = vld [vmem:[%s11 + $0x6c] sm:$0xf]
        %v9462 = vld [vmem:[%s11 + $0x70] sm:$0xf]
        %v9463 = vld [vmem:[%s11 + $0x74] sm:$0xf]
        %v9464 = vld [vmem:[%s11 + $0x78] sm:$0xf]
        %v9465 = vld [vmem:[%s11 + $0x7c] sm:$0xf]
        %v9466 = vld [vmem:[%s11 + $0x80] sm:$0xf]
        %v9467 = vld [vmem:[%s11 + $0x84] sm:$0xf]
        %v9468 = vld [vmem:[%s11 + $0x88] sm:$0xf]
        %v9469 = vld [vmem:[%s11 + $0x8c] sm:$0xf]
        %v9470 = vld [vmem:[%s11 + $0x90] sm:$0xf]
        %v9471 = vld [vmem:[%s11 + $0x94] sm:$0xf]
        %v9472 = vld [vmem:[%s11 + $0x98] sm:$0xf]
        %v9473 = vld [vmem:[%s11 + $0x9c] sm:$0xf]
        %v9474 = vld [vmem:[%s11 + $0xa0] sm:$0xf]
        %v9475 = vld [vmem:[%s11 + $0xa4] sm:$0xf]
        %v9476 = vld [vmem:[%s11 + $0xa8] sm:$0xf]
        %v9477 = vld [vmem:[%s11 + $0xac] sm:$0xf]
        %v9478 = vld [vmem:[%s11 + $0xb0] sm:$0xf]
        %v9479 = vld [vmem:[%s11 + $0xb4] sm:$0xf]
        %v9480 = vld [vmem:[%s11 + $0xb8] sm:$0xf]
        %v9481 = vld [vmem:[%s11 + $0xbc] sm:$0xf]
        %v9482 = vld [vmem:[%s11 + $0xc0] sm:$0xf]
        %v9483 = vld [vmem:[%s11 + $0xc4] sm:$0xf]
        %v9484 = vld [vmem:[%s11 + $0xc8] sm:$0xf]
        %v9485 = vld [vmem:[%s11 + $0xcc] sm:$0xf]
        %v9486 = vld [vmem:[%s11 + $0xd0] sm:$0xf]
        %v9487 = vld [vmem:[%s11 + $0xd4] sm:$0xf]
        %v9488 = vld [vmem:[%s11 + $0xd8] sm:$0xf]
        %v9489 = vld [vmem:[%s11 + $0xdc] sm:$0xf]
        %v9490 = vld [vmem:[%s11 + $0xe0] sm:$0xf]
        %v9491 = vld [vmem:[%s11 + $0xe4] sm:$0xf]
        %v9492 = vld [vmem:[%s11 + $0xe8] sm:$0xf]
        %v9493 = vld [vmem:[%s11 + $0xec] sm:$0xf]
        %v9494 = vld [vmem:[%s11 + $0xf0] sm:$0xf]
        %v9495 = vld [vmem:[%s11 + $0xf4] sm:$0xf]
        %v9496 = vld [vmem:[%s11 + $0xf8] sm:$0xf]
        %v9497 = vld [vmem:[%s11 + $0xfc] sm:$0xf]
        %v9498 = vld [vmem:[%s12] sm:$0x1]
        %v9563 = vunpack.c.l.b16 %v9434
        %v9564 = vunpack.c.l.b16 %v9435
        %v9565 = vunpack.c.l.b16 %v9436
        %v9566 = vunpack.c.l.b16 %v9437
        %v9567 = vunpack.c.l.b16 %v9438
        %v9568 = vunpack.c.l.b16 %v9439
        %v9569 = vunpack.c.l.b16 %v9440
        %v9570 = vunpack.c.l.b16 %v9441
        %v9571 = vunpack.c.l.b16 %v9442
        %v9572 = vunpack.c.l.b16 %v9443
        %v9573 = vunpack.c.l.b16 %v9444
        %v9574 = vunpack.c.l.b16 %v9445
        %v9575 = vunpack.c.l.b16 %v9446
        %v9576 = vunpack.c.l.b16 %v9447
        %v9577 = vunpack.c.l.b16 %v9448
        %v9578 = vunpack.c.l.b16 %v9449
        %v9579 = vunpack.c.l.b16 %v9450
        %v9580 = vunpack.c.l.b16 %v9451
        %v9581 = vunpack.c.l.b16 %v9452
        %v9582 = vunpack.c.l.b16 %v9453
        %v9583 = vunpack.c.l.b16 %v9454
        %v9584 = vunpack.c.l.b16 %v9455
        %v9585 = vunpack.c.l.b16 %v9456
        %v9586 = vunpack.c.l.b16 %v9457
        %v9587 = vunpack.c.l.b16 %v9458
        %v9588 = vunpack.c.l.b16 %v9459
        %v9589 = vunpack.c.l.b16 %v9460
        %v9590 = vunpack.c.l.b16 %v9461
        %v9591 = vunpack.c.l.b16 %v9462
        %v9592 = vunpack.c.l.b16 %v9463
        %v9593 = vunpack.c.l.b16 %v9464
        %v9594 = vunpack.c.l.b16 %v9465
        %v9595 = vunpack.c.l.b16 %v9466
        %v9596 = vunpack.c.l.b16 %v9467
        %v9597 = vunpack.c.l.b16 %v9468
        %v9598 = vunpack.c.l.b16 %v9469
        %v9599 = vunpack.c.l.b16 %v9470
        %v9600 = vunpack.c.l.b16 %v9471
        %v9601 = vunpack.c.l.b16 %v9472
        %v9602 = vunpack.c.l.b16 %v9473
        %v9603 = vunpack.c.l.b16 %v9474
        %v9604 = vunpack.c.l.b16 %v9475
        %v9605 = vunpack.c.l.b16 %v9476
        %v9606 = vunpack.c.l.b16 %v9477
        %v9607 = vunpack.c.l.b16 %v9478
        %v9608 = vunpack.c.l.b16 %v9479
        %v9609 = vunpack.c.l.b16 %v9480
        %v9610 = vunpack.c.l.b16 %v9481
        %v9611 = vunpack.c.l.b16 %v9482
        %v9612 = vunpack.c.l.b16 %v9483
        %v9613 = vunpack.c.l.b16 %v9484
        %v9614 = vunpack.c.l.b16 %v9485
        %v9615 = vunpack.c.l.b16 %v9486
        %v9616 = vunpack.c.l.b16 %v9487
        %v9617 = vunpack.c.l.b16 %v9488
        %v9618 = vunpack.c.l.b16 %v9489
        %v9619 = vunpack.c.l.b16 %v9490
        %v9620 = vunpack.c.l.b16 %v9491
        %v9621 = vunpack.c.l.b16 %v9492
        %v9622 = vunpack.c.l.b16 %v9493
        %v9623 = vunpack.c.l.b16 %v9494
        %v9624 = vunpack.c.l.b16 %v9495
        %v9625 = vunpack.c.l.b16 %v9496
        %v9626 = vunpack.c.l.b16 %v9497
        %v9627 = vpack.c.b16 %v9564, %v9563
        %v9628 = vpack.c.b16 %v9566, %v9565
        %v9629 = vpack.c.b16 %v9568, %v9567
        %v9630 = vpack.c.b16 %v9570, %v9569
        %v9631 = vpack.c.b16 %v9572, %v9571
        %v9632 = vpack.c.b16 %v9574, %v9573
        %v9633 = vpack.c.b16 %v9576, %v9575
        %v9634 = vpack.c.b16 %v9578, %v9577
        %v9635 = vpack.c.b16 %v9580, %v9579
        %v9636 = vpack.c.b16 %v9582, %v9581
        %v9637 = vpack.c.b16 %v9584, %v9583
        %v9638 = vpack.c.b16 %v9586, %v9585
        %v9639 = vpack.c.b16 %v9588, %v9587
        %v9640 = vpack.c.b16 %v9590, %v9589
        %v9641 = vpack.c.b16 %v9592, %v9591
        %v9642 = vpack.c.b16 %v9594, %v9593
        %v9643 = vpack.c.b16 %v9596, %v9595
        %v9644 = vpack.c.b16 %v9598, %v9597
        %v9645 = vpack.c.b16 %v9600, %v9599
        %v9646 = vpack.c.b16 %v9602, %v9601
        %v9647 = vpack.c.b16 %v9604, %v9603
        %v9648 = vpack.c.b16 %v9606, %v9605
        %v9649 = vpack.c.b16 %v9608, %v9607
        %v9650 = vpack.c.b16 %v9610, %v9609
        %v9651 = vpack.c.b16 %v9612, %v9611
        %v9652 = vpack.c.b16 %v9614, %v9613
        %v9653 = vpack.c.b16 %v9616, %v9615
        %v9654 = vpack.c.b16 %v9618, %v9617
        %v9655 = vpack.c.b16 %v9620, %v9619
        %v9656 = vpack.c.b16 %v9622, %v9621
        %v9657 = vpack.c.b16 %v9624, %v9623
        %v9658 = vpack.c.b16 %v9626, %v9625
        %9691 = vmatprep.subr.bf16.mxu0 0
        %9692 = vmatpush1.bf16.msra.mxu0 %v9627
        %9693 = vmatprep.subr.bf16.mxu0 0
        %9694 = vmatpush1.bf16.msra.mxu0 %v9628
        %9695 = vmatprep.subr.bf16.mxu0 0
        %9696 = vmatpush1.bf16.msra.mxu0 %v9629
        %9697 = vmatprep.subr.bf16.mxu0 0
        %9698 = vmatpush1.bf16.msra.mxu0 %v9630
        %9699 = vmatprep.subr.bf16.mxu0 0
        %9700 = vmatpush1.bf16.msra.mxu0 %v9631
        %9701 = vmatprep.subr.bf16.mxu0 0
        %9702 = vmatpush1.bf16.msra.mxu0 %v9632
        %9703 = vmatprep.subr.bf16.mxu0 0
        %9704 = vmatpush1.bf16.msra.mxu0 %v9633
        %9705 = vmatprep.subr.bf16.mxu0 0
        %9706 = vmatpush1.bf16.msra.mxu0 %v9634
        %9707 = vmatprep.subr.bf16.mxu0 0
        %9708 = vmatpush1.bf16.msra.mxu0 %v9635
        %9709 = vmatprep.subr.bf16.mxu0 0
        %9710 = vmatpush1.bf16.msra.mxu0 %v9636
        %9711 = vmatprep.subr.bf16.mxu0 0
        %9712 = vmatpush1.bf16.msra.mxu0 %v9637
        %9713 = vmatprep.subr.bf16.mxu0 0
        %9714 = vmatpush1.bf16.msra.mxu0 %v9638
        %9715 = vmatprep.subr.bf16.mxu0 0
        %9716 = vmatpush1.bf16.msra.mxu0 %v9639
        %9717 = vmatprep.subr.bf16.mxu0 0
        %9718 = vmatpush1.bf16.msra.mxu0 %v9640
        %9719 = vmatprep.subr.bf16.mxu0 0
        %9720 = vmatpush1.bf16.msra.mxu0 %v9641
        %9721 = vmatprep.subr.bf16.mxu0 0
        %9722 = vmatpush1.bf16.msra.mxu0 %v9642
        %9723 = vmatprep.mubr.bf16.mxu0 %v9431
        %9724 = vmatmul.mubr.bf16.gmra.mrb[0].mxu0 %v9430
        %v9725 = vpop.f32.mrb[0].mxu0
        %v9726 = vadd.f32 %v9498, %v9725
        %v9727 = vpop.f32.mrb[0].mxu0
        %v9728 = vpop.f32.mrb[0].mxu0
        %v9729 = vpop.f32.mrb[0].mxu0
        %9730 = vdwg.mxu0
        %9731 = vmatprep.subr.bf16.mxu0 0
        %9732 = vmatpush1.bf16.msra.mxu0 %v9643
        %9733 = vmatprep.subr.bf16.mxu0 0
        %9734 = vmatpush1.bf16.msra.mxu0 %v9644
        %9735 = vmatprep.subr.bf16.mxu0 0
        %9736 = vmatpush1.bf16.msra.mxu0 %v9645
        %9737 = vmatprep.subr.bf16.mxu0 0
        %9738 = vmatpush1.bf16.msra.mxu0 %v9646
        %9739 = vmatprep.subr.bf16.mxu0 0
        %9740 = vmatpush1.bf16.msra.mxu0 %v9647
        %9741 = vmatprep.subr.bf16.mxu0 0
        %9742 = vmatpush1.bf16.msra.mxu0 %v9648
        %9743 = vmatprep.subr.bf16.mxu0 0
        %9744 = vmatpush1.bf16.msra.mxu0 %v9649
        %9745 = vmatprep.subr.bf16.mxu0 0
        %9746 = vmatpush1.bf16.msra.mxu0 %v9650
        %9747 = vmatprep.subr.bf16.mxu0 0
        %9748 = vmatpush1.bf16.msra.mxu0 %v9651
        %9749 = vmatprep.subr.bf16.mxu0 0
        %9750 = vmatpush1.bf16.msra.mxu0 %v9652
        %9751 = vmatprep.subr.bf16.mxu0 0
        %9752 = vmatpush1.bf16.msra.mxu0 %v9653
        %9753 = vmatprep.subr.bf16.mxu0 0
        %9754 = vmatpush1.bf16.msra.mxu0 %v9654
        %9755 = vmatprep.subr.bf16.mxu0 0
        %9756 = vmatpush1.bf16.msra.mxu0 %v9655
        %9757 = vmatprep.subr.bf16.mxu0 0
        %9758 = vmatpush1.bf16.msra.mxu0 %v9656
        %9759 = vmatprep.subr.bf16.mxu0 0
        %9760 = vmatpush1.bf16.msra.mxu0 %v9657
        %9761 = vmatprep.subr.bf16.mxu0 0
        %9762 = vmatpush1.bf16.msra.mxu0 %v9658
        %9763 = vmatprep.mubr.bf16.mxu0 %v9433
        %9764 = vmatmul.mubr.bf16.gmra.mrb[0].mxu0 %v9432
        %v9765 = vpop.f32.mrb[0].mxu0
        %v9766 = vadd.f32 %v9726, %v9765
        %v9767 = vpop.f32.mrb[0].mxu0
        %v9768 = vpop.f32.mrb[0].mxu0
        %v9769 = vpop.f32.mrb[0].mxu0
        %9770 = vdwg.mxu0
        %v9771 = vtanh.pop %v9766
        %9772 = vst [vmem:[%s432] sm:$0x1] %v9771
        %s9773 = sand.u32 %s313, 1
        %s9774 = scalar_lea.sflag [#allocation3], %s9773
        %s9775 = sand.u32 %s313, 1
        %s9776 = scalar_lea.vmem [#allocation2], %s9775
        // Predicated region
        $region73: #{actor_forward.1} parent=71 // pred_check
          %p9777 = pneg %p323
        $region74: #{actor_forward.1} parent=71 // pred_check_branch
          %9779 = sbr.rel (%p9777) target = $region76
        $region75: #{actor_forward.1} parent=71 // pred_region
          %s9781 = ssub.s32 16, 16
          %9782 = vsyncadd %s9774, %s9781
          %s9783 = smul.addr %s27, 16
          %s9784 = scalar_lea.hbm %s13, %s9783
          %s9786 = sshll.u32 %s9776, 4
          %s9787 = int_to_ptr.vmem [resolvable:$true] %s9786
          %9789 = dma.vmem_to_hbm [thread:$0]  %s9787, 16, %s9784, %s9774
        $region76: #{actor_forward.1} parent=71 // pred_fallthru
          _
      $region72: #{actor_forward.1} parent=5 // pred_fallthru
        _
      %p9790 = scmp.le.s32.totalorder 2, %s22
      // Predicated region
      $region77: #{actor_forward.1} parent=5 // pred_check
        %p9791 = pneg %p9790
      $region78: #{actor_forward.1} parent=5 // pred_check_branch
        %9793 = sbr.rel (%p9791) target = $region80
      $region79: #{actor_forward.1} parent=5 // pred_region
        %s9794 = ssub.s32 %s22, 2
        // Predicated region
        $region81: #{actor_forward.1} parent=79 // pred_check
          %p9795 = pneg %p329
        $region82: #{actor_forward.1} parent=79 // pred_check_branch
          %9797 = sbr.rel (%p9795) target = $region84
        $region83: #{actor_forward.1} parent=79 // pred_region
          %s9798 = sand.u32 %s314, 1
          %s9799 = scalar_lea.sflag [#allocation3], %s9798
          %s9800 = sand.u32 %s314, 1
          %s9801 = scalar_lea.vmem [#allocation2], %s9800
          %9802 = dma.done %s9799, 16
        $region84: #{actor_forward.1} parent=79 // pred_fallthru
          _
      $region80: #{actor_forward.1} parent=5 // pred_fallthru
        _
    $region6: #{actor_forward.1} parent=1 // loop_footer
      %s26 = sadd.s32 1, %s22
    $region7: #{actor_forward.1} parent=1 // loop_footer_branch
      %21 = sbr.rel target = $region3
    $region8: #{actor_forward.1} parent=1 // loop_exit
      _
    %9803 = vsyncpa [#allocation3], 1
    %s9804 = scalar_lea.sflag [#allocation3], 1
    %9805 = vsyncpa %s9804, 1

</llo_original>
